<compile_context>
chip_gen: v5e
topology: v5e:2x2
jax: 0.10.0
libtpu: 0.0.40
codegen_flags: <defaults>
</compile_context>

<pallas_src>
import jax
import jax.numpy as jnp
from jax.experimental import pallas as pl
from jax.experimental.pallas import tpu as pltpu

HIDDEN_DIM = 512
N_LAYERS = 5          # Linear layers per branch
BATCH_TILE = 128      # batch rows per grid step


# ---------------------------------------------------------------------------
# Kernel
# ---------------------------------------------------------------------------
def dqn_kernel(x_ref,
               w0_ref, b0_ref,                      # fused layer 0 (both branches)
               vw1, vw2, vw3, vb1, vb2, vb3,        # value branch, layers 1..3
               aw1, aw2, aw3, ab1, ab2, ab3,        # advantage branch, layers 1..3
               w4_ref, b4_ref,                      # fused (block-diag) layer 4
               out_ref):
    H = HIDDEN_DIM
    n_actions = out_ref.shape[-1]

    # Layer 0: one matmul for both branches (shared input x).
    x = x_ref[...].astype(jnp.bfloat16)
    h0 = jnp.dot(x, w0_ref[...], preferred_element_type=jnp.float32)
    h0 = jnp.maximum(h0 + b0_ref[...], 0.0)
    h_v = h0[:, :H]          # lane slice at a multiple of 128 -> clean
    h_a = h0[:, H:]

    def mid(h, ws, bs):
        # Layers 1..3: bf16 weights/activations, f32 accumulation, ReLU.
        for w_ref, b_ref in zip(ws, bs):
            h = jnp.dot(h.astype(jnp.bfloat16), w_ref[...],
                        preferred_element_type=jnp.float32)
            h = jnp.maximum(h + b_ref[...], 0.0)
        return h

    h_v = mid(h_v, (vw1, vw2, vw3), (vb1, vb2, vb3))
    h_a = mid(h_a, (aw1, aw2, aw3), (ab1, ab2, ab3))

    # Layer 4: block-diagonal fusion -> a single (2H, 2*n_actions) matmul.
    h_cat = jnp.concatenate([h_v, h_a], axis=-1).astype(jnp.bfloat16)
    out_cat = jnp.dot(h_cat, w4_ref[...], preferred_element_type=jnp.float32)
    out_cat = out_cat + b4_ref[...]
    value = out_cat[:, :n_actions]
    advantage = out_cat[:, n_actions:]

    # mean over actions as sum * constant (no runtime divide).
    adv_mean = jnp.sum(advantage, axis=1, keepdims=True) * (1.0 / n_actions)
    out_ref[...] = (value + advantage - adv_mean).astype(out_ref.dtype)


# ---------------------------------------------------------------------------
# Parameter construction / fusion
# ---------------------------------------------------------------------------
def init_branch_params(key, state_dim, n_actions):
    """PyTorch-Linear-style (uniform +/- 1/sqrt(fan_in)) init, f32 master."""
    dims = [state_dim] + [HIDDEN_DIM] * (N_LAYERS - 1) + [n_actions]
    ws, bs = [], []
    for i in range(N_LAYERS):
        key, kw, kb = jax.random.split(key, 3)
        bound = 1.0 / jnp.sqrt(jnp.float32(dims[i]))
        ws.append(jax.random.uniform(kw, (dims[i], dims[i + 1]), jnp.float32,
                                     -bound, bound))
        bs.append(jax.random.uniform(kb, (1, dims[i + 1]), jnp.float32,
                                     -bound, bound))
    return ws, bs, key


def prepare_params(v_ws, v_bs, a_ws, a_bs):
    """Fuse layer 0 (shared x) and layer 4 (block-diag); cast weights to bf16."""
    H = HIDDEN_DIM
    n_actions = v_ws[-1].shape[1]

    w0 = jnp.concatenate([v_ws[0], a_ws[0]], axis=1).astype(jnp.bfloat16)
    b0 = jnp.concatenate([v_bs[0], a_bs[0]], axis=1)                  # f32 bias

    mid_v_w = [w.astype(jnp.bfloat16) for w in v_ws[1:4]]
    mid_a_w = [w.astype(jnp.bfloat16) for w in a_ws[1:4]]
    mid_v_b = list(v_bs[1:4])
    mid_a_b = list(a_bs[1:4])

    w4 = jnp.zeros((2 * H, 2 * n_actions), jnp.float32)
    w4 = w4.at[:H, :n_actions].set(v_ws[4]).at[H:, n_actions:].set(a_ws[4])
    w4 = w4.astype(jnp.bfloat16)
    b4 = jnp.concatenate([v_bs[4], a_bs[4]], axis=1)

    return (w0, b0,
            *mid_v_w, *mid_v_b,
            *mid_a_w, *mid_a_b,
            w4, b4)


# ---------------------------------------------------------------------------
# pallas_call wrapper
# ---------------------------------------------------------------------------
def dqn_forward(x, fused_params):
    B, state_dim = x.shape
    b4 = fused_params[-1]
    n_actions = b4.shape[1] // 2
    H = HIDDEN_DIM

    # Batch tile: pipeline / megacore-shard the batch; weights stay resident.
    tm = BATCH_TILE if (B % BATCH_TILE == 0) else B
    grid = (B // tm,)

    x_spec = pl.BlockSpec((tm, state_dim), lambda i: (i, 0))
    out_spec = pl.BlockSpec((tm, n_actions), lambda i: (i, 0))

    def full_spec(a):
        # Whole-array block, constant index_map -> DMA'd once, kept resident.
        return pl.BlockSpec(a.shape, lambda i: (0,) * a.ndim)

    in_specs = [x_spec] + [full_spec(p) for p in fused_params]

    # Advisory cost estimate (whole call).
    flops = 2 * B * (state_dim * 2 * H + 3 * 2 * H * H + 2 * H * 2 * n_actions)
    bytes_accessed = (sum(int(p.size) * p.dtype.itemsize for p in fused_params)
                      + int(x.size) * x.dtype.itemsize
                      + B * n_actions * 4)

    return pl.pallas_call(
        dqn_kernel,
        out_shape=jax.ShapeDtypeStruct((B, n_actions), jnp.float32),
        grid=grid,
        in_specs=in_specs,
        out_specs=out_spec,
        compiler_params=pltpu.CompilerParams(
            dimension_semantics=("parallel",)),   # v7x: batch tiles across 2 TCs
        cost_estimate=pl.CostEstimate(flops=int(flops), transcendentals=0,
                                      bytes_accessed=int(bytes_accessed)),
    )(x, *fused_params)


# ---------------------------------------------------------------------------
# Pure-JAX references
# ---------------------------------------------------------------------------
def dqn_reference_f32(x, v_ws, v_bs, a_ws, a_bs):
    """Full-f32 reference (original module semantics)."""
    def branch(ws, bs):
        h = x
        for i in range(N_LAYERS):
            h = h @ ws[i] + bs[i]
            if i < N_LAYERS - 1:
                h = jnp.maximum(h, 0.0)
        return h
    value = branch(v_ws, v_bs)
    advantage = branch(a_ws, a_bs)
    return value + advantage - advantage.mean(axis=1, keepdims=True)


def dqn_reference_bf16(x, v_ws, v_bs, a_ws, a_bs):
    """Mirror of the kernel arithmetic (bf16 weights/acts, f32 accumulation)."""
    def branch(ws, bs):
        h = x
        for i in range(N_LAYERS):
            h = jnp.dot(h.astype(jnp.bfloat16), ws[i].astype(jnp.bfloat16),
                        preferred_element_type=jnp.float32) + bs[i]
            if i < N_LAYERS - 1:
                h = jnp.maximum(h, 0.0)
        return h
    value = branch(v_ws, v_bs)
    advantage = branch(a_ws, a_bs)
    n_actions = advantage.shape[1]
    return value + advantage - jnp.sum(advantage, axis=1, keepdims=True) * (1.0 / n_actions)


# ---------------------------------------------------------------------------
if __name__ == "__main__":
    B = 256            # replay-buffer-sized minibatch: amortizes weight DMA
    STATE_DIM = 16
    N_ACTIONS = 8

    key = jax.random.PRNGKey(0)
    key, kx = jax.random.split(key)
    x = jax.random.normal(kx, (B, STATE_DIM), jnp.float32)

    v_ws, v_bs, key = init_branch_params(key, STATE_DIM, N_ACTIONS)
    a_ws, a_bs, key = init_branch_params(key, STATE_DIM, N_ACTIONS)
    fused = prepare_params(v_ws, v_bs, a_ws, a_bs)

    out = jax.block_until_ready(dqn_forward(x, fused))
    assert out.shape == (B, N_ACTIONS)

    # Tight check vs. the bf16-mirror reference (same arithmetic as the kernel).
    ref_bf16 = dqn_reference_bf16(x, v_ws, v_bs, a_ws, a_bs)
    assert jnp.allclose(out, ref_bf16, atol=1e-2, rtol=1e-2), "mismatch vs bf16 mirror"

    # Loose check vs. the original full-f32 module semantics (bf16 weight error).
    ref_f32 = dqn_reference_f32(x, v_ws, v_bs, a_ws, a_bs)
    assert jnp.allclose(out, ref_f32, atol=5e-2, rtol=5e-2), "mismatch vs f32 reference"

    print("KERNEL_OK")
</pallas_src>

<mosaic_0001>
module attributes {stable_mosaic.version = 11 : i64} {
  func.func @dqn_kernel(%arg0: i32, %arg1: memref<128x16xf32, #tpu.memory_space<vmem>>, %arg2: memref<16x1024xbf16, #tpu.memory_space<vmem>>, %arg3: memref<1x1024xf32, #tpu.memory_space<vmem>>, %arg4: memref<512x512xbf16, #tpu.memory_space<vmem>>, %arg5: memref<512x512xbf16, #tpu.memory_space<vmem>>, %arg6: memref<512x512xbf16, #tpu.memory_space<vmem>>, %arg7: memref<1x512xf32, #tpu.memory_space<vmem>>, %arg8: memref<1x512xf32, #tpu.memory_space<vmem>>, %arg9: memref<1x512xf32, #tpu.memory_space<vmem>>, %arg10: memref<512x512xbf16, #tpu.memory_space<vmem>>, %arg11: memref<512x512xbf16, #tpu.memory_space<vmem>>, %arg12: memref<512x512xbf16, #tpu.memory_space<vmem>>, %arg13: memref<1x512xf32, #tpu.memory_space<vmem>>, %arg14: memref<1x512xf32, #tpu.memory_space<vmem>>, %arg15: memref<1x512xf32, #tpu.memory_space<vmem>>, %arg16: memref<1024x16xbf16, #tpu.memory_space<vmem>>, %arg17: memref<1x16xf32, #tpu.memory_space<vmem>>, %arg18: memref<128x8xf32, #tpu.memory_space<vmem>>) attributes {dimension_semantics = [#tpu.dimension_semantics<parallel>], iteration_bounds = array<i64: 2>, scalar_prefetch = 0 : i64, scratch_operands = 0 : i64, tpu.core_type = #tpu.core_type<tc>, window_params = [{transform_indices = @transform_0, window_bounds = array<i64: 128, 16>}, {pipeline_mode = #tpu.pipeline_mode<synchronous>, transform_indices = @transform_1, window_bounds = array<i64: 16, 1024>}, {pipeline_mode = #tpu.pipeline_mode<synchronous>, transform_indices = @transform_2, window_bounds = array<i64: 1, 1024>}, {pipeline_mode = #tpu.pipeline_mode<synchronous>, transform_indices = @transform_3, window_bounds = array<i64: 512, 512>}, {pipeline_mode = #tpu.pipeline_mode<synchronous>, transform_indices = @transform_4, window_bounds = array<i64: 512, 512>}, {pipeline_mode = #tpu.pipeline_mode<synchronous>, transform_indices = @transform_5, window_bounds = array<i64: 512, 512>}, {pipeline_mode = #tpu.pipeline_mode<synchronous>, transform_indices = @transform_6, window_bounds = array<i64: 1, 512>}, {pipeline_mode = #tpu.pipeline_mode<synchronous>, transform_indices = @transform_7, window_bounds = array<i64: 1, 512>}, {pipeline_mode = #tpu.pipeline_mode<synchronous>, transform_indices = @transform_8, window_bounds = array<i64: 1, 512>}, {pipeline_mode = #tpu.pipeline_mode<synchronous>, transform_indices = @transform_9, window_bounds = array<i64: 512, 512>}, {pipeline_mode = #tpu.pipeline_mode<synchronous>, transform_indices = @transform_10, window_bounds = array<i64: 512, 512>}, {pipeline_mode = #tpu.pipeline_mode<synchronous>, transform_indices = @transform_11, window_bounds = array<i64: 512, 512>}, {pipeline_mode = #tpu.pipeline_mode<synchronous>, transform_indices = @transform_12, window_bounds = array<i64: 1, 512>}, {pipeline_mode = #tpu.pipeline_mode<synchronous>, transform_indices = @transform_13, window_bounds = array<i64: 1, 512>}, {pipeline_mode = #tpu.pipeline_mode<synchronous>, transform_indices = @transform_14, window_bounds = array<i64: 1, 512>}, {pipeline_mode = #tpu.pipeline_mode<synchronous>, transform_indices = @transform_15, window_bounds = array<i64: 1024, 16>}, {pipeline_mode = #tpu.pipeline_mode<synchronous>, transform_indices = @transform_16, window_bounds = array<i64: 1, 16>}, {transform_indices = @transform_17, window_bounds = array<i64: 128, 8>}]} {
    %c0 = arith.constant 0 : index
    %c0_0 = arith.constant 0 : index
    %0 = vector.load %arg1[%c0, %c0_0] : memref<128x16xf32, #tpu.memory_space<vmem>>, vector<128x16xf32>
    %1 = arith.truncf %0 : vector<128x16xf32> to vector<128x16xbf16>
    %c0_1 = arith.constant 0 : index
    %c0_2 = arith.constant 0 : index
    %2 = vector.load %arg2[%c0_1, %c0_2] : memref<16x1024xbf16, #tpu.memory_space<vmem>>, vector<16x1024xbf16>
    %cst = arith.constant dense<0.000000e+00> : vector<128x1024xf32>
    %3 = tpu.matmul %1, %2, %cst {dimension_numbers = #tpu.dot_dimension_numbers<[1], [0], [0], [1], [0, 0, 1, 1], [], []>} : vector<128x16xbf16>, vector<16x1024xbf16>, vector<128x1024xf32> -> vector<128x1024xf32>
    %c0_3 = arith.constant 0 : index
    %c0_4 = arith.constant 0 : index
    %4 = vector.load %arg3[%c0_3, %c0_4] : memref<1x1024xf32, #tpu.memory_space<vmem>>, vector<1x1024xf32>
    %5 = vector.broadcast %4 : vector<1x1024xf32> to vector<128x1024xf32>
    %6 = arith.addf %3, %5 : vector<128x1024xf32>
    %cst_5 = arith.constant 0.000000e+00 : f32
    %7 = vector.broadcast %cst_5 : f32 to vector<128x1024xf32>
    %8 = arith.maximumf %6, %7 : vector<128x1024xf32>
    %9 = vector.extract_strided_slice %8 {offsets = [0, 0], sizes = [128, 512], strides = [1, 1]} : vector<128x1024xf32> to vector<128x512xf32>
    %10 = vector.extract_strided_slice %8 {offsets = [0, 512], sizes = [128, 512], strides = [1, 1]} : vector<128x1024xf32> to vector<128x512xf32>
    %11 = arith.truncf %9 : vector<128x512xf32> to vector<128x512xbf16>
    %c0_6 = arith.constant 0 : index
    %c0_7 = arith.constant 0 : index
    %12 = vector.load %arg4[%c0_6, %c0_7] : memref<512x512xbf16, #tpu.memory_space<vmem>>, vector<512x512xbf16>
    %cst_8 = arith.constant dense<0.000000e+00> : vector<128x512xf32>
    %13 = tpu.matmul %11, %12, %cst_8 {dimension_numbers = #tpu.dot_dimension_numbers<[1], [0], [0], [1], [0, 0, 1, 1], [], []>} : vector<128x512xbf16>, vector<512x512xbf16>, vector<128x512xf32> -> vector<128x512xf32>
    %c0_9 = arith.constant 0 : index
    %c0_10 = arith.constant 0 : index
    %14 = vector.load %arg7[%c0_9, %c0_10] : memref<1x512xf32, #tpu.memory_space<vmem>>, vector<1x512xf32>
    %15 = vector.broadcast %14 : vector<1x512xf32> to vector<128x512xf32>
    %16 = arith.addf %13, %15 : vector<128x512xf32>
    %cst_11 = arith.constant 0.000000e+00 : f32
    %17 = vector.broadcast %cst_11 : f32 to vector<128x512xf32>
    %18 = arith.maximumf %16, %17 : vector<128x512xf32>
    %19 = arith.truncf %18 : vector<128x512xf32> to vector<128x512xbf16>
    %c0_12 = arith.constant 0 : index
    %c0_13 = arith.constant 0 : index
    %20 = vector.load %arg5[%c0_12, %c0_13] : memref<512x512xbf16, #tpu.memory_space<vmem>>, vector<512x512xbf16>
    %cst_14 = arith.constant dense<0.000000e+00> : vector<128x512xf32>
    %21 = tpu.matmul %19, %20, %cst_14 {dimension_numbers = #tpu.dot_dimension_numbers<[1], [0], [0], [1], [0, 0, 1, 1], [], []>} : vector<128x512xbf16>, vector<512x512xbf16>, vector<128x512xf32> -> vector<128x512xf32>
    %c0_15 = arith.constant 0 : index
    %c0_16 = arith.constant 0 : index
    %22 = vector.load %arg8[%c0_15, %c0_16] : memref<1x512xf32, #tpu.memory_space<vmem>>, vector<1x512xf32>
    %23 = vector.broadcast %22 : vector<1x512xf32> to vector<128x512xf32>
    %24 = arith.addf %21, %23 : vector<128x512xf32>
    %cst_17 = arith.constant 0.000000e+00 : f32
    %25 = vector.broadcast %cst_17 : f32 to vector<128x512xf32>
    %26 = arith.maximumf %24, %25 : vector<128x512xf32>
    %27 = arith.truncf %26 : vector<128x512xf32> to vector<128x512xbf16>
    %c0_18 = arith.constant 0 : index
    %c0_19 = arith.constant 0 : index
    %28 = vector.load %arg6[%c0_18, %c0_19] : memref<512x512xbf16, #tpu.memory_space<vmem>>, vector<512x512xbf16>
    %cst_20 = arith.constant dense<0.000000e+00> : vector<128x512xf32>
    %29 = tpu.matmul %27, %28, %cst_20 {dimension_numbers = #tpu.dot_dimension_numbers<[1], [0], [0], [1], [0, 0, 1, 1], [], []>} : vector<128x512xbf16>, vector<512x512xbf16>, vector<128x512xf32> -> vector<128x512xf32>
    %c0_21 = arith.constant 0 : index
    %c0_22 = arith.constant 0 : index
    %30 = vector.load %arg9[%c0_21, %c0_22] : memref<1x512xf32, #tpu.memory_space<vmem>>, vector<1x512xf32>
    %31 = vector.broadcast %30 : vector<1x512xf32> to vector<128x512xf32>
    %32 = arith.addf %29, %31 : vector<128x512xf32>
    %cst_23 = arith.constant 0.000000e+00 : f32
    %33 = vector.broadcast %cst_23 : f32 to vector<128x512xf32>
    %34 = arith.maximumf %32, %33 : vector<128x512xf32>
    %35 = arith.truncf %10 : vector<128x512xf32> to vector<128x512xbf16>
    %c0_24 = arith.constant 0 : index
    %c0_25 = arith.constant 0 : index
    %36 = vector.load %arg10[%c0_24, %c0_25] : memref<512x512xbf16, #tpu.memory_space<vmem>>, vector<512x512xbf16>
    %cst_26 = arith.constant dense<0.000000e+00> : vector<128x512xf32>
    %37 = tpu.matmul %35, %36, %cst_26 {dimension_numbers = #tpu.dot_dimension_numbers<[1], [0], [0], [1], [0, 0, 1, 1], [], []>} : vector<128x512xbf16>, vector<512x512xbf16>, vector<128x512xf32> -> vector<128x512xf32>
    %c0_27 = arith.constant 0 : index
    %c0_28 = arith.constant 0 : index
    %38 = vector.load %arg13[%c0_27, %c0_28] : memref<1x512xf32, #tpu.memory_space<vmem>>, vector<1x512xf32>
    %39 = vector.broadcast %38 : vector<1x512xf32> to vector<128x512xf32>
    %40 = arith.addf %37, %39 : vector<128x512xf32>
    %cst_29 = arith.constant 0.000000e+00 : f32
    %41 = vector.broadcast %cst_29 : f32 to vector<128x512xf32>
    %42 = arith.maximumf %40, %41 : vector<128x512xf32>
    %43 = arith.truncf %42 : vector<128x512xf32> to vector<128x512xbf16>
    %c0_30 = arith.constant 0 : index
    %c0_31 = arith.constant 0 : index
    %44 = vector.load %arg11[%c0_30, %c0_31] : memref<512x512xbf16, #tpu.memory_space<vmem>>, vector<512x512xbf16>
    %cst_32 = arith.constant dense<0.000000e+00> : vector<128x512xf32>
    %45 = tpu.matmul %43, %44, %cst_32 {dimension_numbers = #tpu.dot_dimension_numbers<[1], [0], [0], [1], [0, 0, 1, 1], [], []>} : vector<128x512xbf16>, vector<512x512xbf16>, vector<128x512xf32> -> vector<128x512xf32>
    %c0_33 = arith.constant 0 : index
    %c0_34 = arith.constant 0 : index
    %46 = vector.load %arg14[%c0_33, %c0_34] : memref<1x512xf32, #tpu.memory_space<vmem>>, vector<1x512xf32>
    %47 = vector.broadcast %46 : vector<1x512xf32> to vector<128x512xf32>
    %48 = arith.addf %45, %47 : vector<128x512xf32>
    %cst_35 = arith.constant 0.000000e+00 : f32
    %49 = vector.broadcast %cst_35 : f32 to vector<128x512xf32>
    %50 = arith.maximumf %48, %49 : vector<128x512xf32>
    %51 = arith.truncf %50 : vector<128x512xf32> to vector<128x512xbf16>
    %c0_36 = arith.constant 0 : index
    %c0_37 = arith.constant 0 : index
    %52 = vector.load %arg12[%c0_36, %c0_37] : memref<512x512xbf16, #tpu.memory_space<vmem>>, vector<512x512xbf16>
    %cst_38 = arith.constant dense<0.000000e+00> : vector<128x512xf32>
    %53 = tpu.matmul %51, %52, %cst_38 {dimension_numbers = #tpu.dot_dimension_numbers<[1], [0], [0], [1], [0, 0, 1, 1], [], []>} : vector<128x512xbf16>, vector<512x512xbf16>, vector<128x512xf32> -> vector<128x512xf32>
    %c0_39 = arith.constant 0 : index
    %c0_40 = arith.constant 0 : index
    %54 = vector.load %arg15[%c0_39, %c0_40] : memref<1x512xf32, #tpu.memory_space<vmem>>, vector<1x512xf32>
    %55 = vector.broadcast %54 : vector<1x512xf32> to vector<128x512xf32>
    %56 = arith.addf %53, %55 : vector<128x512xf32>
    %cst_41 = arith.constant 0.000000e+00 : f32
    %57 = vector.broadcast %cst_41 : f32 to vector<128x512xf32>
    %58 = arith.maximumf %56, %57 : vector<128x512xf32>
    %59 = tpu.concatenate %34, %58 in 1 : vector<128x512xf32>, vector<128x512xf32> -> vector<128x1024xf32>
    %60 = arith.truncf %59 : vector<128x1024xf32> to vector<128x1024xbf16>
    %c0_42 = arith.constant 0 : index
    %c0_43 = arith.constant 0 : index
    %61 = vector.load %arg16[%c0_42, %c0_43] : memref<1024x16xbf16, #tpu.memory_space<vmem>>, vector<1024x16xbf16>
    %cst_44 = arith.constant dense<0.000000e+00> : vector<128x16xf32>
    %62 = tpu.matmul %60, %61, %cst_44 {dimension_numbers = #tpu.dot_dimension_numbers<[1], [0], [0], [1], [0, 0, 1, 1], [], []>} : vector<128x1024xbf16>, vector<1024x16xbf16>, vector<128x16xf32> -> vector<128x16xf32>
    %c0_45 = arith.constant 0 : index
    %c0_46 = arith.constant 0 : index
    %63 = vector.load %arg17[%c0_45, %c0_46] : memref<1x16xf32, #tpu.memory_space<vmem>>, vector<1x16xf32>
    %64 = vector.broadcast %63 : vector<1x16xf32> to vector<128x16xf32>
    %65 = arith.addf %62, %64 : vector<128x16xf32>
    %66 = vector.extract_strided_slice %65 {offsets = [0, 0], sizes = [128, 8], strides = [1, 1]} : vector<128x16xf32> to vector<128x8xf32>
    %67 = vector.extract_strided_slice %65 {offsets = [0, 8], sizes = [128, 8], strides = [1, 1]} : vector<128x16xf32> to vector<128x8xf32>
    %cst_47 = arith.constant dense<0.000000e+00> : vector<128xf32>
    %68 = vector.multi_reduction <add>, %67, %cst_47 [1] : vector<128x8xf32> to vector<128xf32>
    %69 = vector.shape_cast %68 : vector<128xf32> to vector<128x1xf32>
    %cst_48 = arith.constant 1.250000e-01 : f32
    %70 = vector.broadcast %cst_48 : f32 to vector<128x1xf32>
    %71 = arith.mulf %69, %70 : vector<128x1xf32>
    %72 = arith.addf %66, %67 : vector<128x8xf32>
    %73 = vector.broadcast %71 : vector<128x1xf32> to vector<128x8xf32>
    %74 = arith.subf %72, %73 : vector<128x8xf32>
    %c0_49 = arith.constant 0 : index
    %c0_50 = arith.constant 0 : index
    %75 = vector.load %arg18[%c0_49, %c0_50] : memref<128x8xf32, #tpu.memory_space<vmem>>, vector<128x8xf32>
    tpu.vector_store %arg18[%c0_49, %c0_50], %74 {strides = array<i32>} : memref<128x8xf32, #tpu.memory_space<vmem>>, vector<128x8xf32>,
    return
  }
  func.func @transform_0(%arg0: i32) -> (i32, i32) {
    %c0_i32 = arith.constant 0 : i32
    %c0_i32_0 = arith.constant 0 : i32
    return %arg0, %c0_i32 : i32, i32
  }
  func.func @transform_1(%arg0: i32) -> (i32, i32) {
    %c0_i32 = arith.constant 0 : i32
    %c0_i32_0 = arith.constant 0 : i32
    %c0_i32_1 = arith.constant 0 : i32
    return %c0_i32, %c0_i32_0 : i32, i32
  }
  func.func @transform_2(%arg0: i32) -> (i32, i32) {
    %c0_i32 = arith.constant 0 : i32
    %c0_i32_0 = arith.constant 0 : i32
    %c0_i32_1 = arith.constant 0 : i32
    return %c0_i32, %c0_i32_0 : i32, i32
  }
  func.func @transform_3(%arg0: i32) -> (i32, i32) {
    %c0_i32 = arith.constant 0 : i32
    %c0_i32_0 = arith.constant 0 : i32
    %c0_i32_1 = arith.constant 0 : i32
    return %c0_i32, %c0_i32_0 : i32, i32
  }
  func.func @transform_4(%arg0: i32) -> (i32, i32) {
    %c0_i32 = arith.constant 0 : i32
    %c0_i32_0 = arith.constant 0 : i32
    %c0_i32_1 = arith.constant 0 : i32
    return %c0_i32, %c0_i32_0 : i32, i32
  }
  func.func @transform_5(%arg0: i32) -> (i32, i32) {
    %c0_i32 = arith.constant 0 : i32
    %c0_i32_0 = arith.constant 0 : i32
    %c0_i32_1 = arith.constant 0 : i32
    return %c0_i32, %c0_i32_0 : i32, i32
  }
  func.func @transform_6(%arg0: i32) -> (i32, i32) {
    %c0_i32 = arith.constant 0 : i32
    %c0_i32_0 = arith.constant 0 : i32
    %c0_i32_1 = arith.constant 0 : i32
    return %c0_i32, %c0_i32_0 : i32, i32
  }
  func.func @transform_7(%arg0: i32) -> (i32, i32) {
    %c0_i32 = arith.constant 0 : i32
    %c0_i32_0 = arith.constant 0 : i32
    %c0_i32_1 = arith.constant 0 : i32
    return %c0_i32, %c0_i32_0 : i32, i32
  }
  func.func @transform_8(%arg0: i32) -> (i32, i32) {
    %c0_i32 = arith.constant 0 : i32
    %c0_i32_0 = arith.constant 0 : i32
    %c0_i32_1 = arith.constant 0 : i32
    return %c0_i32, %c0_i32_0 : i32, i32
  }
  func.func @transform_9(%arg0: i32) -> (i32, i32) {
    %c0_i32 = arith.constant 0 : i32
    %c0_i32_0 = arith.constant 0 : i32
    %c0_i32_1 = arith.constant 0 : i32
    return %c0_i32, %c0_i32_0 : i32, i32
  }
  func.func @transform_10(%arg0: i32) -> (i32, i32) {
    %c0_i32 = arith.constant 0 : i32
    %c0_i32_0 = arith.constant 0 : i32
    %c0_i32_1 = arith.constant 0 : i32
    return %c0_i32, %c0_i32_0 : i32, i32
  }
  func.func @transform_11(%arg0: i32) -> (i32, i32) {
    %c0_i32 = arith.constant 0 : i32
    %c0_i32_0 = arith.constant 0 : i32
    %c0_i32_1 = arith.constant 0 : i32
    return %c0_i32, %c0_i32_0 : i32, i32
  }
  func.func @transform_12(%arg0: i32) -> (i32, i32) {
    %c0_i32 = arith.constant 0 : i32
    %c0_i32_0 = arith.constant 0 : i32
    %c0_i32_1 = arith.constant 0 : i32
    return %c0_i32, %c0_i32_0 : i32, i32
  }
  func.func @transform_13(%arg0: i32) -> (i32, i32) {
    %c0_i32 = arith.constant 0 : i32
    %c0_i32_0 = arith.constant 0 : i32
    %c0_i32_1 = arith.constant 0 : i32
    return %c0_i32, %c0_i32_0 : i32, i32
  }
  func.func @transform_14(%arg0: i32) -> (i32, i32) {
    %c0_i32 = arith.constant 0 : i32
    %c0_i32_0 = arith.constant 0 : i32
    %c0_i32_1 = arith.constant 0 : i32
    return %c0_i32, %c0_i32_0 : i32, i32
  }
  func.func @transform_15(%arg0: i32) -> (i32, i32) {
    %c0_i32 = arith.constant 0 : i32
    %c0_i32_0 = arith.constant 0 : i32
    %c0_i32_1 = arith.constant 0 : i32
    return %c0_i32, %c0_i32_0 : i32, i32
  }
  func.func @transform_16(%arg0: i32) -> (i32, i32) {
    %c0_i32 = arith.constant 0 : i32
    %c0_i32_0 = arith.constant 0 : i32
    %c0_i32_1 = arith.constant 0 : i32
    return %c0_i32, %c0_i32_0 : i32, i32
  }
  func.func @transform_17(%arg0: i32) -> (i32, i32) {
    %c0_i32 = arith.constant 0 : i32
    %c0_i32_0 = arith.constant 0 : i32
    return %arg0, %c0_i32 : i32, i32
  }
}

</mosaic_0001>

<llo_original>
// kernel: tpu_custom_call.1
$region0: #{tpu_custom_call.1}
  #allocation0 [shape = 'u32[]', space=smem, size = 0x4, offset = 0x4, fixed_abs, tag = 'smem constant byte address 0x4 - core index']
  #allocation1 [shape = 'u32[72,128]{1,0:T(1,128)}', space=vmem, size = 0x9000, scoped, tag = 'internal scratch']
  %s0 = inlined_call_operand.vmem [shape: f32[256,16], index: 0, kind: input, shape index: {}]
  %s1 = inlined_call_operand.vmem [shape: bf16[16,1024], index: 1, kind: input, shape index: {}]
  %s2 = inlined_call_operand.vmem [shape: f32[1,1024], index: 2, kind: input, shape index: {}]
  %s3 = inlined_call_operand.hbm [shape: bf16[512,512], index: 3, kind: input, shape index: {}]
  %s4 = inlined_call_operand.hbm [shape: bf16[512,512], index: 4, kind: input, shape index: {}]
  %s5 = inlined_call_operand.hbm [shape: bf16[512,512], index: 5, kind: input, shape index: {}]
  %s6 = inlined_call_operand.vmem [shape: f32[1,512], index: 6, kind: input, shape index: {}]
  %s7 = inlined_call_operand.vmem [shape: f32[1,512], index: 7, kind: input, shape index: {}]
  %s8 = inlined_call_operand.vmem [shape: f32[1,512], index: 8, kind: input, shape index: {}]
  %s9 = inlined_call_operand.hbm [shape: bf16[512,512], index: 9, kind: input, shape index: {}]
  %s10 = inlined_call_operand.hbm [shape: bf16[512,512], index: 10, kind: input, shape index: {}]
  %s11 = inlined_call_operand.hbm [shape: bf16[512,512], index: 11, kind: input, shape index: {}]
  %s12 = inlined_call_operand.vmem [shape: f32[1,512], index: 12, kind: input, shape index: {}]
  %s13 = inlined_call_operand.vmem [shape: f32[1,512], index: 13, kind: input, shape index: {}]
  %s14 = inlined_call_operand.vmem [shape: f32[1,512], index: 14, kind: input, shape index: {}]
  %s15 = inlined_call_operand.vmem [shape: bf16[1024,16], index: 15, kind: input, shape index: {}]
  %s16 = inlined_call_operand.vmem [shape: f32[1,16], index: 16, kind: input, shape index: {}]
  %s17 = inlined_call_operand.vmem [shape: f32[256,8], index: 17, kind: output, shape index: {}]
  %s18 = sld [smem:[#allocation0]]
  $region125: #{tpu_custom_call.1} parent=0
    _
  %s20 = ssub.s32 1, %s18
  %s21 = scalar_select 0, %s20, %s18
  $region1: #{tpu_custom_call.1} parent=0
    #allocation2 [shape = 'u8[524288]{0}', space=vmem, size = 0x80000, scoped, tag = 'input window, operand 3, single buffered']
    #allocation3 [shape = 's32[2]{0}', space=sflag, size = 0x8, scoped, tag = 'scoped memory for tpu_custom_call.1']
    #allocation4 [shape = 'u8[524288]{0}', space=vmem, size = 0x80000, scoped, tag = 'input window, operand 4, single buffered']
    #allocation5 [shape = 's32[1]{0}', space=sflag, size = 0x4, scoped, tag = 'scoped memory for tpu_custom_call.1']
    #allocation6 [shape = 'u8[524288]{0}', space=vmem, size = 0x80000, scoped, tag = 'input window, operand 5, single buffered']
    #allocation7 [shape = 'u8[524288]{0}', space=vmem, size = 0x80000, scoped, tag = 'input window, operand 9, single buffered']
    #allocation8 [shape = 's32[1]{0}', space=sflag, size = 0x4, scoped, tag = 'scoped memory for tpu_custom_call.1']
    #allocation9 [shape = 'u8[524288]{0}', space=vmem, size = 0x80000, scoped, tag = 'input window, operand 10, single buffered']
    #allocation10 [shape = 'u8[524288]{0}', space=vmem, size = 0x80000, scoped, tag = 'input window, operand 11, single buffered']
    #allocation11 [shape = 's32[1]{0}', space=sflag, size = 0x4, scoped, tag = 'scoped memory for tpu_custom_call.1']
    %22 = vsyncpa [#allocation3], 0
    %23 = vsyncpa [#allocation5], 0
    %24 = vsyncpa [#allocation8], 0
    %25 = vsyncpa [#allocation11], 0
    loop: start=0, step=1, limit=4
    $region2: #{tpu_custom_call.1} parent=1 // loop_pre_header
      _
    $region3: #{tpu_custom_call.1} parent=1 // loop_header
      %s27 = sphi 0, %s31
      %p28 = scmp.ge.s32.totalorder %s27, 4
      %s37 = sphi 0, %s39
      %s40 = sphi 0, %s37
      %s41 = sphi 0, %s40
      %s57 = sphi 0, %s41
      %s61 = sphi 0, %s61
      %s63 = sphi 0, %s61
      %s64 = sphi 0, %s63
      %s78 = sphi 0, %s64
      %s82 = sphi 0, %s82
      %s84 = sphi 0, %s82
      %s85 = sphi 0, %s84
      %s99 = sphi 0, %s85
      %s103 = sphi 0, %s103
      %s105 = sphi 0, %s103
      %s106 = sphi 0, %s105
      %s120 = sphi 0, %s106
      %s124 = sphi 0, %s124
      %s126 = sphi 0, %s124
      %s127 = sphi 0, %s126
      %s141 = sphi 0, %s127
      %s145 = sphi 0, %s145
      %s147 = sphi 0, %s145
      %s148 = sphi 0, %s147
      %s162 = sphi 0, %s148
      %s166 = sphi 0, %s166
      %s168 = sphi 0, %s166
      %s169 = sphi 0, %s168
      %s183 = sphi 0, %s169
      %s187 = sphi 0, %s187
      %s189 = sphi 0, %s187
      %s190 = sphi 0, %s189
      %s204 = sphi 0, %s190
      %s208 = sphi 0, %s208
      %s210 = sphi 0, %s208
      %s211 = sphi 0, %s210
      %s225 = sphi 0, %s211
      %s229 = sphi 0, %s229
      %s231 = sphi 0, %s229
      %s232 = sphi 0, %s231
      %s246 = sphi 0, %s232
      %s250 = sphi 0, %s250
      %s252 = sphi 0, %s250
      %s253 = sphi 0, %s252
      %s267 = sphi 0, %s253
      %s271 = sphi 0, %s271
      %s273 = sphi 0, %s271
      %s274 = sphi 0, %s273
      %s288 = sphi 0, %s274
      %s292 = sphi 0, %s292
      %s294 = sphi 0, %s292
      %s295 = sphi 0, %s294
      %s309 = sphi 0, %s295
      %s313 = sphi 0, %s313
      %s315 = sphi 0, %s313
      %s316 = sphi 0, %s315
      %s330 = sphi 0, %s316
      %s334 = sphi 0, %s334
      %s336 = sphi 0, %s334
      %s337 = sphi 0, %s336
      %s351 = sphi 0, %s337
      %s355 = sphi 0, %s355
      %s357 = sphi 0, %s355
      %s358 = sphi 0, %s357
      %s372 = sphi 0, %s358
      %s376 = sphi 0, %s376
      %s378 = sphi 0, %s376
      %s379 = sphi 0, %s378
      %s393 = sphi 0, %s379
      %s399 = sphi 0, %s401
      %s402 = sphi 0, %s399
      %s403 = sphi 0, %s402
      %s419 = sphi 0, %s403
    $region4: #{tpu_custom_call.1} parent=1 // loop_header_branch
      %30 = sbr.rel (%p28) target = $region8
    $region5: #{tpu_custom_call.1} parent=1 // loop_body
      %s32 = ssub.s32 %s27, 1
      %s33 = ssub.s32 %s27, 2
      %s34 = sadd.s32 %s27, 1
      %s35 = ssub.s32 %s27, %s34
      %p36 = scmp.eq.s32.totalorder %s35, 0
      %s38 = sadd.s32 %s37, 1
      %s39 = scalar_select %p36, %s37, %s38
      %p42 = pneg %p36
      %p43 = scmp.eq.s32.totalorder %s27, 1
      %p44 = por %p42, %p43
      %p45 = scmp.ne.s32.totalorder %s37, %s40
      %p46 = scmp.eq.s32.totalorder %s27, 0
      %p47 = por %p45, %p46
      %p48 = scmp.ne.s32.totalorder %s37, %s40
      %p49 = scmp.eq.s32.totalorder %s32, 1
      %p50 = por %p48, %p49
      %p51 = scmp.ne.s32.totalorder %s40, %s41
      %p52 = scmp.eq.s32.totalorder %s32, 0
      %p53 = por %p51, %p52
      %p54 = scmp.ne.s32.totalorder %s40, %s41
      %p55 = scmp.eq.s32.totalorder %s33, 1
      %p56 = por %p54, %p55
      %p58 = scmp.ne.s32.totalorder %s41, %s57
      %p59 = scmp.eq.s32.totalorder %s33, 0
      %p60 = por %p58, %p59
      %s62 = sadd.s32 %s61, 1
      %p65 = scmp.eq.s32.totalorder %s27, 1
      %p66 = scmp.ne.s32.totalorder %s61, %s63
      %p67 = scmp.eq.s32.totalorder %s27, 0
      %p68 = por %p66, %p67
      %p69 = scmp.ne.s32.totalorder %s61, %s63
      %p70 = scmp.eq.s32.totalorder %s32, 1
      %p71 = por %p69, %p70
      %p72 = scmp.ne.s32.totalorder %s63, %s64
      %p73 = scmp.eq.s32.totalorder %s32, 0
      %p74 = por %p72, %p73
      %p75 = scmp.ne.s32.totalorder %s63, %s64
      %p76 = scmp.eq.s32.totalorder %s33, 1
      %p77 = por %p75, %p76
      %p79 = scmp.ne.s32.totalorder %s64, %s78
      %p80 = scmp.eq.s32.totalorder %s33, 0
      %p81 = por %p79, %p80
      %s83 = sadd.s32 %s82, 1
      %p86 = scmp.eq.s32.totalorder %s27, 1
      %p87 = scmp.ne.s32.totalorder %s82, %s84
      %p88 = scmp.eq.s32.totalorder %s27, 0
      %p89 = por %p87, %p88
      %p90 = scmp.ne.s32.totalorder %s82, %s84
      %p91 = scmp.eq.s32.totalorder %s32, 1
      %p92 = por %p90, %p91
      %p93 = scmp.ne.s32.totalorder %s84, %s85
      %p94 = scmp.eq.s32.totalorder %s32, 0
      %p95 = por %p93, %p94
      %p96 = scmp.ne.s32.totalorder %s84, %s85
      %p97 = scmp.eq.s32.totalorder %s33, 1
      %p98 = por %p96, %p97
      %p100 = scmp.ne.s32.totalorder %s85, %s99
      %p101 = scmp.eq.s32.totalorder %s33, 0
      %p102 = por %p100, %p101
      %s104 = sadd.s32 %s103, 1
      %p107 = scmp.eq.s32.totalorder %s27, 1
      %p108 = scmp.ne.s32.totalorder %s103, %s105
      %p109 = scmp.eq.s32.totalorder %s27, 0
      %p110 = por %p108, %p109
      %p111 = scmp.ne.s32.totalorder %s103, %s105
      %p112 = scmp.eq.s32.totalorder %s32, 1
      %p113 = por %p111, %p112
      %p114 = scmp.ne.s32.totalorder %s105, %s106
      %p115 = scmp.eq.s32.totalorder %s32, 0
      %p116 = por %p114, %p115
      %p117 = scmp.ne.s32.totalorder %s105, %s106
      %p118 = scmp.eq.s32.totalorder %s33, 1
      %p119 = por %p117, %p118
      %p121 = scmp.ne.s32.totalorder %s106, %s120
      %p122 = scmp.eq.s32.totalorder %s33, 0
      %p123 = por %p121, %p122
      %s125 = sadd.s32 %s124, 1
      %p128 = scmp.eq.s32.totalorder %s27, 1
      %p129 = scmp.ne.s32.totalorder %s124, %s126
      %p130 = scmp.eq.s32.totalorder %s27, 0
      %p131 = por %p129, %p130
      %p132 = scmp.ne.s32.totalorder %s124, %s126
      %p133 = scmp.eq.s32.totalorder %s32, 1
      %p134 = por %p132, %p133
      %p135 = scmp.ne.s32.totalorder %s126, %s127
      %p136 = scmp.eq.s32.totalorder %s32, 0
      %p137 = por %p135, %p136
      %p138 = scmp.ne.s32.totalorder %s126, %s127
      %p139 = scmp.eq.s32.totalorder %s33, 1
      %p140 = por %p138, %p139
      %p142 = scmp.ne.s32.totalorder %s127, %s141
      %p143 = scmp.eq.s32.totalorder %s33, 0
      %p144 = por %p142, %p143
      %s146 = sadd.s32 %s145, 1
      %p149 = scmp.eq.s32.totalorder %s27, 1
      %p150 = scmp.ne.s32.totalorder %s145, %s147
      %p151 = scmp.eq.s32.totalorder %s27, 0
      %p152 = por %p150, %p151
      %p153 = scmp.ne.s32.totalorder %s145, %s147
      %p154 = scmp.eq.s32.totalorder %s32, 1
      %p155 = por %p153, %p154
      %p156 = scmp.ne.s32.totalorder %s147, %s148
      %p157 = scmp.eq.s32.totalorder %s32, 0
      %p158 = por %p156, %p157
      %p159 = scmp.ne.s32.totalorder %s147, %s148
      %p160 = scmp.eq.s32.totalorder %s33, 1
      %p161 = por %p159, %p160
      %p163 = scmp.ne.s32.totalorder %s148, %s162
      %p164 = scmp.eq.s32.totalorder %s33, 0
      %p165 = por %p163, %p164
      %s167 = sadd.s32 %s166, 1
      %p170 = scmp.eq.s32.totalorder %s27, 1
      %p171 = scmp.ne.s32.totalorder %s166, %s168
      %p172 = scmp.eq.s32.totalorder %s27, 0
      %p173 = por %p171, %p172
      %p174 = scmp.ne.s32.totalorder %s166, %s168
      %p175 = scmp.eq.s32.totalorder %s32, 1
      %p176 = por %p174, %p175
      %p177 = scmp.ne.s32.totalorder %s168, %s169
      %p178 = scmp.eq.s32.totalorder %s32, 0
      %p179 = por %p177, %p178
      %p180 = scmp.ne.s32.totalorder %s168, %s169
      %p181 = scmp.eq.s32.totalorder %s33, 1
      %p182 = por %p180, %p181
      %p184 = scmp.ne.s32.totalorder %s169, %s183
      %p185 = scmp.eq.s32.totalorder %s33, 0
      %p186 = por %p184, %p185
      %s188 = sadd.s32 %s187, 1
      %p191 = scmp.eq.s32.totalorder %s27, 1
      %p192 = scmp.ne.s32.totalorder %s187, %s189
      %p193 = scmp.eq.s32.totalorder %s27, 0
      %p194 = por %p192, %p193
      %p195 = scmp.ne.s32.totalorder %s187, %s189
      %p196 = scmp.eq.s32.totalorder %s32, 1
      %p197 = por %p195, %p196
      %p198 = scmp.ne.s32.totalorder %s189, %s190
      %p199 = scmp.eq.s32.totalorder %s32, 0
      %p200 = por %p198, %p199
      %p201 = scmp.ne.s32.totalorder %s189, %s190
      %p202 = scmp.eq.s32.totalorder %s33, 1
      %p203 = por %p201, %p202
      %p205 = scmp.ne.s32.totalorder %s190, %s204
      %p206 = scmp.eq.s32.totalorder %s33, 0
      %p207 = por %p205, %p206
      %s209 = sadd.s32 %s208, 1
      %p212 = scmp.eq.s32.totalorder %s27, 1
      %p213 = scmp.ne.s32.totalorder %s208, %s210
      %p214 = scmp.eq.s32.totalorder %s27, 0
      %p215 = por %p213, %p214
      %p216 = scmp.ne.s32.totalorder %s208, %s210
      %p217 = scmp.eq.s32.totalorder %s32, 1
      %p218 = por %p216, %p217
      %p219 = scmp.ne.s32.totalorder %s210, %s211
      %p220 = scmp.eq.s32.totalorder %s32, 0
      %p221 = por %p219, %p220
      %p222 = scmp.ne.s32.totalorder %s210, %s211
      %p223 = scmp.eq.s32.totalorder %s33, 1
      %p224 = por %p222, %p223
      %p226 = scmp.ne.s32.totalorder %s211, %s225
      %p227 = scmp.eq.s32.totalorder %s33, 0
      %p228 = por %p226, %p227
      %s230 = sadd.s32 %s229, 1
      %p233 = scmp.eq.s32.totalorder %s27, 1
      %p234 = scmp.ne.s32.totalorder %s229, %s231
      %p235 = scmp.eq.s32.totalorder %s27, 0
      %p236 = por %p234, %p235
      %p237 = scmp.ne.s32.totalorder %s229, %s231
      %p238 = scmp.eq.s32.totalorder %s32, 1
      %p239 = por %p237, %p238
      %p240 = scmp.ne.s32.totalorder %s231, %s232
      %p241 = scmp.eq.s32.totalorder %s32, 0
      %p242 = por %p240, %p241
      %p243 = scmp.ne.s32.totalorder %s231, %s232
      %p244 = scmp.eq.s32.totalorder %s33, 1
      %p245 = por %p243, %p244
      %p247 = scmp.ne.s32.totalorder %s232, %s246
      %p248 = scmp.eq.s32.totalorder %s33, 0
      %p249 = por %p247, %p248
      %s251 = sadd.s32 %s250, 1
      %p254 = scmp.eq.s32.totalorder %s27, 1
      %p255 = scmp.ne.s32.totalorder %s250, %s252
      %p256 = scmp.eq.s32.totalorder %s27, 0
      %p257 = por %p255, %p256
      %p258 = scmp.ne.s32.totalorder %s250, %s252
      %p259 = scmp.eq.s32.totalorder %s32, 1
      %p260 = por %p258, %p259
      %p261 = scmp.ne.s32.totalorder %s252, %s253
      %p262 = scmp.eq.s32.totalorder %s32, 0
      %p263 = por %p261, %p262
      %p264 = scmp.ne.s32.totalorder %s252, %s253
      %p265 = scmp.eq.s32.totalorder %s33, 1
      %p266 = por %p264, %p265
      %p268 = scmp.ne.s32.totalorder %s253, %s267
      %p269 = scmp.eq.s32.totalorder %s33, 0
      %p270 = por %p268, %p269
      %s272 = sadd.s32 %s271, 1
      %p275 = scmp.eq.s32.totalorder %s27, 1
      %p276 = scmp.ne.s32.totalorder %s271, %s273
      %p277 = scmp.eq.s32.totalorder %s27, 0
      %p278 = por %p276, %p277
      %p279 = scmp.ne.s32.totalorder %s271, %s273
      %p280 = scmp.eq.s32.totalorder %s32, 1
      %p281 = por %p279, %p280
      %p282 = scmp.ne.s32.totalorder %s273, %s274
      %p283 = scmp.eq.s32.totalorder %s32, 0
      %p284 = por %p282, %p283
      %p285 = scmp.ne.s32.totalorder %s273, %s274
      %p286 = scmp.eq.s32.totalorder %s33, 1
      %p287 = por %p285, %p286
      %p289 = scmp.ne.s32.totalorder %s274, %s288
      %p290 = scmp.eq.s32.totalorder %s33, 0
      %p291 = por %p289, %p290
      %s293 = sadd.s32 %s292, 1
      %p296 = scmp.eq.s32.totalorder %s27, 1
      %p297 = scmp.ne.s32.totalorder %s292, %s294
      %p298 = scmp.eq.s32.totalorder %s27, 0
      %p299 = por %p297, %p298
      %p300 = scmp.ne.s32.totalorder %s292, %s294
      %p301 = scmp.eq.s32.totalorder %s32, 1
      %p302 = por %p300, %p301
      %p303 = scmp.ne.s32.totalorder %s294, %s295
      %p304 = scmp.eq.s32.totalorder %s32, 0
      %p305 = por %p303, %p304
      %p306 = scmp.ne.s32.totalorder %s294, %s295
      %p307 = scmp.eq.s32.totalorder %s33, 1
      %p308 = por %p306, %p307
      %p310 = scmp.ne.s32.totalorder %s295, %s309
      %p311 = scmp.eq.s32.totalorder %s33, 0
      %p312 = por %p310, %p311
      %s314 = sadd.s32 %s313, 1
      %p317 = scmp.eq.s32.totalorder %s27, 1
      %p318 = scmp.ne.s32.totalorder %s313, %s315
      %p319 = scmp.eq.s32.totalorder %s27, 0
      %p320 = por %p318, %p319
      %p321 = scmp.ne.s32.totalorder %s313, %s315
      %p322 = scmp.eq.s32.totalorder %s32, 1
      %p323 = por %p321, %p322
      %p324 = scmp.ne.s32.totalorder %s315, %s316
      %p325 = scmp.eq.s32.totalorder %s32, 0
      %p326 = por %p324, %p325
      %p327 = scmp.ne.s32.totalorder %s315, %s316
      %p328 = scmp.eq.s32.totalorder %s33, 1
      %p329 = por %p327, %p328
      %p331 = scmp.ne.s32.totalorder %s316, %s330
      %p332 = scmp.eq.s32.totalorder %s33, 0
      %p333 = por %p331, %p332
      %s335 = sadd.s32 %s334, 1
      %p338 = scmp.eq.s32.totalorder %s27, 1
      %p339 = scmp.ne.s32.totalorder %s334, %s336
      %p340 = scmp.eq.s32.totalorder %s27, 0
      %p341 = por %p339, %p340
      %p342 = scmp.ne.s32.totalorder %s334, %s336
      %p343 = scmp.eq.s32.totalorder %s32, 1
      %p344 = por %p342, %p343
      %p345 = scmp.ne.s32.totalorder %s336, %s337
      %p346 = scmp.eq.s32.totalorder %s32, 0
      %p347 = por %p345, %p346
      %p348 = scmp.ne.s32.totalorder %s336, %s337
      %p349 = scmp.eq.s32.totalorder %s33, 1
      %p350 = por %p348, %p349
      %p352 = scmp.ne.s32.totalorder %s337, %s351
      %p353 = scmp.eq.s32.totalorder %s33, 0
      %p354 = por %p352, %p353
      %s356 = sadd.s32 %s355, 1
      %p359 = scmp.eq.s32.totalorder %s27, 1
      %p360 = scmp.ne.s32.totalorder %s355, %s357
      %p361 = scmp.eq.s32.totalorder %s27, 0
      %p362 = por %p360, %p361
      %p363 = scmp.ne.s32.totalorder %s355, %s357
      %p364 = scmp.eq.s32.totalorder %s32, 1
      %p365 = por %p363, %p364
      %p366 = scmp.ne.s32.totalorder %s357, %s358
      %p367 = scmp.eq.s32.totalorder %s32, 0
      %p368 = por %p366, %p367
      %p369 = scmp.ne.s32.totalorder %s357, %s358
      %p370 = scmp.eq.s32.totalorder %s33, 1
      %p371 = por %p369, %p370
      %p373 = scmp.ne.s32.totalorder %s358, %s372
      %p374 = scmp.eq.s32.totalorder %s33, 0
      %p375 = por %p373, %p374
      %s377 = sadd.s32 %s376, 1
      %p380 = scmp.eq.s32.totalorder %s27, 1
      %p381 = scmp.ne.s32.totalorder %s376, %s378
      %p382 = scmp.eq.s32.totalorder %s27, 0
      %p383 = por %p381, %p382
      %p384 = scmp.ne.s32.totalorder %s376, %s378
      %p385 = scmp.eq.s32.totalorder %s32, 1
      %p386 = por %p384, %p385
      %p387 = scmp.ne.s32.totalorder %s378, %s379
      %p388 = scmp.eq.s32.totalorder %s32, 0
      %p389 = por %p387, %p388
      %p390 = scmp.ne.s32.totalorder %s378, %s379
      %p391 = scmp.eq.s32.totalorder %s33, 1
      %p392 = por %p390, %p391
      %p394 = scmp.ne.s32.totalorder %s379, %s393
      %p395 = scmp.eq.s32.totalorder %s33, 0
      %p396 = por %p394, %p395
      %s397 = ssub.s32 %s27, %s34
      %p398 = scmp.eq.s32.totalorder %s397, 0
      %s400 = sadd.s32 %s399, 1
      %s401 = scalar_select %p398, %s399, %s400
      %p404 = pneg %p398
      %p405 = scmp.eq.s32.totalorder %s27, 1
      %p406 = por %p404, %p405
      %p407 = scmp.ne.s32.totalorder %s399, %s402
      %p408 = scmp.eq.s32.totalorder %s27, 0
      %p409 = por %p407, %p408
      %p410 = scmp.ne.s32.totalorder %s399, %s402
      %p411 = scmp.eq.s32.totalorder %s32, 1
      %p412 = por %p410, %p411
      %p413 = scmp.ne.s32.totalorder %s402, %s403
      %p414 = scmp.eq.s32.totalorder %s32, 0
      %p415 = por %p413, %p414
      %p416 = scmp.ne.s32.totalorder %s402, %s403
      %p417 = scmp.eq.s32.totalorder %s33, 1
      %p418 = por %p416, %p417
      %p420 = scmp.ne.s32.totalorder %s403, %s419
      %p421 = scmp.eq.s32.totalorder %s33, 0
      %p422 = por %p420, %p421
      %p423 = scmp.le.s32.totalorder 1, %s27
      %p424 = scmp.lt.s32.totalorder %s27, 3
      %p425 = pnand %p423, %p424
      %p426 = pneg %p425
      // Predicated region
      $region9: #{tpu_custom_call.1} parent=5 // pred_check
        _
      $region10: #{tpu_custom_call.1} parent=5 // pred_check_branch
        %428 = sbr.rel (%p425) target = $region12
      $region11: #{tpu_custom_call.1} parent=5 // pred_region
        %s429 = ssub.s32 %s27, 1
        // Predicated region
        $region13: #{tpu_custom_call.1} parent=11 // pred_check
          %p430 = pneg %p74
        $region14: #{tpu_custom_call.1} parent=11 // pred_check_branch
          %432 = sbr.rel (%p430) target = $region16
        $region15: #{tpu_custom_call.1} parent=11 // pred_region
          _
        $region16: #{tpu_custom_call.1} parent=11 // pred_fallthru
          _
        // Predicated region
        $region17: #{tpu_custom_call.1} parent=11 // pred_check
          %p433 = pneg %p95
        $region18: #{tpu_custom_call.1} parent=11 // pred_check_branch
          %435 = sbr.rel (%p433) target = $region20
        $region19: #{tpu_custom_call.1} parent=11 // pred_region
          _
        $region20: #{tpu_custom_call.1} parent=11 // pred_fallthru
          _
        // Predicated region
        $region21: #{tpu_custom_call.1} parent=11 // pred_check
          %p436 = pneg %p116
        $region22: #{tpu_custom_call.1} parent=11 // pred_check_branch
          %438 = sbr.rel (%p436) target = $region24
        $region23: #{tpu_custom_call.1} parent=11 // pred_region
          %440 = vsyncadd [#allocation3], 0
          %s441 = sshll.u32 %s3, 4
          %s442 = int_to_ptr.hbm [resolvable:$true] %s441
          %s443 = sshll.u32 [#allocation2], 4
          %s444 = int_to_ptr.vmem [resolvable:$true] %s443
          %449 = dma.hbm_to_vmem [thread:$0]  %s442, 16384, %s444, [#allocation3], 256, 256, 16
        $region24: #{tpu_custom_call.1} parent=11 // pred_fallthru
          _
        // Predicated region
        $region25: #{tpu_custom_call.1} parent=11 // pred_check
          %p450 = pneg %p137
        $region26: #{tpu_custom_call.1} parent=11 // pred_check_branch
          %452 = sbr.rel (%p450) target = $region28
        $region27: #{tpu_custom_call.1} parent=11 // pred_region
          %454 = vsyncadd [#allocation5], 0
          %s455 = sshll.u32 %s4, 4
          %s456 = int_to_ptr.hbm [resolvable:$true] %s455
          %s457 = sshll.u32 [#allocation4], 4
          %s458 = int_to_ptr.vmem [resolvable:$true] %s457
          %463 = dma.hbm_to_vmem [thread:$0]  %s456, 16384, %s458, [#allocation5], 256, 256, 16
        $region28: #{tpu_custom_call.1} parent=11 // pred_fallthru
          _
        // Predicated region
        $region29: #{tpu_custom_call.1} parent=11 // pred_check
          %p464 = pneg %p158
        $region30: #{tpu_custom_call.1} parent=11 // pred_check_branch
          %466 = sbr.rel (%p464) target = $region32
        $region31: #{tpu_custom_call.1} parent=11 // pred_region
          %468 = vsyncadd [#allocation5], 0
          %s469 = sshll.u32 %s5, 4
          %s470 = int_to_ptr.hbm [resolvable:$true] %s469
          %s471 = sshll.u32 [#allocation6], 4
          %s472 = int_to_ptr.vmem [resolvable:$true] %s471
          %477 = dma.hbm_to_vmem [thread:$0]  %s470, 16384, %s472, [#allocation5], 256, 256, 16
        $region32: #{tpu_custom_call.1} parent=11 // pred_fallthru
          _
        // Predicated region
        $region33: #{tpu_custom_call.1} parent=11 // pred_check
          %p478 = pneg %p179
        $region34: #{tpu_custom_call.1} parent=11 // pred_check_branch
          %480 = sbr.rel (%p478) target = $region36
        $region35: #{tpu_custom_call.1} parent=11 // pred_region
          _
        $region36: #{tpu_custom_call.1} parent=11 // pred_fallthru
          _
        // Predicated region
        $region37: #{tpu_custom_call.1} parent=11 // pred_check
          %p481 = pneg %p200
        $region38: #{tpu_custom_call.1} parent=11 // pred_check_branch
          %483 = sbr.rel (%p481) target = $region40
        $region39: #{tpu_custom_call.1} parent=11 // pred_region
          _
        $region40: #{tpu_custom_call.1} parent=11 // pred_fallthru
          _
        // Predicated region
        $region41: #{tpu_custom_call.1} parent=11 // pred_check
          %p484 = pneg %p221
        $region42: #{tpu_custom_call.1} parent=11 // pred_check_branch
          %486 = sbr.rel (%p484) target = $region44
        $region43: #{tpu_custom_call.1} parent=11 // pred_region
          _
        $region44: #{tpu_custom_call.1} parent=11 // pred_fallthru
          _
        // Predicated region
        $region45: #{tpu_custom_call.1} parent=11 // pred_check
          %p487 = pneg %p242
        $region46: #{tpu_custom_call.1} parent=11 // pred_check_branch
          %489 = sbr.rel (%p487) target = $region48
        $region47: #{tpu_custom_call.1} parent=11 // pred_region
          %491 = vsyncadd [#allocation8], 0
          %s492 = sshll.u32 %s9, 4
          %s493 = int_to_ptr.hbm [resolvable:$true] %s492
          %s494 = sshll.u32 [#allocation7], 4
          %s495 = int_to_ptr.vmem [resolvable:$true] %s494
          %500 = dma.hbm_to_vmem [thread:$0]  %s493, 16384, %s495, [#allocation8], 256, 256, 16
        $region48: #{tpu_custom_call.1} parent=11 // pred_fallthru
          _
        // Predicated region
        $region49: #{tpu_custom_call.1} parent=11 // pred_check
          %p501 = pneg %p263
        $region50: #{tpu_custom_call.1} parent=11 // pred_check_branch
          %503 = sbr.rel (%p501) target = $region52
        $region51: #{tpu_custom_call.1} parent=11 // pred_region
          %505 = vsyncadd [#allocation8], 0
          %s506 = sshll.u32 %s10, 4
          %s507 = int_to_ptr.hbm [resolvable:$true] %s506
          %s508 = sshll.u32 [#allocation9], 4
          %s509 = int_to_ptr.vmem [resolvable:$true] %s508
          %514 = dma.hbm_to_vmem [thread:$0]  %s507, 16384, %s509, [#allocation8], 256, 256, 16
        $region52: #{tpu_custom_call.1} parent=11 // pred_fallthru
          _
        // Predicated region
        $region53: #{tpu_custom_call.1} parent=11 // pred_check
          %p515 = pneg %p284
        $region54: #{tpu_custom_call.1} parent=11 // pred_check_branch
          %517 = sbr.rel (%p515) target = $region56
        $region55: #{tpu_custom_call.1} parent=11 // pred_region
          %519 = vsyncadd [#allocation11], 0
          %s520 = sshll.u32 %s11, 4
          %s521 = int_to_ptr.hbm [resolvable:$true] %s520
          %s522 = sshll.u32 [#allocation10], 4
          %s523 = int_to_ptr.vmem [resolvable:$true] %s522
          %528 = dma.hbm_to_vmem [thread:$0]  %s521, 16384, %s523, [#allocation11], 256, 256, 16
        $region56: #{tpu_custom_call.1} parent=11 // pred_fallthru
          _
        // Predicated region
        $region57: #{tpu_custom_call.1} parent=11 // pred_check
          %p529 = pneg %p305
        $region58: #{tpu_custom_call.1} parent=11 // pred_check_branch
          %531 = sbr.rel (%p529) target = $region60
        $region59: #{tpu_custom_call.1} parent=11 // pred_region
          _
        $region60: #{tpu_custom_call.1} parent=11 // pred_fallthru
          _
        // Predicated region
        $region61: #{tpu_custom_call.1} parent=11 // pred_check
          %p532 = pneg %p326
        $region62: #{tpu_custom_call.1} parent=11 // pred_check_branch
          %534 = sbr.rel (%p532) target = $region64
        $region63: #{tpu_custom_call.1} parent=11 // pred_region
          _
        $region64: #{tpu_custom_call.1} parent=11 // pred_fallthru
          _
        // Predicated region
        $region65: #{tpu_custom_call.1} parent=11 // pred_check
          %p535 = pneg %p347
        $region66: #{tpu_custom_call.1} parent=11 // pred_check_branch
          %537 = sbr.rel (%p535) target = $region68
        $region67: #{tpu_custom_call.1} parent=11 // pred_region
          _
        $region68: #{tpu_custom_call.1} parent=11 // pred_fallthru
          _
        // Predicated region
        $region69: #{tpu_custom_call.1} parent=11 // pred_check
          %p538 = pneg %p368
        $region70: #{tpu_custom_call.1} parent=11 // pred_check_branch
          %540 = sbr.rel (%p538) target = $region72
        $region71: #{tpu_custom_call.1} parent=11 // pred_region
          _
        $region72: #{tpu_custom_call.1} parent=11 // pred_fallthru
          _
        // Predicated region
        $region73: #{tpu_custom_call.1} parent=11 // pred_check
          %p541 = pneg %p389
        $region74: #{tpu_custom_call.1} parent=11 // pred_check_branch
          %543 = sbr.rel (%p541) target = $region76
        $region75: #{tpu_custom_call.1} parent=11 // pred_region
          _
        $region76: #{tpu_custom_call.1} parent=11 // pred_fallthru
          _
      $region12: #{tpu_custom_call.1} parent=5 // pred_fallthru
        _
      %p544 = scmp.lt.s32.totalorder %s27, 2
      // Predicated region
      $region77: #{tpu_custom_call.1} parent=5 // pred_check
        %p545 = pneg %p544
      $region78: #{tpu_custom_call.1} parent=5 // pred_check_branch
        %547 = sbr.rel (%p545) target = $region80
      $region79: #{tpu_custom_call.1} parent=5 // pred_region
        // Predicated region
        $region81: #{tpu_custom_call.1} parent=79 // pred_check
          %p548 = pneg %p47
        $region82: #{tpu_custom_call.1} parent=79 // pred_check_branch
          %550 = sbr.rel (%p548) target = $region84
        $region83: #{tpu_custom_call.1} parent=79 // pred_region
          %s551 = smul.u32 16, %s27
          %p552 = scmp.lt.s32.totalorder %s551, 31
          %s553 = scalar_select %p552, %s551, 31
          %s554 = smul.addr %s553, 8
          %s555 = scalar_lea.vmem %s0, %s554
          %s556 = smul.u32 16, %s27
        $region84: #{tpu_custom_call.1} parent=79 // pred_fallthru
          _
      $region80: #{tpu_custom_call.1} parent=5 // pred_fallthru
        _
      %p557 = scmp.le.s32.totalorder 1, %s27
      %p558 = scmp.lt.s32.totalorder %s27, 3
      %p559 = pnand %p557, %p558
      %p560 = pneg %p559
      // Predicated region
      $region85: #{tpu_custom_call.1} parent=5 // pred_check
        _
      $region86: #{tpu_custom_call.1} parent=5 // pred_check_branch
        %562 = sbr.rel (%p559) target = $region88
      $region87: #{tpu_custom_call.1} parent=5 // pred_region
        %s563 = ssub.s32 %s27, 1
        // Predicated region
        $region89: #{tpu_custom_call.1} parent=87 // pred_check
          %p564 = pneg %p116
        $region90: #{tpu_custom_call.1} parent=87 // pred_check_branch
          %566 = sbr.rel (%p564) target = $region92
        $region91: #{tpu_custom_call.1} parent=87 // pred_region
          %568 = dma.done [#allocation3], 16384
        $region92: #{tpu_custom_call.1} parent=87 // pred_fallthru
          _
        // Predicated region
        $region93: #{tpu_custom_call.1} parent=87 // pred_check
          %p569 = pneg %p137
        $region94: #{tpu_custom_call.1} parent=87 // pred_check_branch
          %571 = sbr.rel (%p569) target = $region96
        $region95: #{tpu_custom_call.1} parent=87 // pred_region
          %573 = dma.done [#allocation5], 16384
        $region96: #{tpu_custom_call.1} parent=87 // pred_fallthru
          _
        // Predicated region
        $region97: #{tpu_custom_call.1} parent=87 // pred_check
          %p574 = pneg %p158
        $region98: #{tpu_custom_call.1} parent=87 // pred_check_branch
          %576 = sbr.rel (%p574) target = $region100
        $region99: #{tpu_custom_call.1} parent=87 // pred_region
          %578 = dma.done [#allocation5], 16384
        $region100: #{tpu_custom_call.1} parent=87 // pred_fallthru
          _
        // Predicated region
        $region101: #{tpu_custom_call.1} parent=87 // pred_check
          %p579 = pneg %p242
        $region102: #{tpu_custom_call.1} parent=87 // pred_check_branch
          %581 = sbr.rel (%p579) target = $region104
        $region103: #{tpu_custom_call.1} parent=87 // pred_region
          %583 = dma.done [#allocation8], 16384
        $region104: #{tpu_custom_call.1} parent=87 // pred_fallthru
          _
        // Predicated region
        $region105: #{tpu_custom_call.1} parent=87 // pred_check
          %p584 = pneg %p263
        $region106: #{tpu_custom_call.1} parent=87 // pred_check_branch
          %586 = sbr.rel (%p584) target = $region108
        $region107: #{tpu_custom_call.1} parent=87 // pred_region
          %588 = dma.done [#allocation8], 16384
        $region108: #{tpu_custom_call.1} parent=87 // pred_fallthru
          _
        // Predicated region
        $region109: #{tpu_custom_call.1} parent=87 // pred_check
          %p589 = pneg %p284
        $region110: #{tpu_custom_call.1} parent=87 // pred_check_branch
          %591 = sbr.rel (%p589) target = $region112
        $region111: #{tpu_custom_call.1} parent=87 // pred_region
          %593 = dma.done [#allocation11], 16384
        $region112: #{tpu_custom_call.1} parent=87 // pred_fallthru
          _
        %s594 = smul.u32 16, %s32
        %p595 = scmp.lt.s32.totalorder %s594, 31
        %s596 = scalar_select %p595, %s594, 31
        %s597 = smul.addr %s596, 8
        %s598 = scalar_lea.vmem %s0, %s597
        %p599 = pneg %p53
        %p600 = pneg %p50
        %p601 = pneg %p74
        %p602 = pneg %p71
        %p603 = pneg %p95
        %p604 = pneg %p92
        %p605 = pneg %p116
        %p606 = pneg %p113
        %p607 = pneg %p137
        %p608 = pneg %p134
        %p609 = pneg %p158
        %p610 = pneg %p155
        %p611 = pneg %p179
        %p612 = pneg %p176
        %p613 = pneg %p200
        %p614 = pneg %p197
        %p615 = pneg %p221
        %p616 = pneg %p218
        %p617 = pneg %p242
        %p618 = pneg %p239
        %p619 = pneg %p263
        %p620 = pneg %p260
        %p621 = pneg %p284
        %p622 = pneg %p281
        %p623 = pneg %p305
        %p624 = pneg %p302
        %p625 = pneg %p326
        %p626 = pneg %p323
        %p627 = pneg %p347
        %p628 = pneg %p344
        %p629 = pneg %p368
        %p630 = pneg %p365
        %p631 = pneg %p389
        %p632 = pneg %p386
        %p633 = pneg %p415
        %p634 = pneg %p412
        %s635 = smul.u32 16, %s32
        %p636 = scmp.lt.s32.totalorder %s635, 31
        %s637 = scalar_select %p636, %s635, 31
        %s638 = smul.addr %s637, 8
        %s639 = scalar_lea.vmem %s17, %s638
        %s640 = smul.u32 16, %s32
        %p641 = scmp.lt.s32.totalorder %s640, 31
        %s642 = scalar_select %p641, %s640, 31
        %s643 = smul.addr %s642, 8
        %s644 = scalar_lea.vmem %s0, %s643
        %s645 = smul.u32 16, %s32
        %s646 = smul.u32 16, %s32
        %p647 = scmp.lt.s32.totalorder %s646, 31
        %s648 = scalar_select %p647, %s646, 31
        %s649 = smul.addr %s648, 8
        %s650 = scalar_lea.vmem %s17, %s649
        %s651 = smul.u32 16, %s32
        %v653 = vld [vmem:[%s644] sm:$0xff]
        %v654 = vld [vmem:[%s644 + $0x8] sm:$0xff]
        %v655 = vld [vmem:[%s644 + $0x10] sm:$0xff]
        %v656 = vld [vmem:[%s644 + $0x18] sm:$0xff]
        %v657 = vld [vmem:[%s644 + $0x20] sm:$0xff]
        %v658 = vld [vmem:[%s644 + $0x28] sm:$0xff]
        %v659 = vld [vmem:[%s644 + $0x30] sm:$0xff]
        %v660 = vld [vmem:[%s644 + $0x38] sm:$0xff]
        %v661 = vld [vmem:[%s644 + $0x40] sm:$0xff]
        %v662 = vld [vmem:[%s644 + $0x48] sm:$0xff]
        %v663 = vld [vmem:[%s644 + $0x50] sm:$0xff]
        %v664 = vld [vmem:[%s644 + $0x58] sm:$0xff]
        %v665 = vld [vmem:[%s644 + $0x60] sm:$0xff]
        %v666 = vld [vmem:[%s644 + $0x68] sm:$0xff]
        %v667 = vld [vmem:[%s644 + $0x70] sm:$0xff]
        %v668 = vld [vmem:[%s644 + $0x78] sm:$0xff]
        %v669 = vpack.c.bf16 %v654, %v653
        %v670 = vpack.c.bf16 %v656, %v655
        %v671 = vpack.c.bf16 %v658, %v657
        %v672 = vpack.c.bf16 %v660, %v659
        %v673 = vpack.c.bf16 %v662, %v661
        %v674 = vpack.c.bf16 %v664, %v663
        %v675 = vpack.c.bf16 %v666, %v665
        %v676 = vpack.c.bf16 %v668, %v667
        %v677 = vld [vmem:[%s1] sm:$0xff]
        %v678 = vld [vmem:[%s1 + $0x8] sm:$0xff]
        %v679 = vld [vmem:[%s1 + $0x10] sm:$0xff]
        %v680 = vld [vmem:[%s1 + $0x18] sm:$0xff]
        %v681 = vld [vmem:[%s1 + $0x20] sm:$0xff]
        %v682 = vld [vmem:[%s1 + $0x28] sm:$0xff]
        %v683 = vld [vmem:[%s1 + $0x30] sm:$0xff]
        %v684 = vld [vmem:[%s1 + $0x38] sm:$0xff]
        %v685 = vld [vmem:[%s2] sm:$0xff]
        %v687 = vperm.slane %v685, 0
        %v688 = vperm.slane %v685, 1
        %v689 = vperm.slane %v685, 2
        %v690 = vperm.slane %v685, 3
        %v691 = vperm.slane %v685, 4
        %v692 = vperm.slane %v685, 5
        %v693 = vperm.slane %v685, 6
        %v694 = vperm.slane %v685, 7
        %v711 = vunpack.c.l.b16 %v677
        %v712 = vunpack.c.h.b16 %v677
        %v713 = vunpack.c.l.b16 %v678
        %v714 = vunpack.c.h.b16 %v678
        %v715 = vunpack.c.l.b16 %v679
        %v716 = vunpack.c.h.b16 %v679
        %v717 = vunpack.c.l.b16 %v680
        %v718 = vunpack.c.h.b16 %v680
        %v719 = vunpack.c.l.b16 %v681
        %v720 = vunpack.c.h.b16 %v681
        %v721 = vunpack.c.l.b16 %v682
        %v722 = vunpack.c.h.b16 %v682
        %v723 = vunpack.c.l.b16 %v683
        %v724 = vunpack.c.h.b16 %v683
        %v725 = vunpack.c.l.b16 %v684
        %v726 = vunpack.c.h.b16 %v684
        %v727 = vpack.c.b16 %v719, %v711
        %v728 = vpack.c.b16 %v720, %v712
        %v729 = vpack.c.b16 %v721, %v713
        %v730 = vpack.c.b16 %v722, %v714
        %v731 = vpack.c.b16 %v723, %v715
        %v732 = vpack.c.b16 %v724, %v716
        %v733 = vpack.c.b16 %v725, %v717
        %v734 = vpack.c.b16 %v726, %v718
        %vm743 = vcmask 130048
        %v745 = vsel %vm743, %v669, 0
        %v748 = vsel %vm743, %v670, 0
        %v751 = vsel %vm743, %v671, 0
        %v754 = vsel %vm743, %v672, 0
        %v757 = vsel %vm743, %v673, 0
        %v760 = vsel %vm743, %v674, 0
        %v763 = vsel %vm743, %v675, 0
        %v766 = vsel %vm743, %v676, 0
        %768 = vmatpush.bf16.msra.mxu0 0
        %769 = vmatpush.bf16.msra.mxu0 0
        %770 = vmatpush.bf16.msra.mxu0 0
        %771 = vmatpush.bf16.msra.mxu0 0
        %772 = vmatpush.bf16.msra.mxu0 0
        %773 = vmatpush.bf16.msra.mxu0 0
        %774 = vmatpush.bf16.msra.mxu0 0
        %775 = vmatpush.bf16.msra.mxu0 %v727
        %776 = vmatmul.bf16.gmra.mxu0 %v745
        %v777 = vpop.f32.mrf.mxu0
        %v778 = vadd.f32 %v687, %v777
        %v779 = vpop.f32.mrf.mxu0
        %v780 = vadd.f32 %v687, %v779
        %781 = vmatmul.bf16.gmra.mxu0 %v748
        %v782 = vpop.f32.mrf.mxu0
        %v783 = vadd.f32 %v687, %v782
        %v784 = vpop.f32.mrf.mxu0
        %v785 = vadd.f32 %v687, %v784
        %786 = vmatmul.bf16.gmra.mxu0 %v751
        %v787 = vpop.f32.mrf.mxu0
        %v788 = vadd.f32 %v687, %v787
        %v789 = vpop.f32.mrf.mxu0
        %v790 = vadd.f32 %v687, %v789
        %791 = vmatmul.bf16.gmra.mxu0 %v754
        %v792 = vpop.f32.mrf.mxu0
        %v793 = vadd.f32 %v687, %v792
        %v794 = vpop.f32.mrf.mxu0
        %v795 = vadd.f32 %v687, %v794
        %796 = vmatmul.bf16.gmra.mxu0 %v757
        %v797 = vpop.f32.mrf.mxu0
        %v798 = vadd.f32 %v687, %v797
        %v799 = vpop.f32.mrf.mxu0
        %v800 = vadd.f32 %v687, %v799
        %801 = vmatmul.bf16.gmra.mxu0 %v760
        %v802 = vpop.f32.mrf.mxu0
        %v803 = vadd.f32 %v687, %v802
        %v804 = vpop.f32.mrf.mxu0
        %v805 = vadd.f32 %v687, %v804
        %806 = vmatmul.bf16.gmra.mxu0 %v763
        %v807 = vpop.f32.mrf.mxu0
        %v808 = vadd.f32 %v687, %v807
        %v809 = vpop.f32.mrf.mxu0
        %v810 = vadd.f32 %v687, %v809
        %811 = vmatmul.bf16.gmra.mxu0 %v766
        %v812 = vpop.f32.mrf.mxu0
        %v813 = vadd.f32 %v687, %v812
        %v814 = vpop.f32.mrf.mxu0
        %v815 = vadd.f32 %v687, %v814
        %816 = vdwg.mxu0
        %817 = vmatpush.bf16.msra.mxu0 0
        %818 = vmatpush.bf16.msra.mxu0 0
        %819 = vmatpush.bf16.msra.mxu0 0
        %820 = vmatpush.bf16.msra.mxu0 0
        %821 = vmatpush.bf16.msra.mxu0 0
        %822 = vmatpush.bf16.msra.mxu0 0
        %823 = vmatpush.bf16.msra.mxu0 0
        %824 = vmatpush.bf16.msra.mxu0 %v728
        %825 = vmatmul.bf16.gmra.mxu0 %v745
        %v826 = vpop.f32.mrf.mxu0
        %v827 = vadd.f32 %v688, %v826
        %v828 = vpop.f32.mrf.mxu0
        %v829 = vadd.f32 %v688, %v828
        %830 = vmatmul.bf16.gmra.mxu0 %v748
        %v831 = vpop.f32.mrf.mxu0
        %v832 = vadd.f32 %v688, %v831
        %v833 = vpop.f32.mrf.mxu0
        %v834 = vadd.f32 %v688, %v833
        %835 = vmatmul.bf16.gmra.mxu0 %v751
        %v836 = vpop.f32.mrf.mxu0
        %v837 = vadd.f32 %v688, %v836
        %v838 = vpop.f32.mrf.mxu0
        %v839 = vadd.f32 %v688, %v838
        %840 = vmatmul.bf16.gmra.mxu0 %v754
        %v841 = vpop.f32.mrf.mxu0
        %v842 = vadd.f32 %v688, %v841
        %v843 = vpop.f32.mrf.mxu0
        %v844 = vadd.f32 %v688, %v843
        %845 = vmatmul.bf16.gmra.mxu0 %v757
        %v846 = vpop.f32.mrf.mxu0
        %v847 = vadd.f32 %v688, %v846
        %v848 = vpop.f32.mrf.mxu0
        %v849 = vadd.f32 %v688, %v848
        %850 = vmatmul.bf16.gmra.mxu0 %v760
        %v851 = vpop.f32.mrf.mxu0
        %v852 = vadd.f32 %v688, %v851
        %v853 = vpop.f32.mrf.mxu0
        %v854 = vadd.f32 %v688, %v853
        %855 = vmatmul.bf16.gmra.mxu0 %v763
        %v856 = vpop.f32.mrf.mxu0
        %v857 = vadd.f32 %v688, %v856
        %v858 = vpop.f32.mrf.mxu0
        %v859 = vadd.f32 %v688, %v858
        %860 = vmatmul.bf16.gmra.mxu0 %v766
        %v861 = vpop.f32.mrf.mxu0
        %v862 = vadd.f32 %v688, %v861
        %v863 = vpop.f32.mrf.mxu0
        %v864 = vadd.f32 %v688, %v863
        %865 = vdwg.mxu0
        %866 = vmatpush.bf16.msra.mxu0 0
        %867 = vmatpush.bf16.msra.mxu0 0
        %868 = vmatpush.bf16.msra.mxu0 0
        %869 = vmatpush.bf16.msra.mxu0 0
        %870 = vmatpush.bf16.msra.mxu0 0
        %871 = vmatpush.bf16.msra.mxu0 0
        %872 = vmatpush.bf16.msra.mxu0 0
        %873 = vmatpush.bf16.msra.mxu0 %v729
        %874 = vmatmul.bf16.gmra.mxu0 %v745
        %v875 = vpop.f32.mrf.mxu0
        %v876 = vadd.f32 %v689, %v875
        %v877 = vpop.f32.mrf.mxu0
        %v878 = vadd.f32 %v689, %v877
        %879 = vmatmul.bf16.gmra.mxu0 %v748
        %v880 = vpop.f32.mrf.mxu0
        %v881 = vadd.f32 %v689, %v880
        %v882 = vpop.f32.mrf.mxu0
        %v883 = vadd.f32 %v689, %v882
        %884 = vmatmul.bf16.gmra.mxu0 %v751
        %v885 = vpop.f32.mrf.mxu0
        %v886 = vadd.f32 %v689, %v885
        %v887 = vpop.f32.mrf.mxu0
        %v888 = vadd.f32 %v689, %v887
        %889 = vmatmul.bf16.gmra.mxu0 %v754
        %v890 = vpop.f32.mrf.mxu0
        %v891 = vadd.f32 %v689, %v890
        %v892 = vpop.f32.mrf.mxu0
        %v893 = vadd.f32 %v689, %v892
        %894 = vmatmul.bf16.gmra.mxu0 %v757
        %v895 = vpop.f32.mrf.mxu0
        %v896 = vadd.f32 %v689, %v895
        %v897 = vpop.f32.mrf.mxu0
        %v898 = vadd.f32 %v689, %v897
        %899 = vmatmul.bf16.gmra.mxu0 %v760
        %v900 = vpop.f32.mrf.mxu0
        %v901 = vadd.f32 %v689, %v900
        %v902 = vpop.f32.mrf.mxu0
        %v903 = vadd.f32 %v689, %v902
        %904 = vmatmul.bf16.gmra.mxu0 %v763
        %v905 = vpop.f32.mrf.mxu0
        %v906 = vadd.f32 %v689, %v905
        %v907 = vpop.f32.mrf.mxu0
        %v908 = vadd.f32 %v689, %v907
        %909 = vmatmul.bf16.gmra.mxu0 %v766
        %v910 = vpop.f32.mrf.mxu0
        %v911 = vadd.f32 %v689, %v910
        %v912 = vpop.f32.mrf.mxu0
        %v913 = vadd.f32 %v689, %v912
        %914 = vdwg.mxu0
        %915 = vmatpush.bf16.msra.mxu0 0
        %916 = vmatpush.bf16.msra.mxu0 0
        %917 = vmatpush.bf16.msra.mxu0 0
        %918 = vmatpush.bf16.msra.mxu0 0
        %919 = vmatpush.bf16.msra.mxu0 0
        %920 = vmatpush.bf16.msra.mxu0 0
        %921 = vmatpush.bf16.msra.mxu0 0
        %922 = vmatpush.bf16.msra.mxu0 %v730
        %923 = vmatmul.bf16.gmra.mxu0 %v745
        %v924 = vpop.f32.mrf.mxu0
        %v925 = vadd.f32 %v690, %v924
        %v926 = vpop.f32.mrf.mxu0
        %v927 = vadd.f32 %v690, %v926
        %928 = vmatmul.bf16.gmra.mxu0 %v748
        %v929 = vpop.f32.mrf.mxu0
        %v930 = vadd.f32 %v690, %v929
        %v931 = vpop.f32.mrf.mxu0
        %v932 = vadd.f32 %v690, %v931
        %933 = vmatmul.bf16.gmra.mxu0 %v751
        %v934 = vpop.f32.mrf.mxu0
        %v935 = vadd.f32 %v690, %v934
        %v936 = vpop.f32.mrf.mxu0
        %v937 = vadd.f32 %v690, %v936
        %938 = vmatmul.bf16.gmra.mxu0 %v754
        %v939 = vpop.f32.mrf.mxu0
        %v940 = vadd.f32 %v690, %v939
        %v941 = vpop.f32.mrf.mxu0
        %v942 = vadd.f32 %v690, %v941
        %943 = vmatmul.bf16.gmra.mxu0 %v757
        %v944 = vpop.f32.mrf.mxu0
        %v945 = vadd.f32 %v690, %v944
        %v946 = vpop.f32.mrf.mxu0
        %v947 = vadd.f32 %v690, %v946
        %948 = vmatmul.bf16.gmra.mxu0 %v760
        %v949 = vpop.f32.mrf.mxu0
        %v950 = vadd.f32 %v690, %v949
        %v951 = vpop.f32.mrf.mxu0
        %v952 = vadd.f32 %v690, %v951
        %953 = vmatmul.bf16.gmra.mxu0 %v763
        %v954 = vpop.f32.mrf.mxu0
        %v955 = vadd.f32 %v690, %v954
        %v956 = vpop.f32.mrf.mxu0
        %v957 = vadd.f32 %v690, %v956
        %958 = vmatmul.bf16.gmra.mxu0 %v766
        %v959 = vpop.f32.mrf.mxu0
        %v960 = vadd.f32 %v690, %v959
        %v961 = vpop.f32.mrf.mxu0
        %v962 = vadd.f32 %v690, %v961
        %963 = vdwg.mxu0
        %964 = vmatpush.bf16.msra.mxu0 0
        %965 = vmatpush.bf16.msra.mxu0 0
        %966 = vmatpush.bf16.msra.mxu0 0
        %967 = vmatpush.bf16.msra.mxu0 0
        %968 = vmatpush.bf16.msra.mxu0 0
        %969 = vmatpush.bf16.msra.mxu0 0
        %970 = vmatpush.bf16.msra.mxu0 0
        %971 = vmatpush.bf16.msra.mxu0 %v731
        %972 = vmatmul.bf16.gmra.mxu0 %v745
        %v973 = vpop.f32.mrf.mxu0
        %v974 = vadd.f32 %v691, %v973
        %v975 = vpop.f32.mrf.mxu0
        %v976 = vadd.f32 %v691, %v975
        %977 = vmatmul.bf16.gmra.mxu0 %v748
        %v978 = vpop.f32.mrf.mxu0
        %v979 = vadd.f32 %v691, %v978
        %v980 = vpop.f32.mrf.mxu0
        %v981 = vadd.f32 %v691, %v980
        %982 = vmatmul.bf16.gmra.mxu0 %v751
        %v983 = vpop.f32.mrf.mxu0
        %v984 = vadd.f32 %v691, %v983
        %v985 = vpop.f32.mrf.mxu0
        %v986 = vadd.f32 %v691, %v985
        %987 = vmatmul.bf16.gmra.mxu0 %v754
        %v988 = vpop.f32.mrf.mxu0
        %v989 = vadd.f32 %v691, %v988
        %v990 = vpop.f32.mrf.mxu0
        %v991 = vadd.f32 %v691, %v990
        %992 = vmatmul.bf16.gmra.mxu0 %v757
        %v993 = vpop.f32.mrf.mxu0
        %v994 = vadd.f32 %v691, %v993
        %v995 = vpop.f32.mrf.mxu0
        %v996 = vadd.f32 %v691, %v995
        %997 = vmatmul.bf16.gmra.mxu0 %v760
        %v998 = vpop.f32.mrf.mxu0
        %v999 = vadd.f32 %v691, %v998
        %v1000 = vpop.f32.mrf.mxu0
        %v1001 = vadd.f32 %v691, %v1000
        %1002 = vmatmul.bf16.gmra.mxu0 %v763
        %v1003 = vpop.f32.mrf.mxu0
        %v1004 = vadd.f32 %v691, %v1003
        %v1005 = vpop.f32.mrf.mxu0
        %v1006 = vadd.f32 %v691, %v1005
        %1007 = vmatmul.bf16.gmra.mxu0 %v766
        %v1008 = vpop.f32.mrf.mxu0
        %v1009 = vadd.f32 %v691, %v1008
        %v1010 = vpop.f32.mrf.mxu0
        %v1011 = vadd.f32 %v691, %v1010
        %1012 = vdwg.mxu0
        %1013 = vmatpush.bf16.msra.mxu0 0
        %1014 = vmatpush.bf16.msra.mxu0 0
        %1015 = vmatpush.bf16.msra.mxu0 0
        %1016 = vmatpush.bf16.msra.mxu0 0
        %1017 = vmatpush.bf16.msra.mxu0 0
        %1018 = vmatpush.bf16.msra.mxu0 0
        %1019 = vmatpush.bf16.msra.mxu0 0
        %1020 = vmatpush.bf16.msra.mxu0 %v732
        %1021 = vmatmul.bf16.gmra.mxu0 %v745
        %v1022 = vpop.f32.mrf.mxu0
        %v1023 = vadd.f32 %v692, %v1022
        %v1024 = vpop.f32.mrf.mxu0
        %v1025 = vadd.f32 %v692, %v1024
        %1026 = vmatmul.bf16.gmra.mxu0 %v748
        %v1027 = vpop.f32.mrf.mxu0
        %v1028 = vadd.f32 %v692, %v1027
        %v1029 = vpop.f32.mrf.mxu0
        %v1030 = vadd.f32 %v692, %v1029
        %1031 = vmatmul.bf16.gmra.mxu0 %v751
        %v1032 = vpop.f32.mrf.mxu0
        %v1033 = vadd.f32 %v692, %v1032
        %v1034 = vpop.f32.mrf.mxu0
        %v1035 = vadd.f32 %v692, %v1034
        %1036 = vmatmul.bf16.gmra.mxu0 %v754
        %v1037 = vpop.f32.mrf.mxu0
        %v1038 = vadd.f32 %v692, %v1037
        %v1039 = vpop.f32.mrf.mxu0
        %v1040 = vadd.f32 %v692, %v1039
        %1041 = vmatmul.bf16.gmra.mxu0 %v757
        %v1042 = vpop.f32.mrf.mxu0
        %v1043 = vadd.f32 %v692, %v1042
        %v1044 = vpop.f32.mrf.mxu0
        %v1045 = vadd.f32 %v692, %v1044
        %1046 = vmatmul.bf16.gmra.mxu0 %v760
        %v1047 = vpop.f32.mrf.mxu0
        %v1048 = vadd.f32 %v692, %v1047
        %v1049 = vpop.f32.mrf.mxu0
        %v1050 = vadd.f32 %v692, %v1049
        %1051 = vmatmul.bf16.gmra.mxu0 %v763
        %v1052 = vpop.f32.mrf.mxu0
        %v1053 = vadd.f32 %v692, %v1052
        %v1054 = vpop.f32.mrf.mxu0
        %v1055 = vadd.f32 %v692, %v1054
        %1056 = vmatmul.bf16.gmra.mxu0 %v766
        %v1057 = vpop.f32.mrf.mxu0
        %v1058 = vadd.f32 %v692, %v1057
        %v1059 = vpop.f32.mrf.mxu0
        %v1060 = vadd.f32 %v692, %v1059
        %1061 = vdwg.mxu0
        %1062 = vmatpush.bf16.msra.mxu0 0
        %1063 = vmatpush.bf16.msra.mxu0 0
        %1064 = vmatpush.bf16.msra.mxu0 0
        %1065 = vmatpush.bf16.msra.mxu0 0
        %1066 = vmatpush.bf16.msra.mxu0 0
        %1067 = vmatpush.bf16.msra.mxu0 0
        %1068 = vmatpush.bf16.msra.mxu0 0
        %1069 = vmatpush.bf16.msra.mxu0 %v733
        %1070 = vmatmul.bf16.gmra.mxu0 %v745
        %v1071 = vpop.f32.mrf.mxu0
        %v1072 = vadd.f32 %v693, %v1071
        %v1073 = vpop.f32.mrf.mxu0
        %v1074 = vadd.f32 %v693, %v1073
        %1075 = vmatmul.bf16.gmra.mxu0 %v748
        %v1076 = vpop.f32.mrf.mxu0
        %v1077 = vadd.f32 %v693, %v1076
        %v1078 = vpop.f32.mrf.mxu0
        %v1079 = vadd.f32 %v693, %v1078
        %1080 = vmatmul.bf16.gmra.mxu0 %v751
        %v1081 = vpop.f32.mrf.mxu0
        %v1082 = vadd.f32 %v693, %v1081
        %v1083 = vpop.f32.mrf.mxu0
        %v1084 = vadd.f32 %v693, %v1083
        %1085 = vmatmul.bf16.gmra.mxu0 %v754
        %v1086 = vpop.f32.mrf.mxu0
        %v1087 = vadd.f32 %v693, %v1086
        %v1088 = vpop.f32.mrf.mxu0
        %v1089 = vadd.f32 %v693, %v1088
        %1090 = vmatmul.bf16.gmra.mxu0 %v757
        %v1091 = vpop.f32.mrf.mxu0
        %v1092 = vadd.f32 %v693, %v1091
        %v1093 = vpop.f32.mrf.mxu0
        %v1094 = vadd.f32 %v693, %v1093
        %1095 = vmatmul.bf16.gmra.mxu0 %v760
        %v1096 = vpop.f32.mrf.mxu0
        %v1097 = vadd.f32 %v693, %v1096
        %v1098 = vpop.f32.mrf.mxu0
        %v1099 = vadd.f32 %v693, %v1098
        %1100 = vmatmul.bf16.gmra.mxu0 %v763
        %v1101 = vpop.f32.mrf.mxu0
        %v1102 = vadd.f32 %v693, %v1101
        %v1103 = vpop.f32.mrf.mxu0
        %v1104 = vadd.f32 %v693, %v1103
        %1105 = vmatmul.bf16.gmra.mxu0 %v766
        %v1106 = vpop.f32.mrf.mxu0
        %v1107 = vadd.f32 %v693, %v1106
        %v1108 = vpop.f32.mrf.mxu0
        %v1109 = vadd.f32 %v693, %v1108
        %1110 = vdwg.mxu0
        %1111 = vmatpush.bf16.msra.mxu0 0
        %1112 = vmatpush.bf16.msra.mxu0 0
        %1113 = vmatpush.bf16.msra.mxu0 0
        %1114 = vmatpush.bf16.msra.mxu0 0
        %1115 = vmatpush.bf16.msra.mxu0 0
        %1116 = vmatpush.bf16.msra.mxu0 0
        %1117 = vmatpush.bf16.msra.mxu0 0
        %1118 = vmatpush.bf16.msra.mxu0 %v734
        %1119 = vmatmul.bf16.gmra.mxu0 %v745
        %v1120 = vpop.f32.mrf.mxu0
        %v1121 = vadd.f32 %v694, %v1120
        %v1122 = vpop.f32.mrf.mxu0
        %v1123 = vadd.f32 %v694, %v1122
        %1124 = vmatmul.bf16.gmra.mxu0 %v748
        %v1125 = vpop.f32.mrf.mxu0
        %v1126 = vadd.f32 %v694, %v1125
        %v1127 = vpop.f32.mrf.mxu0
        %v1128 = vadd.f32 %v694, %v1127
        %1129 = vmatmul.bf16.gmra.mxu0 %v751
        %v1130 = vpop.f32.mrf.mxu0
        %v1131 = vadd.f32 %v694, %v1130
        %v1132 = vpop.f32.mrf.mxu0
        %v1133 = vadd.f32 %v694, %v1132
        %1134 = vmatmul.bf16.gmra.mxu0 %v754
        %v1135 = vpop.f32.mrf.mxu0
        %v1136 = vadd.f32 %v694, %v1135
        %v1137 = vpop.f32.mrf.mxu0
        %v1138 = vadd.f32 %v694, %v1137
        %1139 = vmatmul.bf16.gmra.mxu0 %v757
        %v1140 = vpop.f32.mrf.mxu0
        %v1141 = vadd.f32 %v694, %v1140
        %v1142 = vpop.f32.mrf.mxu0
        %v1143 = vadd.f32 %v694, %v1142
        %1144 = vmatmul.bf16.gmra.mxu0 %v760
        %v1145 = vpop.f32.mrf.mxu0
        %v1146 = vadd.f32 %v694, %v1145
        %v1147 = vpop.f32.mrf.mxu0
        %v1148 = vadd.f32 %v694, %v1147
        %1149 = vmatmul.bf16.gmra.mxu0 %v763
        %v1150 = vpop.f32.mrf.mxu0
        %v1151 = vadd.f32 %v694, %v1150
        %v1152 = vpop.f32.mrf.mxu0
        %v1153 = vadd.f32 %v694, %v1152
        %1154 = vmatmul.bf16.gmra.mxu0 %v766
        %v1155 = vpop.f32.mrf.mxu0
        %v1156 = vadd.f32 %v694, %v1155
        %v1157 = vpop.f32.mrf.mxu0
        %v1158 = vadd.f32 %v694, %v1157
        %1159 = vdwg.mxu0
        %v1160 = vmax.f32 %v778, 0.0
        %v1161 = vmax.f32 %v827, 0.0
        %v1162 = vmax.f32 %v876, 0.0
        %v1163 = vmax.f32 %v925, 0.0
        %v1164 = vmax.f32 %v974, 0.0
        %v1165 = vmax.f32 %v1023, 0.0
        %v1166 = vmax.f32 %v1072, 0.0
        %v1167 = vmax.f32 %v1121, 0.0
        %v1168 = vmax.f32 %v780, 0.0
        %v1169 = vmax.f32 %v829, 0.0
        %v1170 = vmax.f32 %v878, 0.0
        %v1171 = vmax.f32 %v927, 0.0
        %v1172 = vmax.f32 %v976, 0.0
        %v1173 = vmax.f32 %v1025, 0.0
        %v1174 = vmax.f32 %v1074, 0.0
        %v1175 = vmax.f32 %v1123, 0.0
        %v1176 = vmax.f32 %v783, 0.0
        %v1177 = vmax.f32 %v832, 0.0
        %v1178 = vmax.f32 %v881, 0.0
        %v1179 = vmax.f32 %v930, 0.0
        %v1180 = vmax.f32 %v979, 0.0
        %v1181 = vmax.f32 %v1028, 0.0
        %v1182 = vmax.f32 %v1077, 0.0
        %v1183 = vmax.f32 %v1126, 0.0
        %v1184 = vmax.f32 %v785, 0.0
        %v1185 = vmax.f32 %v834, 0.0
        %v1186 = vmax.f32 %v883, 0.0
        %v1187 = vmax.f32 %v932, 0.0
        %v1188 = vmax.f32 %v981, 0.0
        %v1189 = vmax.f32 %v1030, 0.0
        %v1190 = vmax.f32 %v1079, 0.0
        %v1191 = vmax.f32 %v1128, 0.0
        %v1192 = vmax.f32 %v788, 0.0
        %v1193 = vmax.f32 %v837, 0.0
        %v1194 = vmax.f32 %v886, 0.0
        %v1195 = vmax.f32 %v935, 0.0
        %v1196 = vmax.f32 %v984, 0.0
        %v1197 = vmax.f32 %v1033, 0.0
        %v1198 = vmax.f32 %v1082, 0.0
        %v1199 = vmax.f32 %v1131, 0.0
        %v1200 = vmax.f32 %v790, 0.0
        %v1201 = vmax.f32 %v839, 0.0
        %v1202 = vmax.f32 %v888, 0.0
        %v1203 = vmax.f32 %v937, 0.0
        %v1204 = vmax.f32 %v986, 0.0
        %v1205 = vmax.f32 %v1035, 0.0
        %v1206 = vmax.f32 %v1084, 0.0
        %v1207 = vmax.f32 %v1133, 0.0
        %v1208 = vmax.f32 %v793, 0.0
        %v1209 = vmax.f32 %v842, 0.0
        %v1210 = vmax.f32 %v891, 0.0
        %v1211 = vmax.f32 %v940, 0.0
        %v1212 = vmax.f32 %v989, 0.0
        %v1213 = vmax.f32 %v1038, 0.0
        %v1214 = vmax.f32 %v1087, 0.0
        %v1215 = vmax.f32 %v1136, 0.0
        %v1216 = vmax.f32 %v795, 0.0
        %v1217 = vmax.f32 %v844, 0.0
        %v1218 = vmax.f32 %v893, 0.0
        %v1219 = vmax.f32 %v942, 0.0
        %v1220 = vmax.f32 %v991, 0.0
        %v1221 = vmax.f32 %v1040, 0.0
        %v1222 = vmax.f32 %v1089, 0.0
        %v1223 = vmax.f32 %v1138, 0.0
        %v1224 = vmax.f32 %v798, 0.0
        %v1225 = vmax.f32 %v847, 0.0
        %v1226 = vmax.f32 %v896, 0.0
        %v1227 = vmax.f32 %v945, 0.0
        %v1228 = vmax.f32 %v994, 0.0
        %v1229 = vmax.f32 %v1043, 0.0
        %v1230 = vmax.f32 %v1092, 0.0
        %v1231 = vmax.f32 %v1141, 0.0
        %v1232 = vmax.f32 %v800, 0.0
        %v1233 = vmax.f32 %v849, 0.0
        %v1234 = vmax.f32 %v898, 0.0
        %v1235 = vmax.f32 %v947, 0.0
        %v1236 = vmax.f32 %v996, 0.0
        %v1237 = vmax.f32 %v1045, 0.0
        %v1238 = vmax.f32 %v1094, 0.0
        %v1239 = vmax.f32 %v1143, 0.0
        %v1240 = vmax.f32 %v803, 0.0
        %v1241 = vmax.f32 %v852, 0.0
        %v1242 = vmax.f32 %v901, 0.0
        %v1243 = vmax.f32 %v950, 0.0
        %v1244 = vmax.f32 %v999, 0.0
        %v1245 = vmax.f32 %v1048, 0.0
        %v1246 = vmax.f32 %v1097, 0.0
        %v1247 = vmax.f32 %v1146, 0.0
        %v1248 = vmax.f32 %v805, 0.0
        %v1249 = vmax.f32 %v854, 0.0
        %v1250 = vmax.f32 %v903, 0.0
        %v1251 = vmax.f32 %v952, 0.0
        %v1252 = vmax.f32 %v1001, 0.0
        %v1253 = vmax.f32 %v1050, 0.0
        %v1254 = vmax.f32 %v1099, 0.0
        %v1255 = vmax.f32 %v1148, 0.0
        %v1256 = vmax.f32 %v808, 0.0
        %v1257 = vmax.f32 %v857, 0.0
        %v1258 = vmax.f32 %v906, 0.0
        %v1259 = vmax.f32 %v955, 0.0
        %v1260 = vmax.f32 %v1004, 0.0
        %v1261 = vmax.f32 %v1053, 0.0
        %v1262 = vmax.f32 %v1102, 0.0
        %v1263 = vmax.f32 %v1151, 0.0
        %v1264 = vmax.f32 %v810, 0.0
        %v1265 = vmax.f32 %v859, 0.0
        %v1266 = vmax.f32 %v908, 0.0
        %v1267 = vmax.f32 %v957, 0.0
        %v1268 = vmax.f32 %v1006, 0.0
        %v1269 = vmax.f32 %v1055, 0.0
        %v1270 = vmax.f32 %v1104, 0.0
        %v1271 = vmax.f32 %v1153, 0.0
        %v1272 = vmax.f32 %v813, 0.0
        %v1273 = vmax.f32 %v862, 0.0
        %v1274 = vmax.f32 %v911, 0.0
        %v1275 = vmax.f32 %v960, 0.0
        %v1276 = vmax.f32 %v1009, 0.0
        %v1277 = vmax.f32 %v1058, 0.0
        %v1278 = vmax.f32 %v1107, 0.0
        %v1279 = vmax.f32 %v1156, 0.0
        %v1280 = vmax.f32 %v815, 0.0
        %v1281 = vmax.f32 %v864, 0.0
        %v1282 = vmax.f32 %v913, 0.0
        %v1283 = vmax.f32 %v962, 0.0
        %v1284 = vmax.f32 %v1011, 0.0
        %v1285 = vmax.f32 %v1060, 0.0
        %v1286 = vmax.f32 %v1109, 0.0
        %v1287 = vmax.f32 %v1158, 0.0
        %v1288 = vpack.c.bf16 %v1168, %v1160
        %v1289 = vpack.c.bf16 %v1169, %v1161
        %v1290 = vpack.c.bf16 %v1170, %v1162
        %v1291 = vpack.c.bf16 %v1171, %v1163
        %v1292 = vpack.c.bf16 %v1184, %v1176
        %v1293 = vpack.c.bf16 %v1185, %v1177
        %v1294 = vpack.c.bf16 %v1186, %v1178
        %v1295 = vpack.c.bf16 %v1187, %v1179
        %v1296 = vpack.c.bf16 %v1200, %v1192
        %v1297 = vpack.c.bf16 %v1201, %v1193
        %v1298 = vpack.c.bf16 %v1202, %v1194
        %v1299 = vpack.c.bf16 %v1203, %v1195
        %v1300 = vpack.c.bf16 %v1216, %v1208
        %v1301 = vpack.c.bf16 %v1217, %v1209
        %v1302 = vpack.c.bf16 %v1218, %v1210
        %v1303 = vpack.c.bf16 %v1219, %v1211
        %v1304 = vpack.c.bf16 %v1232, %v1224
        %v1305 = vpack.c.bf16 %v1233, %v1225
        %v1306 = vpack.c.bf16 %v1234, %v1226
        %v1307 = vpack.c.bf16 %v1235, %v1227
        %v1308 = vpack.c.bf16 %v1248, %v1240
        %v1309 = vpack.c.bf16 %v1249, %v1241
        %v1310 = vpack.c.bf16 %v1250, %v1242
        %v1311 = vpack.c.bf16 %v1251, %v1243
        %v1312 = vpack.c.bf16 %v1264, %v1256
        %v1313 = vpack.c.bf16 %v1265, %v1257
        %v1314 = vpack.c.bf16 %v1266, %v1258
        %v1315 = vpack.c.bf16 %v1267, %v1259
        %v1316 = vpack.c.bf16 %v1280, %v1272
        %v1317 = vpack.c.bf16 %v1281, %v1273
        %v1318 = vpack.c.bf16 %v1282, %v1274
        %v1319 = vpack.c.bf16 %v1283, %v1275
        %v1320 = vld [vmem:[#allocation2] sm:$0xff]
        %v1321 = vld [vmem:[#allocation2 + $0x8] sm:$0xff]
        %v1322 = vld [vmem:[#allocation2 + $0x10] sm:$0xff]
        %v1323 = vld [vmem:[#allocation2 + $0x18] sm:$0xff]
        %v1324 = vld [vmem:[#allocation2 + $0x20] sm:$0xff]
        %v1325 = vld [vmem:[#allocation2 + $0x28] sm:$0xff]
        %v1326 = vld [vmem:[#allocation2 + $0x30] sm:$0xff]
        %v1327 = vld [vmem:[#allocation2 + $0x38] sm:$0xff]
        %v1328 = vld [vmem:[#allocation2 + $0x40] sm:$0xff]
        %v1329 = vld [vmem:[#allocation2 + $0x48] sm:$0xff]
        %v1330 = vld [vmem:[#allocation2 + $0x50] sm:$0xff]
        %v1331 = vld [vmem:[#allocation2 + $0x58] sm:$0xff]
        %v1332 = vld [vmem:[#allocation2 + $0x60] sm:$0xff]
        %v1333 = vld [vmem:[#allocation2 + $0x68] sm:$0xff]
        %v1334 = vld [vmem:[#allocation2 + $0x70] sm:$0xff]
        %v1335 = vld [vmem:[#allocation2 + $0x78] sm:$0xff]
        %v1336 = vld [vmem:[#allocation2 + $0x80] sm:$0xff]
        %v1337 = vld [vmem:[#allocation2 + $0x88] sm:$0xff]
        %v1338 = vld [vmem:[#allocation2 + $0x90] sm:$0xff]
        %v1339 = vld [vmem:[#allocation2 + $0x98] sm:$0xff]
        %v1340 = vld [vmem:[#allocation2 + $0xa0] sm:$0xff]
        %v1341 = vld [vmem:[#allocation2 + $0xa8] sm:$0xff]
        %v1342 = vld [vmem:[#allocation2 + $0xb0] sm:$0xff]
        %v1343 = vld [vmem:[#allocation2 + $0xb8] sm:$0xff]
        %v1344 = vld [vmem:[#allocation2 + $0xc0] sm:$0xff]
        %v1345 = vld [vmem:[#allocation2 + $0xc8] sm:$0xff]
        %v1346 = vld [vmem:[#allocation2 + $0xd0] sm:$0xff]
        %v1347 = vld [vmem:[#allocation2 + $0xd8] sm:$0xff]
        %v1348 = vld [vmem:[#allocation2 + $0xe0] sm:$0xff]
        %v1349 = vld [vmem:[#allocation2 + $0xe8] sm:$0xff]
        %v1350 = vld [vmem:[#allocation2 + $0xf0] sm:$0xff]
        %v1351 = vld [vmem:[#allocation2 + $0xf8] sm:$0xff]
        %v1352 = vld [vmem:[#allocation2 + $0x100] sm:$0xff]
        %v1353 = vld [vmem:[#allocation2 + $0x108] sm:$0xff]
        %v1354 = vld [vmem:[#allocation2 + $0x110] sm:$0xff]
        %v1355 = vld [vmem:[#allocation2 + $0x118] sm:$0xff]
        %v1356 = vld [vmem:[#allocation2 + $0x120] sm:$0xff]
        %v1357 = vld [vmem:[#allocation2 + $0x128] sm:$0xff]
        %v1358 = vld [vmem:[#allocation2 + $0x130] sm:$0xff]
        %v1359 = vld [vmem:[#allocation2 + $0x138] sm:$0xff]
        %v1360 = vld [vmem:[#allocation2 + $0x140] sm:$0xff]
        %v1361 = vld [vmem:[#allocation2 + $0x148] sm:$0xff]
        %v1362 = vld [vmem:[#allocation2 + $0x150] sm:$0xff]
        %v1363 = vld [vmem:[#allocation2 + $0x158] sm:$0xff]
        %v1364 = vld [vmem:[#allocation2 + $0x160] sm:$0xff]
        %v1365 = vld [vmem:[#allocation2 + $0x168] sm:$0xff]
        %v1366 = vld [vmem:[#allocation2 + $0x170] sm:$0xff]
        %v1367 = vld [vmem:[#allocation2 + $0x178] sm:$0xff]
        %v1368 = vld [vmem:[#allocation2 + $0x180] sm:$0xff]
        %v1369 = vld [vmem:[#allocation2 + $0x188] sm:$0xff]
        %v1370 = vld [vmem:[#allocation2 + $0x190] sm:$0xff]
        %v1371 = vld [vmem:[#allocation2 + $0x198] sm:$0xff]
        %v1372 = vld [vmem:[#allocation2 + $0x1a0] sm:$0xff]
        %v1373 = vld [vmem:[#allocation2 + $0x1a8] sm:$0xff]
        %v1374 = vld [vmem:[#allocation2 + $0x1b0] sm:$0xff]
        %v1375 = vld [vmem:[#allocation2 + $0x1b8] sm:$0xff]
        %v1376 = vld [vmem:[#allocation2 + $0x1c0] sm:$0xff]
        %v1377 = vld [vmem:[#allocation2 + $0x1c8] sm:$0xff]
        %v1378 = vld [vmem:[#allocation2 + $0x1d0] sm:$0xff]
        %v1379 = vld [vmem:[#allocation2 + $0x1d8] sm:$0xff]
        %v1380 = vld [vmem:[#allocation2 + $0x1e0] sm:$0xff]
        %v1381 = vld [vmem:[#allocation2 + $0x1e8] sm:$0xff]
        %v1382 = vld [vmem:[#allocation2 + $0x1f0] sm:$0xff]
        %v1383 = vld [vmem:[#allocation2 + $0x1f8] sm:$0xff]
        %v1384 = vld [vmem:[#allocation2 + $0x200] sm:$0xff]
        %v1385 = vld [vmem:[#allocation2 + $0x208] sm:$0xff]
        %v1386 = vld [vmem:[#allocation2 + $0x210] sm:$0xff]
        %v1387 = vld [vmem:[#allocation2 + $0x218] sm:$0xff]
        %v1388 = vld [vmem:[#allocation2 + $0x220] sm:$0xff]
        %v1389 = vld [vmem:[#allocation2 + $0x228] sm:$0xff]
        %v1390 = vld [vmem:[#allocation2 + $0x230] sm:$0xff]
        %v1391 = vld [vmem:[#allocation2 + $0x238] sm:$0xff]
        %v1392 = vld [vmem:[#allocation2 + $0x240] sm:$0xff]
        %v1393 = vld [vmem:[#allocation2 + $0x248] sm:$0xff]
        %v1394 = vld [vmem:[#allocation2 + $0x250] sm:$0xff]
        %v1395 = vld [vmem:[#allocation2 + $0x258] sm:$0xff]
        %v1396 = vld [vmem:[#allocation2 + $0x260] sm:$0xff]
        %v1397 = vld [vmem:[#allocation2 + $0x268] sm:$0xff]
        %v1398 = vld [vmem:[#allocation2 + $0x270] sm:$0xff]
        %v1399 = vld [vmem:[#allocation2 + $0x278] sm:$0xff]
        %v1400 = vld [vmem:[#allocation2 + $0x280] sm:$0xff]
        %v1401 = vld [vmem:[#allocation2 + $0x288] sm:$0xff]
        %v1402 = vld [vmem:[#allocation2 + $0x290] sm:$0xff]
        %v1403 = vld [vmem:[#allocation2 + $0x298] sm:$0xff]
        %v1404 = vld [vmem:[#allocation2 + $0x2a0] sm:$0xff]
        %v1405 = vld [vmem:[#allocation2 + $0x2a8] sm:$0xff]
        %v1406 = vld [vmem:[#allocation2 + $0x2b0] sm:$0xff]
        %v1407 = vld [vmem:[#allocation2 + $0x2b8] sm:$0xff]
        %v1408 = vld [vmem:[#allocation2 + $0x2c0] sm:$0xff]
        %v1409 = vld [vmem:[#allocation2 + $0x2c8] sm:$0xff]
        %v1410 = vld [vmem:[#allocation2 + $0x2d0] sm:$0xff]
        %v1411 = vld [vmem:[#allocation2 + $0x2d8] sm:$0xff]
        %v1412 = vld [vmem:[#allocation2 + $0x2e0] sm:$0xff]
        %v1413 = vld [vmem:[#allocation2 + $0x2e8] sm:$0xff]
        %v1414 = vld [vmem:[#allocation2 + $0x2f0] sm:$0xff]
        %v1415 = vld [vmem:[#allocation2 + $0x2f8] sm:$0xff]
        %v1416 = vld [vmem:[#allocation2 + $0x300] sm:$0xff]
        %v1417 = vld [vmem:[#allocation2 + $0x308] sm:$0xff]
        %v1418 = vld [vmem:[#allocation2 + $0x310] sm:$0xff]
        %v1419 = vld [vmem:[#allocation2 + $0x318] sm:$0xff]
        %v1420 = vld [vmem:[#allocation2 + $0x320] sm:$0xff]
        %v1421 = vld [vmem:[#allocation2 + $0x328] sm:$0xff]
        %v1422 = vld [vmem:[#allocation2 + $0x330] sm:$0xff]
        %v1423 = vld [vmem:[#allocation2 + $0x338] sm:$0xff]
        %v1424 = vld [vmem:[#allocation2 + $0x340] sm:$0xff]
        %v1425 = vld [vmem:[#allocation2 + $0x348] sm:$0xff]
        %v1426 = vld [vmem:[#allocation2 + $0x350] sm:$0xff]
        %v1427 = vld [vmem:[#allocation2 + $0x358] sm:$0xff]
        %v1428 = vld [vmem:[#allocation2 + $0x360] sm:$0xff]
        %v1429 = vld [vmem:[#allocation2 + $0x368] sm:$0xff]
        %v1430 = vld [vmem:[#allocation2 + $0x370] sm:$0xff]
        %v1431 = vld [vmem:[#allocation2 + $0x378] sm:$0xff]
        %v1432 = vld [vmem:[#allocation2 + $0x380] sm:$0xff]
        %v1433 = vld [vmem:[#allocation2 + $0x388] sm:$0xff]
        %v1434 = vld [vmem:[#allocation2 + $0x390] sm:$0xff]
        %v1435 = vld [vmem:[#allocation2 + $0x398] sm:$0xff]
        %v1436 = vld [vmem:[#allocation2 + $0x3a0] sm:$0xff]
        %v1437 = vld [vmem:[#allocation2 + $0x3a8] sm:$0xff]
        %v1438 = vld [vmem:[#allocation2 + $0x3b0] sm:$0xff]
        %v1439 = vld [vmem:[#allocation2 + $0x3b8] sm:$0xff]
        %v1440 = vld [vmem:[#allocation2 + $0x3c0] sm:$0xff]
        %v1441 = vld [vmem:[#allocation2 + $0x3c8] sm:$0xff]
        %v1442 = vld [vmem:[#allocation2 + $0x3d0] sm:$0xff]
        %v1443 = vld [vmem:[#allocation2 + $0x3d8] sm:$0xff]
        %v1444 = vld [vmem:[#allocation2 + $0x3e0] sm:$0xff]
        %v1445 = vld [vmem:[#allocation2 + $0x3e8] sm:$0xff]
        %v1446 = vld [vmem:[#allocation2 + $0x3f0] sm:$0xff]
        %v1447 = vld [vmem:[#allocation2 + $0x3f8] sm:$0xff]
        %v1448 = vld [vmem:[%s6] sm:$0xf]
        %v1450 = vperm.slane %v1448, 0
        %v1451 = vperm.slane %v1448, 1
        %v1452 = vperm.slane %v1448, 2
        %v1453 = vperm.slane %v1448, 3
        %v1586 = vunpack.c.l.b16 %v1320
        %v1587 = vunpack.c.h.b16 %v1320
        %v1588 = vunpack.c.l.b16 %v1321
        %v1589 = vunpack.c.h.b16 %v1321
        %v1590 = vunpack.c.l.b16 %v1322
        %v1591 = vunpack.c.h.b16 %v1322
        %v1592 = vunpack.c.l.b16 %v1323
        %v1593 = vunpack.c.h.b16 %v1323
        %v1594 = vunpack.c.l.b16 %v1324
        %v1595 = vunpack.c.h.b16 %v1324
        %v1596 = vunpack.c.l.b16 %v1325
        %v1597 = vunpack.c.h.b16 %v1325
        %v1598 = vunpack.c.l.b16 %v1326
        %v1599 = vunpack.c.h.b16 %v1326
        %v1600 = vunpack.c.l.b16 %v1327
        %v1601 = vunpack.c.h.b16 %v1327
        %v1602 = vunpack.c.l.b16 %v1328
        %v1603 = vunpack.c.h.b16 %v1328
        %v1604 = vunpack.c.l.b16 %v1329
        %v1605 = vunpack.c.h.b16 %v1329
        %v1606 = vunpack.c.l.b16 %v1330
        %v1607 = vunpack.c.h.b16 %v1330
        %v1608 = vunpack.c.l.b16 %v1331
        %v1609 = vunpack.c.h.b16 %v1331
        %v1610 = vunpack.c.l.b16 %v1332
        %v1611 = vunpack.c.h.b16 %v1332
        %v1612 = vunpack.c.l.b16 %v1333
        %v1613 = vunpack.c.h.b16 %v1333
        %v1614 = vunpack.c.l.b16 %v1334
        %v1615 = vunpack.c.h.b16 %v1334
        %v1616 = vunpack.c.l.b16 %v1335
        %v1617 = vunpack.c.h.b16 %v1335
        %v1618 = vunpack.c.l.b16 %v1336
        %v1619 = vunpack.c.h.b16 %v1336
        %v1620 = vunpack.c.l.b16 %v1337
        %v1621 = vunpack.c.h.b16 %v1337
        %v1622 = vunpack.c.l.b16 %v1338
        %v1623 = vunpack.c.h.b16 %v1338
        %v1624 = vunpack.c.l.b16 %v1339
        %v1625 = vunpack.c.h.b16 %v1339
        %v1626 = vunpack.c.l.b16 %v1340
        %v1627 = vunpack.c.h.b16 %v1340
        %v1628 = vunpack.c.l.b16 %v1341
        %v1629 = vunpack.c.h.b16 %v1341
        %v1630 = vunpack.c.l.b16 %v1342
        %v1631 = vunpack.c.h.b16 %v1342
        %v1632 = vunpack.c.l.b16 %v1343
        %v1633 = vunpack.c.h.b16 %v1343
        %v1634 = vunpack.c.l.b16 %v1344
        %v1635 = vunpack.c.h.b16 %v1344
        %v1636 = vunpack.c.l.b16 %v1345
        %v1637 = vunpack.c.h.b16 %v1345
        %v1638 = vunpack.c.l.b16 %v1346
        %v1639 = vunpack.c.h.b16 %v1346
        %v1640 = vunpack.c.l.b16 %v1347
        %v1641 = vunpack.c.h.b16 %v1347
        %v1642 = vunpack.c.l.b16 %v1348
        %v1643 = vunpack.c.h.b16 %v1348
        %v1644 = vunpack.c.l.b16 %v1349
        %v1645 = vunpack.c.h.b16 %v1349
        %v1646 = vunpack.c.l.b16 %v1350
        %v1647 = vunpack.c.h.b16 %v1350
        %v1648 = vunpack.c.l.b16 %v1351
        %v1649 = vunpack.c.h.b16 %v1351
        %v1650 = vunpack.c.l.b16 %v1352
        %v1651 = vunpack.c.h.b16 %v1352
        %v1652 = vunpack.c.l.b16 %v1353
        %v1653 = vunpack.c.h.b16 %v1353
        %v1654 = vunpack.c.l.b16 %v1354
        %v1655 = vunpack.c.h.b16 %v1354
        %v1656 = vunpack.c.l.b16 %v1355
        %v1657 = vunpack.c.h.b16 %v1355
        %v1658 = vunpack.c.l.b16 %v1356
        %v1659 = vunpack.c.h.b16 %v1356
        %v1660 = vunpack.c.l.b16 %v1357
        %v1661 = vunpack.c.h.b16 %v1357
        %v1662 = vunpack.c.l.b16 %v1358
        %v1663 = vunpack.c.h.b16 %v1358
        %v1664 = vunpack.c.l.b16 %v1359
        %v1665 = vunpack.c.h.b16 %v1359
        %v1666 = vunpack.c.l.b16 %v1360
        %v1667 = vunpack.c.h.b16 %v1360
        %v1668 = vunpack.c.l.b16 %v1361
        %v1669 = vunpack.c.h.b16 %v1361
        %v1670 = vunpack.c.l.b16 %v1362
        %v1671 = vunpack.c.h.b16 %v1362
        %v1672 = vunpack.c.l.b16 %v1363
        %v1673 = vunpack.c.h.b16 %v1363
        %v1674 = vunpack.c.l.b16 %v1364
        %v1675 = vunpack.c.h.b16 %v1364
        %v1676 = vunpack.c.l.b16 %v1365
        %v1677 = vunpack.c.h.b16 %v1365
        %v1678 = vunpack.c.l.b16 %v1366
        %v1679 = vunpack.c.h.b16 %v1366
        %v1680 = vunpack.c.l.b16 %v1367
        %v1681 = vunpack.c.h.b16 %v1367
        %v1682 = vunpack.c.l.b16 %v1368
        %v1683 = vunpack.c.h.b16 %v1368
        %v1684 = vunpack.c.l.b16 %v1369
        %v1685 = vunpack.c.h.b16 %v1369
        %v1686 = vunpack.c.l.b16 %v1370
        %v1687 = vunpack.c.h.b16 %v1370
        %v1688 = vunpack.c.l.b16 %v1371
        %v1689 = vunpack.c.h.b16 %v1371
        %v1690 = vunpack.c.l.b16 %v1372
        %v1691 = vunpack.c.h.b16 %v1372
        %v1692 = vunpack.c.l.b16 %v1373
        %v1693 = vunpack.c.h.b16 %v1373
        %v1694 = vunpack.c.l.b16 %v1374
        %v1695 = vunpack.c.h.b16 %v1374
        %v1696 = vunpack.c.l.b16 %v1375
        %v1697 = vunpack.c.h.b16 %v1375
        %v1698 = vunpack.c.l.b16 %v1376
        %v1699 = vunpack.c.h.b16 %v1376
        %v1700 = vunpack.c.l.b16 %v1377
        %v1701 = vunpack.c.h.b16 %v1377
        %v1702 = vunpack.c.l.b16 %v1378
        %v1703 = vunpack.c.h.b16 %v1378
        %v1704 = vunpack.c.l.b16 %v1379
        %v1705 = vunpack.c.h.b16 %v1379
        %v1706 = vunpack.c.l.b16 %v1380
        %v1707 = vunpack.c.h.b16 %v1380
        %v1708 = vunpack.c.l.b16 %v1381
        %v1709 = vunpack.c.h.b16 %v1381
        %v1710 = vunpack.c.l.b16 %v1382
        %v1711 = vunpack.c.h.b16 %v1382
        %v1712 = vunpack.c.l.b16 %v1383
        %v1713 = vunpack.c.h.b16 %v1383
        %v1714 = vunpack.c.l.b16 %v1384
        %v1715 = vunpack.c.h.b16 %v1384
        %v1716 = vunpack.c.l.b16 %v1385
        %v1717 = vunpack.c.h.b16 %v1385
        %v1718 = vunpack.c.l.b16 %v1386
        %v1719 = vunpack.c.h.b16 %v1386
        %v1720 = vunpack.c.l.b16 %v1387
        %v1721 = vunpack.c.h.b16 %v1387
        %v1722 = vunpack.c.l.b16 %v1388
        %v1723 = vunpack.c.h.b16 %v1388
        %v1724 = vunpack.c.l.b16 %v1389
        %v1725 = vunpack.c.h.b16 %v1389
        %v1726 = vunpack.c.l.b16 %v1390
        %v1727 = vunpack.c.h.b16 %v1390
        %v1728 = vunpack.c.l.b16 %v1391
        %v1729 = vunpack.c.h.b16 %v1391
        %v1730 = vunpack.c.l.b16 %v1392
        %v1731 = vunpack.c.h.b16 %v1392
        %v1732 = vunpack.c.l.b16 %v1393
        %v1733 = vunpack.c.h.b16 %v1393
        %v1734 = vunpack.c.l.b16 %v1394
        %v1735 = vunpack.c.h.b16 %v1394
        %v1736 = vunpack.c.l.b16 %v1395
        %v1737 = vunpack.c.h.b16 %v1395
        %v1738 = vunpack.c.l.b16 %v1396
        %v1739 = vunpack.c.h.b16 %v1396
        %v1740 = vunpack.c.l.b16 %v1397
        %v1741 = vunpack.c.h.b16 %v1397
        %v1742 = vunpack.c.l.b16 %v1398
        %v1743 = vunpack.c.h.b16 %v1398
        %v1744 = vunpack.c.l.b16 %v1399
        %v1745 = vunpack.c.h.b16 %v1399
        %v1746 = vunpack.c.l.b16 %v1400
        %v1747 = vunpack.c.h.b16 %v1400
        %v1748 = vunpack.c.l.b16 %v1401
        %v1749 = vunpack.c.h.b16 %v1401
        %v1750 = vunpack.c.l.b16 %v1402
        %v1751 = vunpack.c.h.b16 %v1402
        %v1752 = vunpack.c.l.b16 %v1403
        %v1753 = vunpack.c.h.b16 %v1403
        %v1754 = vunpack.c.l.b16 %v1404
        %v1755 = vunpack.c.h.b16 %v1404
        %v1756 = vunpack.c.l.b16 %v1405
        %v1757 = vunpack.c.h.b16 %v1405
        %v1758 = vunpack.c.l.b16 %v1406
        %v1759 = vunpack.c.h.b16 %v1406
        %v1760 = vunpack.c.l.b16 %v1407
        %v1761 = vunpack.c.h.b16 %v1407
        %v1762 = vunpack.c.l.b16 %v1408
        %v1763 = vunpack.c.h.b16 %v1408
        %v1764 = vunpack.c.l.b16 %v1409
        %v1765 = vunpack.c.h.b16 %v1409
        %v1766 = vunpack.c.l.b16 %v1410
        %v1767 = vunpack.c.h.b16 %v1410
        %v1768 = vunpack.c.l.b16 %v1411
        %v1769 = vunpack.c.h.b16 %v1411
        %v1770 = vunpack.c.l.b16 %v1412
        %v1771 = vunpack.c.h.b16 %v1412
        %v1772 = vunpack.c.l.b16 %v1413
        %v1773 = vunpack.c.h.b16 %v1413
        %v1774 = vunpack.c.l.b16 %v1414
        %v1775 = vunpack.c.h.b16 %v1414
        %v1776 = vunpack.c.l.b16 %v1415
        %v1777 = vunpack.c.h.b16 %v1415
        %v1778 = vunpack.c.l.b16 %v1416
        %v1779 = vunpack.c.h.b16 %v1416
        %v1780 = vunpack.c.l.b16 %v1417
        %v1781 = vunpack.c.h.b16 %v1417
        %v1782 = vunpack.c.l.b16 %v1418
        %v1783 = vunpack.c.h.b16 %v1418
        %v1784 = vunpack.c.l.b16 %v1419
        %v1785 = vunpack.c.h.b16 %v1419
        %v1786 = vunpack.c.l.b16 %v1420
        %v1787 = vunpack.c.h.b16 %v1420
        %v1788 = vunpack.c.l.b16 %v1421
        %v1789 = vunpack.c.h.b16 %v1421
        %v1790 = vunpack.c.l.b16 %v1422
        %v1791 = vunpack.c.h.b16 %v1422
        %v1792 = vunpack.c.l.b16 %v1423
        %v1793 = vunpack.c.h.b16 %v1423
        %v1794 = vunpack.c.l.b16 %v1424
        %v1795 = vunpack.c.h.b16 %v1424
        %v1796 = vunpack.c.l.b16 %v1425
        %v1797 = vunpack.c.h.b16 %v1425
        %v1798 = vunpack.c.l.b16 %v1426
        %v1799 = vunpack.c.h.b16 %v1426
        %v1800 = vunpack.c.l.b16 %v1427
        %v1801 = vunpack.c.h.b16 %v1427
        %v1802 = vunpack.c.l.b16 %v1428
        %v1803 = vunpack.c.h.b16 %v1428
        %v1804 = vunpack.c.l.b16 %v1429
        %v1805 = vunpack.c.h.b16 %v1429
        %v1806 = vunpack.c.l.b16 %v1430
        %v1807 = vunpack.c.h.b16 %v1430
        %v1808 = vunpack.c.l.b16 %v1431
        %v1809 = vunpack.c.h.b16 %v1431
        %v1810 = vunpack.c.l.b16 %v1432
        %v1811 = vunpack.c.h.b16 %v1432
        %v1812 = vunpack.c.l.b16 %v1433
        %v1813 = vunpack.c.h.b16 %v1433
        %v1814 = vunpack.c.l.b16 %v1434
        %v1815 = vunpack.c.h.b16 %v1434
        %v1816 = vunpack.c.l.b16 %v1435
        %v1817 = vunpack.c.h.b16 %v1435
        %v1818 = vunpack.c.l.b16 %v1436
        %v1819 = vunpack.c.h.b16 %v1436
        %v1820 = vunpack.c.l.b16 %v1437
        %v1821 = vunpack.c.h.b16 %v1437
        %v1822 = vunpack.c.l.b16 %v1438
        %v1823 = vunpack.c.h.b16 %v1438
        %v1824 = vunpack.c.l.b16 %v1439
        %v1825 = vunpack.c.h.b16 %v1439
        %v1826 = vunpack.c.l.b16 %v1440
        %v1827 = vunpack.c.h.b16 %v1440
        %v1828 = vunpack.c.l.b16 %v1441
        %v1829 = vunpack.c.h.b16 %v1441
        %v1830 = vunpack.c.l.b16 %v1442
        %v1831 = vunpack.c.h.b16 %v1442
        %v1832 = vunpack.c.l.b16 %v1443
        %v1833 = vunpack.c.h.b16 %v1443
        %v1834 = vunpack.c.l.b16 %v1444
        %v1835 = vunpack.c.h.b16 %v1444
        %v1836 = vunpack.c.l.b16 %v1445
        %v1837 = vunpack.c.h.b16 %v1445
        %v1838 = vunpack.c.l.b16 %v1446
        %v1839 = vunpack.c.h.b16 %v1446
        %v1840 = vunpack.c.l.b16 %v1447
        %v1841 = vunpack.c.h.b16 %v1447
        %v1842 = vpack.c.b16 %v1590, %v1586
        %v1843 = vpack.c.b16 %v1591, %v1587
        %v1844 = vpack.c.b16 %v1592, %v1588
        %v1845 = vpack.c.b16 %v1593, %v1589
        %v1846 = vpack.c.b16 %v1598, %v1594
        %v1847 = vpack.c.b16 %v1599, %v1595
        %v1848 = vpack.c.b16 %v1600, %v1596
        %v1849 = vpack.c.b16 %v1601, %v1597
        %v1850 = vpack.c.b16 %v1606, %v1602
        %v1851 = vpack.c.b16 %v1607, %v1603
        %v1852 = vpack.c.b16 %v1608, %v1604
        %v1853 = vpack.c.b16 %v1609, %v1605
        %v1854 = vpack.c.b16 %v1614, %v1610
        %v1855 = vpack.c.b16 %v1615, %v1611
        %v1856 = vpack.c.b16 %v1616, %v1612
        %v1857 = vpack.c.b16 %v1617, %v1613
        %v1858 = vpack.c.b16 %v1622, %v1618
        %v1859 = vpack.c.b16 %v1623, %v1619
        %v1860 = vpack.c.b16 %v1624, %v1620
        %v1861 = vpack.c.b16 %v1625, %v1621
        %v1862 = vpack.c.b16 %v1630, %v1626
        %v1863 = vpack.c.b16 %v1631, %v1627
        %v1864 = vpack.c.b16 %v1632, %v1628
        %v1865 = vpack.c.b16 %v1633, %v1629
        %v1866 = vpack.c.b16 %v1638, %v1634
        %v1867 = vpack.c.b16 %v1639, %v1635
        %v1868 = vpack.c.b16 %v1640, %v1636
        %v1869 = vpack.c.b16 %v1641, %v1637
        %v1870 = vpack.c.b16 %v1646, %v1642
        %v1871 = vpack.c.b16 %v1647, %v1643
        %v1872 = vpack.c.b16 %v1648, %v1644
        %v1873 = vpack.c.b16 %v1649, %v1645
        %v1874 = vpack.c.b16 %v1654, %v1650
        %v1875 = vpack.c.b16 %v1655, %v1651
        %v1876 = vpack.c.b16 %v1656, %v1652
        %v1877 = vpack.c.b16 %v1657, %v1653
        %v1878 = vpack.c.b16 %v1662, %v1658
        %v1879 = vpack.c.b16 %v1663, %v1659
        %v1880 = vpack.c.b16 %v1664, %v1660
        %v1881 = vpack.c.b16 %v1665, %v1661
        %v1882 = vpack.c.b16 %v1670, %v1666
        %v1883 = vpack.c.b16 %v1671, %v1667
        %v1884 = vpack.c.b16 %v1672, %v1668
        %v1885 = vpack.c.b16 %v1673, %v1669
        %v1886 = vpack.c.b16 %v1678, %v1674
        %v1887 = vpack.c.b16 %v1679, %v1675
        %v1888 = vpack.c.b16 %v1680, %v1676
        %v1889 = vpack.c.b16 %v1681, %v1677
        %v1890 = vpack.c.b16 %v1686, %v1682
        %v1891 = vpack.c.b16 %v1687, %v1683
        %v1892 = vpack.c.b16 %v1688, %v1684
        %v1893 = vpack.c.b16 %v1689, %v1685
        %v1894 = vpack.c.b16 %v1694, %v1690
        %v1895 = vpack.c.b16 %v1695, %v1691
        %v1896 = vpack.c.b16 %v1696, %v1692
        %v1897 = vpack.c.b16 %v1697, %v1693
        %v1898 = vpack.c.b16 %v1702, %v1698
        %v1899 = vpack.c.b16 %v1703, %v1699
        %v1900 = vpack.c.b16 %v1704, %v1700
        %v1901 = vpack.c.b16 %v1705, %v1701
        %v1902 = vpack.c.b16 %v1710, %v1706
        %v1903 = vpack.c.b16 %v1711, %v1707
        %v1904 = vpack.c.b16 %v1712, %v1708
        %v1905 = vpack.c.b16 %v1713, %v1709
        %v1906 = vpack.c.b16 %v1718, %v1714
        %v1907 = vpack.c.b16 %v1719, %v1715
        %v1908 = vpack.c.b16 %v1720, %v1716
        %v1909 = vpack.c.b16 %v1721, %v1717
        %v1910 = vpack.c.b16 %v1726, %v1722
        %v1911 = vpack.c.b16 %v1727, %v1723
        %v1912 = vpack.c.b16 %v1728, %v1724
        %v1913 = vpack.c.b16 %v1729, %v1725
        %v1914 = vpack.c.b16 %v1734, %v1730
        %v1915 = vpack.c.b16 %v1735, %v1731
        %v1916 = vpack.c.b16 %v1736, %v1732
        %v1917 = vpack.c.b16 %v1737, %v1733
        %v1918 = vpack.c.b16 %v1742, %v1738
        %v1919 = vpack.c.b16 %v1743, %v1739
        %v1920 = vpack.c.b16 %v1744, %v1740
        %v1921 = vpack.c.b16 %v1745, %v1741
        %v1922 = vpack.c.b16 %v1750, %v1746
        %v1923 = vpack.c.b16 %v1751, %v1747
        %v1924 = vpack.c.b16 %v1752, %v1748
        %v1925 = vpack.c.b16 %v1753, %v1749
        %v1926 = vpack.c.b16 %v1758, %v1754
        %v1927 = vpack.c.b16 %v1759, %v1755
        %v1928 = vpack.c.b16 %v1760, %v1756
        %v1929 = vpack.c.b16 %v1761, %v1757
        %v1930 = vpack.c.b16 %v1766, %v1762
        %v1931 = vpack.c.b16 %v1767, %v1763
        %v1932 = vpack.c.b16 %v1768, %v1764
        %v1933 = vpack.c.b16 %v1769, %v1765
        %v1934 = vpack.c.b16 %v1774, %v1770
        %v1935 = vpack.c.b16 %v1775, %v1771
        %v1936 = vpack.c.b16 %v1776, %v1772
        %v1937 = vpack.c.b16 %v1777, %v1773
        %v1938 = vpack.c.b16 %v1782, %v1778
        %v1939 = vpack.c.b16 %v1783, %v1779
        %v1940 = vpack.c.b16 %v1784, %v1780
        %v1941 = vpack.c.b16 %v1785, %v1781
        %v1942 = vpack.c.b16 %v1790, %v1786
        %v1943 = vpack.c.b16 %v1791, %v1787
        %v1944 = vpack.c.b16 %v1792, %v1788
        %v1945 = vpack.c.b16 %v1793, %v1789
        %v1946 = vpack.c.b16 %v1798, %v1794
        %v1947 = vpack.c.b16 %v1799, %v1795
        %v1948 = vpack.c.b16 %v1800, %v1796
        %v1949 = vpack.c.b16 %v1801, %v1797
        %v1950 = vpack.c.b16 %v1806, %v1802
        %v1951 = vpack.c.b16 %v1807, %v1803
        %v1952 = vpack.c.b16 %v1808, %v1804
        %v1953 = vpack.c.b16 %v1809, %v1805
        %v1954 = vpack.c.b16 %v1814, %v1810
        %v1955 = vpack.c.b16 %v1815, %v1811
        %v1956 = vpack.c.b16 %v1816, %v1812
        %v1957 = vpack.c.b16 %v1817, %v1813
        %v1958 = vpack.c.b16 %v1822, %v1818
        %v1959 = vpack.c.b16 %v1823, %v1819
        %v1960 = vpack.c.b16 %v1824, %v1820
        %v1961 = vpack.c.b16 %v1825, %v1821
        %v1962 = vpack.c.b16 %v1830, %v1826
        %v1963 = vpack.c.b16 %v1831, %v1827
        %v1964 = vpack.c.b16 %v1832, %v1828
        %v1965 = vpack.c.b16 %v1833, %v1829
        %v1966 = vpack.c.b16 %v1838, %v1834
        %v1967 = vpack.c.b16 %v1839, %v1835
        %v1968 = vpack.c.b16 %v1840, %v1836
        %v1969 = vpack.c.b16 %v1841, %v1837
        %2098 = vmatpush.bf16.msra.mxu0 %v1870
        %2099 = vmatpush.bf16.msra.mxu0 %v1866
        %2100 = vmatpush.bf16.msra.mxu0 %v1862
        %2101 = vmatpush.bf16.msra.mxu0 %v1858
        %2102 = vmatpush.bf16.msra.mxu0 %v1854
        %2103 = vmatpush.bf16.msra.mxu0 %v1850
        %2104 = vmatpush.bf16.msra.mxu0 %v1846
        %2105 = vmatpush.bf16.msra.mxu0 %v1842
        %2106 = vmatmul.bf16.gmra.mxu0 %v1288
        %v2107 = vpop.f32.mrf.mxu0
        %v2108 = vadd.f32 %v1450, %v2107
        %v2109 = vpop.f32.mrf.mxu0
        %v2110 = vadd.f32 %v1450, %v2109
        %2111 = vmatmul.bf16.gmra.mxu0 %v1292
        %v2112 = vpop.f32.mrf.mxu0
        %v2113 = vadd.f32 %v1450, %v2112
        %v2114 = vpop.f32.mrf.mxu0
        %v2115 = vadd.f32 %v1450, %v2114
        %2116 = vmatmul.bf16.gmra.mxu0 %v1296
        %v2117 = vpop.f32.mrf.mxu0
        %v2118 = vadd.f32 %v1450, %v2117
        %v2119 = vpop.f32.mrf.mxu0
        %v2120 = vadd.f32 %v1450, %v2119
        %2121 = vmatmul.bf16.gmra.mxu0 %v1300
        %v2122 = vpop.f32.mrf.mxu0
        %v2123 = vadd.f32 %v1450, %v2122
        %v2124 = vpop.f32.mrf.mxu0
        %v2125 = vadd.f32 %v1450, %v2124
        %2126 = vmatmul.bf16.gmra.mxu0 %v1304
        %v2127 = vpop.f32.mrf.mxu0
        %v2128 = vadd.f32 %v1450, %v2127
        %v2129 = vpop.f32.mrf.mxu0
        %v2130 = vadd.f32 %v1450, %v2129
        %2131 = vmatmul.bf16.gmra.mxu0 %v1308
        %v2132 = vpop.f32.mrf.mxu0
        %v2133 = vadd.f32 %v1450, %v2132
        %v2134 = vpop.f32.mrf.mxu0
        %v2135 = vadd.f32 %v1450, %v2134
        %2136 = vmatmul.bf16.gmra.mxu0 %v1312
        %v2137 = vpop.f32.mrf.mxu0
        %v2138 = vadd.f32 %v1450, %v2137
        %v2139 = vpop.f32.mrf.mxu0
        %v2140 = vadd.f32 %v1450, %v2139
        %2141 = vmatmul.bf16.gmra.mxu0 %v1316
        %v2142 = vpop.f32.mrf.mxu0
        %v2143 = vadd.f32 %v1450, %v2142
        %v2144 = vpop.f32.mrf.mxu0
        %v2145 = vadd.f32 %v1450, %v2144
        %2146 = vdwg.mxu0
        %2147 = vmatpush.bf16.msra.mxu0 %v1902
        %2148 = vmatpush.bf16.msra.mxu0 %v1898
        %2149 = vmatpush.bf16.msra.mxu0 %v1894
        %2150 = vmatpush.bf16.msra.mxu0 %v1890
        %2151 = vmatpush.bf16.msra.mxu0 %v1886
        %2152 = vmatpush.bf16.msra.mxu0 %v1882
        %2153 = vmatpush.bf16.msra.mxu0 %v1878
        %2154 = vmatpush.bf16.msra.mxu0 %v1874
        %2155 = vmatmul.bf16.gmra.mxu0 %v1289
        %v2156 = vpop.f32.mrf.mxu0
        %v2157 = vadd.f32 %v2108, %v2156
        %v2158 = vpop.f32.mrf.mxu0
        %v2159 = vadd.f32 %v2110, %v2158
        %2160 = vmatmul.bf16.gmra.mxu0 %v1293
        %v2161 = vpop.f32.mrf.mxu0
        %v2162 = vadd.f32 %v2113, %v2161
        %v2163 = vpop.f32.mrf.mxu0
        %v2164 = vadd.f32 %v2115, %v2163
        %2165 = vmatmul.bf16.gmra.mxu0 %v1297
        %v2166 = vpop.f32.mrf.mxu0
        %v2167 = vadd.f32 %v2118, %v2166
        %v2168 = vpop.f32.mrf.mxu0
        %v2169 = vadd.f32 %v2120, %v2168
        %2170 = vmatmul.bf16.gmra.mxu0 %v1301
        %v2171 = vpop.f32.mrf.mxu0
        %v2172 = vadd.f32 %v2123, %v2171
        %v2173 = vpop.f32.mrf.mxu0
        %v2174 = vadd.f32 %v2125, %v2173
        %2175 = vmatmul.bf16.gmra.mxu0 %v1305
        %v2176 = vpop.f32.mrf.mxu0
        %v2177 = vadd.f32 %v2128, %v2176
        %v2178 = vpop.f32.mrf.mxu0
        %v2179 = vadd.f32 %v2130, %v2178
        %2180 = vmatmul.bf16.gmra.mxu0 %v1309
        %v2181 = vpop.f32.mrf.mxu0
        %v2182 = vadd.f32 %v2133, %v2181
        %v2183 = vpop.f32.mrf.mxu0
        %v2184 = vadd.f32 %v2135, %v2183
        %2185 = vmatmul.bf16.gmra.mxu0 %v1313
        %v2186 = vpop.f32.mrf.mxu0
        %v2187 = vadd.f32 %v2138, %v2186
        %v2188 = vpop.f32.mrf.mxu0
        %v2189 = vadd.f32 %v2140, %v2188
        %2190 = vmatmul.bf16.gmra.mxu0 %v1317
        %v2191 = vpop.f32.mrf.mxu0
        %v2192 = vadd.f32 %v2143, %v2191
        %v2193 = vpop.f32.mrf.mxu0
        %v2194 = vadd.f32 %v2145, %v2193
        %2195 = vdwg.mxu0
        %2196 = vmatpush.bf16.msra.mxu0 %v1934
        %2197 = vmatpush.bf16.msra.mxu0 %v1930
        %2198 = vmatpush.bf16.msra.mxu0 %v1926
        %2199 = vmatpush.bf16.msra.mxu0 %v1922
        %2200 = vmatpush.bf16.msra.mxu0 %v1918
        %2201 = vmatpush.bf16.msra.mxu0 %v1914
        %2202 = vmatpush.bf16.msra.mxu0 %v1910
        %2203 = vmatpush.bf16.msra.mxu0 %v1906
        %2204 = vmatmul.bf16.gmra.mxu0 %v1290
        %v2205 = vpop.f32.mrf.mxu0
        %v2206 = vadd.f32 %v2157, %v2205
        %v2207 = vpop.f32.mrf.mxu0
        %v2208 = vadd.f32 %v2159, %v2207
        %2209 = vmatmul.bf16.gmra.mxu0 %v1294
        %v2210 = vpop.f32.mrf.mxu0
        %v2211 = vadd.f32 %v2162, %v2210
        %v2212 = vpop.f32.mrf.mxu0
        %v2213 = vadd.f32 %v2164, %v2212
        %2214 = vmatmul.bf16.gmra.mxu0 %v1298
        %v2215 = vpop.f32.mrf.mxu0
        %v2216 = vadd.f32 %v2167, %v2215
        %v2217 = vpop.f32.mrf.mxu0
        %v2218 = vadd.f32 %v2169, %v2217
        %2219 = vmatmul.bf16.gmra.mxu0 %v1302
        %v2220 = vpop.f32.mrf.mxu0
        %v2221 = vadd.f32 %v2172, %v2220
        %v2222 = vpop.f32.mrf.mxu0
        %v2223 = vadd.f32 %v2174, %v2222
        %2224 = vmatmul.bf16.gmra.mxu0 %v1306
        %v2225 = vpop.f32.mrf.mxu0
        %v2226 = vadd.f32 %v2177, %v2225
        %v2227 = vpop.f32.mrf.mxu0
        %v2228 = vadd.f32 %v2179, %v2227
        %2229 = vmatmul.bf16.gmra.mxu0 %v1310
        %v2230 = vpop.f32.mrf.mxu0
        %v2231 = vadd.f32 %v2182, %v2230
        %v2232 = vpop.f32.mrf.mxu0
        %v2233 = vadd.f32 %v2184, %v2232
        %2234 = vmatmul.bf16.gmra.mxu0 %v1314
        %v2235 = vpop.f32.mrf.mxu0
        %v2236 = vadd.f32 %v2187, %v2235
        %v2237 = vpop.f32.mrf.mxu0
        %v2238 = vadd.f32 %v2189, %v2237
        %2239 = vmatmul.bf16.gmra.mxu0 %v1318
        %v2240 = vpop.f32.mrf.mxu0
        %v2241 = vadd.f32 %v2192, %v2240
        %v2242 = vpop.f32.mrf.mxu0
        %v2243 = vadd.f32 %v2194, %v2242
        %2244 = vdwg.mxu0
        %2245 = vmatpush.bf16.msra.mxu0 %v1966
        %2246 = vmatpush.bf16.msra.mxu0 %v1962
        %2247 = vmatpush.bf16.msra.mxu0 %v1958
        %2248 = vmatpush.bf16.msra.mxu0 %v1954
        %2249 = vmatpush.bf16.msra.mxu0 %v1950
        %2250 = vmatpush.bf16.msra.mxu0 %v1946
        %2251 = vmatpush.bf16.msra.mxu0 %v1942
        %2252 = vmatpush.bf16.msra.mxu0 %v1938
        %2253 = vmatmul.bf16.gmra.mxu0 %v1291
        %v2254 = vpop.f32.mrf.mxu0
        %v2255 = vadd.f32 %v2206, %v2254
        %v2256 = vpop.f32.mrf.mxu0
        %v2257 = vadd.f32 %v2208, %v2256
        %2258 = vmatmul.bf16.gmra.mxu0 %v1295
        %v2259 = vpop.f32.mrf.mxu0
        %v2260 = vadd.f32 %v2211, %v2259
        %v2261 = vpop.f32.mrf.mxu0
        %v2262 = vadd.f32 %v2213, %v2261
        %2263 = vmatmul.bf16.gmra.mxu0 %v1299
        %v2264 = vpop.f32.mrf.mxu0
        %v2265 = vadd.f32 %v2216, %v2264
        %v2266 = vpop.f32.mrf.mxu0
        %v2267 = vadd.f32 %v2218, %v2266
        %2268 = vmatmul.bf16.gmra.mxu0 %v1303
        %v2269 = vpop.f32.mrf.mxu0
        %v2270 = vadd.f32 %v2221, %v2269
        %v2271 = vpop.f32.mrf.mxu0
        %v2272 = vadd.f32 %v2223, %v2271
        %2273 = vmatmul.bf16.gmra.mxu0 %v1307
        %v2274 = vpop.f32.mrf.mxu0
        %v2275 = vadd.f32 %v2226, %v2274
        %v2276 = vpop.f32.mrf.mxu0
        %v2277 = vadd.f32 %v2228, %v2276
        %2278 = vmatmul.bf16.gmra.mxu0 %v1311
        %v2279 = vpop.f32.mrf.mxu0
        %v2280 = vadd.f32 %v2231, %v2279
        %v2281 = vpop.f32.mrf.mxu0
        %v2282 = vadd.f32 %v2233, %v2281
        %2283 = vmatmul.bf16.gmra.mxu0 %v1315
        %v2284 = vpop.f32.mrf.mxu0
        %v2285 = vadd.f32 %v2236, %v2284
        %v2286 = vpop.f32.mrf.mxu0
        %v2287 = vadd.f32 %v2238, %v2286
        %2288 = vmatmul.bf16.gmra.mxu0 %v1319
        %v2289 = vpop.f32.mrf.mxu0
        %v2290 = vadd.f32 %v2241, %v2289
        %v2291 = vpop.f32.mrf.mxu0
        %v2292 = vadd.f32 %v2243, %v2291
        %2293 = vdwg.mxu0
        %2294 = vmatpush.bf16.msra.mxu0 %v1871
        %2295 = vmatpush.bf16.msra.mxu0 %v1867
        %2296 = vmatpush.bf16.msra.mxu0 %v1863
        %2297 = vmatpush.bf16.msra.mxu0 %v1859
        %2298 = vmatpush.bf16.msra.mxu0 %v1855
        %2299 = vmatpush.bf16.msra.mxu0 %v1851
        %2300 = vmatpush.bf16.msra.mxu0 %v1847
        %2301 = vmatpush.bf16.msra.mxu0 %v1843
        %2302 = vmatmul.bf16.gmra.mxu0 %v1288
        %v2303 = vpop.f32.mrf.mxu0
        %v2304 = vadd.f32 %v1451, %v2303
        %v2305 = vpop.f32.mrf.mxu0
        %v2306 = vadd.f32 %v1451, %v2305
        %2307 = vmatmul.bf16.gmra.mxu0 %v1292
        %v2308 = vpop.f32.mrf.mxu0
        %v2309 = vadd.f32 %v1451, %v2308
        %v2310 = vpop.f32.mrf.mxu0
        %v2311 = vadd.f32 %v1451, %v2310
        %2312 = vmatmul.bf16.gmra.mxu0 %v1296
        %v2313 = vpop.f32.mrf.mxu0
        %v2314 = vadd.f32 %v1451, %v2313
        %v2315 = vpop.f32.mrf.mxu0
        %v2316 = vadd.f32 %v1451, %v2315
        %2317 = vmatmul.bf16.gmra.mxu0 %v1300
        %v2318 = vpop.f32.mrf.mxu0
        %v2319 = vadd.f32 %v1451, %v2318
        %v2320 = vpop.f32.mrf.mxu0
        %v2321 = vadd.f32 %v1451, %v2320
        %2322 = vmatmul.bf16.gmra.mxu0 %v1304
        %v2323 = vpop.f32.mrf.mxu0
        %v2324 = vadd.f32 %v1451, %v2323
        %v2325 = vpop.f32.mrf.mxu0
        %v2326 = vadd.f32 %v1451, %v2325
        %2327 = vmatmul.bf16.gmra.mxu0 %v1308
        %v2328 = vpop.f32.mrf.mxu0
        %v2329 = vadd.f32 %v1451, %v2328
        %v2330 = vpop.f32.mrf.mxu0
        %v2331 = vadd.f32 %v1451, %v2330
        %2332 = vmatmul.bf16.gmra.mxu0 %v1312
        %v2333 = vpop.f32.mrf.mxu0
        %v2334 = vadd.f32 %v1451, %v2333
        %v2335 = vpop.f32.mrf.mxu0
        %v2336 = vadd.f32 %v1451, %v2335
        %2337 = vmatmul.bf16.gmra.mxu0 %v1316
        %v2338 = vpop.f32.mrf.mxu0
        %v2339 = vadd.f32 %v1451, %v2338
        %v2340 = vpop.f32.mrf.mxu0
        %v2341 = vadd.f32 %v1451, %v2340
        %2342 = vdwg.mxu0
        %2343 = vmatpush.bf16.msra.mxu0 %v1903
        %2344 = vmatpush.bf16.msra.mxu0 %v1899
        %2345 = vmatpush.bf16.msra.mxu0 %v1895
        %2346 = vmatpush.bf16.msra.mxu0 %v1891
        %2347 = vmatpush.bf16.msra.mxu0 %v1887
        %2348 = vmatpush.bf16.msra.mxu0 %v1883
        %2349 = vmatpush.bf16.msra.mxu0 %v1879
        %2350 = vmatpush.bf16.msra.mxu0 %v1875
        %2351 = vmatmul.bf16.gmra.mxu0 %v1289
        %v2352 = vpop.f32.mrf.mxu0
        %v2353 = vadd.f32 %v2304, %v2352
        %v2354 = vpop.f32.mrf.mxu0
        %v2355 = vadd.f32 %v2306, %v2354
        %2356 = vmatmul.bf16.gmra.mxu0 %v1293
        %v2357 = vpop.f32.mrf.mxu0
        %v2358 = vadd.f32 %v2309, %v2357
        %v2359 = vpop.f32.mrf.mxu0
        %v2360 = vadd.f32 %v2311, %v2359
        %2361 = vmatmul.bf16.gmra.mxu0 %v1297
        %v2362 = vpop.f32.mrf.mxu0
        %v2363 = vadd.f32 %v2314, %v2362
        %v2364 = vpop.f32.mrf.mxu0
        %v2365 = vadd.f32 %v2316, %v2364
        %2366 = vmatmul.bf16.gmra.mxu0 %v1301
        %v2367 = vpop.f32.mrf.mxu0
        %v2368 = vadd.f32 %v2319, %v2367
        %v2369 = vpop.f32.mrf.mxu0
        %v2370 = vadd.f32 %v2321, %v2369
        %2371 = vmatmul.bf16.gmra.mxu0 %v1305
        %v2372 = vpop.f32.mrf.mxu0
        %v2373 = vadd.f32 %v2324, %v2372
        %v2374 = vpop.f32.mrf.mxu0
        %v2375 = vadd.f32 %v2326, %v2374
        %2376 = vmatmul.bf16.gmra.mxu0 %v1309
        %v2377 = vpop.f32.mrf.mxu0
        %v2378 = vadd.f32 %v2329, %v2377
        %v2379 = vpop.f32.mrf.mxu0
        %v2380 = vadd.f32 %v2331, %v2379
        %2381 = vmatmul.bf16.gmra.mxu0 %v1313
        %v2382 = vpop.f32.mrf.mxu0
        %v2383 = vadd.f32 %v2334, %v2382
        %v2384 = vpop.f32.mrf.mxu0
        %v2385 = vadd.f32 %v2336, %v2384
        %2386 = vmatmul.bf16.gmra.mxu0 %v1317
        %v2387 = vpop.f32.mrf.mxu0
        %v2388 = vadd.f32 %v2339, %v2387
        %v2389 = vpop.f32.mrf.mxu0
        %v2390 = vadd.f32 %v2341, %v2389
        %2391 = vdwg.mxu0
        %2392 = vmatpush.bf16.msra.mxu0 %v1935
        %2393 = vmatpush.bf16.msra.mxu0 %v1931
        %2394 = vmatpush.bf16.msra.mxu0 %v1927
        %2395 = vmatpush.bf16.msra.mxu0 %v1923
        %2396 = vmatpush.bf16.msra.mxu0 %v1919
        %2397 = vmatpush.bf16.msra.mxu0 %v1915
        %2398 = vmatpush.bf16.msra.mxu0 %v1911
        %2399 = vmatpush.bf16.msra.mxu0 %v1907
        %2400 = vmatmul.bf16.gmra.mxu0 %v1290
        %v2401 = vpop.f32.mrf.mxu0
        %v2402 = vadd.f32 %v2353, %v2401
        %v2403 = vpop.f32.mrf.mxu0
        %v2404 = vadd.f32 %v2355, %v2403
        %2405 = vmatmul.bf16.gmra.mxu0 %v1294
        %v2406 = vpop.f32.mrf.mxu0
        %v2407 = vadd.f32 %v2358, %v2406
        %v2408 = vpop.f32.mrf.mxu0
        %v2409 = vadd.f32 %v2360, %v2408
        %2410 = vmatmul.bf16.gmra.mxu0 %v1298
        %v2411 = vpop.f32.mrf.mxu0
        %v2412 = vadd.f32 %v2363, %v2411
        %v2413 = vpop.f32.mrf.mxu0
        %v2414 = vadd.f32 %v2365, %v2413
        %2415 = vmatmul.bf16.gmra.mxu0 %v1302
        %v2416 = vpop.f32.mrf.mxu0
        %v2417 = vadd.f32 %v2368, %v2416
        %v2418 = vpop.f32.mrf.mxu0
        %v2419 = vadd.f32 %v2370, %v2418
        %2420 = vmatmul.bf16.gmra.mxu0 %v1306
        %v2421 = vpop.f32.mrf.mxu0
        %v2422 = vadd.f32 %v2373, %v2421
        %v2423 = vpop.f32.mrf.mxu0
        %v2424 = vadd.f32 %v2375, %v2423
        %2425 = vmatmul.bf16.gmra.mxu0 %v1310
        %v2426 = vpop.f32.mrf.mxu0
        %v2427 = vadd.f32 %v2378, %v2426
        %v2428 = vpop.f32.mrf.mxu0
        %v2429 = vadd.f32 %v2380, %v2428
        %2430 = vmatmul.bf16.gmra.mxu0 %v1314
        %v2431 = vpop.f32.mrf.mxu0
        %v2432 = vadd.f32 %v2383, %v2431
        %v2433 = vpop.f32.mrf.mxu0
        %v2434 = vadd.f32 %v2385, %v2433
        %2435 = vmatmul.bf16.gmra.mxu0 %v1318
        %v2436 = vpop.f32.mrf.mxu0
        %v2437 = vadd.f32 %v2388, %v2436
        %v2438 = vpop.f32.mrf.mxu0
        %v2439 = vadd.f32 %v2390, %v2438
        %2440 = vdwg.mxu0
        %2441 = vmatpush.bf16.msra.mxu0 %v1967
        %2442 = vmatpush.bf16.msra.mxu0 %v1963
        %2443 = vmatpush.bf16.msra.mxu0 %v1959
        %2444 = vmatpush.bf16.msra.mxu0 %v1955
        %2445 = vmatpush.bf16.msra.mxu0 %v1951
        %2446 = vmatpush.bf16.msra.mxu0 %v1947
        %2447 = vmatpush.bf16.msra.mxu0 %v1943
        %2448 = vmatpush.bf16.msra.mxu0 %v1939
        %2449 = vmatmul.bf16.gmra.mxu0 %v1291
        %v2450 = vpop.f32.mrf.mxu0
        %v2451 = vadd.f32 %v2402, %v2450
        %v2452 = vpop.f32.mrf.mxu0
        %v2453 = vadd.f32 %v2404, %v2452
        %2454 = vmatmul.bf16.gmra.mxu0 %v1295
        %v2455 = vpop.f32.mrf.mxu0
        %v2456 = vadd.f32 %v2407, %v2455
        %v2457 = vpop.f32.mrf.mxu0
        %v2458 = vadd.f32 %v2409, %v2457
        %2459 = vmatmul.bf16.gmra.mxu0 %v1299
        %v2460 = vpop.f32.mrf.mxu0
        %v2461 = vadd.f32 %v2412, %v2460
        %v2462 = vpop.f32.mrf.mxu0
        %v2463 = vadd.f32 %v2414, %v2462
        %2464 = vmatmul.bf16.gmra.mxu0 %v1303
        %v2465 = vpop.f32.mrf.mxu0
        %v2466 = vadd.f32 %v2417, %v2465
        %v2467 = vpop.f32.mrf.mxu0
        %v2468 = vadd.f32 %v2419, %v2467
        %2469 = vmatmul.bf16.gmra.mxu0 %v1307
        %v2470 = vpop.f32.mrf.mxu0
        %v2471 = vadd.f32 %v2422, %v2470
        %v2472 = vpop.f32.mrf.mxu0
        %v2473 = vadd.f32 %v2424, %v2472
        %2474 = vmatmul.bf16.gmra.mxu0 %v1311
        %v2475 = vpop.f32.mrf.mxu0
        %v2476 = vadd.f32 %v2427, %v2475
        %v2477 = vpop.f32.mrf.mxu0
        %v2478 = vadd.f32 %v2429, %v2477
        %2479 = vmatmul.bf16.gmra.mxu0 %v1315
        %v2480 = vpop.f32.mrf.mxu0
        %v2481 = vadd.f32 %v2432, %v2480
        %v2482 = vpop.f32.mrf.mxu0
        %v2483 = vadd.f32 %v2434, %v2482
        %2484 = vmatmul.bf16.gmra.mxu0 %v1319
        %v2485 = vpop.f32.mrf.mxu0
        %v2486 = vadd.f32 %v2437, %v2485
        %v2487 = vpop.f32.mrf.mxu0
        %v2488 = vadd.f32 %v2439, %v2487
        %2489 = vdwg.mxu0
        %2490 = vmatpush.bf16.msra.mxu0 %v1872
        %2491 = vmatpush.bf16.msra.mxu0 %v1868
        %2492 = vmatpush.bf16.msra.mxu0 %v1864
        %2493 = vmatpush.bf16.msra.mxu0 %v1860
        %2494 = vmatpush.bf16.msra.mxu0 %v1856
        %2495 = vmatpush.bf16.msra.mxu0 %v1852
        %2496 = vmatpush.bf16.msra.mxu0 %v1848
        %2497 = vmatpush.bf16.msra.mxu0 %v1844
        %2498 = vmatmul.bf16.gmra.mxu0 %v1288
        %v2499 = vpop.f32.mrf.mxu0
        %v2500 = vadd.f32 %v1452, %v2499
        %v2501 = vpop.f32.mrf.mxu0
        %v2502 = vadd.f32 %v1452, %v2501
        %2503 = vmatmul.bf16.gmra.mxu0 %v1292
        %v2504 = vpop.f32.mrf.mxu0
        %v2505 = vadd.f32 %v1452, %v2504
        %v2506 = vpop.f32.mrf.mxu0
        %v2507 = vadd.f32 %v1452, %v2506
        %2508 = vmatmul.bf16.gmra.mxu0 %v1296
        %v2509 = vpop.f32.mrf.mxu0
        %v2510 = vadd.f32 %v1452, %v2509
        %v2511 = vpop.f32.mrf.mxu0
        %v2512 = vadd.f32 %v1452, %v2511
        %2513 = vmatmul.bf16.gmra.mxu0 %v1300
        %v2514 = vpop.f32.mrf.mxu0
        %v2515 = vadd.f32 %v1452, %v2514
        %v2516 = vpop.f32.mrf.mxu0
        %v2517 = vadd.f32 %v1452, %v2516
        %2518 = vmatmul.bf16.gmra.mxu0 %v1304
        %v2519 = vpop.f32.mrf.mxu0
        %v2520 = vadd.f32 %v1452, %v2519
        %v2521 = vpop.f32.mrf.mxu0
        %v2522 = vadd.f32 %v1452, %v2521
        %2523 = vmatmul.bf16.gmra.mxu0 %v1308
        %v2524 = vpop.f32.mrf.mxu0
        %v2525 = vadd.f32 %v1452, %v2524
        %v2526 = vpop.f32.mrf.mxu0
        %v2527 = vadd.f32 %v1452, %v2526
        %2528 = vmatmul.bf16.gmra.mxu0 %v1312
        %v2529 = vpop.f32.mrf.mxu0
        %v2530 = vadd.f32 %v1452, %v2529
        %v2531 = vpop.f32.mrf.mxu0
        %v2532 = vadd.f32 %v1452, %v2531
        %2533 = vmatmul.bf16.gmra.mxu0 %v1316
        %v2534 = vpop.f32.mrf.mxu0
        %v2535 = vadd.f32 %v1452, %v2534
        %v2536 = vpop.f32.mrf.mxu0
        %v2537 = vadd.f32 %v1452, %v2536
        %2538 = vdwg.mxu0
        %2539 = vmatpush.bf16.msra.mxu0 %v1904
        %2540 = vmatpush.bf16.msra.mxu0 %v1900
        %2541 = vmatpush.bf16.msra.mxu0 %v1896
        %2542 = vmatpush.bf16.msra.mxu0 %v1892
        %2543 = vmatpush.bf16.msra.mxu0 %v1888
        %2544 = vmatpush.bf16.msra.mxu0 %v1884
        %2545 = vmatpush.bf16.msra.mxu0 %v1880
        %2546 = vmatpush.bf16.msra.mxu0 %v1876
        %2547 = vmatmul.bf16.gmra.mxu0 %v1289
        %v2548 = vpop.f32.mrf.mxu0
        %v2549 = vadd.f32 %v2500, %v2548
        %v2550 = vpop.f32.mrf.mxu0
        %v2551 = vadd.f32 %v2502, %v2550
        %2552 = vmatmul.bf16.gmra.mxu0 %v1293
        %v2553 = vpop.f32.mrf.mxu0
        %v2554 = vadd.f32 %v2505, %v2553
        %v2555 = vpop.f32.mrf.mxu0
        %v2556 = vadd.f32 %v2507, %v2555
        %2557 = vmatmul.bf16.gmra.mxu0 %v1297
        %v2558 = vpop.f32.mrf.mxu0
        %v2559 = vadd.f32 %v2510, %v2558
        %v2560 = vpop.f32.mrf.mxu0
        %v2561 = vadd.f32 %v2512, %v2560
        %2562 = vmatmul.bf16.gmra.mxu0 %v1301
        %v2563 = vpop.f32.mrf.mxu0
        %v2564 = vadd.f32 %v2515, %v2563
        %v2565 = vpop.f32.mrf.mxu0
        %v2566 = vadd.f32 %v2517, %v2565
        %2567 = vmatmul.bf16.gmra.mxu0 %v1305
        %v2568 = vpop.f32.mrf.mxu0
        %v2569 = vadd.f32 %v2520, %v2568
        %v2570 = vpop.f32.mrf.mxu0
        %v2571 = vadd.f32 %v2522, %v2570
        %2572 = vmatmul.bf16.gmra.mxu0 %v1309
        %v2573 = vpop.f32.mrf.mxu0
        %v2574 = vadd.f32 %v2525, %v2573
        %v2575 = vpop.f32.mrf.mxu0
        %v2576 = vadd.f32 %v2527, %v2575
        %2577 = vmatmul.bf16.gmra.mxu0 %v1313
        %v2578 = vpop.f32.mrf.mxu0
        %v2579 = vadd.f32 %v2530, %v2578
        %v2580 = vpop.f32.mrf.mxu0
        %v2581 = vadd.f32 %v2532, %v2580
        %2582 = vmatmul.bf16.gmra.mxu0 %v1317
        %v2583 = vpop.f32.mrf.mxu0
        %v2584 = vadd.f32 %v2535, %v2583
        %v2585 = vpop.f32.mrf.mxu0
        %v2586 = vadd.f32 %v2537, %v2585
        %2587 = vdwg.mxu0
        %2588 = vmatpush.bf16.msra.mxu0 %v1936
        %2589 = vmatpush.bf16.msra.mxu0 %v1932
        %2590 = vmatpush.bf16.msra.mxu0 %v1928
        %2591 = vmatpush.bf16.msra.mxu0 %v1924
        %2592 = vmatpush.bf16.msra.mxu0 %v1920
        %2593 = vmatpush.bf16.msra.mxu0 %v1916
        %2594 = vmatpush.bf16.msra.mxu0 %v1912
        %2595 = vmatpush.bf16.msra.mxu0 %v1908
        %2596 = vmatmul.bf16.gmra.mxu0 %v1290
        %v2597 = vpop.f32.mrf.mxu0
        %v2598 = vadd.f32 %v2549, %v2597
        %v2599 = vpop.f32.mrf.mxu0
        %v2600 = vadd.f32 %v2551, %v2599
        %2601 = vmatmul.bf16.gmra.mxu0 %v1294
        %v2602 = vpop.f32.mrf.mxu0
        %v2603 = vadd.f32 %v2554, %v2602
        %v2604 = vpop.f32.mrf.mxu0
        %v2605 = vadd.f32 %v2556, %v2604
        %2606 = vmatmul.bf16.gmra.mxu0 %v1298
        %v2607 = vpop.f32.mrf.mxu0
        %v2608 = vadd.f32 %v2559, %v2607
        %v2609 = vpop.f32.mrf.mxu0
        %v2610 = vadd.f32 %v2561, %v2609
        %2611 = vmatmul.bf16.gmra.mxu0 %v1302
        %v2612 = vpop.f32.mrf.mxu0
        %v2613 = vadd.f32 %v2564, %v2612
        %v2614 = vpop.f32.mrf.mxu0
        %v2615 = vadd.f32 %v2566, %v2614
        %2616 = vmatmul.bf16.gmra.mxu0 %v1306
        %v2617 = vpop.f32.mrf.mxu0
        %v2618 = vadd.f32 %v2569, %v2617
        %v2619 = vpop.f32.mrf.mxu0
        %v2620 = vadd.f32 %v2571, %v2619
        %2621 = vmatmul.bf16.gmra.mxu0 %v1310
        %v2622 = vpop.f32.mrf.mxu0
        %v2623 = vadd.f32 %v2574, %v2622
        %v2624 = vpop.f32.mrf.mxu0
        %v2625 = vadd.f32 %v2576, %v2624
        %2626 = vmatmul.bf16.gmra.mxu0 %v1314
        %v2627 = vpop.f32.mrf.mxu0
        %v2628 = vadd.f32 %v2579, %v2627
        %v2629 = vpop.f32.mrf.mxu0
        %v2630 = vadd.f32 %v2581, %v2629
        %2631 = vmatmul.bf16.gmra.mxu0 %v1318
        %v2632 = vpop.f32.mrf.mxu0
        %v2633 = vadd.f32 %v2584, %v2632
        %v2634 = vpop.f32.mrf.mxu0
        %v2635 = vadd.f32 %v2586, %v2634
        %2636 = vdwg.mxu0
        %2637 = vmatpush.bf16.msra.mxu0 %v1968
        %2638 = vmatpush.bf16.msra.mxu0 %v1964
        %2639 = vmatpush.bf16.msra.mxu0 %v1960
        %2640 = vmatpush.bf16.msra.mxu0 %v1956
        %2641 = vmatpush.bf16.msra.mxu0 %v1952
        %2642 = vmatpush.bf16.msra.mxu0 %v1948
        %2643 = vmatpush.bf16.msra.mxu0 %v1944
        %2644 = vmatpush.bf16.msra.mxu0 %v1940
        %2645 = vmatmul.bf16.gmra.mxu0 %v1291
        %v2646 = vpop.f32.mrf.mxu0
        %v2647 = vadd.f32 %v2598, %v2646
        %v2648 = vpop.f32.mrf.mxu0
        %v2649 = vadd.f32 %v2600, %v2648
        %2650 = vmatmul.bf16.gmra.mxu0 %v1295
        %v2651 = vpop.f32.mrf.mxu0
        %v2652 = vadd.f32 %v2603, %v2651
        %v2653 = vpop.f32.mrf.mxu0
        %v2654 = vadd.f32 %v2605, %v2653
        %2655 = vmatmul.bf16.gmra.mxu0 %v1299
        %v2656 = vpop.f32.mrf.mxu0
        %v2657 = vadd.f32 %v2608, %v2656
        %v2658 = vpop.f32.mrf.mxu0
        %v2659 = vadd.f32 %v2610, %v2658
        %2660 = vmatmul.bf16.gmra.mxu0 %v1303
        %v2661 = vpop.f32.mrf.mxu0
        %v2662 = vadd.f32 %v2613, %v2661
        %v2663 = vpop.f32.mrf.mxu0
        %v2664 = vadd.f32 %v2615, %v2663
        %2665 = vmatmul.bf16.gmra.mxu0 %v1307
        %v2666 = vpop.f32.mrf.mxu0
        %v2667 = vadd.f32 %v2618, %v2666
        %v2668 = vpop.f32.mrf.mxu0
        %v2669 = vadd.f32 %v2620, %v2668
        %2670 = vmatmul.bf16.gmra.mxu0 %v1311
        %v2671 = vpop.f32.mrf.mxu0
        %v2672 = vadd.f32 %v2623, %v2671
        %v2673 = vpop.f32.mrf.mxu0
        %v2674 = vadd.f32 %v2625, %v2673
        %2675 = vmatmul.bf16.gmra.mxu0 %v1315
        %v2676 = vpop.f32.mrf.mxu0
        %v2677 = vadd.f32 %v2628, %v2676
        %v2678 = vpop.f32.mrf.mxu0
        %v2679 = vadd.f32 %v2630, %v2678
        %2680 = vmatmul.bf16.gmra.mxu0 %v1319
        %v2681 = vpop.f32.mrf.mxu0
        %v2682 = vadd.f32 %v2633, %v2681
        %v2683 = vpop.f32.mrf.mxu0
        %v2684 = vadd.f32 %v2635, %v2683
        %2685 = vdwg.mxu0
        %2686 = vmatpush.bf16.msra.mxu0 %v1873
        %2687 = vmatpush.bf16.msra.mxu0 %v1869
        %2688 = vmatpush.bf16.msra.mxu0 %v1865
        %2689 = vmatpush.bf16.msra.mxu0 %v1861
        %2690 = vmatpush.bf16.msra.mxu0 %v1857
        %2691 = vmatpush.bf16.msra.mxu0 %v1853
        %2692 = vmatpush.bf16.msra.mxu0 %v1849
        %2693 = vmatpush.bf16.msra.mxu0 %v1845
        %2694 = vmatmul.bf16.gmra.mxu0 %v1288
        %v2695 = vpop.f32.mrf.mxu0
        %v2696 = vadd.f32 %v1453, %v2695
        %v2697 = vpop.f32.mrf.mxu0
        %v2698 = vadd.f32 %v1453, %v2697
        %2699 = vmatmul.bf16.gmra.mxu0 %v1292
        %v2700 = vpop.f32.mrf.mxu0
        %v2701 = vadd.f32 %v1453, %v2700
        %v2702 = vpop.f32.mrf.mxu0
        %v2703 = vadd.f32 %v1453, %v2702
        %2704 = vmatmul.bf16.gmra.mxu0 %v1296
        %v2705 = vpop.f32.mrf.mxu0
        %v2706 = vadd.f32 %v1453, %v2705
        %v2707 = vpop.f32.mrf.mxu0
        %v2708 = vadd.f32 %v1453, %v2707
        %2709 = vmatmul.bf16.gmra.mxu0 %v1300
        %v2710 = vpop.f32.mrf.mxu0
        %v2711 = vadd.f32 %v1453, %v2710
        %v2712 = vpop.f32.mrf.mxu0
        %v2713 = vadd.f32 %v1453, %v2712
        %2714 = vmatmul.bf16.gmra.mxu0 %v1304
        %v2715 = vpop.f32.mrf.mxu0
        %v2716 = vadd.f32 %v1453, %v2715
        %v2717 = vpop.f32.mrf.mxu0
        %v2718 = vadd.f32 %v1453, %v2717
        %2719 = vmatmul.bf16.gmra.mxu0 %v1308
        %v2720 = vpop.f32.mrf.mxu0
        %v2721 = vadd.f32 %v1453, %v2720
        %v2722 = vpop.f32.mrf.mxu0
        %v2723 = vadd.f32 %v1453, %v2722
        %2724 = vmatmul.bf16.gmra.mxu0 %v1312
        %v2725 = vpop.f32.mrf.mxu0
        %v2726 = vadd.f32 %v1453, %v2725
        %v2727 = vpop.f32.mrf.mxu0
        %v2728 = vadd.f32 %v1453, %v2727
        %2729 = vmatmul.bf16.gmra.mxu0 %v1316
        %v2730 = vpop.f32.mrf.mxu0
        %v2731 = vadd.f32 %v1453, %v2730
        %v2732 = vpop.f32.mrf.mxu0
        %v2733 = vadd.f32 %v1453, %v2732
        %2734 = vdwg.mxu0
        %2735 = vmatpush.bf16.msra.mxu0 %v1905
        %2736 = vmatpush.bf16.msra.mxu0 %v1901
        %2737 = vmatpush.bf16.msra.mxu0 %v1897
        %2738 = vmatpush.bf16.msra.mxu0 %v1893
        %2739 = vmatpush.bf16.msra.mxu0 %v1889
        %2740 = vmatpush.bf16.msra.mxu0 %v1885
        %2741 = vmatpush.bf16.msra.mxu0 %v1881
        %2742 = vmatpush.bf16.msra.mxu0 %v1877
        %2743 = vmatmul.bf16.gmra.mxu0 %v1289
        %v2744 = vpop.f32.mrf.mxu0
        %v2745 = vadd.f32 %v2696, %v2744
        %v2746 = vpop.f32.mrf.mxu0
        %v2747 = vadd.f32 %v2698, %v2746
        %2748 = vmatmul.bf16.gmra.mxu0 %v1293
        %v2749 = vpop.f32.mrf.mxu0
        %v2750 = vadd.f32 %v2701, %v2749
        %v2751 = vpop.f32.mrf.mxu0
        %v2752 = vadd.f32 %v2703, %v2751
        %2753 = vmatmul.bf16.gmra.mxu0 %v1297
        %v2754 = vpop.f32.mrf.mxu0
        %v2755 = vadd.f32 %v2706, %v2754
        %v2756 = vpop.f32.mrf.mxu0
        %v2757 = vadd.f32 %v2708, %v2756
        %2758 = vmatmul.bf16.gmra.mxu0 %v1301
        %v2759 = vpop.f32.mrf.mxu0
        %v2760 = vadd.f32 %v2711, %v2759
        %v2761 = vpop.f32.mrf.mxu0
        %v2762 = vadd.f32 %v2713, %v2761
        %2763 = vmatmul.bf16.gmra.mxu0 %v1305
        %v2764 = vpop.f32.mrf.mxu0
        %v2765 = vadd.f32 %v2716, %v2764
        %v2766 = vpop.f32.mrf.mxu0
        %v2767 = vadd.f32 %v2718, %v2766
        %2768 = vmatmul.bf16.gmra.mxu0 %v1309
        %v2769 = vpop.f32.mrf.mxu0
        %v2770 = vadd.f32 %v2721, %v2769
        %v2771 = vpop.f32.mrf.mxu0
        %v2772 = vadd.f32 %v2723, %v2771
        %2773 = vmatmul.bf16.gmra.mxu0 %v1313
        %v2774 = vpop.f32.mrf.mxu0
        %v2775 = vadd.f32 %v2726, %v2774
        %v2776 = vpop.f32.mrf.mxu0
        %v2777 = vadd.f32 %v2728, %v2776
        %2778 = vmatmul.bf16.gmra.mxu0 %v1317
        %v2779 = vpop.f32.mrf.mxu0
        %v2780 = vadd.f32 %v2731, %v2779
        %v2781 = vpop.f32.mrf.mxu0
        %v2782 = vadd.f32 %v2733, %v2781
        %2783 = vdwg.mxu0
        %2784 = vmatpush.bf16.msra.mxu0 %v1937
        %2785 = vmatpush.bf16.msra.mxu0 %v1933
        %2786 = vmatpush.bf16.msra.mxu0 %v1929
        %2787 = vmatpush.bf16.msra.mxu0 %v1925
        %2788 = vmatpush.bf16.msra.mxu0 %v1921
        %2789 = vmatpush.bf16.msra.mxu0 %v1917
        %2790 = vmatpush.bf16.msra.mxu0 %v1913
        %2791 = vmatpush.bf16.msra.mxu0 %v1909
        %2792 = vmatmul.bf16.gmra.mxu0 %v1290
        %v2793 = vpop.f32.mrf.mxu0
        %v2794 = vadd.f32 %v2745, %v2793
        %v2795 = vpop.f32.mrf.mxu0
        %v2796 = vadd.f32 %v2747, %v2795
        %2797 = vmatmul.bf16.gmra.mxu0 %v1294
        %v2798 = vpop.f32.mrf.mxu0
        %v2799 = vadd.f32 %v2750, %v2798
        %v2800 = vpop.f32.mrf.mxu0
        %v2801 = vadd.f32 %v2752, %v2800
        %2802 = vmatmul.bf16.gmra.mxu0 %v1298
        %v2803 = vpop.f32.mrf.mxu0
        %v2804 = vadd.f32 %v2755, %v2803
        %v2805 = vpop.f32.mrf.mxu0
        %v2806 = vadd.f32 %v2757, %v2805
        %2807 = vmatmul.bf16.gmra.mxu0 %v1302
        %v2808 = vpop.f32.mrf.mxu0
        %v2809 = vadd.f32 %v2760, %v2808
        %v2810 = vpop.f32.mrf.mxu0
        %v2811 = vadd.f32 %v2762, %v2810
        %2812 = vmatmul.bf16.gmra.mxu0 %v1306
        %v2813 = vpop.f32.mrf.mxu0
        %v2814 = vadd.f32 %v2765, %v2813
        %v2815 = vpop.f32.mrf.mxu0
        %v2816 = vadd.f32 %v2767, %v2815
        %2817 = vmatmul.bf16.gmra.mxu0 %v1310
        %v2818 = vpop.f32.mrf.mxu0
        %v2819 = vadd.f32 %v2770, %v2818
        %v2820 = vpop.f32.mrf.mxu0
        %v2821 = vadd.f32 %v2772, %v2820
        %2822 = vmatmul.bf16.gmra.mxu0 %v1314
        %v2823 = vpop.f32.mrf.mxu0
        %v2824 = vadd.f32 %v2775, %v2823
        %v2825 = vpop.f32.mrf.mxu0
        %v2826 = vadd.f32 %v2777, %v2825
        %2827 = vmatmul.bf16.gmra.mxu0 %v1318
        %v2828 = vpop.f32.mrf.mxu0
        %v2829 = vadd.f32 %v2780, %v2828
        %v2830 = vpop.f32.mrf.mxu0
        %v2831 = vadd.f32 %v2782, %v2830
        %2832 = vdwg.mxu0
        %2833 = vmatpush.bf16.msra.mxu0 %v1969
        %2834 = vmatpush.bf16.msra.mxu0 %v1965
        %2835 = vmatpush.bf16.msra.mxu0 %v1961
        %2836 = vmatpush.bf16.msra.mxu0 %v1957
        %2837 = vmatpush.bf16.msra.mxu0 %v1953
        %2838 = vmatpush.bf16.msra.mxu0 %v1949
        %2839 = vmatpush.bf16.msra.mxu0 %v1945
        %2840 = vmatpush.bf16.msra.mxu0 %v1941
        %2841 = vmatmul.bf16.gmra.mxu0 %v1291
        %v2842 = vpop.f32.mrf.mxu0
        %v2843 = vadd.f32 %v2794, %v2842
        %v2844 = vpop.f32.mrf.mxu0
        %v2845 = vadd.f32 %v2796, %v2844
        %2846 = vmatmul.bf16.gmra.mxu0 %v1295
        %v2847 = vpop.f32.mrf.mxu0
        %v2848 = vadd.f32 %v2799, %v2847
        %v2849 = vpop.f32.mrf.mxu0
        %v2850 = vadd.f32 %v2801, %v2849
        %2851 = vmatmul.bf16.gmra.mxu0 %v1299
        %v2852 = vpop.f32.mrf.mxu0
        %v2853 = vadd.f32 %v2804, %v2852
        %v2854 = vpop.f32.mrf.mxu0
        %v2855 = vadd.f32 %v2806, %v2854
        %2856 = vmatmul.bf16.gmra.mxu0 %v1303
        %v2857 = vpop.f32.mrf.mxu0
        %v2858 = vadd.f32 %v2809, %v2857
        %v2859 = vpop.f32.mrf.mxu0
        %v2860 = vadd.f32 %v2811, %v2859
        %2861 = vmatmul.bf16.gmra.mxu0 %v1307
        %v2862 = vpop.f32.mrf.mxu0
        %v2863 = vadd.f32 %v2814, %v2862
        %v2864 = vpop.f32.mrf.mxu0
        %v2865 = vadd.f32 %v2816, %v2864
        %2866 = vmatmul.bf16.gmra.mxu0 %v1311
        %v2867 = vpop.f32.mrf.mxu0
        %v2868 = vadd.f32 %v2819, %v2867
        %v2869 = vpop.f32.mrf.mxu0
        %v2870 = vadd.f32 %v2821, %v2869
        %2871 = vmatmul.bf16.gmra.mxu0 %v1315
        %v2872 = vpop.f32.mrf.mxu0
        %v2873 = vadd.f32 %v2824, %v2872
        %v2874 = vpop.f32.mrf.mxu0
        %v2875 = vadd.f32 %v2826, %v2874
        %2876 = vmatmul.bf16.gmra.mxu0 %v1319
        %v2877 = vpop.f32.mrf.mxu0
        %v2878 = vadd.f32 %v2829, %v2877
        %v2879 = vpop.f32.mrf.mxu0
        %v2880 = vadd.f32 %v2831, %v2879
        %2881 = vdwg.mxu0
        %v2882 = vmax.f32 %v2255, 0.0
        %v2883 = vmax.f32 %v2451, 0.0
        %v2884 = vmax.f32 %v2647, 0.0
        %v2885 = vmax.f32 %v2843, 0.0
        %v2886 = vmax.f32 %v2257, 0.0
        %v2887 = vmax.f32 %v2453, 0.0
        %v2888 = vmax.f32 %v2649, 0.0
        %v2889 = vmax.f32 %v2845, 0.0
        %v2890 = vmax.f32 %v2260, 0.0
        %v2891 = vmax.f32 %v2456, 0.0
        %v2892 = vmax.f32 %v2652, 0.0
        %v2893 = vmax.f32 %v2848, 0.0
        %v2894 = vmax.f32 %v2262, 0.0
        %v2895 = vmax.f32 %v2458, 0.0
        %v2896 = vmax.f32 %v2654, 0.0
        %v2897 = vmax.f32 %v2850, 0.0
        %v2898 = vmax.f32 %v2265, 0.0
        %v2899 = vmax.f32 %v2461, 0.0
        %v2900 = vmax.f32 %v2657, 0.0
        %v2901 = vmax.f32 %v2853, 0.0
        %v2902 = vmax.f32 %v2267, 0.0
        %v2903 = vmax.f32 %v2463, 0.0
        %v2904 = vmax.f32 %v2659, 0.0
        %v2905 = vmax.f32 %v2855, 0.0
        %v2906 = vmax.f32 %v2270, 0.0
        %v2907 = vmax.f32 %v2466, 0.0
        %v2908 = vmax.f32 %v2662, 0.0
        %v2909 = vmax.f32 %v2858, 0.0
        %v2910 = vmax.f32 %v2272, 0.0
        %v2911 = vmax.f32 %v2468, 0.0
        %v2912 = vmax.f32 %v2664, 0.0
        %v2913 = vmax.f32 %v2860, 0.0
        %v2914 = vmax.f32 %v2275, 0.0
        %v2915 = vmax.f32 %v2471, 0.0
        %v2916 = vmax.f32 %v2667, 0.0
        %v2917 = vmax.f32 %v2863, 0.0
        %v2918 = vmax.f32 %v2277, 0.0
        %v2919 = vmax.f32 %v2473, 0.0
        %v2920 = vmax.f32 %v2669, 0.0
        %v2921 = vmax.f32 %v2865, 0.0
        %v2922 = vmax.f32 %v2280, 0.0
        %v2923 = vmax.f32 %v2476, 0.0
        %v2924 = vmax.f32 %v2672, 0.0
        %v2925 = vmax.f32 %v2868, 0.0
        %v2926 = vmax.f32 %v2282, 0.0
        %v2927 = vmax.f32 %v2478, 0.0
        %v2928 = vmax.f32 %v2674, 0.0
        %v2929 = vmax.f32 %v2870, 0.0
        %v2930 = vmax.f32 %v2285, 0.0
        %v2931 = vmax.f32 %v2481, 0.0
        %v2932 = vmax.f32 %v2677, 0.0
        %v2933 = vmax.f32 %v2873, 0.0
        %v2934 = vmax.f32 %v2287, 0.0
        %v2935 = vmax.f32 %v2483, 0.0
        %v2936 = vmax.f32 %v2679, 0.0
        %v2937 = vmax.f32 %v2875, 0.0
        %v2938 = vmax.f32 %v2290, 0.0
        %v2939 = vmax.f32 %v2486, 0.0
        %v2940 = vmax.f32 %v2682, 0.0
        %v2941 = vmax.f32 %v2878, 0.0
        %v2942 = vmax.f32 %v2292, 0.0
        %v2943 = vmax.f32 %v2488, 0.0
        %v2944 = vmax.f32 %v2684, 0.0
        %v2945 = vmax.f32 %v2880, 0.0
        %v2946 = vpack.c.bf16 %v2886, %v2882
        %v2947 = vpack.c.bf16 %v2887, %v2883
        %v2948 = vpack.c.bf16 %v2888, %v2884
        %v2949 = vpack.c.bf16 %v2889, %v2885
        %v2950 = vpack.c.bf16 %v2894, %v2890
        %v2951 = vpack.c.bf16 %v2895, %v2891
        %v2952 = vpack.c.bf16 %v2896, %v2892
        %v2953 = vpack.c.bf16 %v2897, %v2893
        %v2954 = vpack.c.bf16 %v2902, %v2898
        %v2955 = vpack.c.bf16 %v2903, %v2899
        %v2956 = vpack.c.bf16 %v2904, %v2900
        %v2957 = vpack.c.bf16 %v2905, %v2901
        %v2958 = vpack.c.bf16 %v2910, %v2906
        %v2959 = vpack.c.bf16 %v2911, %v2907
        %v2960 = vpack.c.bf16 %v2912, %v2908
        %v2961 = vpack.c.bf16 %v2913, %v2909
        %v2962 = vpack.c.bf16 %v2918, %v2914
        %v2963 = vpack.c.bf16 %v2919, %v2915
        %v2964 = vpack.c.bf16 %v2920, %v2916
        %v2965 = vpack.c.bf16 %v2921, %v2917
        %v2966 = vpack.c.bf16 %v2926, %v2922
        %v2967 = vpack.c.bf16 %v2927, %v2923
        %v2968 = vpack.c.bf16 %v2928, %v2924
        %v2969 = vpack.c.bf16 %v2929, %v2925
        %v2970 = vpack.c.bf16 %v2934, %v2930
        %v2971 = vpack.c.bf16 %v2935, %v2931
        %v2972 = vpack.c.bf16 %v2936, %v2932
        %v2973 = vpack.c.bf16 %v2937, %v2933
        %v2974 = vpack.c.bf16 %v2942, %v2938
        %v2975 = vpack.c.bf16 %v2943, %v2939
        %v2976 = vpack.c.bf16 %v2944, %v2940
        %v2977 = vpack.c.bf16 %v2945, %v2941
        %v2978 = vld [vmem:[#allocation4] sm:$0xff]
        %v2979 = vld [vmem:[#allocation4 + $0x8] sm:$0xff]
        %v2980 = vld [vmem:[#allocation4 + $0x10] sm:$0xff]
        %v2981 = vld [vmem:[#allocation4 + $0x18] sm:$0xff]
        %v2982 = vld [vmem:[#allocation4 + $0x20] sm:$0xff]
        %v2983 = vld [vmem:[#allocation4 + $0x28] sm:$0xff]
        %v2984 = vld [vmem:[#allocation4 + $0x30] sm:$0xff]
        %v2985 = vld [vmem:[#allocation4 + $0x38] sm:$0xff]
        %v2986 = vld [vmem:[#allocation4 + $0x40] sm:$0xff]
        %v2987 = vld [vmem:[#allocation4 + $0x48] sm:$0xff]
        %v2988 = vld [vmem:[#allocation4 + $0x50] sm:$0xff]
        %v2989 = vld [vmem:[#allocation4 + $0x58] sm:$0xff]
        %v2990 = vld [vmem:[#allocation4 + $0x60] sm:$0xff]
        %v2991 = vld [vmem:[#allocation4 + $0x68] sm:$0xff]
        %v2992 = vld [vmem:[#allocation4 + $0x70] sm:$0xff]
        %v2993 = vld [vmem:[#allocation4 + $0x78] sm:$0xff]
        %v2994 = vld [vmem:[#allocation4 + $0x80] sm:$0xff]
        %v2995 = vld [vmem:[#allocation4 + $0x88] sm:$0xff]
        %v2996 = vld [vmem:[#allocation4 + $0x90] sm:$0xff]
        %v2997 = vld [vmem:[#allocation4 + $0x98] sm:$0xff]
        %v2998 = vld [vmem:[#allocation4 + $0xa0] sm:$0xff]
        %v2999 = vld [vmem:[#allocation4 + $0xa8] sm:$0xff]
        %v3000 = vld [vmem:[#allocation4 + $0xb0] sm:$0xff]
        %v3001 = vld [vmem:[#allocation4 + $0xb8] sm:$0xff]
        %v3002 = vld [vmem:[#allocation4 + $0xc0] sm:$0xff]
        %v3003 = vld [vmem:[#allocation4 + $0xc8] sm:$0xff]
        %v3004 = vld [vmem:[#allocation4 + $0xd0] sm:$0xff]
        %v3005 = vld [vmem:[#allocation4 + $0xd8] sm:$0xff]
        %v3006 = vld [vmem:[#allocation4 + $0xe0] sm:$0xff]
        %v3007 = vld [vmem:[#allocation4 + $0xe8] sm:$0xff]
        %v3008 = vld [vmem:[#allocation4 + $0xf0] sm:$0xff]
        %v3009 = vld [vmem:[#allocation4 + $0xf8] sm:$0xff]
        %v3010 = vld [vmem:[#allocation4 + $0x100] sm:$0xff]
        %v3011 = vld [vmem:[#allocation4 + $0x108] sm:$0xff]
        %v3012 = vld [vmem:[#allocation4 + $0x110] sm:$0xff]
        %v3013 = vld [vmem:[#allocation4 + $0x118] sm:$0xff]
        %v3014 = vld [vmem:[#allocation4 + $0x120] sm:$0xff]
        %v3015 = vld [vmem:[#allocation4 + $0x128] sm:$0xff]
        %v3016 = vld [vmem:[#allocation4 + $0x130] sm:$0xff]
        %v3017 = vld [vmem:[#allocation4 + $0x138] sm:$0xff]
        %v3018 = vld [vmem:[#allocation4 + $0x140] sm:$0xff]
        %v3019 = vld [vmem:[#allocation4 + $0x148] sm:$0xff]
        %v3020 = vld [vmem:[#allocation4 + $0x150] sm:$0xff]
        %v3021 = vld [vmem:[#allocation4 + $0x158] sm:$0xff]
        %v3022 = vld [vmem:[#allocation4 + $0x160] sm:$0xff]
        %v3023 = vld [vmem:[#allocation4 + $0x168] sm:$0xff]
        %v3024 = vld [vmem:[#allocation4 + $0x170] sm:$0xff]
        %v3025 = vld [vmem:[#allocation4 + $0x178] sm:$0xff]
        %v3026 = vld [vmem:[#allocation4 + $0x180] sm:$0xff]
        %v3027 = vld [vmem:[#allocation4 + $0x188] sm:$0xff]
        %v3028 = vld [vmem:[#allocation4 + $0x190] sm:$0xff]
        %v3029 = vld [vmem:[#allocation4 + $0x198] sm:$0xff]
        %v3030 = vld [vmem:[#allocation4 + $0x1a0] sm:$0xff]
        %v3031 = vld [vmem:[#allocation4 + $0x1a8] sm:$0xff]
        %v3032 = vld [vmem:[#allocation4 + $0x1b0] sm:$0xff]
        %v3033 = vld [vmem:[#allocation4 + $0x1b8] sm:$0xff]
        %v3034 = vld [vmem:[#allocation4 + $0x1c0] sm:$0xff]
        %v3035 = vld [vmem:[#allocation4 + $0x1c8] sm:$0xff]
        %v3036 = vld [vmem:[#allocation4 + $0x1d0] sm:$0xff]
        %v3037 = vld [vmem:[#allocation4 + $0x1d8] sm:$0xff]
        %v3038 = vld [vmem:[#allocation4 + $0x1e0] sm:$0xff]
        %v3039 = vld [vmem:[#allocation4 + $0x1e8] sm:$0xff]
        %v3040 = vld [vmem:[#allocation4 + $0x1f0] sm:$0xff]
        %v3041 = vld [vmem:[#allocation4 + $0x1f8] sm:$0xff]
        %v3042 = vld [vmem:[#allocation4 + $0x200] sm:$0xff]
        %v3043 = vld [vmem:[#allocation4 + $0x208] sm:$0xff]
        %v3044 = vld [vmem:[#allocation4 + $0x210] sm:$0xff]
        %v3045 = vld [vmem:[#allocation4 + $0x218] sm:$0xff]
        %v3046 = vld [vmem:[#allocation4 + $0x220] sm:$0xff]
        %v3047 = vld [vmem:[#allocation4 + $0x228] sm:$0xff]
        %v3048 = vld [vmem:[#allocation4 + $0x230] sm:$0xff]
        %v3049 = vld [vmem:[#allocation4 + $0x238] sm:$0xff]
        %v3050 = vld [vmem:[#allocation4 + $0x240] sm:$0xff]
        %v3051 = vld [vmem:[#allocation4 + $0x248] sm:$0xff]
        %v3052 = vld [vmem:[#allocation4 + $0x250] sm:$0xff]
        %v3053 = vld [vmem:[#allocation4 + $0x258] sm:$0xff]
        %v3054 = vld [vmem:[#allocation4 + $0x260] sm:$0xff]
        %v3055 = vld [vmem:[#allocation4 + $0x268] sm:$0xff]
        %v3056 = vld [vmem:[#allocation4 + $0x270] sm:$0xff]
        %v3057 = vld [vmem:[#allocation4 + $0x278] sm:$0xff]
        %v3058 = vld [vmem:[#allocation4 + $0x280] sm:$0xff]
        %v3059 = vld [vmem:[#allocation4 + $0x288] sm:$0xff]
        %v3060 = vld [vmem:[#allocation4 + $0x290] sm:$0xff]
        %v3061 = vld [vmem:[#allocation4 + $0x298] sm:$0xff]
        %v3062 = vld [vmem:[#allocation4 + $0x2a0] sm:$0xff]
        %v3063 = vld [vmem:[#allocation4 + $0x2a8] sm:$0xff]
        %v3064 = vld [vmem:[#allocation4 + $0x2b0] sm:$0xff]
        %v3065 = vld [vmem:[#allocation4 + $0x2b8] sm:$0xff]
        %v3066 = vld [vmem:[#allocation4 + $0x2c0] sm:$0xff]
        %v3067 = vld [vmem:[#allocation4 + $0x2c8] sm:$0xff]
        %v3068 = vld [vmem:[#allocation4 + $0x2d0] sm:$0xff]
        %v3069 = vld [vmem:[#allocation4 + $0x2d8] sm:$0xff]
        %v3070 = vld [vmem:[#allocation4 + $0x2e0] sm:$0xff]
        %v3071 = vld [vmem:[#allocation4 + $0x2e8] sm:$0xff]
        %v3072 = vld [vmem:[#allocation4 + $0x2f0] sm:$0xff]
        %v3073 = vld [vmem:[#allocation4 + $0x2f8] sm:$0xff]
        %v3074 = vld [vmem:[#allocation4 + $0x300] sm:$0xff]
        %v3075 = vld [vmem:[#allocation4 + $0x308] sm:$0xff]
        %v3076 = vld [vmem:[#allocation4 + $0x310] sm:$0xff]
        %v3077 = vld [vmem:[#allocation4 + $0x318] sm:$0xff]
        %v3078 = vld [vmem:[#allocation4 + $0x320] sm:$0xff]
        %v3079 = vld [vmem:[#allocation4 + $0x328] sm:$0xff]
        %v3080 = vld [vmem:[#allocation4 + $0x330] sm:$0xff]
        %v3081 = vld [vmem:[#allocation4 + $0x338] sm:$0xff]
        %v3082 = vld [vmem:[#allocation4 + $0x340] sm:$0xff]
        %v3083 = vld [vmem:[#allocation4 + $0x348] sm:$0xff]
        %v3084 = vld [vmem:[#allocation4 + $0x350] sm:$0xff]
        %v3085 = vld [vmem:[#allocation4 + $0x358] sm:$0xff]
        %v3086 = vld [vmem:[#allocation4 + $0x360] sm:$0xff]
        %v3087 = vld [vmem:[#allocation4 + $0x368] sm:$0xff]
        %v3088 = vld [vmem:[#allocation4 + $0x370] sm:$0xff]
        %v3089 = vld [vmem:[#allocation4 + $0x378] sm:$0xff]
        %v3090 = vld [vmem:[#allocation4 + $0x380] sm:$0xff]
        %v3091 = vld [vmem:[#allocation4 + $0x388] sm:$0xff]
        %v3092 = vld [vmem:[#allocation4 + $0x390] sm:$0xff]
        %v3093 = vld [vmem:[#allocation4 + $0x398] sm:$0xff]
        %v3094 = vld [vmem:[#allocation4 + $0x3a0] sm:$0xff]
        %v3095 = vld [vmem:[#allocation4 + $0x3a8] sm:$0xff]
        %v3096 = vld [vmem:[#allocation4 + $0x3b0] sm:$0xff]
        %v3097 = vld [vmem:[#allocation4 + $0x3b8] sm:$0xff]
        %v3098 = vld [vmem:[#allocation4 + $0x3c0] sm:$0xff]
        %v3099 = vld [vmem:[#allocation4 + $0x3c8] sm:$0xff]
        %v3100 = vld [vmem:[#allocation4 + $0x3d0] sm:$0xff]
        %v3101 = vld [vmem:[#allocation4 + $0x3d8] sm:$0xff]
        %v3102 = vld [vmem:[#allocation4 + $0x3e0] sm:$0xff]
        %v3103 = vld [vmem:[#allocation4 + $0x3e8] sm:$0xff]
        %v3104 = vld [vmem:[#allocation4 + $0x3f0] sm:$0xff]
        %v3105 = vld [vmem:[#allocation4 + $0x3f8] sm:$0xff]
        %v3106 = vld [vmem:[%s7] sm:$0xf]
        %v3108 = vperm.slane %v3106, 0
        %v3109 = vperm.slane %v3106, 1
        %v3110 = vperm.slane %v3106, 2
        %v3111 = vperm.slane %v3106, 3
        %v3244 = vunpack.c.l.b16 %v2978
        %v3245 = vunpack.c.h.b16 %v2978
        %v3246 = vunpack.c.l.b16 %v2979
        %v3247 = vunpack.c.h.b16 %v2979
        %v3248 = vunpack.c.l.b16 %v2980
        %v3249 = vunpack.c.h.b16 %v2980
        %v3250 = vunpack.c.l.b16 %v2981
        %v3251 = vunpack.c.h.b16 %v2981
        %v3252 = vunpack.c.l.b16 %v2982
        %v3253 = vunpack.c.h.b16 %v2982
        %v3254 = vunpack.c.l.b16 %v2983
        %v3255 = vunpack.c.h.b16 %v2983
        %v3256 = vunpack.c.l.b16 %v2984
        %v3257 = vunpack.c.h.b16 %v2984
        %v3258 = vunpack.c.l.b16 %v2985
        %v3259 = vunpack.c.h.b16 %v2985
        %v3260 = vunpack.c.l.b16 %v2986
        %v3261 = vunpack.c.h.b16 %v2986
        %v3262 = vunpack.c.l.b16 %v2987
        %v3263 = vunpack.c.h.b16 %v2987
        %v3264 = vunpack.c.l.b16 %v2988
        %v3265 = vunpack.c.h.b16 %v2988
        %v3266 = vunpack.c.l.b16 %v2989
        %v3267 = vunpack.c.h.b16 %v2989
        %v3268 = vunpack.c.l.b16 %v2990
        %v3269 = vunpack.c.h.b16 %v2990
        %v3270 = vunpack.c.l.b16 %v2991
        %v3271 = vunpack.c.h.b16 %v2991
        %v3272 = vunpack.c.l.b16 %v2992
        %v3273 = vunpack.c.h.b16 %v2992
        %v3274 = vunpack.c.l.b16 %v2993
        %v3275 = vunpack.c.h.b16 %v2993
        %v3276 = vunpack.c.l.b16 %v2994
        %v3277 = vunpack.c.h.b16 %v2994
        %v3278 = vunpack.c.l.b16 %v2995
        %v3279 = vunpack.c.h.b16 %v2995
        %v3280 = vunpack.c.l.b16 %v2996
        %v3281 = vunpack.c.h.b16 %v2996
        %v3282 = vunpack.c.l.b16 %v2997
        %v3283 = vunpack.c.h.b16 %v2997
        %v3284 = vunpack.c.l.b16 %v2998
        %v3285 = vunpack.c.h.b16 %v2998
        %v3286 = vunpack.c.l.b16 %v2999
        %v3287 = vunpack.c.h.b16 %v2999
        %v3288 = vunpack.c.l.b16 %v3000
        %v3289 = vunpack.c.h.b16 %v3000
        %v3290 = vunpack.c.l.b16 %v3001
        %v3291 = vunpack.c.h.b16 %v3001
        %v3292 = vunpack.c.l.b16 %v3002
        %v3293 = vunpack.c.h.b16 %v3002
        %v3294 = vunpack.c.l.b16 %v3003
        %v3295 = vunpack.c.h.b16 %v3003
        %v3296 = vunpack.c.l.b16 %v3004
        %v3297 = vunpack.c.h.b16 %v3004
        %v3298 = vunpack.c.l.b16 %v3005
        %v3299 = vunpack.c.h.b16 %v3005
        %v3300 = vunpack.c.l.b16 %v3006
        %v3301 = vunpack.c.h.b16 %v3006
        %v3302 = vunpack.c.l.b16 %v3007
        %v3303 = vunpack.c.h.b16 %v3007
        %v3304 = vunpack.c.l.b16 %v3008
        %v3305 = vunpack.c.h.b16 %v3008
        %v3306 = vunpack.c.l.b16 %v3009
        %v3307 = vunpack.c.h.b16 %v3009
        %v3308 = vunpack.c.l.b16 %v3010
        %v3309 = vunpack.c.h.b16 %v3010
        %v3310 = vunpack.c.l.b16 %v3011
        %v3311 = vunpack.c.h.b16 %v3011
        %v3312 = vunpack.c.l.b16 %v3012
        %v3313 = vunpack.c.h.b16 %v3012
        %v3314 = vunpack.c.l.b16 %v3013
        %v3315 = vunpack.c.h.b16 %v3013
        %v3316 = vunpack.c.l.b16 %v3014
        %v3317 = vunpack.c.h.b16 %v3014
        %v3318 = vunpack.c.l.b16 %v3015
        %v3319 = vunpack.c.h.b16 %v3015
        %v3320 = vunpack.c.l.b16 %v3016
        %v3321 = vunpack.c.h.b16 %v3016
        %v3322 = vunpack.c.l.b16 %v3017
        %v3323 = vunpack.c.h.b16 %v3017
        %v3324 = vunpack.c.l.b16 %v3018
        %v3325 = vunpack.c.h.b16 %v3018
        %v3326 = vunpack.c.l.b16 %v3019
        %v3327 = vunpack.c.h.b16 %v3019
        %v3328 = vunpack.c.l.b16 %v3020
        %v3329 = vunpack.c.h.b16 %v3020
        %v3330 = vunpack.c.l.b16 %v3021
        %v3331 = vunpack.c.h.b16 %v3021
        %v3332 = vunpack.c.l.b16 %v3022
        %v3333 = vunpack.c.h.b16 %v3022
        %v3334 = vunpack.c.l.b16 %v3023
        %v3335 = vunpack.c.h.b16 %v3023
        %v3336 = vunpack.c.l.b16 %v3024
        %v3337 = vunpack.c.h.b16 %v3024
        %v3338 = vunpack.c.l.b16 %v3025
        %v3339 = vunpack.c.h.b16 %v3025
        %v3340 = vunpack.c.l.b16 %v3026
        %v3341 = vunpack.c.h.b16 %v3026
        %v3342 = vunpack.c.l.b16 %v3027
        %v3343 = vunpack.c.h.b16 %v3027
        %v3344 = vunpack.c.l.b16 %v3028
        %v3345 = vunpack.c.h.b16 %v3028
        %v3346 = vunpack.c.l.b16 %v3029
        %v3347 = vunpack.c.h.b16 %v3029
        %v3348 = vunpack.c.l.b16 %v3030
        %v3349 = vunpack.c.h.b16 %v3030
        %v3350 = vunpack.c.l.b16 %v3031
        %v3351 = vunpack.c.h.b16 %v3031
        %v3352 = vunpack.c.l.b16 %v3032
        %v3353 = vunpack.c.h.b16 %v3032
        %v3354 = vunpack.c.l.b16 %v3033
        %v3355 = vunpack.c.h.b16 %v3033
        %v3356 = vunpack.c.l.b16 %v3034
        %v3357 = vunpack.c.h.b16 %v3034
        %v3358 = vunpack.c.l.b16 %v3035
        %v3359 = vunpack.c.h.b16 %v3035
        %v3360 = vunpack.c.l.b16 %v3036
        %v3361 = vunpack.c.h.b16 %v3036
        %v3362 = vunpack.c.l.b16 %v3037
        %v3363 = vunpack.c.h.b16 %v3037
        %v3364 = vunpack.c.l.b16 %v3038
        %v3365 = vunpack.c.h.b16 %v3038
        %v3366 = vunpack.c.l.b16 %v3039
        %v3367 = vunpack.c.h.b16 %v3039
        %v3368 = vunpack.c.l.b16 %v3040
        %v3369 = vunpack.c.h.b16 %v3040
        %v3370 = vunpack.c.l.b16 %v3041
        %v3371 = vunpack.c.h.b16 %v3041
        %v3372 = vunpack.c.l.b16 %v3042
        %v3373 = vunpack.c.h.b16 %v3042
        %v3374 = vunpack.c.l.b16 %v3043
        %v3375 = vunpack.c.h.b16 %v3043
        %v3376 = vunpack.c.l.b16 %v3044
        %v3377 = vunpack.c.h.b16 %v3044
        %v3378 = vunpack.c.l.b16 %v3045
        %v3379 = vunpack.c.h.b16 %v3045
        %v3380 = vunpack.c.l.b16 %v3046
        %v3381 = vunpack.c.h.b16 %v3046
        %v3382 = vunpack.c.l.b16 %v3047
        %v3383 = vunpack.c.h.b16 %v3047
        %v3384 = vunpack.c.l.b16 %v3048
        %v3385 = vunpack.c.h.b16 %v3048
        %v3386 = vunpack.c.l.b16 %v3049
        %v3387 = vunpack.c.h.b16 %v3049
        %v3388 = vunpack.c.l.b16 %v3050
        %v3389 = vunpack.c.h.b16 %v3050
        %v3390 = vunpack.c.l.b16 %v3051
        %v3391 = vunpack.c.h.b16 %v3051
        %v3392 = vunpack.c.l.b16 %v3052
        %v3393 = vunpack.c.h.b16 %v3052
        %v3394 = vunpack.c.l.b16 %v3053
        %v3395 = vunpack.c.h.b16 %v3053
        %v3396 = vunpack.c.l.b16 %v3054
        %v3397 = vunpack.c.h.b16 %v3054
        %v3398 = vunpack.c.l.b16 %v3055
        %v3399 = vunpack.c.h.b16 %v3055
        %v3400 = vunpack.c.l.b16 %v3056
        %v3401 = vunpack.c.h.b16 %v3056
        %v3402 = vunpack.c.l.b16 %v3057
        %v3403 = vunpack.c.h.b16 %v3057
        %v3404 = vunpack.c.l.b16 %v3058
        %v3405 = vunpack.c.h.b16 %v3058
        %v3406 = vunpack.c.l.b16 %v3059
        %v3407 = vunpack.c.h.b16 %v3059
        %v3408 = vunpack.c.l.b16 %v3060
        %v3409 = vunpack.c.h.b16 %v3060
        %v3410 = vunpack.c.l.b16 %v3061
        %v3411 = vunpack.c.h.b16 %v3061
        %v3412 = vunpack.c.l.b16 %v3062
        %v3413 = vunpack.c.h.b16 %v3062
        %v3414 = vunpack.c.l.b16 %v3063
        %v3415 = vunpack.c.h.b16 %v3063
        %v3416 = vunpack.c.l.b16 %v3064
        %v3417 = vunpack.c.h.b16 %v3064
        %v3418 = vunpack.c.l.b16 %v3065
        %v3419 = vunpack.c.h.b16 %v3065
        %v3420 = vunpack.c.l.b16 %v3066
        %v3421 = vunpack.c.h.b16 %v3066
        %v3422 = vunpack.c.l.b16 %v3067
        %v3423 = vunpack.c.h.b16 %v3067
        %v3424 = vunpack.c.l.b16 %v3068
        %v3425 = vunpack.c.h.b16 %v3068
        %v3426 = vunpack.c.l.b16 %v3069
        %v3427 = vunpack.c.h.b16 %v3069
        %v3428 = vunpack.c.l.b16 %v3070
        %v3429 = vunpack.c.h.b16 %v3070
        %v3430 = vunpack.c.l.b16 %v3071
        %v3431 = vunpack.c.h.b16 %v3071
        %v3432 = vunpack.c.l.b16 %v3072
        %v3433 = vunpack.c.h.b16 %v3072
        %v3434 = vunpack.c.l.b16 %v3073
        %v3435 = vunpack.c.h.b16 %v3073
        %v3436 = vunpack.c.l.b16 %v3074
        %v3437 = vunpack.c.h.b16 %v3074
        %v3438 = vunpack.c.l.b16 %v3075
        %v3439 = vunpack.c.h.b16 %v3075
        %v3440 = vunpack.c.l.b16 %v3076
        %v3441 = vunpack.c.h.b16 %v3076
        %v3442 = vunpack.c.l.b16 %v3077
        %v3443 = vunpack.c.h.b16 %v3077
        %v3444 = vunpack.c.l.b16 %v3078
        %v3445 = vunpack.c.h.b16 %v3078
        %v3446 = vunpack.c.l.b16 %v3079
        %v3447 = vunpack.c.h.b16 %v3079
        %v3448 = vunpack.c.l.b16 %v3080
        %v3449 = vunpack.c.h.b16 %v3080
        %v3450 = vunpack.c.l.b16 %v3081
        %v3451 = vunpack.c.h.b16 %v3081
        %v3452 = vunpack.c.l.b16 %v3082
        %v3453 = vunpack.c.h.b16 %v3082
        %v3454 = vunpack.c.l.b16 %v3083
        %v3455 = vunpack.c.h.b16 %v3083
        %v3456 = vunpack.c.l.b16 %v3084
        %v3457 = vunpack.c.h.b16 %v3084
        %v3458 = vunpack.c.l.b16 %v3085
        %v3459 = vunpack.c.h.b16 %v3085
        %v3460 = vunpack.c.l.b16 %v3086
        %v3461 = vunpack.c.h.b16 %v3086
        %v3462 = vunpack.c.l.b16 %v3087
        %v3463 = vunpack.c.h.b16 %v3087
        %v3464 = vunpack.c.l.b16 %v3088
        %v3465 = vunpack.c.h.b16 %v3088
        %v3466 = vunpack.c.l.b16 %v3089
        %v3467 = vunpack.c.h.b16 %v3089
        %v3468 = vunpack.c.l.b16 %v3090
        %v3469 = vunpack.c.h.b16 %v3090
        %v3470 = vunpack.c.l.b16 %v3091
        %v3471 = vunpack.c.h.b16 %v3091
        %v3472 = vunpack.c.l.b16 %v3092
        %v3473 = vunpack.c.h.b16 %v3092
        %v3474 = vunpack.c.l.b16 %v3093
        %v3475 = vunpack.c.h.b16 %v3093
        %v3476 = vunpack.c.l.b16 %v3094
        %v3477 = vunpack.c.h.b16 %v3094
        %v3478 = vunpack.c.l.b16 %v3095
        %v3479 = vunpack.c.h.b16 %v3095
        %v3480 = vunpack.c.l.b16 %v3096
        %v3481 = vunpack.c.h.b16 %v3096
        %v3482 = vunpack.c.l.b16 %v3097
        %v3483 = vunpack.c.h.b16 %v3097
        %v3484 = vunpack.c.l.b16 %v3098
        %v3485 = vunpack.c.h.b16 %v3098
        %v3486 = vunpack.c.l.b16 %v3099
        %v3487 = vunpack.c.h.b16 %v3099
        %v3488 = vunpack.c.l.b16 %v3100
        %v3489 = vunpack.c.h.b16 %v3100
        %v3490 = vunpack.c.l.b16 %v3101
        %v3491 = vunpack.c.h.b16 %v3101
        %v3492 = vunpack.c.l.b16 %v3102
        %v3493 = vunpack.c.h.b16 %v3102
        %v3494 = vunpack.c.l.b16 %v3103
        %v3495 = vunpack.c.h.b16 %v3103
        %v3496 = vunpack.c.l.b16 %v3104
        %v3497 = vunpack.c.h.b16 %v3104
        %v3498 = vunpack.c.l.b16 %v3105
        %v3499 = vunpack.c.h.b16 %v3105
        %v3500 = vpack.c.b16 %v3248, %v3244
        %v3501 = vpack.c.b16 %v3249, %v3245
        %v3502 = vpack.c.b16 %v3250, %v3246
        %v3503 = vpack.c.b16 %v3251, %v3247
        %v3504 = vpack.c.b16 %v3256, %v3252
        %v3505 = vpack.c.b16 %v3257, %v3253
        %v3506 = vpack.c.b16 %v3258, %v3254
        %v3507 = vpack.c.b16 %v3259, %v3255
        %v3508 = vpack.c.b16 %v3264, %v3260
        %v3509 = vpack.c.b16 %v3265, %v3261
        %v3510 = vpack.c.b16 %v3266, %v3262
        %v3511 = vpack.c.b16 %v3267, %v3263
        %v3512 = vpack.c.b16 %v3272, %v3268
        %v3513 = vpack.c.b16 %v3273, %v3269
        %v3514 = vpack.c.b16 %v3274, %v3270
        %v3515 = vpack.c.b16 %v3275, %v3271
        %v3516 = vpack.c.b16 %v3280, %v3276
        %v3517 = vpack.c.b16 %v3281, %v3277
        %v3518 = vpack.c.b16 %v3282, %v3278
        %v3519 = vpack.c.b16 %v3283, %v3279
        %v3520 = vpack.c.b16 %v3288, %v3284
        %v3521 = vpack.c.b16 %v3289, %v3285
        %v3522 = vpack.c.b16 %v3290, %v3286
        %v3523 = vpack.c.b16 %v3291, %v3287
        %v3524 = vpack.c.b16 %v3296, %v3292
        %v3525 = vpack.c.b16 %v3297, %v3293
        %v3526 = vpack.c.b16 %v3298, %v3294
        %v3527 = vpack.c.b16 %v3299, %v3295
        %v3528 = vpack.c.b16 %v3304, %v3300
        %v3529 = vpack.c.b16 %v3305, %v3301
        %v3530 = vpack.c.b16 %v3306, %v3302
        %v3531 = vpack.c.b16 %v3307, %v3303
        %v3532 = vpack.c.b16 %v3312, %v3308
        %v3533 = vpack.c.b16 %v3313, %v3309
        %v3534 = vpack.c.b16 %v3314, %v3310
        %v3535 = vpack.c.b16 %v3315, %v3311
        %v3536 = vpack.c.b16 %v3320, %v3316
        %v3537 = vpack.c.b16 %v3321, %v3317
        %v3538 = vpack.c.b16 %v3322, %v3318
        %v3539 = vpack.c.b16 %v3323, %v3319
        %v3540 = vpack.c.b16 %v3328, %v3324
        %v3541 = vpack.c.b16 %v3329, %v3325
        %v3542 = vpack.c.b16 %v3330, %v3326
        %v3543 = vpack.c.b16 %v3331, %v3327
        %v3544 = vpack.c.b16 %v3336, %v3332
        %v3545 = vpack.c.b16 %v3337, %v3333
        %v3546 = vpack.c.b16 %v3338, %v3334
        %v3547 = vpack.c.b16 %v3339, %v3335
        %v3548 = vpack.c.b16 %v3344, %v3340
        %v3549 = vpack.c.b16 %v3345, %v3341
        %v3550 = vpack.c.b16 %v3346, %v3342
        %v3551 = vpack.c.b16 %v3347, %v3343
        %v3552 = vpack.c.b16 %v3352, %v3348
        %v3553 = vpack.c.b16 %v3353, %v3349
        %v3554 = vpack.c.b16 %v3354, %v3350
        %v3555 = vpack.c.b16 %v3355, %v3351
        %v3556 = vpack.c.b16 %v3360, %v3356
        %v3557 = vpack.c.b16 %v3361, %v3357
        %v3558 = vpack.c.b16 %v3362, %v3358
        %v3559 = vpack.c.b16 %v3363, %v3359
        %v3560 = vpack.c.b16 %v3368, %v3364
        %v3561 = vpack.c.b16 %v3369, %v3365
        %v3562 = vpack.c.b16 %v3370, %v3366
        %v3563 = vpack.c.b16 %v3371, %v3367
        %v3564 = vpack.c.b16 %v3376, %v3372
        %v3565 = vpack.c.b16 %v3377, %v3373
        %v3566 = vpack.c.b16 %v3378, %v3374
        %v3567 = vpack.c.b16 %v3379, %v3375
        %v3568 = vpack.c.b16 %v3384, %v3380
        %v3569 = vpack.c.b16 %v3385, %v3381
        %v3570 = vpack.c.b16 %v3386, %v3382
        %v3571 = vpack.c.b16 %v3387, %v3383
        %v3572 = vpack.c.b16 %v3392, %v3388
        %v3573 = vpack.c.b16 %v3393, %v3389
        %v3574 = vpack.c.b16 %v3394, %v3390
        %v3575 = vpack.c.b16 %v3395, %v3391
        %v3576 = vpack.c.b16 %v3400, %v3396
        %v3577 = vpack.c.b16 %v3401, %v3397
        %v3578 = vpack.c.b16 %v3402, %v3398
        %v3579 = vpack.c.b16 %v3403, %v3399
        %v3580 = vpack.c.b16 %v3408, %v3404
        %v3581 = vpack.c.b16 %v3409, %v3405
        %v3582 = vpack.c.b16 %v3410, %v3406
        %v3583 = vpack.c.b16 %v3411, %v3407
        %v3584 = vpack.c.b16 %v3416, %v3412
        %v3585 = vpack.c.b16 %v3417, %v3413
        %v3586 = vpack.c.b16 %v3418, %v3414
        %v3587 = vpack.c.b16 %v3419, %v3415
        %v3588 = vpack.c.b16 %v3424, %v3420
        %v3589 = vpack.c.b16 %v3425, %v3421
        %v3590 = vpack.c.b16 %v3426, %v3422
        %v3591 = vpack.c.b16 %v3427, %v3423
        %v3592 = vpack.c.b16 %v3432, %v3428
        %v3593 = vpack.c.b16 %v3433, %v3429
        %v3594 = vpack.c.b16 %v3434, %v3430
        %v3595 = vpack.c.b16 %v3435, %v3431
        %v3596 = vpack.c.b16 %v3440, %v3436
        %v3597 = vpack.c.b16 %v3441, %v3437
        %v3598 = vpack.c.b16 %v3442, %v3438
        %v3599 = vpack.c.b16 %v3443, %v3439
        %v3600 = vpack.c.b16 %v3448, %v3444
        %v3601 = vpack.c.b16 %v3449, %v3445
        %v3602 = vpack.c.b16 %v3450, %v3446
        %v3603 = vpack.c.b16 %v3451, %v3447
        %v3604 = vpack.c.b16 %v3456, %v3452
        %v3605 = vpack.c.b16 %v3457, %v3453
        %v3606 = vpack.c.b16 %v3458, %v3454
        %v3607 = vpack.c.b16 %v3459, %v3455
        %v3608 = vpack.c.b16 %v3464, %v3460
        %v3609 = vpack.c.b16 %v3465, %v3461
        %v3610 = vpack.c.b16 %v3466, %v3462
        %v3611 = vpack.c.b16 %v3467, %v3463
        %v3612 = vpack.c.b16 %v3472, %v3468
        %v3613 = vpack.c.b16 %v3473, %v3469
        %v3614 = vpack.c.b16 %v3474, %v3470
        %v3615 = vpack.c.b16 %v3475, %v3471
        %v3616 = vpack.c.b16 %v3480, %v3476
        %v3617 = vpack.c.b16 %v3481, %v3477
        %v3618 = vpack.c.b16 %v3482, %v3478
        %v3619 = vpack.c.b16 %v3483, %v3479
        %v3620 = vpack.c.b16 %v3488, %v3484
        %v3621 = vpack.c.b16 %v3489, %v3485
        %v3622 = vpack.c.b16 %v3490, %v3486
        %v3623 = vpack.c.b16 %v3491, %v3487
        %v3624 = vpack.c.b16 %v3496, %v3492
        %v3625 = vpack.c.b16 %v3497, %v3493
        %v3626 = vpack.c.b16 %v3498, %v3494
        %v3627 = vpack.c.b16 %v3499, %v3495
        %3756 = vmatpush.bf16.msra.mxu0 %v3528
        %3757 = vmatpush.bf16.msra.mxu0 %v3524
        %3758 = vmatpush.bf16.msra.mxu0 %v3520
        %3759 = vmatpush.bf16.msra.mxu0 %v3516
        %3760 = vmatpush.bf16.msra.mxu0 %v3512
        %3761 = vmatpush.bf16.msra.mxu0 %v3508
        %3762 = vmatpush.bf16.msra.mxu0 %v3504
        %3763 = vmatpush.bf16.msra.mxu0 %v3500
        %3764 = vmatmul.bf16.gmra.mxu0 %v2946
        %v3765 = vpop.f32.mrf.mxu0
        %v3766 = vadd.f32 %v3108, %v3765
        %v3767 = vpop.f32.mrf.mxu0
        %v3768 = vadd.f32 %v3108, %v3767
        %3769 = vmatmul.bf16.gmra.mxu0 %v2950
        %v3770 = vpop.f32.mrf.mxu0
        %v3771 = vadd.f32 %v3108, %v3770
        %v3772 = vpop.f32.mrf.mxu0
        %v3773 = vadd.f32 %v3108, %v3772
        %3774 = vmatmul.bf16.gmra.mxu0 %v2954
        %v3775 = vpop.f32.mrf.mxu0
        %v3776 = vadd.f32 %v3108, %v3775
        %v3777 = vpop.f32.mrf.mxu0
        %v3778 = vadd.f32 %v3108, %v3777
        %3779 = vmatmul.bf16.gmra.mxu0 %v2958
        %v3780 = vpop.f32.mrf.mxu0
        %v3781 = vadd.f32 %v3108, %v3780
        %v3782 = vpop.f32.mrf.mxu0
        %v3783 = vadd.f32 %v3108, %v3782
        %3784 = vmatmul.bf16.gmra.mxu0 %v2962
        %v3785 = vpop.f32.mrf.mxu0
        %v3786 = vadd.f32 %v3108, %v3785
        %v3787 = vpop.f32.mrf.mxu0
        %v3788 = vadd.f32 %v3108, %v3787
        %3789 = vmatmul.bf16.gmra.mxu0 %v2966
        %v3790 = vpop.f32.mrf.mxu0
        %v3791 = vadd.f32 %v3108, %v3790
        %v3792 = vpop.f32.mrf.mxu0
        %v3793 = vadd.f32 %v3108, %v3792
        %3794 = vmatmul.bf16.gmra.mxu0 %v2970
        %v3795 = vpop.f32.mrf.mxu0
        %v3796 = vadd.f32 %v3108, %v3795
        %v3797 = vpop.f32.mrf.mxu0
        %v3798 = vadd.f32 %v3108, %v3797
        %3799 = vmatmul.bf16.gmra.mxu0 %v2974
        %v3800 = vpop.f32.mrf.mxu0
        %v3801 = vadd.f32 %v3108, %v3800
        %v3802 = vpop.f32.mrf.mxu0
        %v3803 = vadd.f32 %v3108, %v3802
        %3804 = vdwg.mxu0
        %3805 = vmatpush.bf16.msra.mxu0 %v3560
        %3806 = vmatpush.bf16.msra.mxu0 %v3556
        %3807 = vmatpush.bf16.msra.mxu0 %v3552
        %3808 = vmatpush.bf16.msra.mxu0 %v3548
        %3809 = vmatpush.bf16.msra.mxu0 %v3544
        %3810 = vmatpush.bf16.msra.mxu0 %v3540
        %3811 = vmatpush.bf16.msra.mxu0 %v3536
        %3812 = vmatpush.bf16.msra.mxu0 %v3532
        %3813 = vmatmul.bf16.gmra.mxu0 %v2947
        %v3814 = vpop.f32.mrf.mxu0
        %v3815 = vadd.f32 %v3766, %v3814
        %v3816 = vpop.f32.mrf.mxu0
        %v3817 = vadd.f32 %v3768, %v3816
        %3818 = vmatmul.bf16.gmra.mxu0 %v2951
        %v3819 = vpop.f32.mrf.mxu0
        %v3820 = vadd.f32 %v3771, %v3819
        %v3821 = vpop.f32.mrf.mxu0
        %v3822 = vadd.f32 %v3773, %v3821
        %3823 = vmatmul.bf16.gmra.mxu0 %v2955
        %v3824 = vpop.f32.mrf.mxu0
        %v3825 = vadd.f32 %v3776, %v3824
        %v3826 = vpop.f32.mrf.mxu0
        %v3827 = vadd.f32 %v3778, %v3826
        %3828 = vmatmul.bf16.gmra.mxu0 %v2959
        %v3829 = vpop.f32.mrf.mxu0
        %v3830 = vadd.f32 %v3781, %v3829
        %v3831 = vpop.f32.mrf.mxu0
        %v3832 = vadd.f32 %v3783, %v3831
        %3833 = vmatmul.bf16.gmra.mxu0 %v2963
        %v3834 = vpop.f32.mrf.mxu0
        %v3835 = vadd.f32 %v3786, %v3834
        %v3836 = vpop.f32.mrf.mxu0
        %v3837 = vadd.f32 %v3788, %v3836
        %3838 = vmatmul.bf16.gmra.mxu0 %v2967
        %v3839 = vpop.f32.mrf.mxu0
        %v3840 = vadd.f32 %v3791, %v3839
        %v3841 = vpop.f32.mrf.mxu0
        %v3842 = vadd.f32 %v3793, %v3841
        %3843 = vmatmul.bf16.gmra.mxu0 %v2971
        %v3844 = vpop.f32.mrf.mxu0
        %v3845 = vadd.f32 %v3796, %v3844
        %v3846 = vpop.f32.mrf.mxu0
        %v3847 = vadd.f32 %v3798, %v3846
        %3848 = vmatmul.bf16.gmra.mxu0 %v2975
        %v3849 = vpop.f32.mrf.mxu0
        %v3850 = vadd.f32 %v3801, %v3849
        %v3851 = vpop.f32.mrf.mxu0
        %v3852 = vadd.f32 %v3803, %v3851
        %3853 = vdwg.mxu0
        %3854 = vmatpush.bf16.msra.mxu0 %v3592
        %3855 = vmatpush.bf16.msra.mxu0 %v3588
        %3856 = vmatpush.bf16.msra.mxu0 %v3584
        %3857 = vmatpush.bf16.msra.mxu0 %v3580
        %3858 = vmatpush.bf16.msra.mxu0 %v3576
        %3859 = vmatpush.bf16.msra.mxu0 %v3572
        %3860 = vmatpush.bf16.msra.mxu0 %v3568
        %3861 = vmatpush.bf16.msra.mxu0 %v3564
        %3862 = vmatmul.bf16.gmra.mxu0 %v2948
        %v3863 = vpop.f32.mrf.mxu0
        %v3864 = vadd.f32 %v3815, %v3863
        %v3865 = vpop.f32.mrf.mxu0
        %v3866 = vadd.f32 %v3817, %v3865
        %3867 = vmatmul.bf16.gmra.mxu0 %v2952
        %v3868 = vpop.f32.mrf.mxu0
        %v3869 = vadd.f32 %v3820, %v3868
        %v3870 = vpop.f32.mrf.mxu0
        %v3871 = vadd.f32 %v3822, %v3870
        %3872 = vmatmul.bf16.gmra.mxu0 %v2956
        %v3873 = vpop.f32.mrf.mxu0
        %v3874 = vadd.f32 %v3825, %v3873
        %v3875 = vpop.f32.mrf.mxu0
        %v3876 = vadd.f32 %v3827, %v3875
        %3877 = vmatmul.bf16.gmra.mxu0 %v2960
        %v3878 = vpop.f32.mrf.mxu0
        %v3879 = vadd.f32 %v3830, %v3878
        %v3880 = vpop.f32.mrf.mxu0
        %v3881 = vadd.f32 %v3832, %v3880
        %3882 = vmatmul.bf16.gmra.mxu0 %v2964
        %v3883 = vpop.f32.mrf.mxu0
        %v3884 = vadd.f32 %v3835, %v3883
        %v3885 = vpop.f32.mrf.mxu0
        %v3886 = vadd.f32 %v3837, %v3885
        %3887 = vmatmul.bf16.gmra.mxu0 %v2968
        %v3888 = vpop.f32.mrf.mxu0
        %v3889 = vadd.f32 %v3840, %v3888
        %v3890 = vpop.f32.mrf.mxu0
        %v3891 = vadd.f32 %v3842, %v3890
        %3892 = vmatmul.bf16.gmra.mxu0 %v2972
        %v3893 = vpop.f32.mrf.mxu0
        %v3894 = vadd.f32 %v3845, %v3893
        %v3895 = vpop.f32.mrf.mxu0
        %v3896 = vadd.f32 %v3847, %v3895
        %3897 = vmatmul.bf16.gmra.mxu0 %v2976
        %v3898 = vpop.f32.mrf.mxu0
        %v3899 = vadd.f32 %v3850, %v3898
        %v3900 = vpop.f32.mrf.mxu0
        %v3901 = vadd.f32 %v3852, %v3900
        %3902 = vdwg.mxu0
        %3903 = vmatpush.bf16.msra.mxu0 %v3624
        %3904 = vmatpush.bf16.msra.mxu0 %v3620
        %3905 = vmatpush.bf16.msra.mxu0 %v3616
        %3906 = vmatpush.bf16.msra.mxu0 %v3612
        %3907 = vmatpush.bf16.msra.mxu0 %v3608
        %3908 = vmatpush.bf16.msra.mxu0 %v3604
        %3909 = vmatpush.bf16.msra.mxu0 %v3600
        %3910 = vmatpush.bf16.msra.mxu0 %v3596
        %3911 = vmatmul.bf16.gmra.mxu0 %v2949
        %v3912 = vpop.f32.mrf.mxu0
        %v3913 = vadd.f32 %v3864, %v3912
        %v3914 = vpop.f32.mrf.mxu0
        %v3915 = vadd.f32 %v3866, %v3914
        %3916 = vmatmul.bf16.gmra.mxu0 %v2953
        %v3917 = vpop.f32.mrf.mxu0
        %v3918 = vadd.f32 %v3869, %v3917
        %v3919 = vpop.f32.mrf.mxu0
        %v3920 = vadd.f32 %v3871, %v3919
        %3921 = vmatmul.bf16.gmra.mxu0 %v2957
        %v3922 = vpop.f32.mrf.mxu0
        %v3923 = vadd.f32 %v3874, %v3922
        %v3924 = vpop.f32.mrf.mxu0
        %v3925 = vadd.f32 %v3876, %v3924
        %3926 = vmatmul.bf16.gmra.mxu0 %v2961
        %v3927 = vpop.f32.mrf.mxu0
        %v3928 = vadd.f32 %v3879, %v3927
        %v3929 = vpop.f32.mrf.mxu0
        %v3930 = vadd.f32 %v3881, %v3929
        %3931 = vmatmul.bf16.gmra.mxu0 %v2965
        %v3932 = vpop.f32.mrf.mxu0
        %v3933 = vadd.f32 %v3884, %v3932
        %v3934 = vpop.f32.mrf.mxu0
        %v3935 = vadd.f32 %v3886, %v3934
        %3936 = vmatmul.bf16.gmra.mxu0 %v2969
        %v3937 = vpop.f32.mrf.mxu0
        %v3938 = vadd.f32 %v3889, %v3937
        %v3939 = vpop.f32.mrf.mxu0
        %v3940 = vadd.f32 %v3891, %v3939
        %3941 = vmatmul.bf16.gmra.mxu0 %v2973
        %v3942 = vpop.f32.mrf.mxu0
        %v3943 = vadd.f32 %v3894, %v3942
        %v3944 = vpop.f32.mrf.mxu0
        %v3945 = vadd.f32 %v3896, %v3944
        %3946 = vmatmul.bf16.gmra.mxu0 %v2977
        %v3947 = vpop.f32.mrf.mxu0
        %v3948 = vadd.f32 %v3899, %v3947
        %v3949 = vpop.f32.mrf.mxu0
        %v3950 = vadd.f32 %v3901, %v3949
        %3951 = vdwg.mxu0
        %3952 = vmatpush.bf16.msra.mxu0 %v3529
        %3953 = vmatpush.bf16.msra.mxu0 %v3525
        %3954 = vmatpush.bf16.msra.mxu0 %v3521
        %3955 = vmatpush.bf16.msra.mxu0 %v3517
        %3956 = vmatpush.bf16.msra.mxu0 %v3513
        %3957 = vmatpush.bf16.msra.mxu0 %v3509
        %3958 = vmatpush.bf16.msra.mxu0 %v3505
        %3959 = vmatpush.bf16.msra.mxu0 %v3501
        %3960 = vmatmul.bf16.gmra.mxu0 %v2946
        %v3961 = vpop.f32.mrf.mxu0
        %v3962 = vadd.f32 %v3109, %v3961
        %v3963 = vpop.f32.mrf.mxu0
        %v3964 = vadd.f32 %v3109, %v3963
        %3965 = vmatmul.bf16.gmra.mxu0 %v2950
        %v3966 = vpop.f32.mrf.mxu0
        %v3967 = vadd.f32 %v3109, %v3966
        %v3968 = vpop.f32.mrf.mxu0
        %v3969 = vadd.f32 %v3109, %v3968
        %3970 = vmatmul.bf16.gmra.mxu0 %v2954
        %v3971 = vpop.f32.mrf.mxu0
        %v3972 = vadd.f32 %v3109, %v3971
        %v3973 = vpop.f32.mrf.mxu0
        %v3974 = vadd.f32 %v3109, %v3973
        %3975 = vmatmul.bf16.gmra.mxu0 %v2958
        %v3976 = vpop.f32.mrf.mxu0
        %v3977 = vadd.f32 %v3109, %v3976
        %v3978 = vpop.f32.mrf.mxu0
        %v3979 = vadd.f32 %v3109, %v3978
        %3980 = vmatmul.bf16.gmra.mxu0 %v2962
        %v3981 = vpop.f32.mrf.mxu0
        %v3982 = vadd.f32 %v3109, %v3981
        %v3983 = vpop.f32.mrf.mxu0
        %v3984 = vadd.f32 %v3109, %v3983
        %3985 = vmatmul.bf16.gmra.mxu0 %v2966
        %v3986 = vpop.f32.mrf.mxu0
        %v3987 = vadd.f32 %v3109, %v3986
        %v3988 = vpop.f32.mrf.mxu0
        %v3989 = vadd.f32 %v3109, %v3988
        %3990 = vmatmul.bf16.gmra.mxu0 %v2970
        %v3991 = vpop.f32.mrf.mxu0
        %v3992 = vadd.f32 %v3109, %v3991
        %v3993 = vpop.f32.mrf.mxu0
        %v3994 = vadd.f32 %v3109, %v3993
        %3995 = vmatmul.bf16.gmra.mxu0 %v2974
        %v3996 = vpop.f32.mrf.mxu0
        %v3997 = vadd.f32 %v3109, %v3996
        %v3998 = vpop.f32.mrf.mxu0
        %v3999 = vadd.f32 %v3109, %v3998
        %4000 = vdwg.mxu0
        %4001 = vmatpush.bf16.msra.mxu0 %v3561
        %4002 = vmatpush.bf16.msra.mxu0 %v3557
        %4003 = vmatpush.bf16.msra.mxu0 %v3553
        %4004 = vmatpush.bf16.msra.mxu0 %v3549
        %4005 = vmatpush.bf16.msra.mxu0 %v3545
        %4006 = vmatpush.bf16.msra.mxu0 %v3541
        %4007 = vmatpush.bf16.msra.mxu0 %v3537
        %4008 = vmatpush.bf16.msra.mxu0 %v3533
        %4009 = vmatmul.bf16.gmra.mxu0 %v2947
        %v4010 = vpop.f32.mrf.mxu0
        %v4011 = vadd.f32 %v3962, %v4010
        %v4012 = vpop.f32.mrf.mxu0
        %v4013 = vadd.f32 %v3964, %v4012
        %4014 = vmatmul.bf16.gmra.mxu0 %v2951
        %v4015 = vpop.f32.mrf.mxu0
        %v4016 = vadd.f32 %v3967, %v4015
        %v4017 = vpop.f32.mrf.mxu0
        %v4018 = vadd.f32 %v3969, %v4017
        %4019 = vmatmul.bf16.gmra.mxu0 %v2955
        %v4020 = vpop.f32.mrf.mxu0
        %v4021 = vadd.f32 %v3972, %v4020
        %v4022 = vpop.f32.mrf.mxu0
        %v4023 = vadd.f32 %v3974, %v4022
        %4024 = vmatmul.bf16.gmra.mxu0 %v2959
        %v4025 = vpop.f32.mrf.mxu0
        %v4026 = vadd.f32 %v3977, %v4025
        %v4027 = vpop.f32.mrf.mxu0
        %v4028 = vadd.f32 %v3979, %v4027
        %4029 = vmatmul.bf16.gmra.mxu0 %v2963
        %v4030 = vpop.f32.mrf.mxu0
        %v4031 = vadd.f32 %v3982, %v4030
        %v4032 = vpop.f32.mrf.mxu0
        %v4033 = vadd.f32 %v3984, %v4032
        %4034 = vmatmul.bf16.gmra.mxu0 %v2967
        %v4035 = vpop.f32.mrf.mxu0
        %v4036 = vadd.f32 %v3987, %v4035
        %v4037 = vpop.f32.mrf.mxu0
        %v4038 = vadd.f32 %v3989, %v4037
        %4039 = vmatmul.bf16.gmra.mxu0 %v2971
        %v4040 = vpop.f32.mrf.mxu0
        %v4041 = vadd.f32 %v3992, %v4040
        %v4042 = vpop.f32.mrf.mxu0
        %v4043 = vadd.f32 %v3994, %v4042
        %4044 = vmatmul.bf16.gmra.mxu0 %v2975
        %v4045 = vpop.f32.mrf.mxu0
        %v4046 = vadd.f32 %v3997, %v4045
        %v4047 = vpop.f32.mrf.mxu0
        %v4048 = vadd.f32 %v3999, %v4047
        %4049 = vdwg.mxu0
        %4050 = vmatpush.bf16.msra.mxu0 %v3593
        %4051 = vmatpush.bf16.msra.mxu0 %v3589
        %4052 = vmatpush.bf16.msra.mxu0 %v3585
        %4053 = vmatpush.bf16.msra.mxu0 %v3581
        %4054 = vmatpush.bf16.msra.mxu0 %v3577
        %4055 = vmatpush.bf16.msra.mxu0 %v3573
        %4056 = vmatpush.bf16.msra.mxu0 %v3569
        %4057 = vmatpush.bf16.msra.mxu0 %v3565
        %4058 = vmatmul.bf16.gmra.mxu0 %v2948
        %v4059 = vpop.f32.mrf.mxu0
        %v4060 = vadd.f32 %v4011, %v4059
        %v4061 = vpop.f32.mrf.mxu0
        %v4062 = vadd.f32 %v4013, %v4061
        %4063 = vmatmul.bf16.gmra.mxu0 %v2952
        %v4064 = vpop.f32.mrf.mxu0
        %v4065 = vadd.f32 %v4016, %v4064
        %v4066 = vpop.f32.mrf.mxu0
        %v4067 = vadd.f32 %v4018, %v4066
        %4068 = vmatmul.bf16.gmra.mxu0 %v2956
        %v4069 = vpop.f32.mrf.mxu0
        %v4070 = vadd.f32 %v4021, %v4069
        %v4071 = vpop.f32.mrf.mxu0
        %v4072 = vadd.f32 %v4023, %v4071
        %4073 = vmatmul.bf16.gmra.mxu0 %v2960
        %v4074 = vpop.f32.mrf.mxu0
        %v4075 = vadd.f32 %v4026, %v4074
        %v4076 = vpop.f32.mrf.mxu0
        %v4077 = vadd.f32 %v4028, %v4076
        %4078 = vmatmul.bf16.gmra.mxu0 %v2964
        %v4079 = vpop.f32.mrf.mxu0
        %v4080 = vadd.f32 %v4031, %v4079
        %v4081 = vpop.f32.mrf.mxu0
        %v4082 = vadd.f32 %v4033, %v4081
        %4083 = vmatmul.bf16.gmra.mxu0 %v2968
        %v4084 = vpop.f32.mrf.mxu0
        %v4085 = vadd.f32 %v4036, %v4084
        %v4086 = vpop.f32.mrf.mxu0
        %v4087 = vadd.f32 %v4038, %v4086
        %4088 = vmatmul.bf16.gmra.mxu0 %v2972
        %v4089 = vpop.f32.mrf.mxu0
        %v4090 = vadd.f32 %v4041, %v4089
        %v4091 = vpop.f32.mrf.mxu0
        %v4092 = vadd.f32 %v4043, %v4091
        %4093 = vmatmul.bf16.gmra.mxu0 %v2976
        %v4094 = vpop.f32.mrf.mxu0
        %v4095 = vadd.f32 %v4046, %v4094
        %v4096 = vpop.f32.mrf.mxu0
        %v4097 = vadd.f32 %v4048, %v4096
        %4098 = vdwg.mxu0
        %4099 = vmatpush.bf16.msra.mxu0 %v3625
        %4100 = vmatpush.bf16.msra.mxu0 %v3621
        %4101 = vmatpush.bf16.msra.mxu0 %v3617
        %4102 = vmatpush.bf16.msra.mxu0 %v3613
        %4103 = vmatpush.bf16.msra.mxu0 %v3609
        %4104 = vmatpush.bf16.msra.mxu0 %v3605
        %4105 = vmatpush.bf16.msra.mxu0 %v3601
        %4106 = vmatpush.bf16.msra.mxu0 %v3597
        %4107 = vmatmul.bf16.gmra.mxu0 %v2949
        %v4108 = vpop.f32.mrf.mxu0
        %v4109 = vadd.f32 %v4060, %v4108
        %v4110 = vpop.f32.mrf.mxu0
        %v4111 = vadd.f32 %v4062, %v4110
        %4112 = vmatmul.bf16.gmra.mxu0 %v2953
        %v4113 = vpop.f32.mrf.mxu0
        %v4114 = vadd.f32 %v4065, %v4113
        %v4115 = vpop.f32.mrf.mxu0
        %v4116 = vadd.f32 %v4067, %v4115
        %4117 = vmatmul.bf16.gmra.mxu0 %v2957
        %v4118 = vpop.f32.mrf.mxu0
        %v4119 = vadd.f32 %v4070, %v4118
        %v4120 = vpop.f32.mrf.mxu0
        %v4121 = vadd.f32 %v4072, %v4120
        %4122 = vmatmul.bf16.gmra.mxu0 %v2961
        %v4123 = vpop.f32.mrf.mxu0
        %v4124 = vadd.f32 %v4075, %v4123
        %v4125 = vpop.f32.mrf.mxu0
        %v4126 = vadd.f32 %v4077, %v4125
        %4127 = vmatmul.bf16.gmra.mxu0 %v2965
        %v4128 = vpop.f32.mrf.mxu0
        %v4129 = vadd.f32 %v4080, %v4128
        %v4130 = vpop.f32.mrf.mxu0
        %v4131 = vadd.f32 %v4082, %v4130
        %4132 = vmatmul.bf16.gmra.mxu0 %v2969
        %v4133 = vpop.f32.mrf.mxu0
        %v4134 = vadd.f32 %v4085, %v4133
        %v4135 = vpop.f32.mrf.mxu0
        %v4136 = vadd.f32 %v4087, %v4135
        %4137 = vmatmul.bf16.gmra.mxu0 %v2973
        %v4138 = vpop.f32.mrf.mxu0
        %v4139 = vadd.f32 %v4090, %v4138
        %v4140 = vpop.f32.mrf.mxu0
        %v4141 = vadd.f32 %v4092, %v4140
        %4142 = vmatmul.bf16.gmra.mxu0 %v2977
        %v4143 = vpop.f32.mrf.mxu0
        %v4144 = vadd.f32 %v4095, %v4143
        %v4145 = vpop.f32.mrf.mxu0
        %v4146 = vadd.f32 %v4097, %v4145
        %4147 = vdwg.mxu0
        %4148 = vmatpush.bf16.msra.mxu0 %v3530
        %4149 = vmatpush.bf16.msra.mxu0 %v3526
        %4150 = vmatpush.bf16.msra.mxu0 %v3522
        %4151 = vmatpush.bf16.msra.mxu0 %v3518
        %4152 = vmatpush.bf16.msra.mxu0 %v3514
        %4153 = vmatpush.bf16.msra.mxu0 %v3510
        %4154 = vmatpush.bf16.msra.mxu0 %v3506
        %4155 = vmatpush.bf16.msra.mxu0 %v3502
        %4156 = vmatmul.bf16.gmra.mxu0 %v2946
        %v4157 = vpop.f32.mrf.mxu0
        %v4158 = vadd.f32 %v3110, %v4157
        %v4159 = vpop.f32.mrf.mxu0
        %v4160 = vadd.f32 %v3110, %v4159
        %4161 = vmatmul.bf16.gmra.mxu0 %v2950
        %v4162 = vpop.f32.mrf.mxu0
        %v4163 = vadd.f32 %v3110, %v4162
        %v4164 = vpop.f32.mrf.mxu0
        %v4165 = vadd.f32 %v3110, %v4164
        %4166 = vmatmul.bf16.gmra.mxu0 %v2954
        %v4167 = vpop.f32.mrf.mxu0
        %v4168 = vadd.f32 %v3110, %v4167
        %v4169 = vpop.f32.mrf.mxu0
        %v4170 = vadd.f32 %v3110, %v4169
        %4171 = vmatmul.bf16.gmra.mxu0 %v2958
        %v4172 = vpop.f32.mrf.mxu0
        %v4173 = vadd.f32 %v3110, %v4172
        %v4174 = vpop.f32.mrf.mxu0
        %v4175 = vadd.f32 %v3110, %v4174
        %4176 = vmatmul.bf16.gmra.mxu0 %v2962
        %v4177 = vpop.f32.mrf.mxu0
        %v4178 = vadd.f32 %v3110, %v4177
        %v4179 = vpop.f32.mrf.mxu0
        %v4180 = vadd.f32 %v3110, %v4179
        %4181 = vmatmul.bf16.gmra.mxu0 %v2966
        %v4182 = vpop.f32.mrf.mxu0
        %v4183 = vadd.f32 %v3110, %v4182
        %v4184 = vpop.f32.mrf.mxu0
        %v4185 = vadd.f32 %v3110, %v4184
        %4186 = vmatmul.bf16.gmra.mxu0 %v2970
        %v4187 = vpop.f32.mrf.mxu0
        %v4188 = vadd.f32 %v3110, %v4187
        %v4189 = vpop.f32.mrf.mxu0
        %v4190 = vadd.f32 %v3110, %v4189
        %4191 = vmatmul.bf16.gmra.mxu0 %v2974
        %v4192 = vpop.f32.mrf.mxu0
        %v4193 = vadd.f32 %v3110, %v4192
        %v4194 = vpop.f32.mrf.mxu0
        %v4195 = vadd.f32 %v3110, %v4194
        %4196 = vdwg.mxu0
        %4197 = vmatpush.bf16.msra.mxu0 %v3562
        %4198 = vmatpush.bf16.msra.mxu0 %v3558
        %4199 = vmatpush.bf16.msra.mxu0 %v3554
        %4200 = vmatpush.bf16.msra.mxu0 %v3550
        %4201 = vmatpush.bf16.msra.mxu0 %v3546
        %4202 = vmatpush.bf16.msra.mxu0 %v3542
        %4203 = vmatpush.bf16.msra.mxu0 %v3538
        %4204 = vmatpush.bf16.msra.mxu0 %v3534
        %4205 = vmatmul.bf16.gmra.mxu0 %v2947
        %v4206 = vpop.f32.mrf.mxu0
        %v4207 = vadd.f32 %v4158, %v4206
        %v4208 = vpop.f32.mrf.mxu0
        %v4209 = vadd.f32 %v4160, %v4208
        %4210 = vmatmul.bf16.gmra.mxu0 %v2951
        %v4211 = vpop.f32.mrf.mxu0
        %v4212 = vadd.f32 %v4163, %v4211
        %v4213 = vpop.f32.mrf.mxu0
        %v4214 = vadd.f32 %v4165, %v4213
        %4215 = vmatmul.bf16.gmra.mxu0 %v2955
        %v4216 = vpop.f32.mrf.mxu0
        %v4217 = vadd.f32 %v4168, %v4216
        %v4218 = vpop.f32.mrf.mxu0
        %v4219 = vadd.f32 %v4170, %v4218
        %4220 = vmatmul.bf16.gmra.mxu0 %v2959
        %v4221 = vpop.f32.mrf.mxu0
        %v4222 = vadd.f32 %v4173, %v4221
        %v4223 = vpop.f32.mrf.mxu0
        %v4224 = vadd.f32 %v4175, %v4223
        %4225 = vmatmul.bf16.gmra.mxu0 %v2963
        %v4226 = vpop.f32.mrf.mxu0
        %v4227 = vadd.f32 %v4178, %v4226
        %v4228 = vpop.f32.mrf.mxu0
        %v4229 = vadd.f32 %v4180, %v4228
        %4230 = vmatmul.bf16.gmra.mxu0 %v2967
        %v4231 = vpop.f32.mrf.mxu0
        %v4232 = vadd.f32 %v4183, %v4231
        %v4233 = vpop.f32.mrf.mxu0
        %v4234 = vadd.f32 %v4185, %v4233
        %4235 = vmatmul.bf16.gmra.mxu0 %v2971
        %v4236 = vpop.f32.mrf.mxu0
        %v4237 = vadd.f32 %v4188, %v4236
        %v4238 = vpop.f32.mrf.mxu0
        %v4239 = vadd.f32 %v4190, %v4238
        %4240 = vmatmul.bf16.gmra.mxu0 %v2975
        %v4241 = vpop.f32.mrf.mxu0
        %v4242 = vadd.f32 %v4193, %v4241
        %v4243 = vpop.f32.mrf.mxu0
        %v4244 = vadd.f32 %v4195, %v4243
        %4245 = vdwg.mxu0
        %4246 = vmatpush.bf16.msra.mxu0 %v3594
        %4247 = vmatpush.bf16.msra.mxu0 %v3590
        %4248 = vmatpush.bf16.msra.mxu0 %v3586
        %4249 = vmatpush.bf16.msra.mxu0 %v3582
        %4250 = vmatpush.bf16.msra.mxu0 %v3578
        %4251 = vmatpush.bf16.msra.mxu0 %v3574
        %4252 = vmatpush.bf16.msra.mxu0 %v3570
        %4253 = vmatpush.bf16.msra.mxu0 %v3566
        %4254 = vmatmul.bf16.gmra.mxu0 %v2948
        %v4255 = vpop.f32.mrf.mxu0
        %v4256 = vadd.f32 %v4207, %v4255
        %v4257 = vpop.f32.mrf.mxu0
        %v4258 = vadd.f32 %v4209, %v4257
        %4259 = vmatmul.bf16.gmra.mxu0 %v2952
        %v4260 = vpop.f32.mrf.mxu0
        %v4261 = vadd.f32 %v4212, %v4260
        %v4262 = vpop.f32.mrf.mxu0
        %v4263 = vadd.f32 %v4214, %v4262
        %4264 = vmatmul.bf16.gmra.mxu0 %v2956
        %v4265 = vpop.f32.mrf.mxu0
        %v4266 = vadd.f32 %v4217, %v4265
        %v4267 = vpop.f32.mrf.mxu0
        %v4268 = vadd.f32 %v4219, %v4267
        %4269 = vmatmul.bf16.gmra.mxu0 %v2960
        %v4270 = vpop.f32.mrf.mxu0
        %v4271 = vadd.f32 %v4222, %v4270
        %v4272 = vpop.f32.mrf.mxu0
        %v4273 = vadd.f32 %v4224, %v4272
        %4274 = vmatmul.bf16.gmra.mxu0 %v2964
        %v4275 = vpop.f32.mrf.mxu0
        %v4276 = vadd.f32 %v4227, %v4275
        %v4277 = vpop.f32.mrf.mxu0
        %v4278 = vadd.f32 %v4229, %v4277
        %4279 = vmatmul.bf16.gmra.mxu0 %v2968
        %v4280 = vpop.f32.mrf.mxu0
        %v4281 = vadd.f32 %v4232, %v4280
        %v4282 = vpop.f32.mrf.mxu0
        %v4283 = vadd.f32 %v4234, %v4282
        %4284 = vmatmul.bf16.gmra.mxu0 %v2972
        %v4285 = vpop.f32.mrf.mxu0
        %v4286 = vadd.f32 %v4237, %v4285
        %v4287 = vpop.f32.mrf.mxu0
        %v4288 = vadd.f32 %v4239, %v4287
        %4289 = vmatmul.bf16.gmra.mxu0 %v2976
        %v4290 = vpop.f32.mrf.mxu0
        %v4291 = vadd.f32 %v4242, %v4290
        %v4292 = vpop.f32.mrf.mxu0
        %v4293 = vadd.f32 %v4244, %v4292
        %4294 = vdwg.mxu0
        %4295 = vmatpush.bf16.msra.mxu0 %v3626
        %4296 = vmatpush.bf16.msra.mxu0 %v3622
        %4297 = vmatpush.bf16.msra.mxu0 %v3618
        %4298 = vmatpush.bf16.msra.mxu0 %v3614
        %4299 = vmatpush.bf16.msra.mxu0 %v3610
        %4300 = vmatpush.bf16.msra.mxu0 %v3606
        %4301 = vmatpush.bf16.msra.mxu0 %v3602
        %4302 = vmatpush.bf16.msra.mxu0 %v3598
        %4303 = vmatmul.bf16.gmra.mxu0 %v2949
        %v4304 = vpop.f32.mrf.mxu0
        %v4305 = vadd.f32 %v4256, %v4304
        %v4306 = vpop.f32.mrf.mxu0
        %v4307 = vadd.f32 %v4258, %v4306
        %4308 = vmatmul.bf16.gmra.mxu0 %v2953
        %v4309 = vpop.f32.mrf.mxu0
        %v4310 = vadd.f32 %v4261, %v4309
        %v4311 = vpop.f32.mrf.mxu0
        %v4312 = vadd.f32 %v4263, %v4311
        %4313 = vmatmul.bf16.gmra.mxu0 %v2957
        %v4314 = vpop.f32.mrf.mxu0
        %v4315 = vadd.f32 %v4266, %v4314
        %v4316 = vpop.f32.mrf.mxu0
        %v4317 = vadd.f32 %v4268, %v4316
        %4318 = vmatmul.bf16.gmra.mxu0 %v2961
        %v4319 = vpop.f32.mrf.mxu0
        %v4320 = vadd.f32 %v4271, %v4319
        %v4321 = vpop.f32.mrf.mxu0
        %v4322 = vadd.f32 %v4273, %v4321
        %4323 = vmatmul.bf16.gmra.mxu0 %v2965
        %v4324 = vpop.f32.mrf.mxu0
        %v4325 = vadd.f32 %v4276, %v4324
        %v4326 = vpop.f32.mrf.mxu0
        %v4327 = vadd.f32 %v4278, %v4326
        %4328 = vmatmul.bf16.gmra.mxu0 %v2969
        %v4329 = vpop.f32.mrf.mxu0
        %v4330 = vadd.f32 %v4281, %v4329
        %v4331 = vpop.f32.mrf.mxu0
        %v4332 = vadd.f32 %v4283, %v4331
        %4333 = vmatmul.bf16.gmra.mxu0 %v2973
        %v4334 = vpop.f32.mrf.mxu0
        %v4335 = vadd.f32 %v4286, %v4334
        %v4336 = vpop.f32.mrf.mxu0
        %v4337 = vadd.f32 %v4288, %v4336
        %4338 = vmatmul.bf16.gmra.mxu0 %v2977
        %v4339 = vpop.f32.mrf.mxu0
        %v4340 = vadd.f32 %v4291, %v4339
        %v4341 = vpop.f32.mrf.mxu0
        %v4342 = vadd.f32 %v4293, %v4341
        %4343 = vdwg.mxu0
        %4344 = vmatpush.bf16.msra.mxu0 %v3531
        %4345 = vmatpush.bf16.msra.mxu0 %v3527
        %4346 = vmatpush.bf16.msra.mxu0 %v3523
        %4347 = vmatpush.bf16.msra.mxu0 %v3519
        %4348 = vmatpush.bf16.msra.mxu0 %v3515
        %4349 = vmatpush.bf16.msra.mxu0 %v3511
        %4350 = vmatpush.bf16.msra.mxu0 %v3507
        %4351 = vmatpush.bf16.msra.mxu0 %v3503
        %4352 = vmatmul.bf16.gmra.mxu0 %v2946
        %v4353 = vpop.f32.mrf.mxu0
        %v4354 = vadd.f32 %v3111, %v4353
        %v4355 = vpop.f32.mrf.mxu0
        %v4356 = vadd.f32 %v3111, %v4355
        %4357 = vmatmul.bf16.gmra.mxu0 %v2950
        %v4358 = vpop.f32.mrf.mxu0
        %v4359 = vadd.f32 %v3111, %v4358
        %v4360 = vpop.f32.mrf.mxu0
        %v4361 = vadd.f32 %v3111, %v4360
        %4362 = vmatmul.bf16.gmra.mxu0 %v2954
        %v4363 = vpop.f32.mrf.mxu0
        %v4364 = vadd.f32 %v3111, %v4363
        %v4365 = vpop.f32.mrf.mxu0
        %v4366 = vadd.f32 %v3111, %v4365
        %4367 = vmatmul.bf16.gmra.mxu0 %v2958
        %v4368 = vpop.f32.mrf.mxu0
        %v4369 = vadd.f32 %v3111, %v4368
        %v4370 = vpop.f32.mrf.mxu0
        %v4371 = vadd.f32 %v3111, %v4370
        %4372 = vmatmul.bf16.gmra.mxu0 %v2962
        %v4373 = vpop.f32.mrf.mxu0
        %v4374 = vadd.f32 %v3111, %v4373
        %v4375 = vpop.f32.mrf.mxu0
        %v4376 = vadd.f32 %v3111, %v4375
        %4377 = vmatmul.bf16.gmra.mxu0 %v2966
        %v4378 = vpop.f32.mrf.mxu0
        %v4379 = vadd.f32 %v3111, %v4378
        %v4380 = vpop.f32.mrf.mxu0
        %v4381 = vadd.f32 %v3111, %v4380
        %4382 = vmatmul.bf16.gmra.mxu0 %v2970
        %v4383 = vpop.f32.mrf.mxu0
        %v4384 = vadd.f32 %v3111, %v4383
        %v4385 = vpop.f32.mrf.mxu0
        %v4386 = vadd.f32 %v3111, %v4385
        %4387 = vmatmul.bf16.gmra.mxu0 %v2974
        %v4388 = vpop.f32.mrf.mxu0
        %v4389 = vadd.f32 %v3111, %v4388
        %v4390 = vpop.f32.mrf.mxu0
        %v4391 = vadd.f32 %v3111, %v4390
        %4392 = vdwg.mxu0
        %4393 = vmatpush.bf16.msra.mxu0 %v3563
        %4394 = vmatpush.bf16.msra.mxu0 %v3559
        %4395 = vmatpush.bf16.msra.mxu0 %v3555
        %4396 = vmatpush.bf16.msra.mxu0 %v3551
        %4397 = vmatpush.bf16.msra.mxu0 %v3547
        %4398 = vmatpush.bf16.msra.mxu0 %v3543
        %4399 = vmatpush.bf16.msra.mxu0 %v3539
        %4400 = vmatpush.bf16.msra.mxu0 %v3535
        %4401 = vmatmul.bf16.gmra.mxu0 %v2947
        %v4402 = vpop.f32.mrf.mxu0
        %v4403 = vadd.f32 %v4354, %v4402
        %v4404 = vpop.f32.mrf.mxu0
        %v4405 = vadd.f32 %v4356, %v4404
        %4406 = vmatmul.bf16.gmra.mxu0 %v2951
        %v4407 = vpop.f32.mrf.mxu0
        %v4408 = vadd.f32 %v4359, %v4407
        %v4409 = vpop.f32.mrf.mxu0
        %v4410 = vadd.f32 %v4361, %v4409
        %4411 = vmatmul.bf16.gmra.mxu0 %v2955
        %v4412 = vpop.f32.mrf.mxu0
        %v4413 = vadd.f32 %v4364, %v4412
        %v4414 = vpop.f32.mrf.mxu0
        %v4415 = vadd.f32 %v4366, %v4414
        %4416 = vmatmul.bf16.gmra.mxu0 %v2959
        %v4417 = vpop.f32.mrf.mxu0
        %v4418 = vadd.f32 %v4369, %v4417
        %v4419 = vpop.f32.mrf.mxu0
        %v4420 = vadd.f32 %v4371, %v4419
        %4421 = vmatmul.bf16.gmra.mxu0 %v2963
        %v4422 = vpop.f32.mrf.mxu0
        %v4423 = vadd.f32 %v4374, %v4422
        %v4424 = vpop.f32.mrf.mxu0
        %v4425 = vadd.f32 %v4376, %v4424
        %4426 = vmatmul.bf16.gmra.mxu0 %v2967
        %v4427 = vpop.f32.mrf.mxu0
        %v4428 = vadd.f32 %v4379, %v4427
        %v4429 = vpop.f32.mrf.mxu0
        %v4430 = vadd.f32 %v4381, %v4429
        %4431 = vmatmul.bf16.gmra.mxu0 %v2971
        %v4432 = vpop.f32.mrf.mxu0
        %v4433 = vadd.f32 %v4384, %v4432
        %v4434 = vpop.f32.mrf.mxu0
        %v4435 = vadd.f32 %v4386, %v4434
        %4436 = vmatmul.bf16.gmra.mxu0 %v2975
        %v4437 = vpop.f32.mrf.mxu0
        %v4438 = vadd.f32 %v4389, %v4437
        %v4439 = vpop.f32.mrf.mxu0
        %v4440 = vadd.f32 %v4391, %v4439
        %4441 = vdwg.mxu0
        %4442 = vmatpush.bf16.msra.mxu0 %v3595
        %4443 = vmatpush.bf16.msra.mxu0 %v3591
        %4444 = vmatpush.bf16.msra.mxu0 %v3587
        %4445 = vmatpush.bf16.msra.mxu0 %v3583
        %4446 = vmatpush.bf16.msra.mxu0 %v3579
        %4447 = vmatpush.bf16.msra.mxu0 %v3575
        %4448 = vmatpush.bf16.msra.mxu0 %v3571
        %4449 = vmatpush.bf16.msra.mxu0 %v3567
        %4450 = vmatmul.bf16.gmra.mxu0 %v2948
        %v4451 = vpop.f32.mrf.mxu0
        %v4452 = vadd.f32 %v4403, %v4451
        %v4453 = vpop.f32.mrf.mxu0
        %v4454 = vadd.f32 %v4405, %v4453
        %4455 = vmatmul.bf16.gmra.mxu0 %v2952
        %v4456 = vpop.f32.mrf.mxu0
        %v4457 = vadd.f32 %v4408, %v4456
        %v4458 = vpop.f32.mrf.mxu0
        %v4459 = vadd.f32 %v4410, %v4458
        %4460 = vmatmul.bf16.gmra.mxu0 %v2956
        %v4461 = vpop.f32.mrf.mxu0
        %v4462 = vadd.f32 %v4413, %v4461
        %v4463 = vpop.f32.mrf.mxu0
        %v4464 = vadd.f32 %v4415, %v4463
        %4465 = vmatmul.bf16.gmra.mxu0 %v2960
        %v4466 = vpop.f32.mrf.mxu0
        %v4467 = vadd.f32 %v4418, %v4466
        %v4468 = vpop.f32.mrf.mxu0
        %v4469 = vadd.f32 %v4420, %v4468
        %4470 = vmatmul.bf16.gmra.mxu0 %v2964
        %v4471 = vpop.f32.mrf.mxu0
        %v4472 = vadd.f32 %v4423, %v4471
        %v4473 = vpop.f32.mrf.mxu0
        %v4474 = vadd.f32 %v4425, %v4473
        %4475 = vmatmul.bf16.gmra.mxu0 %v2968
        %v4476 = vpop.f32.mrf.mxu0
        %v4477 = vadd.f32 %v4428, %v4476
        %v4478 = vpop.f32.mrf.mxu0
        %v4479 = vadd.f32 %v4430, %v4478
        %4480 = vmatmul.bf16.gmra.mxu0 %v2972
        %v4481 = vpop.f32.mrf.mxu0
        %v4482 = vadd.f32 %v4433, %v4481
        %v4483 = vpop.f32.mrf.mxu0
        %v4484 = vadd.f32 %v4435, %v4483
        %4485 = vmatmul.bf16.gmra.mxu0 %v2976
        %v4486 = vpop.f32.mrf.mxu0
        %v4487 = vadd.f32 %v4438, %v4486
        %v4488 = vpop.f32.mrf.mxu0
        %v4489 = vadd.f32 %v4440, %v4488
        %4490 = vdwg.mxu0
        %4491 = vmatpush.bf16.msra.mxu0 %v3627
        %4492 = vmatpush.bf16.msra.mxu0 %v3623
        %4493 = vmatpush.bf16.msra.mxu0 %v3619
        %4494 = vmatpush.bf16.msra.mxu0 %v3615
        %4495 = vmatpush.bf16.msra.mxu0 %v3611
        %4496 = vmatpush.bf16.msra.mxu0 %v3607
        %4497 = vmatpush.bf16.msra.mxu0 %v3603
        %4498 = vmatpush.bf16.msra.mxu0 %v3599
        %4499 = vmatmul.bf16.gmra.mxu0 %v2949
        %v4500 = vpop.f32.mrf.mxu0
        %v4501 = vadd.f32 %v4452, %v4500
        %v4502 = vpop.f32.mrf.mxu0
        %v4503 = vadd.f32 %v4454, %v4502
        %4504 = vmatmul.bf16.gmra.mxu0 %v2953
        %v4505 = vpop.f32.mrf.mxu0
        %v4506 = vadd.f32 %v4457, %v4505
        %v4507 = vpop.f32.mrf.mxu0
        %v4508 = vadd.f32 %v4459, %v4507
        %4509 = vmatmul.bf16.gmra.mxu0 %v2957
        %v4510 = vpop.f32.mrf.mxu0
        %v4511 = vadd.f32 %v4462, %v4510
        %v4512 = vpop.f32.mrf.mxu0
        %v4513 = vadd.f32 %v4464, %v4512
        %4514 = vmatmul.bf16.gmra.mxu0 %v2961
        %v4515 = vpop.f32.mrf.mxu0
        %v4516 = vadd.f32 %v4467, %v4515
        %v4517 = vpop.f32.mrf.mxu0
        %v4518 = vadd.f32 %v4469, %v4517
        %4519 = vmatmul.bf16.gmra.mxu0 %v2965
        %v4520 = vpop.f32.mrf.mxu0
        %v4521 = vadd.f32 %v4472, %v4520
        %v4522 = vpop.f32.mrf.mxu0
        %v4523 = vadd.f32 %v4474, %v4522
        %4524 = vmatmul.bf16.gmra.mxu0 %v2969
        %v4525 = vpop.f32.mrf.mxu0
        %v4526 = vadd.f32 %v4477, %v4525
        %v4527 = vpop.f32.mrf.mxu0
        %v4528 = vadd.f32 %v4479, %v4527
        %4529 = vmatmul.bf16.gmra.mxu0 %v2973
        %v4530 = vpop.f32.mrf.mxu0
        %v4531 = vadd.f32 %v4482, %v4530
        %v4532 = vpop.f32.mrf.mxu0
        %v4533 = vadd.f32 %v4484, %v4532
        %4534 = vmatmul.bf16.gmra.mxu0 %v2977
        %v4535 = vpop.f32.mrf.mxu0
        %v4536 = vadd.f32 %v4487, %v4535
        %v4537 = vpop.f32.mrf.mxu0
        %v4538 = vadd.f32 %v4489, %v4537
        %4539 = vdwg.mxu0
        %v4540 = vmax.f32 %v3913, 0.0
        %v4541 = vmax.f32 %v4109, 0.0
        %v4542 = vmax.f32 %v4305, 0.0
        %v4543 = vmax.f32 %v4501, 0.0
        %v4544 = vmax.f32 %v3915, 0.0
        %v4545 = vmax.f32 %v4111, 0.0
        %v4546 = vmax.f32 %v4307, 0.0
        %v4547 = vmax.f32 %v4503, 0.0
        %v4548 = vmax.f32 %v3918, 0.0
        %v4549 = vmax.f32 %v4114, 0.0
        %v4550 = vmax.f32 %v4310, 0.0
        %v4551 = vmax.f32 %v4506, 0.0
        %v4552 = vmax.f32 %v3920, 0.0
        %v4553 = vmax.f32 %v4116, 0.0
        %v4554 = vmax.f32 %v4312, 0.0
        %v4555 = vmax.f32 %v4508, 0.0
        %v4556 = vmax.f32 %v3923, 0.0
        %v4557 = vmax.f32 %v4119, 0.0
        %v4558 = vmax.f32 %v4315, 0.0
        %v4559 = vmax.f32 %v4511, 0.0
        %v4560 = vmax.f32 %v3925, 0.0
        %v4561 = vmax.f32 %v4121, 0.0
        %v4562 = vmax.f32 %v4317, 0.0
        %v4563 = vmax.f32 %v4513, 0.0
        %v4564 = vmax.f32 %v3928, 0.0
        %v4565 = vmax.f32 %v4124, 0.0
        %v4566 = vmax.f32 %v4320, 0.0
        %v4567 = vmax.f32 %v4516, 0.0
        %v4568 = vmax.f32 %v3930, 0.0
        %v4569 = vmax.f32 %v4126, 0.0
        %v4570 = vmax.f32 %v4322, 0.0
        %v4571 = vmax.f32 %v4518, 0.0
        %v4572 = vmax.f32 %v3933, 0.0
        %v4573 = vmax.f32 %v4129, 0.0
        %v4574 = vmax.f32 %v4325, 0.0
        %v4575 = vmax.f32 %v4521, 0.0
        %v4576 = vmax.f32 %v3935, 0.0
        %v4577 = vmax.f32 %v4131, 0.0
        %v4578 = vmax.f32 %v4327, 0.0
        %v4579 = vmax.f32 %v4523, 0.0
        %v4580 = vmax.f32 %v3938, 0.0
        %v4581 = vmax.f32 %v4134, 0.0
        %v4582 = vmax.f32 %v4330, 0.0
        %v4583 = vmax.f32 %v4526, 0.0
        %v4584 = vmax.f32 %v3940, 0.0
        %v4585 = vmax.f32 %v4136, 0.0
        %v4586 = vmax.f32 %v4332, 0.0
        %v4587 = vmax.f32 %v4528, 0.0
        %v4588 = vmax.f32 %v3943, 0.0
        %v4589 = vmax.f32 %v4139, 0.0
        %v4590 = vmax.f32 %v4335, 0.0
        %v4591 = vmax.f32 %v4531, 0.0
        %v4592 = vmax.f32 %v3945, 0.0
        %v4593 = vmax.f32 %v4141, 0.0
        %v4594 = vmax.f32 %v4337, 0.0
        %v4595 = vmax.f32 %v4533, 0.0
        %v4596 = vmax.f32 %v3948, 0.0
        %v4597 = vmax.f32 %v4144, 0.0
        %v4598 = vmax.f32 %v4340, 0.0
        %v4599 = vmax.f32 %v4536, 0.0
        %v4600 = vmax.f32 %v3950, 0.0
        %v4601 = vmax.f32 %v4146, 0.0
        %v4602 = vmax.f32 %v4342, 0.0
        %v4603 = vmax.f32 %v4538, 0.0
        %v4604 = vpack.c.bf16 %v4544, %v4540
        %v4605 = vpack.c.bf16 %v4545, %v4541
        %v4606 = vpack.c.bf16 %v4546, %v4542
        %v4607 = vpack.c.bf16 %v4547, %v4543
        %v4608 = vpack.c.bf16 %v4552, %v4548
        %v4609 = vpack.c.bf16 %v4553, %v4549
        %v4610 = vpack.c.bf16 %v4554, %v4550
        %v4611 = vpack.c.bf16 %v4555, %v4551
        %v4612 = vpack.c.bf16 %v4560, %v4556
        %v4613 = vpack.c.bf16 %v4561, %v4557
        %v4614 = vpack.c.bf16 %v4562, %v4558
        %v4615 = vpack.c.bf16 %v4563, %v4559
        %v4616 = vpack.c.bf16 %v4568, %v4564
        %v4617 = vpack.c.bf16 %v4569, %v4565
        %v4618 = vpack.c.bf16 %v4570, %v4566
        %v4619 = vpack.c.bf16 %v4571, %v4567
        %v4620 = vpack.c.bf16 %v4576, %v4572
        %v4621 = vpack.c.bf16 %v4577, %v4573
        %v4622 = vpack.c.bf16 %v4578, %v4574
        %v4623 = vpack.c.bf16 %v4579, %v4575
        %v4624 = vpack.c.bf16 %v4584, %v4580
        %v4625 = vpack.c.bf16 %v4585, %v4581
        %v4626 = vpack.c.bf16 %v4586, %v4582
        %v4627 = vpack.c.bf16 %v4587, %v4583
        %v4628 = vpack.c.bf16 %v4592, %v4588
        %v4629 = vpack.c.bf16 %v4593, %v4589
        %v4630 = vpack.c.bf16 %v4594, %v4590
        %v4631 = vpack.c.bf16 %v4595, %v4591
        %v4632 = vpack.c.bf16 %v4600, %v4596
        %v4633 = vpack.c.bf16 %v4601, %v4597
        %v4634 = vpack.c.bf16 %v4602, %v4598
        %v4635 = vpack.c.bf16 %v4603, %v4599
        %v4636 = vld [vmem:[#allocation6] sm:$0xff]
        %v4637 = vld [vmem:[#allocation6 + $0x8] sm:$0xff]
        %v4638 = vld [vmem:[#allocation6 + $0x10] sm:$0xff]
        %v4639 = vld [vmem:[#allocation6 + $0x18] sm:$0xff]
        %v4640 = vld [vmem:[#allocation6 + $0x20] sm:$0xff]
        %v4641 = vld [vmem:[#allocation6 + $0x28] sm:$0xff]
        %v4642 = vld [vmem:[#allocation6 + $0x30] sm:$0xff]
        %v4643 = vld [vmem:[#allocation6 + $0x38] sm:$0xff]
        %v4644 = vld [vmem:[#allocation6 + $0x40] sm:$0xff]
        %v4645 = vld [vmem:[#allocation6 + $0x48] sm:$0xff]
        %v4646 = vld [vmem:[#allocation6 + $0x50] sm:$0xff]
        %v4647 = vld [vmem:[#allocation6 + $0x58] sm:$0xff]
        %v4648 = vld [vmem:[#allocation6 + $0x60] sm:$0xff]
        %v4649 = vld [vmem:[#allocation6 + $0x68] sm:$0xff]
        %v4650 = vld [vmem:[#allocation6 + $0x70] sm:$0xff]
        %v4651 = vld [vmem:[#allocation6 + $0x78] sm:$0xff]
        %v4652 = vld [vmem:[#allocation6 + $0x80] sm:$0xff]
        %v4653 = vld [vmem:[#allocation6 + $0x88] sm:$0xff]
        %v4654 = vld [vmem:[#allocation6 + $0x90] sm:$0xff]
        %v4655 = vld [vmem:[#allocation6 + $0x98] sm:$0xff]
        %v4656 = vld [vmem:[#allocation6 + $0xa0] sm:$0xff]
        %v4657 = vld [vmem:[#allocation6 + $0xa8] sm:$0xff]
        %v4658 = vld [vmem:[#allocation6 + $0xb0] sm:$0xff]
        %v4659 = vld [vmem:[#allocation6 + $0xb8] sm:$0xff]
        %v4660 = vld [vmem:[#allocation6 + $0xc0] sm:$0xff]
        %v4661 = vld [vmem:[#allocation6 + $0xc8] sm:$0xff]
        %v4662 = vld [vmem:[#allocation6 + $0xd0] sm:$0xff]
        %v4663 = vld [vmem:[#allocation6 + $0xd8] sm:$0xff]
        %v4664 = vld [vmem:[#allocation6 + $0xe0] sm:$0xff]
        %v4665 = vld [vmem:[#allocation6 + $0xe8] sm:$0xff]
        %v4666 = vld [vmem:[#allocation6 + $0xf0] sm:$0xff]
        %v4667 = vld [vmem:[#allocation6 + $0xf8] sm:$0xff]
        %v4668 = vld [vmem:[#allocation6 + $0x100] sm:$0xff]
        %v4669 = vld [vmem:[#allocation6 + $0x108] sm:$0xff]
        %v4670 = vld [vmem:[#allocation6 + $0x110] sm:$0xff]
        %v4671 = vld [vmem:[#allocation6 + $0x118] sm:$0xff]
        %v4672 = vld [vmem:[#allocation6 + $0x120] sm:$0xff]
        %v4673 = vld [vmem:[#allocation6 + $0x128] sm:$0xff]
        %v4674 = vld [vmem:[#allocation6 + $0x130] sm:$0xff]
        %v4675 = vld [vmem:[#allocation6 + $0x138] sm:$0xff]
        %v4676 = vld [vmem:[#allocation6 + $0x140] sm:$0xff]
        %v4677 = vld [vmem:[#allocation6 + $0x148] sm:$0xff]
        %v4678 = vld [vmem:[#allocation6 + $0x150] sm:$0xff]
        %v4679 = vld [vmem:[#allocation6 + $0x158] sm:$0xff]
        %v4680 = vld [vmem:[#allocation6 + $0x160] sm:$0xff]
        %v4681 = vld [vmem:[#allocation6 + $0x168] sm:$0xff]
        %v4682 = vld [vmem:[#allocation6 + $0x170] sm:$0xff]
        %v4683 = vld [vmem:[#allocation6 + $0x178] sm:$0xff]
        %v4684 = vld [vmem:[#allocation6 + $0x180] sm:$0xff]
        %v4685 = vld [vmem:[#allocation6 + $0x188] sm:$0xff]
        %v4686 = vld [vmem:[#allocation6 + $0x190] sm:$0xff]
        %v4687 = vld [vmem:[#allocation6 + $0x198] sm:$0xff]
        %v4688 = vld [vmem:[#allocation6 + $0x1a0] sm:$0xff]
        %v4689 = vld [vmem:[#allocation6 + $0x1a8] sm:$0xff]
        %v4690 = vld [vmem:[#allocation6 + $0x1b0] sm:$0xff]
        %v4691 = vld [vmem:[#allocation6 + $0x1b8] sm:$0xff]
        %v4692 = vld [vmem:[#allocation6 + $0x1c0] sm:$0xff]
        %v4693 = vld [vmem:[#allocation6 + $0x1c8] sm:$0xff]
        %v4694 = vld [vmem:[#allocation6 + $0x1d0] sm:$0xff]
        %v4695 = vld [vmem:[#allocation6 + $0x1d8] sm:$0xff]
        %v4696 = vld [vmem:[#allocation6 + $0x1e0] sm:$0xff]
        %v4697 = vld [vmem:[#allocation6 + $0x1e8] sm:$0xff]
        %v4698 = vld [vmem:[#allocation6 + $0x1f0] sm:$0xff]
        %v4699 = vld [vmem:[#allocation6 + $0x1f8] sm:$0xff]
        %v4700 = vld [vmem:[#allocation6 + $0x200] sm:$0xff]
        %v4701 = vld [vmem:[#allocation6 + $0x208] sm:$0xff]
        %v4702 = vld [vmem:[#allocation6 + $0x210] sm:$0xff]
        %v4703 = vld [vmem:[#allocation6 + $0x218] sm:$0xff]
        %v4704 = vld [vmem:[#allocation6 + $0x220] sm:$0xff]
        %v4705 = vld [vmem:[#allocation6 + $0x228] sm:$0xff]
        %v4706 = vld [vmem:[#allocation6 + $0x230] sm:$0xff]
        %v4707 = vld [vmem:[#allocation6 + $0x238] sm:$0xff]
        %v4708 = vld [vmem:[#allocation6 + $0x240] sm:$0xff]
        %v4709 = vld [vmem:[#allocation6 + $0x248] sm:$0xff]
        %v4710 = vld [vmem:[#allocation6 + $0x250] sm:$0xff]
        %v4711 = vld [vmem:[#allocation6 + $0x258] sm:$0xff]
        %v4712 = vld [vmem:[#allocation6 + $0x260] sm:$0xff]
        %v4713 = vld [vmem:[#allocation6 + $0x268] sm:$0xff]
        %v4714 = vld [vmem:[#allocation6 + $0x270] sm:$0xff]
        %v4715 = vld [vmem:[#allocation6 + $0x278] sm:$0xff]
        %v4716 = vld [vmem:[#allocation6 + $0x280] sm:$0xff]
        %v4717 = vld [vmem:[#allocation6 + $0x288] sm:$0xff]
        %v4718 = vld [vmem:[#allocation6 + $0x290] sm:$0xff]
        %v4719 = vld [vmem:[#allocation6 + $0x298] sm:$0xff]
        %v4720 = vld [vmem:[#allocation6 + $0x2a0] sm:$0xff]
        %v4721 = vld [vmem:[#allocation6 + $0x2a8] sm:$0xff]
        %v4722 = vld [vmem:[#allocation6 + $0x2b0] sm:$0xff]
        %v4723 = vld [vmem:[#allocation6 + $0x2b8] sm:$0xff]
        %v4724 = vld [vmem:[#allocation6 + $0x2c0] sm:$0xff]
        %v4725 = vld [vmem:[#allocation6 + $0x2c8] sm:$0xff]
        %v4726 = vld [vmem:[#allocation6 + $0x2d0] sm:$0xff]
        %v4727 = vld [vmem:[#allocation6 + $0x2d8] sm:$0xff]
        %v4728 = vld [vmem:[#allocation6 + $0x2e0] sm:$0xff]
        %v4729 = vld [vmem:[#allocation6 + $0x2e8] sm:$0xff]
        %v4730 = vld [vmem:[#allocation6 + $0x2f0] sm:$0xff]
        %v4731 = vld [vmem:[#allocation6 + $0x2f8] sm:$0xff]
        %v4732 = vld [vmem:[#allocation6 + $0x300] sm:$0xff]
        %v4733 = vld [vmem:[#allocation6 + $0x308] sm:$0xff]
        %v4734 = vld [vmem:[#allocation6 + $0x310] sm:$0xff]
        %v4735 = vld [vmem:[#allocation6 + $0x318] sm:$0xff]
        %v4736 = vld [vmem:[#allocation6 + $0x320] sm:$0xff]
        %v4737 = vld [vmem:[#allocation6 + $0x328] sm:$0xff]
        %v4738 = vld [vmem:[#allocation6 + $0x330] sm:$0xff]
        %v4739 = vld [vmem:[#allocation6 + $0x338] sm:$0xff]
        %v4740 = vld [vmem:[#allocation6 + $0x340] sm:$0xff]
        %v4741 = vld [vmem:[#allocation6 + $0x348] sm:$0xff]
        %v4742 = vld [vmem:[#allocation6 + $0x350] sm:$0xff]
        %v4743 = vld [vmem:[#allocation6 + $0x358] sm:$0xff]
        %v4744 = vld [vmem:[#allocation6 + $0x360] sm:$0xff]
        %v4745 = vld [vmem:[#allocation6 + $0x368] sm:$0xff]
        %v4746 = vld [vmem:[#allocation6 + $0x370] sm:$0xff]
        %v4747 = vld [vmem:[#allocation6 + $0x378] sm:$0xff]
        %v4748 = vld [vmem:[#allocation6 + $0x380] sm:$0xff]
        %v4749 = vld [vmem:[#allocation6 + $0x388] sm:$0xff]
        %v4750 = vld [vmem:[#allocation6 + $0x390] sm:$0xff]
        %v4751 = vld [vmem:[#allocation6 + $0x398] sm:$0xff]
        %v4752 = vld [vmem:[#allocation6 + $0x3a0] sm:$0xff]
        %v4753 = vld [vmem:[#allocation6 + $0x3a8] sm:$0xff]
        %v4754 = vld [vmem:[#allocation6 + $0x3b0] sm:$0xff]
        %v4755 = vld [vmem:[#allocation6 + $0x3b8] sm:$0xff]
        %v4756 = vld [vmem:[#allocation6 + $0x3c0] sm:$0xff]
        %v4757 = vld [vmem:[#allocation6 + $0x3c8] sm:$0xff]
        %v4758 = vld [vmem:[#allocation6 + $0x3d0] sm:$0xff]
        %v4759 = vld [vmem:[#allocation6 + $0x3d8] sm:$0xff]
        %v4760 = vld [vmem:[#allocation6 + $0x3e0] sm:$0xff]
        %v4761 = vld [vmem:[#allocation6 + $0x3e8] sm:$0xff]
        %v4762 = vld [vmem:[#allocation6 + $0x3f0] sm:$0xff]
        %v4763 = vld [vmem:[#allocation6 + $0x3f8] sm:$0xff]
        %v4764 = vld [vmem:[%s8] sm:$0xf]
        %v4766 = vperm.slane %v4764, 0
        %v4767 = vperm.slane %v4764, 1
        %v4768 = vperm.slane %v4764, 2
        %v4769 = vperm.slane %v4764, 3
        %v4902 = vunpack.c.l.b16 %v4636
        %v4903 = vunpack.c.h.b16 %v4636
        %v4904 = vunpack.c.l.b16 %v4637
        %v4905 = vunpack.c.h.b16 %v4637
        %v4906 = vunpack.c.l.b16 %v4638
        %v4907 = vunpack.c.h.b16 %v4638
        %v4908 = vunpack.c.l.b16 %v4639
        %v4909 = vunpack.c.h.b16 %v4639
        %v4910 = vunpack.c.l.b16 %v4640
        %v4911 = vunpack.c.h.b16 %v4640
        %v4912 = vunpack.c.l.b16 %v4641
        %v4913 = vunpack.c.h.b16 %v4641
        %v4914 = vunpack.c.l.b16 %v4642
        %v4915 = vunpack.c.h.b16 %v4642
        %v4916 = vunpack.c.l.b16 %v4643
        %v4917 = vunpack.c.h.b16 %v4643
        %v4918 = vunpack.c.l.b16 %v4644
        %v4919 = vunpack.c.h.b16 %v4644
        %v4920 = vunpack.c.l.b16 %v4645
        %v4921 = vunpack.c.h.b16 %v4645
        %v4922 = vunpack.c.l.b16 %v4646
        %v4923 = vunpack.c.h.b16 %v4646
        %v4924 = vunpack.c.l.b16 %v4647
        %v4925 = vunpack.c.h.b16 %v4647
        %v4926 = vunpack.c.l.b16 %v4648
        %v4927 = vunpack.c.h.b16 %v4648
        %v4928 = vunpack.c.l.b16 %v4649
        %v4929 = vunpack.c.h.b16 %v4649
        %v4930 = vunpack.c.l.b16 %v4650
        %v4931 = vunpack.c.h.b16 %v4650
        %v4932 = vunpack.c.l.b16 %v4651
        %v4933 = vunpack.c.h.b16 %v4651
        %v4934 = vunpack.c.l.b16 %v4652
        %v4935 = vunpack.c.h.b16 %v4652
        %v4936 = vunpack.c.l.b16 %v4653
        %v4937 = vunpack.c.h.b16 %v4653
        %v4938 = vunpack.c.l.b16 %v4654
        %v4939 = vunpack.c.h.b16 %v4654
        %v4940 = vunpack.c.l.b16 %v4655
        %v4941 = vunpack.c.h.b16 %v4655
        %v4942 = vunpack.c.l.b16 %v4656
        %v4943 = vunpack.c.h.b16 %v4656
        %v4944 = vunpack.c.l.b16 %v4657
        %v4945 = vunpack.c.h.b16 %v4657
        %v4946 = vunpack.c.l.b16 %v4658
        %v4947 = vunpack.c.h.b16 %v4658
        %v4948 = vunpack.c.l.b16 %v4659
        %v4949 = vunpack.c.h.b16 %v4659
        %v4950 = vunpack.c.l.b16 %v4660
        %v4951 = vunpack.c.h.b16 %v4660
        %v4952 = vunpack.c.l.b16 %v4661
        %v4953 = vunpack.c.h.b16 %v4661
        %v4954 = vunpack.c.l.b16 %v4662
        %v4955 = vunpack.c.h.b16 %v4662
        %v4956 = vunpack.c.l.b16 %v4663
        %v4957 = vunpack.c.h.b16 %v4663
        %v4958 = vunpack.c.l.b16 %v4664
        %v4959 = vunpack.c.h.b16 %v4664
        %v4960 = vunpack.c.l.b16 %v4665
        %v4961 = vunpack.c.h.b16 %v4665
        %v4962 = vunpack.c.l.b16 %v4666
        %v4963 = vunpack.c.h.b16 %v4666
        %v4964 = vunpack.c.l.b16 %v4667
        %v4965 = vunpack.c.h.b16 %v4667
        %v4966 = vunpack.c.l.b16 %v4668
        %v4967 = vunpack.c.h.b16 %v4668
        %v4968 = vunpack.c.l.b16 %v4669
        %v4969 = vunpack.c.h.b16 %v4669
        %v4970 = vunpack.c.l.b16 %v4670
        %v4971 = vunpack.c.h.b16 %v4670
        %v4972 = vunpack.c.l.b16 %v4671
        %v4973 = vunpack.c.h.b16 %v4671
        %v4974 = vunpack.c.l.b16 %v4672
        %v4975 = vunpack.c.h.b16 %v4672
        %v4976 = vunpack.c.l.b16 %v4673
        %v4977 = vunpack.c.h.b16 %v4673
        %v4978 = vunpack.c.l.b16 %v4674
        %v4979 = vunpack.c.h.b16 %v4674
        %v4980 = vunpack.c.l.b16 %v4675
        %v4981 = vunpack.c.h.b16 %v4675
        %v4982 = vunpack.c.l.b16 %v4676
        %v4983 = vunpack.c.h.b16 %v4676
        %v4984 = vunpack.c.l.b16 %v4677
        %v4985 = vunpack.c.h.b16 %v4677
        %v4986 = vunpack.c.l.b16 %v4678
        %v4987 = vunpack.c.h.b16 %v4678
        %v4988 = vunpack.c.l.b16 %v4679
        %v4989 = vunpack.c.h.b16 %v4679
        %v4990 = vunpack.c.l.b16 %v4680
        %v4991 = vunpack.c.h.b16 %v4680
        %v4992 = vunpack.c.l.b16 %v4681
        %v4993 = vunpack.c.h.b16 %v4681
        %v4994 = vunpack.c.l.b16 %v4682
        %v4995 = vunpack.c.h.b16 %v4682
        %v4996 = vunpack.c.l.b16 %v4683
        %v4997 = vunpack.c.h.b16 %v4683
        %v4998 = vunpack.c.l.b16 %v4684
        %v4999 = vunpack.c.h.b16 %v4684
        %v5000 = vunpack.c.l.b16 %v4685
        %v5001 = vunpack.c.h.b16 %v4685
        %v5002 = vunpack.c.l.b16 %v4686
        %v5003 = vunpack.c.h.b16 %v4686
        %v5004 = vunpack.c.l.b16 %v4687
        %v5005 = vunpack.c.h.b16 %v4687
        %v5006 = vunpack.c.l.b16 %v4688
        %v5007 = vunpack.c.h.b16 %v4688
        %v5008 = vunpack.c.l.b16 %v4689
        %v5009 = vunpack.c.h.b16 %v4689
        %v5010 = vunpack.c.l.b16 %v4690
        %v5011 = vunpack.c.h.b16 %v4690
        %v5012 = vunpack.c.l.b16 %v4691
        %v5013 = vunpack.c.h.b16 %v4691
        %v5014 = vunpack.c.l.b16 %v4692
        %v5015 = vunpack.c.h.b16 %v4692
        %v5016 = vunpack.c.l.b16 %v4693
        %v5017 = vunpack.c.h.b16 %v4693
        %v5018 = vunpack.c.l.b16 %v4694
        %v5019 = vunpack.c.h.b16 %v4694
        %v5020 = vunpack.c.l.b16 %v4695
        %v5021 = vunpack.c.h.b16 %v4695
        %v5022 = vunpack.c.l.b16 %v4696
        %v5023 = vunpack.c.h.b16 %v4696
        %v5024 = vunpack.c.l.b16 %v4697
        %v5025 = vunpack.c.h.b16 %v4697
        %v5026 = vunpack.c.l.b16 %v4698
        %v5027 = vunpack.c.h.b16 %v4698
        %v5028 = vunpack.c.l.b16 %v4699
        %v5029 = vunpack.c.h.b16 %v4699
        %v5030 = vunpack.c.l.b16 %v4700
        %v5031 = vunpack.c.h.b16 %v4700
        %v5032 = vunpack.c.l.b16 %v4701
        %v5033 = vunpack.c.h.b16 %v4701
        %v5034 = vunpack.c.l.b16 %v4702
        %v5035 = vunpack.c.h.b16 %v4702
        %v5036 = vunpack.c.l.b16 %v4703
        %v5037 = vunpack.c.h.b16 %v4703
        %v5038 = vunpack.c.l.b16 %v4704
        %v5039 = vunpack.c.h.b16 %v4704
        %v5040 = vunpack.c.l.b16 %v4705
        %v5041 = vunpack.c.h.b16 %v4705
        %v5042 = vunpack.c.l.b16 %v4706
        %v5043 = vunpack.c.h.b16 %v4706
        %v5044 = vunpack.c.l.b16 %v4707
        %v5045 = vunpack.c.h.b16 %v4707
        %v5046 = vunpack.c.l.b16 %v4708
        %v5047 = vunpack.c.h.b16 %v4708
        %v5048 = vunpack.c.l.b16 %v4709
        %v5049 = vunpack.c.h.b16 %v4709
        %v5050 = vunpack.c.l.b16 %v4710
        %v5051 = vunpack.c.h.b16 %v4710
        %v5052 = vunpack.c.l.b16 %v4711
        %v5053 = vunpack.c.h.b16 %v4711
        %v5054 = vunpack.c.l.b16 %v4712
        %v5055 = vunpack.c.h.b16 %v4712
        %v5056 = vunpack.c.l.b16 %v4713
        %v5057 = vunpack.c.h.b16 %v4713
        %v5058 = vunpack.c.l.b16 %v4714
        %v5059 = vunpack.c.h.b16 %v4714
        %v5060 = vunpack.c.l.b16 %v4715
        %v5061 = vunpack.c.h.b16 %v4715
        %v5062 = vunpack.c.l.b16 %v4716
        %v5063 = vunpack.c.h.b16 %v4716
        %v5064 = vunpack.c.l.b16 %v4717
        %v5065 = vunpack.c.h.b16 %v4717
        %v5066 = vunpack.c.l.b16 %v4718
        %v5067 = vunpack.c.h.b16 %v4718
        %v5068 = vunpack.c.l.b16 %v4719
        %v5069 = vunpack.c.h.b16 %v4719
        %v5070 = vunpack.c.l.b16 %v4720
        %v5071 = vunpack.c.h.b16 %v4720
        %v5072 = vunpack.c.l.b16 %v4721
        %v5073 = vunpack.c.h.b16 %v4721
        %v5074 = vunpack.c.l.b16 %v4722
        %v5075 = vunpack.c.h.b16 %v4722
        %v5076 = vunpack.c.l.b16 %v4723
        %v5077 = vunpack.c.h.b16 %v4723
        %v5078 = vunpack.c.l.b16 %v4724
        %v5079 = vunpack.c.h.b16 %v4724
        %v5080 = vunpack.c.l.b16 %v4725
        %v5081 = vunpack.c.h.b16 %v4725
        %v5082 = vunpack.c.l.b16 %v4726
        %v5083 = vunpack.c.h.b16 %v4726
        %v5084 = vunpack.c.l.b16 %v4727
        %v5085 = vunpack.c.h.b16 %v4727
        %v5086 = vunpack.c.l.b16 %v4728
        %v5087 = vunpack.c.h.b16 %v4728
        %v5088 = vunpack.c.l.b16 %v4729
        %v5089 = vunpack.c.h.b16 %v4729
        %v5090 = vunpack.c.l.b16 %v4730
        %v5091 = vunpack.c.h.b16 %v4730
        %v5092 = vunpack.c.l.b16 %v4731
        %v5093 = vunpack.c.h.b16 %v4731
        %v5094 = vunpack.c.l.b16 %v4732
        %v5095 = vunpack.c.h.b16 %v4732
        %v5096 = vunpack.c.l.b16 %v4733
        %v5097 = vunpack.c.h.b16 %v4733
        %v5098 = vunpack.c.l.b16 %v4734
        %v5099 = vunpack.c.h.b16 %v4734
        %v5100 = vunpack.c.l.b16 %v4735
        %v5101 = vunpack.c.h.b16 %v4735
        %v5102 = vunpack.c.l.b16 %v4736
        %v5103 = vunpack.c.h.b16 %v4736
        %v5104 = vunpack.c.l.b16 %v4737
        %v5105 = vunpack.c.h.b16 %v4737
        %v5106 = vunpack.c.l.b16 %v4738
        %v5107 = vunpack.c.h.b16 %v4738
        %v5108 = vunpack.c.l.b16 %v4739
        %v5109 = vunpack.c.h.b16 %v4739
        %v5110 = vunpack.c.l.b16 %v4740
        %v5111 = vunpack.c.h.b16 %v4740
        %v5112 = vunpack.c.l.b16 %v4741
        %v5113 = vunpack.c.h.b16 %v4741
        %v5114 = vunpack.c.l.b16 %v4742
        %v5115 = vunpack.c.h.b16 %v4742
        %v5116 = vunpack.c.l.b16 %v4743
        %v5117 = vunpack.c.h.b16 %v4743
        %v5118 = vunpack.c.l.b16 %v4744
        %v5119 = vunpack.c.h.b16 %v4744
        %v5120 = vunpack.c.l.b16 %v4745
        %v5121 = vunpack.c.h.b16 %v4745
        %v5122 = vunpack.c.l.b16 %v4746
        %v5123 = vunpack.c.h.b16 %v4746
        %v5124 = vunpack.c.l.b16 %v4747
        %v5125 = vunpack.c.h.b16 %v4747
        %v5126 = vunpack.c.l.b16 %v4748
        %v5127 = vunpack.c.h.b16 %v4748
        %v5128 = vunpack.c.l.b16 %v4749
        %v5129 = vunpack.c.h.b16 %v4749
        %v5130 = vunpack.c.l.b16 %v4750
        %v5131 = vunpack.c.h.b16 %v4750
        %v5132 = vunpack.c.l.b16 %v4751
        %v5133 = vunpack.c.h.b16 %v4751
        %v5134 = vunpack.c.l.b16 %v4752
        %v5135 = vunpack.c.h.b16 %v4752
        %v5136 = vunpack.c.l.b16 %v4753
        %v5137 = vunpack.c.h.b16 %v4753
        %v5138 = vunpack.c.l.b16 %v4754
        %v5139 = vunpack.c.h.b16 %v4754
        %v5140 = vunpack.c.l.b16 %v4755
        %v5141 = vunpack.c.h.b16 %v4755
        %v5142 = vunpack.c.l.b16 %v4756
        %v5143 = vunpack.c.h.b16 %v4756
        %v5144 = vunpack.c.l.b16 %v4757
        %v5145 = vunpack.c.h.b16 %v4757
        %v5146 = vunpack.c.l.b16 %v4758
        %v5147 = vunpack.c.h.b16 %v4758
        %v5148 = vunpack.c.l.b16 %v4759
        %v5149 = vunpack.c.h.b16 %v4759
        %v5150 = vunpack.c.l.b16 %v4760
        %v5151 = vunpack.c.h.b16 %v4760
        %v5152 = vunpack.c.l.b16 %v4761
        %v5153 = vunpack.c.h.b16 %v4761
        %v5154 = vunpack.c.l.b16 %v4762
        %v5155 = vunpack.c.h.b16 %v4762
        %v5156 = vunpack.c.l.b16 %v4763
        %v5157 = vunpack.c.h.b16 %v4763
        %v5158 = vpack.c.b16 %v4906, %v4902
        %v5159 = vpack.c.b16 %v4907, %v4903
        %v5160 = vpack.c.b16 %v4908, %v4904
        %v5161 = vpack.c.b16 %v4909, %v4905
        %v5162 = vpack.c.b16 %v4914, %v4910
        %v5163 = vpack.c.b16 %v4915, %v4911
        %v5164 = vpack.c.b16 %v4916, %v4912
        %v5165 = vpack.c.b16 %v4917, %v4913
        %v5166 = vpack.c.b16 %v4922, %v4918
        %v5167 = vpack.c.b16 %v4923, %v4919
        %v5168 = vpack.c.b16 %v4924, %v4920
        %v5169 = vpack.c.b16 %v4925, %v4921
        %v5170 = vpack.c.b16 %v4930, %v4926
        %v5171 = vpack.c.b16 %v4931, %v4927
        %v5172 = vpack.c.b16 %v4932, %v4928
        %v5173 = vpack.c.b16 %v4933, %v4929
        %v5174 = vpack.c.b16 %v4938, %v4934
        %v5175 = vpack.c.b16 %v4939, %v4935
        %v5176 = vpack.c.b16 %v4940, %v4936
        %v5177 = vpack.c.b16 %v4941, %v4937
        %v5178 = vpack.c.b16 %v4946, %v4942
        %v5179 = vpack.c.b16 %v4947, %v4943
        %v5180 = vpack.c.b16 %v4948, %v4944
        %v5181 = vpack.c.b16 %v4949, %v4945
        %v5182 = vpack.c.b16 %v4954, %v4950
        %v5183 = vpack.c.b16 %v4955, %v4951
        %v5184 = vpack.c.b16 %v4956, %v4952
        %v5185 = vpack.c.b16 %v4957, %v4953
        %v5186 = vpack.c.b16 %v4962, %v4958
        %v5187 = vpack.c.b16 %v4963, %v4959
        %v5188 = vpack.c.b16 %v4964, %v4960
        %v5189 = vpack.c.b16 %v4965, %v4961
        %v5190 = vpack.c.b16 %v4970, %v4966
        %v5191 = vpack.c.b16 %v4971, %v4967
        %v5192 = vpack.c.b16 %v4972, %v4968
        %v5193 = vpack.c.b16 %v4973, %v4969
        %v5194 = vpack.c.b16 %v4978, %v4974
        %v5195 = vpack.c.b16 %v4979, %v4975
        %v5196 = vpack.c.b16 %v4980, %v4976
        %v5197 = vpack.c.b16 %v4981, %v4977
        %v5198 = vpack.c.b16 %v4986, %v4982
        %v5199 = vpack.c.b16 %v4987, %v4983
        %v5200 = vpack.c.b16 %v4988, %v4984
        %v5201 = vpack.c.b16 %v4989, %v4985
        %v5202 = vpack.c.b16 %v4994, %v4990
        %v5203 = vpack.c.b16 %v4995, %v4991
        %v5204 = vpack.c.b16 %v4996, %v4992
        %v5205 = vpack.c.b16 %v4997, %v4993
        %v5206 = vpack.c.b16 %v5002, %v4998
        %v5207 = vpack.c.b16 %v5003, %v4999
        %v5208 = vpack.c.b16 %v5004, %v5000
        %v5209 = vpack.c.b16 %v5005, %v5001
        %v5210 = vpack.c.b16 %v5010, %v5006
        %v5211 = vpack.c.b16 %v5011, %v5007
        %v5212 = vpack.c.b16 %v5012, %v5008
        %v5213 = vpack.c.b16 %v5013, %v5009
        %v5214 = vpack.c.b16 %v5018, %v5014
        %v5215 = vpack.c.b16 %v5019, %v5015
        %v5216 = vpack.c.b16 %v5020, %v5016
        %v5217 = vpack.c.b16 %v5021, %v5017
        %v5218 = vpack.c.b16 %v5026, %v5022
        %v5219 = vpack.c.b16 %v5027, %v5023
        %v5220 = vpack.c.b16 %v5028, %v5024
        %v5221 = vpack.c.b16 %v5029, %v5025
        %v5222 = vpack.c.b16 %v5034, %v5030
        %v5223 = vpack.c.b16 %v5035, %v5031
        %v5224 = vpack.c.b16 %v5036, %v5032
        %v5225 = vpack.c.b16 %v5037, %v5033
        %v5226 = vpack.c.b16 %v5042, %v5038
        %v5227 = vpack.c.b16 %v5043, %v5039
        %v5228 = vpack.c.b16 %v5044, %v5040
        %v5229 = vpack.c.b16 %v5045, %v5041
        %v5230 = vpack.c.b16 %v5050, %v5046
        %v5231 = vpack.c.b16 %v5051, %v5047
        %v5232 = vpack.c.b16 %v5052, %v5048
        %v5233 = vpack.c.b16 %v5053, %v5049
        %v5234 = vpack.c.b16 %v5058, %v5054
        %v5235 = vpack.c.b16 %v5059, %v5055
        %v5236 = vpack.c.b16 %v5060, %v5056
        %v5237 = vpack.c.b16 %v5061, %v5057
        %v5238 = vpack.c.b16 %v5066, %v5062
        %v5239 = vpack.c.b16 %v5067, %v5063
        %v5240 = vpack.c.b16 %v5068, %v5064
        %v5241 = vpack.c.b16 %v5069, %v5065
        %v5242 = vpack.c.b16 %v5074, %v5070
        %v5243 = vpack.c.b16 %v5075, %v5071
        %v5244 = vpack.c.b16 %v5076, %v5072
        %v5245 = vpack.c.b16 %v5077, %v5073
        %v5246 = vpack.c.b16 %v5082, %v5078
        %v5247 = vpack.c.b16 %v5083, %v5079
        %v5248 = vpack.c.b16 %v5084, %v5080
        %v5249 = vpack.c.b16 %v5085, %v5081
        %v5250 = vpack.c.b16 %v5090, %v5086
        %v5251 = vpack.c.b16 %v5091, %v5087
        %v5252 = vpack.c.b16 %v5092, %v5088
        %v5253 = vpack.c.b16 %v5093, %v5089
        %v5254 = vpack.c.b16 %v5098, %v5094
        %v5255 = vpack.c.b16 %v5099, %v5095
        %v5256 = vpack.c.b16 %v5100, %v5096
        %v5257 = vpack.c.b16 %v5101, %v5097
        %v5258 = vpack.c.b16 %v5106, %v5102
        %v5259 = vpack.c.b16 %v5107, %v5103
        %v5260 = vpack.c.b16 %v5108, %v5104
        %v5261 = vpack.c.b16 %v5109, %v5105
        %v5262 = vpack.c.b16 %v5114, %v5110
        %v5263 = vpack.c.b16 %v5115, %v5111
        %v5264 = vpack.c.b16 %v5116, %v5112
        %v5265 = vpack.c.b16 %v5117, %v5113
        %v5266 = vpack.c.b16 %v5122, %v5118
        %v5267 = vpack.c.b16 %v5123, %v5119
        %v5268 = vpack.c.b16 %v5124, %v5120
        %v5269 = vpack.c.b16 %v5125, %v5121
        %v5270 = vpack.c.b16 %v5130, %v5126
        %v5271 = vpack.c.b16 %v5131, %v5127
        %v5272 = vpack.c.b16 %v5132, %v5128
        %v5273 = vpack.c.b16 %v5133, %v5129
        %v5274 = vpack.c.b16 %v5138, %v5134
        %v5275 = vpack.c.b16 %v5139, %v5135
        %v5276 = vpack.c.b16 %v5140, %v5136
        %v5277 = vpack.c.b16 %v5141, %v5137
        %v5278 = vpack.c.b16 %v5146, %v5142
        %v5279 = vpack.c.b16 %v5147, %v5143
        %v5280 = vpack.c.b16 %v5148, %v5144
        %v5281 = vpack.c.b16 %v5149, %v5145
        %v5282 = vpack.c.b16 %v5154, %v5150
        %v5283 = vpack.c.b16 %v5155, %v5151
        %v5284 = vpack.c.b16 %v5156, %v5152
        %v5285 = vpack.c.b16 %v5157, %v5153
        %5414 = vmatpush.bf16.msra.mxu0 %v5186
        %5415 = vmatpush.bf16.msra.mxu0 %v5182
        %5416 = vmatpush.bf16.msra.mxu0 %v5178
        %5417 = vmatpush.bf16.msra.mxu0 %v5174
        %5418 = vmatpush.bf16.msra.mxu0 %v5170
        %5419 = vmatpush.bf16.msra.mxu0 %v5166
        %5420 = vmatpush.bf16.msra.mxu0 %v5162
        %5421 = vmatpush.bf16.msra.mxu0 %v5158
        %5422 = vmatmul.bf16.gmra.mxu0 %v4604
        %v5423 = vpop.f32.mrf.mxu0
        %v5424 = vadd.f32 %v4766, %v5423
        %v5425 = vpop.f32.mrf.mxu0
        %v5426 = vadd.f32 %v4766, %v5425
        %5427 = vmatmul.bf16.gmra.mxu0 %v4608
        %v5428 = vpop.f32.mrf.mxu0
        %v5429 = vadd.f32 %v4766, %v5428
        %v5430 = vpop.f32.mrf.mxu0
        %v5431 = vadd.f32 %v4766, %v5430
        %5432 = vmatmul.bf16.gmra.mxu0 %v4612
        %v5433 = vpop.f32.mrf.mxu0
        %v5434 = vadd.f32 %v4766, %v5433
        %v5435 = vpop.f32.mrf.mxu0
        %v5436 = vadd.f32 %v4766, %v5435
        %5437 = vmatmul.bf16.gmra.mxu0 %v4616
        %v5438 = vpop.f32.mrf.mxu0
        %v5439 = vadd.f32 %v4766, %v5438
        %v5440 = vpop.f32.mrf.mxu0
        %v5441 = vadd.f32 %v4766, %v5440
        %5442 = vmatmul.bf16.gmra.mxu0 %v4620
        %v5443 = vpop.f32.mrf.mxu0
        %v5444 = vadd.f32 %v4766, %v5443
        %v5445 = vpop.f32.mrf.mxu0
        %v5446 = vadd.f32 %v4766, %v5445
        %5447 = vmatmul.bf16.gmra.mxu0 %v4624
        %v5448 = vpop.f32.mrf.mxu0
        %v5449 = vadd.f32 %v4766, %v5448
        %v5450 = vpop.f32.mrf.mxu0
        %v5451 = vadd.f32 %v4766, %v5450
        %5452 = vmatmul.bf16.gmra.mxu0 %v4628
        %v5453 = vpop.f32.mrf.mxu0
        %v5454 = vadd.f32 %v4766, %v5453
        %v5455 = vpop.f32.mrf.mxu0
        %v5456 = vadd.f32 %v4766, %v5455
        %5457 = vmatmul.bf16.gmra.mxu0 %v4632
        %v5458 = vpop.f32.mrf.mxu0
        %v5459 = vadd.f32 %v4766, %v5458
        %v5460 = vpop.f32.mrf.mxu0
        %v5461 = vadd.f32 %v4766, %v5460
        %5462 = vdwg.mxu0
        %5463 = vmatpush.bf16.msra.mxu0 %v5218
        %5464 = vmatpush.bf16.msra.mxu0 %v5214
        %5465 = vmatpush.bf16.msra.mxu0 %v5210
        %5466 = vmatpush.bf16.msra.mxu0 %v5206
        %5467 = vmatpush.bf16.msra.mxu0 %v5202
        %5468 = vmatpush.bf16.msra.mxu0 %v5198
        %5469 = vmatpush.bf16.msra.mxu0 %v5194
        %5470 = vmatpush.bf16.msra.mxu0 %v5190
        %5471 = vmatmul.bf16.gmra.mxu0 %v4605
        %v5472 = vpop.f32.mrf.mxu0
        %v5473 = vadd.f32 %v5424, %v5472
        %v5474 = vpop.f32.mrf.mxu0
        %v5475 = vadd.f32 %v5426, %v5474
        %5476 = vmatmul.bf16.gmra.mxu0 %v4609
        %v5477 = vpop.f32.mrf.mxu0
        %v5478 = vadd.f32 %v5429, %v5477
        %v5479 = vpop.f32.mrf.mxu0
        %v5480 = vadd.f32 %v5431, %v5479
        %5481 = vmatmul.bf16.gmra.mxu0 %v4613
        %v5482 = vpop.f32.mrf.mxu0
        %v5483 = vadd.f32 %v5434, %v5482
        %v5484 = vpop.f32.mrf.mxu0
        %v5485 = vadd.f32 %v5436, %v5484
        %5486 = vmatmul.bf16.gmra.mxu0 %v4617
        %v5487 = vpop.f32.mrf.mxu0
        %v5488 = vadd.f32 %v5439, %v5487
        %v5489 = vpop.f32.mrf.mxu0
        %v5490 = vadd.f32 %v5441, %v5489
        %5491 = vmatmul.bf16.gmra.mxu0 %v4621
        %v5492 = vpop.f32.mrf.mxu0
        %v5493 = vadd.f32 %v5444, %v5492
        %v5494 = vpop.f32.mrf.mxu0
        %v5495 = vadd.f32 %v5446, %v5494
        %5496 = vmatmul.bf16.gmra.mxu0 %v4625
        %v5497 = vpop.f32.mrf.mxu0
        %v5498 = vadd.f32 %v5449, %v5497
        %v5499 = vpop.f32.mrf.mxu0
        %v5500 = vadd.f32 %v5451, %v5499
        %5501 = vmatmul.bf16.gmra.mxu0 %v4629
        %v5502 = vpop.f32.mrf.mxu0
        %v5503 = vadd.f32 %v5454, %v5502
        %v5504 = vpop.f32.mrf.mxu0
        %v5505 = vadd.f32 %v5456, %v5504
        %5506 = vmatmul.bf16.gmra.mxu0 %v4633
        %v5507 = vpop.f32.mrf.mxu0
        %v5508 = vadd.f32 %v5459, %v5507
        %v5509 = vpop.f32.mrf.mxu0
        %v5510 = vadd.f32 %v5461, %v5509
        %5511 = vdwg.mxu0
        %5512 = vmatpush.bf16.msra.mxu0 %v5250
        %5513 = vmatpush.bf16.msra.mxu0 %v5246
        %5514 = vmatpush.bf16.msra.mxu0 %v5242
        %5515 = vmatpush.bf16.msra.mxu0 %v5238
        %5516 = vmatpush.bf16.msra.mxu0 %v5234
        %5517 = vmatpush.bf16.msra.mxu0 %v5230
        %5518 = vmatpush.bf16.msra.mxu0 %v5226
        %5519 = vmatpush.bf16.msra.mxu0 %v5222
        %5520 = vmatmul.bf16.gmra.mxu0 %v4606
        %v5521 = vpop.f32.mrf.mxu0
        %v5522 = vadd.f32 %v5473, %v5521
        %v5523 = vpop.f32.mrf.mxu0
        %v5524 = vadd.f32 %v5475, %v5523
        %5525 = vmatmul.bf16.gmra.mxu0 %v4610
        %v5526 = vpop.f32.mrf.mxu0
        %v5527 = vadd.f32 %v5478, %v5526
        %v5528 = vpop.f32.mrf.mxu0
        %v5529 = vadd.f32 %v5480, %v5528
        %5530 = vmatmul.bf16.gmra.mxu0 %v4614
        %v5531 = vpop.f32.mrf.mxu0
        %v5532 = vadd.f32 %v5483, %v5531
        %v5533 = vpop.f32.mrf.mxu0
        %v5534 = vadd.f32 %v5485, %v5533
        %5535 = vmatmul.bf16.gmra.mxu0 %v4618
        %v5536 = vpop.f32.mrf.mxu0
        %v5537 = vadd.f32 %v5488, %v5536
        %v5538 = vpop.f32.mrf.mxu0
        %v5539 = vadd.f32 %v5490, %v5538
        %5540 = vmatmul.bf16.gmra.mxu0 %v4622
        %v5541 = vpop.f32.mrf.mxu0
        %v5542 = vadd.f32 %v5493, %v5541
        %v5543 = vpop.f32.mrf.mxu0
        %v5544 = vadd.f32 %v5495, %v5543
        %5545 = vmatmul.bf16.gmra.mxu0 %v4626
        %v5546 = vpop.f32.mrf.mxu0
        %v5547 = vadd.f32 %v5498, %v5546
        %v5548 = vpop.f32.mrf.mxu0
        %v5549 = vadd.f32 %v5500, %v5548
        %5550 = vmatmul.bf16.gmra.mxu0 %v4630
        %v5551 = vpop.f32.mrf.mxu0
        %v5552 = vadd.f32 %v5503, %v5551
        %v5553 = vpop.f32.mrf.mxu0
        %v5554 = vadd.f32 %v5505, %v5553
        %5555 = vmatmul.bf16.gmra.mxu0 %v4634
        %v5556 = vpop.f32.mrf.mxu0
        %v5557 = vadd.f32 %v5508, %v5556
        %v5558 = vpop.f32.mrf.mxu0
        %v5559 = vadd.f32 %v5510, %v5558
        %5560 = vdwg.mxu0
        %5561 = vmatpush.bf16.msra.mxu0 %v5282
        %5562 = vmatpush.bf16.msra.mxu0 %v5278
        %5563 = vmatpush.bf16.msra.mxu0 %v5274
        %5564 = vmatpush.bf16.msra.mxu0 %v5270
        %5565 = vmatpush.bf16.msra.mxu0 %v5266
        %5566 = vmatpush.bf16.msra.mxu0 %v5262
        %5567 = vmatpush.bf16.msra.mxu0 %v5258
        %5568 = vmatpush.bf16.msra.mxu0 %v5254
        %5569 = vmatmul.bf16.gmra.mxu0 %v4607
        %v5570 = vpop.f32.mrf.mxu0
        %v5571 = vadd.f32 %v5522, %v5570
        %v5572 = vpop.f32.mrf.mxu0
        %v5573 = vadd.f32 %v5524, %v5572
        %5574 = vmatmul.bf16.gmra.mxu0 %v4611
        %v5575 = vpop.f32.mrf.mxu0
        %v5576 = vadd.f32 %v5527, %v5575
        %v5577 = vpop.f32.mrf.mxu0
        %v5578 = vadd.f32 %v5529, %v5577
        %5579 = vmatmul.bf16.gmra.mxu0 %v4615
        %v5580 = vpop.f32.mrf.mxu0
        %v5581 = vadd.f32 %v5532, %v5580
        %v5582 = vpop.f32.mrf.mxu0
        %v5583 = vadd.f32 %v5534, %v5582
        %5584 = vmatmul.bf16.gmra.mxu0 %v4619
        %v5585 = vpop.f32.mrf.mxu0
        %v5586 = vadd.f32 %v5537, %v5585
        %v5587 = vpop.f32.mrf.mxu0
        %v5588 = vadd.f32 %v5539, %v5587
        %5589 = vmatmul.bf16.gmra.mxu0 %v4623
        %v5590 = vpop.f32.mrf.mxu0
        %v5591 = vadd.f32 %v5542, %v5590
        %v5592 = vpop.f32.mrf.mxu0
        %v5593 = vadd.f32 %v5544, %v5592
        %5594 = vmatmul.bf16.gmra.mxu0 %v4627
        %v5595 = vpop.f32.mrf.mxu0
        %v5596 = vadd.f32 %v5547, %v5595
        %v5597 = vpop.f32.mrf.mxu0
        %v5598 = vadd.f32 %v5549, %v5597
        %5599 = vmatmul.bf16.gmra.mxu0 %v4631
        %v5600 = vpop.f32.mrf.mxu0
        %v5601 = vadd.f32 %v5552, %v5600
        %v5602 = vpop.f32.mrf.mxu0
        %v5603 = vadd.f32 %v5554, %v5602
        %5604 = vmatmul.bf16.gmra.mxu0 %v4635
        %v5605 = vpop.f32.mrf.mxu0
        %v5606 = vadd.f32 %v5557, %v5605
        %v5607 = vpop.f32.mrf.mxu0
        %v5608 = vadd.f32 %v5559, %v5607
        %5609 = vdwg.mxu0
        %5610 = vmatpush.bf16.msra.mxu0 %v5187
        %5611 = vmatpush.bf16.msra.mxu0 %v5183
        %5612 = vmatpush.bf16.msra.mxu0 %v5179
        %5613 = vmatpush.bf16.msra.mxu0 %v5175
        %5614 = vmatpush.bf16.msra.mxu0 %v5171
        %5615 = vmatpush.bf16.msra.mxu0 %v5167
        %5616 = vmatpush.bf16.msra.mxu0 %v5163
        %5617 = vmatpush.bf16.msra.mxu0 %v5159
        %5618 = vmatmul.bf16.gmra.mxu0 %v4604
        %v5619 = vpop.f32.mrf.mxu0
        %v5620 = vadd.f32 %v4767, %v5619
        %v5621 = vpop.f32.mrf.mxu0
        %v5622 = vadd.f32 %v4767, %v5621
        %5623 = vmatmul.bf16.gmra.mxu0 %v4608
        %v5624 = vpop.f32.mrf.mxu0
        %v5625 = vadd.f32 %v4767, %v5624
        %v5626 = vpop.f32.mrf.mxu0
        %v5627 = vadd.f32 %v4767, %v5626
        %5628 = vmatmul.bf16.gmra.mxu0 %v4612
        %v5629 = vpop.f32.mrf.mxu0
        %v5630 = vadd.f32 %v4767, %v5629
        %v5631 = vpop.f32.mrf.mxu0
        %v5632 = vadd.f32 %v4767, %v5631
        %5633 = vmatmul.bf16.gmra.mxu0 %v4616
        %v5634 = vpop.f32.mrf.mxu0
        %v5635 = vadd.f32 %v4767, %v5634
        %v5636 = vpop.f32.mrf.mxu0
        %v5637 = vadd.f32 %v4767, %v5636
        %5638 = vmatmul.bf16.gmra.mxu0 %v4620
        %v5639 = vpop.f32.mrf.mxu0
        %v5640 = vadd.f32 %v4767, %v5639
        %v5641 = vpop.f32.mrf.mxu0
        %v5642 = vadd.f32 %v4767, %v5641
        %5643 = vmatmul.bf16.gmra.mxu0 %v4624
        %v5644 = vpop.f32.mrf.mxu0
        %v5645 = vadd.f32 %v4767, %v5644
        %v5646 = vpop.f32.mrf.mxu0
        %v5647 = vadd.f32 %v4767, %v5646
        %5648 = vmatmul.bf16.gmra.mxu0 %v4628
        %v5649 = vpop.f32.mrf.mxu0
        %v5650 = vadd.f32 %v4767, %v5649
        %v5651 = vpop.f32.mrf.mxu0
        %v5652 = vadd.f32 %v4767, %v5651
        %5653 = vmatmul.bf16.gmra.mxu0 %v4632
        %v5654 = vpop.f32.mrf.mxu0
        %v5655 = vadd.f32 %v4767, %v5654
        %v5656 = vpop.f32.mrf.mxu0
        %v5657 = vadd.f32 %v4767, %v5656
        %5658 = vdwg.mxu0
        %5659 = vmatpush.bf16.msra.mxu0 %v5219
        %5660 = vmatpush.bf16.msra.mxu0 %v5215
        %5661 = vmatpush.bf16.msra.mxu0 %v5211
        %5662 = vmatpush.bf16.msra.mxu0 %v5207
        %5663 = vmatpush.bf16.msra.mxu0 %v5203
        %5664 = vmatpush.bf16.msra.mxu0 %v5199
        %5665 = vmatpush.bf16.msra.mxu0 %v5195
        %5666 = vmatpush.bf16.msra.mxu0 %v5191
        %5667 = vmatmul.bf16.gmra.mxu0 %v4605
        %v5668 = vpop.f32.mrf.mxu0
        %v5669 = vadd.f32 %v5620, %v5668
        %v5670 = vpop.f32.mrf.mxu0
        %v5671 = vadd.f32 %v5622, %v5670
        %5672 = vmatmul.bf16.gmra.mxu0 %v4609
        %v5673 = vpop.f32.mrf.mxu0
        %v5674 = vadd.f32 %v5625, %v5673
        %v5675 = vpop.f32.mrf.mxu0
        %v5676 = vadd.f32 %v5627, %v5675
        %5677 = vmatmul.bf16.gmra.mxu0 %v4613
        %v5678 = vpop.f32.mrf.mxu0
        %v5679 = vadd.f32 %v5630, %v5678
        %v5680 = vpop.f32.mrf.mxu0
        %v5681 = vadd.f32 %v5632, %v5680
        %5682 = vmatmul.bf16.gmra.mxu0 %v4617
        %v5683 = vpop.f32.mrf.mxu0
        %v5684 = vadd.f32 %v5635, %v5683
        %v5685 = vpop.f32.mrf.mxu0
        %v5686 = vadd.f32 %v5637, %v5685
        %5687 = vmatmul.bf16.gmra.mxu0 %v4621
        %v5688 = vpop.f32.mrf.mxu0
        %v5689 = vadd.f32 %v5640, %v5688
        %v5690 = vpop.f32.mrf.mxu0
        %v5691 = vadd.f32 %v5642, %v5690
        %5692 = vmatmul.bf16.gmra.mxu0 %v4625
        %v5693 = vpop.f32.mrf.mxu0
        %v5694 = vadd.f32 %v5645, %v5693
        %v5695 = vpop.f32.mrf.mxu0
        %v5696 = vadd.f32 %v5647, %v5695
        %5697 = vmatmul.bf16.gmra.mxu0 %v4629
        %v5698 = vpop.f32.mrf.mxu0
        %v5699 = vadd.f32 %v5650, %v5698
        %v5700 = vpop.f32.mrf.mxu0
        %v5701 = vadd.f32 %v5652, %v5700
        %5702 = vmatmul.bf16.gmra.mxu0 %v4633
        %v5703 = vpop.f32.mrf.mxu0
        %v5704 = vadd.f32 %v5655, %v5703
        %v5705 = vpop.f32.mrf.mxu0
        %v5706 = vadd.f32 %v5657, %v5705
        %5707 = vdwg.mxu0
        %5708 = vmatpush.bf16.msra.mxu0 %v5251
        %5709 = vmatpush.bf16.msra.mxu0 %v5247
        %5710 = vmatpush.bf16.msra.mxu0 %v5243
        %5711 = vmatpush.bf16.msra.mxu0 %v5239
        %5712 = vmatpush.bf16.msra.mxu0 %v5235
        %5713 = vmatpush.bf16.msra.mxu0 %v5231
        %5714 = vmatpush.bf16.msra.mxu0 %v5227
        %5715 = vmatpush.bf16.msra.mxu0 %v5223
        %5716 = vmatmul.bf16.gmra.mxu0 %v4606
        %v5717 = vpop.f32.mrf.mxu0
        %v5718 = vadd.f32 %v5669, %v5717
        %v5719 = vpop.f32.mrf.mxu0
        %v5720 = vadd.f32 %v5671, %v5719
        %5721 = vmatmul.bf16.gmra.mxu0 %v4610
        %v5722 = vpop.f32.mrf.mxu0
        %v5723 = vadd.f32 %v5674, %v5722
        %v5724 = vpop.f32.mrf.mxu0
        %v5725 = vadd.f32 %v5676, %v5724
        %5726 = vmatmul.bf16.gmra.mxu0 %v4614
        %v5727 = vpop.f32.mrf.mxu0
        %v5728 = vadd.f32 %v5679, %v5727
        %v5729 = vpop.f32.mrf.mxu0
        %v5730 = vadd.f32 %v5681, %v5729
        %5731 = vmatmul.bf16.gmra.mxu0 %v4618
        %v5732 = vpop.f32.mrf.mxu0
        %v5733 = vadd.f32 %v5684, %v5732
        %v5734 = vpop.f32.mrf.mxu0
        %v5735 = vadd.f32 %v5686, %v5734
        %5736 = vmatmul.bf16.gmra.mxu0 %v4622
        %v5737 = vpop.f32.mrf.mxu0
        %v5738 = vadd.f32 %v5689, %v5737
        %v5739 = vpop.f32.mrf.mxu0
        %v5740 = vadd.f32 %v5691, %v5739
        %5741 = vmatmul.bf16.gmra.mxu0 %v4626
        %v5742 = vpop.f32.mrf.mxu0
        %v5743 = vadd.f32 %v5694, %v5742
        %v5744 = vpop.f32.mrf.mxu0
        %v5745 = vadd.f32 %v5696, %v5744
        %5746 = vmatmul.bf16.gmra.mxu0 %v4630
        %v5747 = vpop.f32.mrf.mxu0
        %v5748 = vadd.f32 %v5699, %v5747
        %v5749 = vpop.f32.mrf.mxu0
        %v5750 = vadd.f32 %v5701, %v5749
        %5751 = vmatmul.bf16.gmra.mxu0 %v4634
        %v5752 = vpop.f32.mrf.mxu0
        %v5753 = vadd.f32 %v5704, %v5752
        %v5754 = vpop.f32.mrf.mxu0
        %v5755 = vadd.f32 %v5706, %v5754
        %5756 = vdwg.mxu0
        %5757 = vmatpush.bf16.msra.mxu0 %v5283
        %5758 = vmatpush.bf16.msra.mxu0 %v5279
        %5759 = vmatpush.bf16.msra.mxu0 %v5275
        %5760 = vmatpush.bf16.msra.mxu0 %v5271
        %5761 = vmatpush.bf16.msra.mxu0 %v5267
        %5762 = vmatpush.bf16.msra.mxu0 %v5263
        %5763 = vmatpush.bf16.msra.mxu0 %v5259
        %5764 = vmatpush.bf16.msra.mxu0 %v5255
        %5765 = vmatmul.bf16.gmra.mxu0 %v4607
        %v5766 = vpop.f32.mrf.mxu0
        %v5767 = vadd.f32 %v5718, %v5766
        %v5768 = vpop.f32.mrf.mxu0
        %v5769 = vadd.f32 %v5720, %v5768
        %5770 = vmatmul.bf16.gmra.mxu0 %v4611
        %v5771 = vpop.f32.mrf.mxu0
        %v5772 = vadd.f32 %v5723, %v5771
        %v5773 = vpop.f32.mrf.mxu0
        %v5774 = vadd.f32 %v5725, %v5773
        %5775 = vmatmul.bf16.gmra.mxu0 %v4615
        %v5776 = vpop.f32.mrf.mxu0
        %v5777 = vadd.f32 %v5728, %v5776
        %v5778 = vpop.f32.mrf.mxu0
        %v5779 = vadd.f32 %v5730, %v5778
        %5780 = vmatmul.bf16.gmra.mxu0 %v4619
        %v5781 = vpop.f32.mrf.mxu0
        %v5782 = vadd.f32 %v5733, %v5781
        %v5783 = vpop.f32.mrf.mxu0
        %v5784 = vadd.f32 %v5735, %v5783
        %5785 = vmatmul.bf16.gmra.mxu0 %v4623
        %v5786 = vpop.f32.mrf.mxu0
        %v5787 = vadd.f32 %v5738, %v5786
        %v5788 = vpop.f32.mrf.mxu0
        %v5789 = vadd.f32 %v5740, %v5788
        %5790 = vmatmul.bf16.gmra.mxu0 %v4627
        %v5791 = vpop.f32.mrf.mxu0
        %v5792 = vadd.f32 %v5743, %v5791
        %v5793 = vpop.f32.mrf.mxu0
        %v5794 = vadd.f32 %v5745, %v5793
        %5795 = vmatmul.bf16.gmra.mxu0 %v4631
        %v5796 = vpop.f32.mrf.mxu0
        %v5797 = vadd.f32 %v5748, %v5796
        %v5798 = vpop.f32.mrf.mxu0
        %v5799 = vadd.f32 %v5750, %v5798
        %5800 = vmatmul.bf16.gmra.mxu0 %v4635
        %v5801 = vpop.f32.mrf.mxu0
        %v5802 = vadd.f32 %v5753, %v5801
        %v5803 = vpop.f32.mrf.mxu0
        %v5804 = vadd.f32 %v5755, %v5803
        %5805 = vdwg.mxu0
        %5806 = vmatpush.bf16.msra.mxu0 %v5188
        %5807 = vmatpush.bf16.msra.mxu0 %v5184
        %5808 = vmatpush.bf16.msra.mxu0 %v5180
        %5809 = vmatpush.bf16.msra.mxu0 %v5176
        %5810 = vmatpush.bf16.msra.mxu0 %v5172
        %5811 = vmatpush.bf16.msra.mxu0 %v5168
        %5812 = vmatpush.bf16.msra.mxu0 %v5164
        %5813 = vmatpush.bf16.msra.mxu0 %v5160
        %5814 = vmatmul.bf16.gmra.mxu0 %v4604
        %v5815 = vpop.f32.mrf.mxu0
        %v5816 = vadd.f32 %v4768, %v5815
        %v5817 = vpop.f32.mrf.mxu0
        %v5818 = vadd.f32 %v4768, %v5817
        %5819 = vmatmul.bf16.gmra.mxu0 %v4608
        %v5820 = vpop.f32.mrf.mxu0
        %v5821 = vadd.f32 %v4768, %v5820
        %v5822 = vpop.f32.mrf.mxu0
        %v5823 = vadd.f32 %v4768, %v5822
        %5824 = vmatmul.bf16.gmra.mxu0 %v4612
        %v5825 = vpop.f32.mrf.mxu0
        %v5826 = vadd.f32 %v4768, %v5825
        %v5827 = vpop.f32.mrf.mxu0
        %v5828 = vadd.f32 %v4768, %v5827
        %5829 = vmatmul.bf16.gmra.mxu0 %v4616
        %v5830 = vpop.f32.mrf.mxu0
        %v5831 = vadd.f32 %v4768, %v5830
        %v5832 = vpop.f32.mrf.mxu0
        %v5833 = vadd.f32 %v4768, %v5832
        %5834 = vmatmul.bf16.gmra.mxu0 %v4620
        %v5835 = vpop.f32.mrf.mxu0
        %v5836 = vadd.f32 %v4768, %v5835
        %v5837 = vpop.f32.mrf.mxu0
        %v5838 = vadd.f32 %v4768, %v5837
        %5839 = vmatmul.bf16.gmra.mxu0 %v4624
        %v5840 = vpop.f32.mrf.mxu0
        %v5841 = vadd.f32 %v4768, %v5840
        %v5842 = vpop.f32.mrf.mxu0
        %v5843 = vadd.f32 %v4768, %v5842
        %5844 = vmatmul.bf16.gmra.mxu0 %v4628
        %v5845 = vpop.f32.mrf.mxu0
        %v5846 = vadd.f32 %v4768, %v5845
        %v5847 = vpop.f32.mrf.mxu0
        %v5848 = vadd.f32 %v4768, %v5847
        %5849 = vmatmul.bf16.gmra.mxu0 %v4632
        %v5850 = vpop.f32.mrf.mxu0
        %v5851 = vadd.f32 %v4768, %v5850
        %v5852 = vpop.f32.mrf.mxu0
        %v5853 = vadd.f32 %v4768, %v5852
        %5854 = vdwg.mxu0
        %5855 = vmatpush.bf16.msra.mxu0 %v5220
        %5856 = vmatpush.bf16.msra.mxu0 %v5216
        %5857 = vmatpush.bf16.msra.mxu0 %v5212
        %5858 = vmatpush.bf16.msra.mxu0 %v5208
        %5859 = vmatpush.bf16.msra.mxu0 %v5204
        %5860 = vmatpush.bf16.msra.mxu0 %v5200
        %5861 = vmatpush.bf16.msra.mxu0 %v5196
        %5862 = vmatpush.bf16.msra.mxu0 %v5192
        %5863 = vmatmul.bf16.gmra.mxu0 %v4605
        %v5864 = vpop.f32.mrf.mxu0
        %v5865 = vadd.f32 %v5816, %v5864
        %v5866 = vpop.f32.mrf.mxu0
        %v5867 = vadd.f32 %v5818, %v5866
        %5868 = vmatmul.bf16.gmra.mxu0 %v4609
        %v5869 = vpop.f32.mrf.mxu0
        %v5870 = vadd.f32 %v5821, %v5869
        %v5871 = vpop.f32.mrf.mxu0
        %v5872 = vadd.f32 %v5823, %v5871
        %5873 = vmatmul.bf16.gmra.mxu0 %v4613
        %v5874 = vpop.f32.mrf.mxu0
        %v5875 = vadd.f32 %v5826, %v5874
        %v5876 = vpop.f32.mrf.mxu0
        %v5877 = vadd.f32 %v5828, %v5876
        %5878 = vmatmul.bf16.gmra.mxu0 %v4617
        %v5879 = vpop.f32.mrf.mxu0
        %v5880 = vadd.f32 %v5831, %v5879
        %v5881 = vpop.f32.mrf.mxu0
        %v5882 = vadd.f32 %v5833, %v5881
        %5883 = vmatmul.bf16.gmra.mxu0 %v4621
        %v5884 = vpop.f32.mrf.mxu0
        %v5885 = vadd.f32 %v5836, %v5884
        %v5886 = vpop.f32.mrf.mxu0
        %v5887 = vadd.f32 %v5838, %v5886
        %5888 = vmatmul.bf16.gmra.mxu0 %v4625
        %v5889 = vpop.f32.mrf.mxu0
        %v5890 = vadd.f32 %v5841, %v5889
        %v5891 = vpop.f32.mrf.mxu0
        %v5892 = vadd.f32 %v5843, %v5891
        %5893 = vmatmul.bf16.gmra.mxu0 %v4629
        %v5894 = vpop.f32.mrf.mxu0
        %v5895 = vadd.f32 %v5846, %v5894
        %v5896 = vpop.f32.mrf.mxu0
        %v5897 = vadd.f32 %v5848, %v5896
        %5898 = vmatmul.bf16.gmra.mxu0 %v4633
        %v5899 = vpop.f32.mrf.mxu0
        %v5900 = vadd.f32 %v5851, %v5899
        %v5901 = vpop.f32.mrf.mxu0
        %v5902 = vadd.f32 %v5853, %v5901
        %5903 = vdwg.mxu0
        %5904 = vmatpush.bf16.msra.mxu0 %v5252
        %5905 = vmatpush.bf16.msra.mxu0 %v5248
        %5906 = vmatpush.bf16.msra.mxu0 %v5244
        %5907 = vmatpush.bf16.msra.mxu0 %v5240
        %5908 = vmatpush.bf16.msra.mxu0 %v5236
        %5909 = vmatpush.bf16.msra.mxu0 %v5232
        %5910 = vmatpush.bf16.msra.mxu0 %v5228
        %5911 = vmatpush.bf16.msra.mxu0 %v5224
        %5912 = vmatmul.bf16.gmra.mxu0 %v4606
        %v5913 = vpop.f32.mrf.mxu0
        %v5914 = vadd.f32 %v5865, %v5913
        %v5915 = vpop.f32.mrf.mxu0
        %v5916 = vadd.f32 %v5867, %v5915
        %5917 = vmatmul.bf16.gmra.mxu0 %v4610
        %v5918 = vpop.f32.mrf.mxu0
        %v5919 = vadd.f32 %v5870, %v5918
        %v5920 = vpop.f32.mrf.mxu0
        %v5921 = vadd.f32 %v5872, %v5920
        %5922 = vmatmul.bf16.gmra.mxu0 %v4614
        %v5923 = vpop.f32.mrf.mxu0
        %v5924 = vadd.f32 %v5875, %v5923
        %v5925 = vpop.f32.mrf.mxu0
        %v5926 = vadd.f32 %v5877, %v5925
        %5927 = vmatmul.bf16.gmra.mxu0 %v4618
        %v5928 = vpop.f32.mrf.mxu0
        %v5929 = vadd.f32 %v5880, %v5928
        %v5930 = vpop.f32.mrf.mxu0
        %v5931 = vadd.f32 %v5882, %v5930
        %5932 = vmatmul.bf16.gmra.mxu0 %v4622
        %v5933 = vpop.f32.mrf.mxu0
        %v5934 = vadd.f32 %v5885, %v5933
        %v5935 = vpop.f32.mrf.mxu0
        %v5936 = vadd.f32 %v5887, %v5935
        %5937 = vmatmul.bf16.gmra.mxu0 %v4626
        %v5938 = vpop.f32.mrf.mxu0
        %v5939 = vadd.f32 %v5890, %v5938
        %v5940 = vpop.f32.mrf.mxu0
        %v5941 = vadd.f32 %v5892, %v5940
        %5942 = vmatmul.bf16.gmra.mxu0 %v4630
        %v5943 = vpop.f32.mrf.mxu0
        %v5944 = vadd.f32 %v5895, %v5943
        %v5945 = vpop.f32.mrf.mxu0
        %v5946 = vadd.f32 %v5897, %v5945
        %5947 = vmatmul.bf16.gmra.mxu0 %v4634
        %v5948 = vpop.f32.mrf.mxu0
        %v5949 = vadd.f32 %v5900, %v5948
        %v5950 = vpop.f32.mrf.mxu0
        %v5951 = vadd.f32 %v5902, %v5950
        %5952 = vdwg.mxu0
        %5953 = vmatpush.bf16.msra.mxu0 %v5284
        %5954 = vmatpush.bf16.msra.mxu0 %v5280
        %5955 = vmatpush.bf16.msra.mxu0 %v5276
        %5956 = vmatpush.bf16.msra.mxu0 %v5272
        %5957 = vmatpush.bf16.msra.mxu0 %v5268
        %5958 = vmatpush.bf16.msra.mxu0 %v5264
        %5959 = vmatpush.bf16.msra.mxu0 %v5260
        %5960 = vmatpush.bf16.msra.mxu0 %v5256
        %5961 = vmatmul.bf16.gmra.mxu0 %v4607
        %v5962 = vpop.f32.mrf.mxu0
        %v5963 = vadd.f32 %v5914, %v5962
        %v5964 = vpop.f32.mrf.mxu0
        %v5965 = vadd.f32 %v5916, %v5964
        %5966 = vmatmul.bf16.gmra.mxu0 %v4611
        %v5967 = vpop.f32.mrf.mxu0
        %v5968 = vadd.f32 %v5919, %v5967
        %v5969 = vpop.f32.mrf.mxu0
        %v5970 = vadd.f32 %v5921, %v5969
        %5971 = vmatmul.bf16.gmra.mxu0 %v4615
        %v5972 = vpop.f32.mrf.mxu0
        %v5973 = vadd.f32 %v5924, %v5972
        %v5974 = vpop.f32.mrf.mxu0
        %v5975 = vadd.f32 %v5926, %v5974
        %5976 = vmatmul.bf16.gmra.mxu0 %v4619
        %v5977 = vpop.f32.mrf.mxu0
        %v5978 = vadd.f32 %v5929, %v5977
        %v5979 = vpop.f32.mrf.mxu0
        %v5980 = vadd.f32 %v5931, %v5979
        %5981 = vmatmul.bf16.gmra.mxu0 %v4623
        %v5982 = vpop.f32.mrf.mxu0
        %v5983 = vadd.f32 %v5934, %v5982
        %v5984 = vpop.f32.mrf.mxu0
        %v5985 = vadd.f32 %v5936, %v5984
        %5986 = vmatmul.bf16.gmra.mxu0 %v4627
        %v5987 = vpop.f32.mrf.mxu0
        %v5988 = vadd.f32 %v5939, %v5987
        %v5989 = vpop.f32.mrf.mxu0
        %v5990 = vadd.f32 %v5941, %v5989
        %5991 = vmatmul.bf16.gmra.mxu0 %v4631
        %v5992 = vpop.f32.mrf.mxu0
        %v5993 = vadd.f32 %v5944, %v5992
        %v5994 = vpop.f32.mrf.mxu0
        %v5995 = vadd.f32 %v5946, %v5994
        %5996 = vmatmul.bf16.gmra.mxu0 %v4635
        %v5997 = vpop.f32.mrf.mxu0
        %v5998 = vadd.f32 %v5949, %v5997
        %v5999 = vpop.f32.mrf.mxu0
        %v6000 = vadd.f32 %v5951, %v5999
        %6001 = vdwg.mxu0
        %6002 = vmatpush.bf16.msra.mxu0 %v5189
        %6003 = vmatpush.bf16.msra.mxu0 %v5185
        %6004 = vmatpush.bf16.msra.mxu0 %v5181
        %6005 = vmatpush.bf16.msra.mxu0 %v5177
        %6006 = vmatpush.bf16.msra.mxu0 %v5173
        %6007 = vmatpush.bf16.msra.mxu0 %v5169
        %6008 = vmatpush.bf16.msra.mxu0 %v5165
        %6009 = vmatpush.bf16.msra.mxu0 %v5161
        %6010 = vmatmul.bf16.gmra.mxu0 %v4604
        %v6011 = vpop.f32.mrf.mxu0
        %v6012 = vadd.f32 %v4769, %v6011
        %v6013 = vpop.f32.mrf.mxu0
        %v6014 = vadd.f32 %v4769, %v6013
        %6015 = vmatmul.bf16.gmra.mxu0 %v4608
        %v6016 = vpop.f32.mrf.mxu0
        %v6017 = vadd.f32 %v4769, %v6016
        %v6018 = vpop.f32.mrf.mxu0
        %v6019 = vadd.f32 %v4769, %v6018
        %6020 = vmatmul.bf16.gmra.mxu0 %v4612
        %v6021 = vpop.f32.mrf.mxu0
        %v6022 = vadd.f32 %v4769, %v6021
        %v6023 = vpop.f32.mrf.mxu0
        %v6024 = vadd.f32 %v4769, %v6023
        %6025 = vmatmul.bf16.gmra.mxu0 %v4616
        %v6026 = vpop.f32.mrf.mxu0
        %v6027 = vadd.f32 %v4769, %v6026
        %v6028 = vpop.f32.mrf.mxu0
        %v6029 = vadd.f32 %v4769, %v6028
        %6030 = vmatmul.bf16.gmra.mxu0 %v4620
        %v6031 = vpop.f32.mrf.mxu0
        %v6032 = vadd.f32 %v4769, %v6031
        %v6033 = vpop.f32.mrf.mxu0
        %v6034 = vadd.f32 %v4769, %v6033
        %6035 = vmatmul.bf16.gmra.mxu0 %v4624
        %v6036 = vpop.f32.mrf.mxu0
        %v6037 = vadd.f32 %v4769, %v6036
        %v6038 = vpop.f32.mrf.mxu0
        %v6039 = vadd.f32 %v4769, %v6038
        %6040 = vmatmul.bf16.gmra.mxu0 %v4628
        %v6041 = vpop.f32.mrf.mxu0
        %v6042 = vadd.f32 %v4769, %v6041
        %v6043 = vpop.f32.mrf.mxu0
        %v6044 = vadd.f32 %v4769, %v6043
        %6045 = vmatmul.bf16.gmra.mxu0 %v4632
        %v6046 = vpop.f32.mrf.mxu0
        %v6047 = vadd.f32 %v4769, %v6046
        %v6048 = vpop.f32.mrf.mxu0
        %v6049 = vadd.f32 %v4769, %v6048
        %6050 = vdwg.mxu0
        %6051 = vmatpush.bf16.msra.mxu0 %v5221
        %6052 = vmatpush.bf16.msra.mxu0 %v5217
        %6053 = vmatpush.bf16.msra.mxu0 %v5213
        %6054 = vmatpush.bf16.msra.mxu0 %v5209
        %6055 = vmatpush.bf16.msra.mxu0 %v5205
        %6056 = vmatpush.bf16.msra.mxu0 %v5201
        %6057 = vmatpush.bf16.msra.mxu0 %v5197
        %6058 = vmatpush.bf16.msra.mxu0 %v5193
        %6059 = vmatmul.bf16.gmra.mxu0 %v4605
        %v6060 = vpop.f32.mrf.mxu0
        %v6061 = vadd.f32 %v6012, %v6060
        %v6062 = vpop.f32.mrf.mxu0
        %v6063 = vadd.f32 %v6014, %v6062
        %6064 = vmatmul.bf16.gmra.mxu0 %v4609
        %v6065 = vpop.f32.mrf.mxu0
        %v6066 = vadd.f32 %v6017, %v6065
        %v6067 = vpop.f32.mrf.mxu0
        %v6068 = vadd.f32 %v6019, %v6067
        %6069 = vmatmul.bf16.gmra.mxu0 %v4613
        %v6070 = vpop.f32.mrf.mxu0
        %v6071 = vadd.f32 %v6022, %v6070
        %v6072 = vpop.f32.mrf.mxu0
        %v6073 = vadd.f32 %v6024, %v6072
        %6074 = vmatmul.bf16.gmra.mxu0 %v4617
        %v6075 = vpop.f32.mrf.mxu0
        %v6076 = vadd.f32 %v6027, %v6075
        %v6077 = vpop.f32.mrf.mxu0
        %v6078 = vadd.f32 %v6029, %v6077
        %6079 = vmatmul.bf16.gmra.mxu0 %v4621
        %v6080 = vpop.f32.mrf.mxu0
        %v6081 = vadd.f32 %v6032, %v6080
        %v6082 = vpop.f32.mrf.mxu0
        %v6083 = vadd.f32 %v6034, %v6082
        %6084 = vmatmul.bf16.gmra.mxu0 %v4625
        %v6085 = vpop.f32.mrf.mxu0
        %v6086 = vadd.f32 %v6037, %v6085
        %v6087 = vpop.f32.mrf.mxu0
        %v6088 = vadd.f32 %v6039, %v6087
        %6089 = vmatmul.bf16.gmra.mxu0 %v4629
        %v6090 = vpop.f32.mrf.mxu0
        %v6091 = vadd.f32 %v6042, %v6090
        %v6092 = vpop.f32.mrf.mxu0
        %v6093 = vadd.f32 %v6044, %v6092
        %6094 = vmatmul.bf16.gmra.mxu0 %v4633
        %v6095 = vpop.f32.mrf.mxu0
        %v6096 = vadd.f32 %v6047, %v6095
        %v6097 = vpop.f32.mrf.mxu0
        %v6098 = vadd.f32 %v6049, %v6097
        %6099 = vdwg.mxu0
        %6100 = vmatpush.bf16.msra.mxu0 %v5253
        %6101 = vmatpush.bf16.msra.mxu0 %v5249
        %6102 = vmatpush.bf16.msra.mxu0 %v5245
        %6103 = vmatpush.bf16.msra.mxu0 %v5241
        %6104 = vmatpush.bf16.msra.mxu0 %v5237
        %6105 = vmatpush.bf16.msra.mxu0 %v5233
        %6106 = vmatpush.bf16.msra.mxu0 %v5229
        %6107 = vmatpush.bf16.msra.mxu0 %v5225
        %6108 = vmatmul.bf16.gmra.mxu0 %v4606
        %v6109 = vpop.f32.mrf.mxu0
        %v6110 = vadd.f32 %v6061, %v6109
        %v6111 = vpop.f32.mrf.mxu0
        %v6112 = vadd.f32 %v6063, %v6111
        %6113 = vmatmul.bf16.gmra.mxu0 %v4610
        %v6114 = vpop.f32.mrf.mxu0
        %v6115 = vadd.f32 %v6066, %v6114
        %v6116 = vpop.f32.mrf.mxu0
        %v6117 = vadd.f32 %v6068, %v6116
        %6118 = vmatmul.bf16.gmra.mxu0 %v4614
        %v6119 = vpop.f32.mrf.mxu0
        %v6120 = vadd.f32 %v6071, %v6119
        %v6121 = vpop.f32.mrf.mxu0
        %v6122 = vadd.f32 %v6073, %v6121
        %6123 = vmatmul.bf16.gmra.mxu0 %v4618
        %v6124 = vpop.f32.mrf.mxu0
        %v6125 = vadd.f32 %v6076, %v6124
        %v6126 = vpop.f32.mrf.mxu0
        %v6127 = vadd.f32 %v6078, %v6126
        %6128 = vmatmul.bf16.gmra.mxu0 %v4622
        %v6129 = vpop.f32.mrf.mxu0
        %v6130 = vadd.f32 %v6081, %v6129
        %v6131 = vpop.f32.mrf.mxu0
        %v6132 = vadd.f32 %v6083, %v6131
        %6133 = vmatmul.bf16.gmra.mxu0 %v4626
        %v6134 = vpop.f32.mrf.mxu0
        %v6135 = vadd.f32 %v6086, %v6134
        %v6136 = vpop.f32.mrf.mxu0
        %v6137 = vadd.f32 %v6088, %v6136
        %6138 = vmatmul.bf16.gmra.mxu0 %v4630
        %v6139 = vpop.f32.mrf.mxu0
        %v6140 = vadd.f32 %v6091, %v6139
        %v6141 = vpop.f32.mrf.mxu0
        %v6142 = vadd.f32 %v6093, %v6141
        %6143 = vmatmul.bf16.gmra.mxu0 %v4634
        %v6144 = vpop.f32.mrf.mxu0
        %v6145 = vadd.f32 %v6096, %v6144
        %v6146 = vpop.f32.mrf.mxu0
        %v6147 = vadd.f32 %v6098, %v6146
        %6148 = vdwg.mxu0
        %6149 = vmatpush.bf16.msra.mxu0 %v5285
        %6150 = vmatpush.bf16.msra.mxu0 %v5281
        %6151 = vmatpush.bf16.msra.mxu0 %v5277
        %6152 = vmatpush.bf16.msra.mxu0 %v5273
        %6153 = vmatpush.bf16.msra.mxu0 %v5269
        %6154 = vmatpush.bf16.msra.mxu0 %v5265
        %6155 = vmatpush.bf16.msra.mxu0 %v5261
        %6156 = vmatpush.bf16.msra.mxu0 %v5257
        %6157 = vmatmul.bf16.gmra.mxu0 %v4607
        %v6158 = vpop.f32.mrf.mxu0
        %v6159 = vadd.f32 %v6110, %v6158
        %v6160 = vpop.f32.mrf.mxu0
        %v6161 = vadd.f32 %v6112, %v6160
        %6162 = vmatmul.bf16.gmra.mxu0 %v4611
        %v6163 = vpop.f32.mrf.mxu0
        %v6164 = vadd.f32 %v6115, %v6163
        %v6165 = vpop.f32.mrf.mxu0
        %v6166 = vadd.f32 %v6117, %v6165
        %6167 = vmatmul.bf16.gmra.mxu0 %v4615
        %v6168 = vpop.f32.mrf.mxu0
        %v6169 = vadd.f32 %v6120, %v6168
        %v6170 = vpop.f32.mrf.mxu0
        %v6171 = vadd.f32 %v6122, %v6170
        %6172 = vmatmul.bf16.gmra.mxu0 %v4619
        %v6173 = vpop.f32.mrf.mxu0
        %v6174 = vadd.f32 %v6125, %v6173
        %v6175 = vpop.f32.mrf.mxu0
        %v6176 = vadd.f32 %v6127, %v6175
        %6177 = vmatmul.bf16.gmra.mxu0 %v4623
        %v6178 = vpop.f32.mrf.mxu0
        %v6179 = vadd.f32 %v6130, %v6178
        %v6180 = vpop.f32.mrf.mxu0
        %v6181 = vadd.f32 %v6132, %v6180
        %6182 = vmatmul.bf16.gmra.mxu0 %v4627
        %v6183 = vpop.f32.mrf.mxu0
        %v6184 = vadd.f32 %v6135, %v6183
        %v6185 = vpop.f32.mrf.mxu0
        %v6186 = vadd.f32 %v6137, %v6185
        %6187 = vmatmul.bf16.gmra.mxu0 %v4631
        %v6188 = vpop.f32.mrf.mxu0
        %v6189 = vadd.f32 %v6140, %v6188
        %v6190 = vpop.f32.mrf.mxu0
        %v6191 = vadd.f32 %v6142, %v6190
        %6192 = vmatmul.bf16.gmra.mxu0 %v4635
        %v6193 = vpop.f32.mrf.mxu0
        %v6194 = vadd.f32 %v6145, %v6193
        %v6195 = vpop.f32.mrf.mxu0
        %v6196 = vadd.f32 %v6147, %v6195
        %6197 = vdwg.mxu0
        %v6198 = vmax.f32 %v5571, 0.0
        %v6199 = vmax.f32 %v5767, 0.0
        %v6200 = vmax.f32 %v5963, 0.0
        %v6201 = vmax.f32 %v6159, 0.0
        %v6202 = vmax.f32 %v5573, 0.0
        %v6203 = vmax.f32 %v5769, 0.0
        %v6204 = vmax.f32 %v5965, 0.0
        %v6205 = vmax.f32 %v6161, 0.0
        %v6206 = vmax.f32 %v5576, 0.0
        %v6207 = vmax.f32 %v5772, 0.0
        %v6208 = vmax.f32 %v5968, 0.0
        %v6209 = vmax.f32 %v6164, 0.0
        %v6210 = vmax.f32 %v5578, 0.0
        %v6211 = vmax.f32 %v5774, 0.0
        %v6212 = vmax.f32 %v5970, 0.0
        %v6213 = vmax.f32 %v6166, 0.0
        %v6214 = vmax.f32 %v5581, 0.0
        %v6215 = vmax.f32 %v5777, 0.0
        %v6216 = vmax.f32 %v5973, 0.0
        %v6217 = vmax.f32 %v6169, 0.0
        %v6218 = vmax.f32 %v5583, 0.0
        %v6219 = vmax.f32 %v5779, 0.0
        %v6220 = vmax.f32 %v5975, 0.0
        %v6221 = vmax.f32 %v6171, 0.0
        %v6222 = vmax.f32 %v5586, 0.0
        %v6223 = vmax.f32 %v5782, 0.0
        %v6224 = vmax.f32 %v5978, 0.0
        %v6225 = vmax.f32 %v6174, 0.0
        %v6226 = vmax.f32 %v5588, 0.0
        %v6227 = vmax.f32 %v5784, 0.0
        %v6228 = vmax.f32 %v5980, 0.0
        %v6229 = vmax.f32 %v6176, 0.0
        %v6230 = vmax.f32 %v5591, 0.0
        %v6231 = vmax.f32 %v5787, 0.0
        %v6232 = vmax.f32 %v5983, 0.0
        %v6233 = vmax.f32 %v6179, 0.0
        %v6234 = vmax.f32 %v5593, 0.0
        %v6235 = vmax.f32 %v5789, 0.0
        %v6236 = vmax.f32 %v5985, 0.0
        %v6237 = vmax.f32 %v6181, 0.0
        %v6238 = vmax.f32 %v5596, 0.0
        %v6239 = vmax.f32 %v5792, 0.0
        %v6240 = vmax.f32 %v5988, 0.0
        %v6241 = vmax.f32 %v6184, 0.0
        %v6242 = vmax.f32 %v5598, 0.0
        %v6243 = vmax.f32 %v5794, 0.0
        %v6244 = vmax.f32 %v5990, 0.0
        %v6245 = vmax.f32 %v6186, 0.0
        %v6246 = vmax.f32 %v5601, 0.0
        %v6247 = vmax.f32 %v5797, 0.0
        %v6248 = vmax.f32 %v5993, 0.0
        %v6249 = vmax.f32 %v6189, 0.0
        %v6250 = vmax.f32 %v5603, 0.0
        %v6251 = vmax.f32 %v5799, 0.0
        %v6252 = vmax.f32 %v5995, 0.0
        %v6253 = vmax.f32 %v6191, 0.0
        %v6254 = vmax.f32 %v5606, 0.0
        %v6255 = vmax.f32 %v5802, 0.0
        %v6256 = vmax.f32 %v5998, 0.0
        %v6257 = vmax.f32 %v6194, 0.0
        %v6258 = vmax.f32 %v5608, 0.0
        %v6259 = vmax.f32 %v5804, 0.0
        %v6260 = vmax.f32 %v6000, 0.0
        %v6261 = vmax.f32 %v6196, 0.0
        %v6262 = vpack.c.bf16 %v1172, %v1164
        %v6263 = vpack.c.bf16 %v1173, %v1165
        %v6264 = vpack.c.bf16 %v1174, %v1166
        %v6265 = vpack.c.bf16 %v1175, %v1167
        %v6266 = vpack.c.bf16 %v1188, %v1180
        %v6267 = vpack.c.bf16 %v1189, %v1181
        %v6268 = vpack.c.bf16 %v1190, %v1182
        %v6269 = vpack.c.bf16 %v1191, %v1183
        %v6270 = vpack.c.bf16 %v1204, %v1196
        %v6271 = vpack.c.bf16 %v1205, %v1197
        %v6272 = vpack.c.bf16 %v1206, %v1198
        %v6273 = vpack.c.bf16 %v1207, %v1199
        %v6274 = vpack.c.bf16 %v1220, %v1212
        %v6275 = vpack.c.bf16 %v1221, %v1213
        %v6276 = vpack.c.bf16 %v1222, %v1214
        %v6277 = vpack.c.bf16 %v1223, %v1215
        %v6278 = vpack.c.bf16 %v1236, %v1228
        %v6279 = vpack.c.bf16 %v1237, %v1229
        %v6280 = vpack.c.bf16 %v1238, %v1230
        %v6281 = vpack.c.bf16 %v1239, %v1231
        %v6282 = vpack.c.bf16 %v1252, %v1244
        %v6283 = vpack.c.bf16 %v1253, %v1245
        %v6284 = vpack.c.bf16 %v1254, %v1246
        %v6285 = vpack.c.bf16 %v1255, %v1247
        %v6286 = vpack.c.bf16 %v1268, %v1260
        %v6287 = vpack.c.bf16 %v1269, %v1261
        %v6288 = vpack.c.bf16 %v1270, %v1262
        %v6289 = vpack.c.bf16 %v1271, %v1263
        %v6290 = vpack.c.bf16 %v1284, %v1276
        %v6291 = vpack.c.bf16 %v1285, %v1277
        %v6292 = vpack.c.bf16 %v1286, %v1278
        %v6293 = vpack.c.bf16 %v1287, %v1279
        %v6294 = vld [vmem:[#allocation7] sm:$0xff]
        %v6295 = vld [vmem:[#allocation7 + $0x8] sm:$0xff]
        %v6296 = vld [vmem:[#allocation7 + $0x10] sm:$0xff]
        %v6297 = vld [vmem:[#allocation7 + $0x18] sm:$0xff]
        %v6298 = vld [vmem:[#allocation7 + $0x20] sm:$0xff]
        %v6299 = vld [vmem:[#allocation7 + $0x28] sm:$0xff]
        %v6300 = vld [vmem:[#allocation7 + $0x30] sm:$0xff]
        %v6301 = vld [vmem:[#allocation7 + $0x38] sm:$0xff]
        %v6302 = vld [vmem:[#allocation7 + $0x40] sm:$0xff]
        %v6303 = vld [vmem:[#allocation7 + $0x48] sm:$0xff]
        %v6304 = vld [vmem:[#allocation7 + $0x50] sm:$0xff]
        %v6305 = vld [vmem:[#allocation7 + $0x58] sm:$0xff]
        %v6306 = vld [vmem:[#allocation7 + $0x60] sm:$0xff]
        %v6307 = vld [vmem:[#allocation7 + $0x68] sm:$0xff]
        %v6308 = vld [vmem:[#allocation7 + $0x70] sm:$0xff]
        %v6309 = vld [vmem:[#allocation7 + $0x78] sm:$0xff]
        %v6310 = vld [vmem:[#allocation7 + $0x80] sm:$0xff]
        %v6311 = vld [vmem:[#allocation7 + $0x88] sm:$0xff]
        %v6312 = vld [vmem:[#allocation7 + $0x90] sm:$0xff]
        %v6313 = vld [vmem:[#allocation7 + $0x98] sm:$0xff]
        %v6314 = vld [vmem:[#allocation7 + $0xa0] sm:$0xff]
        %v6315 = vld [vmem:[#allocation7 + $0xa8] sm:$0xff]
        %v6316 = vld [vmem:[#allocation7 + $0xb0] sm:$0xff]
        %v6317 = vld [vmem:[#allocation7 + $0xb8] sm:$0xff]
        %v6318 = vld [vmem:[#allocation7 + $0xc0] sm:$0xff]
        %v6319 = vld [vmem:[#allocation7 + $0xc8] sm:$0xff]
        %v6320 = vld [vmem:[#allocation7 + $0xd0] sm:$0xff]
        %v6321 = vld [vmem:[#allocation7 + $0xd8] sm:$0xff]
        %v6322 = vld [vmem:[#allocation7 + $0xe0] sm:$0xff]
        %v6323 = vld [vmem:[#allocation7 + $0xe8] sm:$0xff]
        %v6324 = vld [vmem:[#allocation7 + $0xf0] sm:$0xff]
        %v6325 = vld [vmem:[#allocation7 + $0xf8] sm:$0xff]
        %v6326 = vld [vmem:[#allocation7 + $0x100] sm:$0xff]
        %v6327 = vld [vmem:[#allocation7 + $0x108] sm:$0xff]
        %v6328 = vld [vmem:[#allocation7 + $0x110] sm:$0xff]
        %v6329 = vld [vmem:[#allocation7 + $0x118] sm:$0xff]
        %v6330 = vld [vmem:[#allocation7 + $0x120] sm:$0xff]
        %v6331 = vld [vmem:[#allocation7 + $0x128] sm:$0xff]
        %v6332 = vld [vmem:[#allocation7 + $0x130] sm:$0xff]
        %v6333 = vld [vmem:[#allocation7 + $0x138] sm:$0xff]
        %v6334 = vld [vmem:[#allocation7 + $0x140] sm:$0xff]
        %v6335 = vld [vmem:[#allocation7 + $0x148] sm:$0xff]
        %v6336 = vld [vmem:[#allocation7 + $0x150] sm:$0xff]
        %v6337 = vld [vmem:[#allocation7 + $0x158] sm:$0xff]
        %v6338 = vld [vmem:[#allocation7 + $0x160] sm:$0xff]
        %v6339 = vld [vmem:[#allocation7 + $0x168] sm:$0xff]
        %v6340 = vld [vmem:[#allocation7 + $0x170] sm:$0xff]
        %v6341 = vld [vmem:[#allocation7 + $0x178] sm:$0xff]
        %v6342 = vld [vmem:[#allocation7 + $0x180] sm:$0xff]
        %v6343 = vld [vmem:[#allocation7 + $0x188] sm:$0xff]
        %v6344 = vld [vmem:[#allocation7 + $0x190] sm:$0xff]
        %v6345 = vld [vmem:[#allocation7 + $0x198] sm:$0xff]
        %v6346 = vld [vmem:[#allocation7 + $0x1a0] sm:$0xff]
        %v6347 = vld [vmem:[#allocation7 + $0x1a8] sm:$0xff]
        %v6348 = vld [vmem:[#allocation7 + $0x1b0] sm:$0xff]
        %v6349 = vld [vmem:[#allocation7 + $0x1b8] sm:$0xff]
        %v6350 = vld [vmem:[#allocation7 + $0x1c0] sm:$0xff]
        %v6351 = vld [vmem:[#allocation7 + $0x1c8] sm:$0xff]
        %v6352 = vld [vmem:[#allocation7 + $0x1d0] sm:$0xff]
        %v6353 = vld [vmem:[#allocation7 + $0x1d8] sm:$0xff]
        %v6354 = vld [vmem:[#allocation7 + $0x1e0] sm:$0xff]
        %v6355 = vld [vmem:[#allocation7 + $0x1e8] sm:$0xff]
        %v6356 = vld [vmem:[#allocation7 + $0x1f0] sm:$0xff]
        %v6357 = vld [vmem:[#allocation7 + $0x1f8] sm:$0xff]
        %v6358 = vld [vmem:[#allocation7 + $0x200] sm:$0xff]
        %v6359 = vld [vmem:[#allocation7 + $0x208] sm:$0xff]
        %v6360 = vld [vmem:[#allocation7 + $0x210] sm:$0xff]
        %v6361 = vld [vmem:[#allocation7 + $0x218] sm:$0xff]
        %v6362 = vld [vmem:[#allocation7 + $0x220] sm:$0xff]
        %v6363 = vld [vmem:[#allocation7 + $0x228] sm:$0xff]
        %v6364 = vld [vmem:[#allocation7 + $0x230] sm:$0xff]
        %v6365 = vld [vmem:[#allocation7 + $0x238] sm:$0xff]
        %v6366 = vld [vmem:[#allocation7 + $0x240] sm:$0xff]
        %v6367 = vld [vmem:[#allocation7 + $0x248] sm:$0xff]
        %v6368 = vld [vmem:[#allocation7 + $0x250] sm:$0xff]
        %v6369 = vld [vmem:[#allocation7 + $0x258] sm:$0xff]
        %v6370 = vld [vmem:[#allocation7 + $0x260] sm:$0xff]
        %v6371 = vld [vmem:[#allocation7 + $0x268] sm:$0xff]
        %v6372 = vld [vmem:[#allocation7 + $0x270] sm:$0xff]
        %v6373 = vld [vmem:[#allocation7 + $0x278] sm:$0xff]
        %v6374 = vld [vmem:[#allocation7 + $0x280] sm:$0xff]
        %v6375 = vld [vmem:[#allocation7 + $0x288] sm:$0xff]
        %v6376 = vld [vmem:[#allocation7 + $0x290] sm:$0xff]
        %v6377 = vld [vmem:[#allocation7 + $0x298] sm:$0xff]
        %v6378 = vld [vmem:[#allocation7 + $0x2a0] sm:$0xff]
        %v6379 = vld [vmem:[#allocation7 + $0x2a8] sm:$0xff]
        %v6380 = vld [vmem:[#allocation7 + $0x2b0] sm:$0xff]
        %v6381 = vld [vmem:[#allocation7 + $0x2b8] sm:$0xff]
        %v6382 = vld [vmem:[#allocation7 + $0x2c0] sm:$0xff]
        %v6383 = vld [vmem:[#allocation7 + $0x2c8] sm:$0xff]
        %v6384 = vld [vmem:[#allocation7 + $0x2d0] sm:$0xff]
        %v6385 = vld [vmem:[#allocation7 + $0x2d8] sm:$0xff]
        %v6386 = vld [vmem:[#allocation7 + $0x2e0] sm:$0xff]
        %v6387 = vld [vmem:[#allocation7 + $0x2e8] sm:$0xff]
        %v6388 = vld [vmem:[#allocation7 + $0x2f0] sm:$0xff]
        %v6389 = vld [vmem:[#allocation7 + $0x2f8] sm:$0xff]
        %v6390 = vld [vmem:[#allocation7 + $0x300] sm:$0xff]
        %v6391 = vld [vmem:[#allocation7 + $0x308] sm:$0xff]
        %v6392 = vld [vmem:[#allocation7 + $0x310] sm:$0xff]
        %v6393 = vld [vmem:[#allocation7 + $0x318] sm:$0xff]
        %v6394 = vld [vmem:[#allocation7 + $0x320] sm:$0xff]
        %v6395 = vld [vmem:[#allocation7 + $0x328] sm:$0xff]
        %v6396 = vld [vmem:[#allocation7 + $0x330] sm:$0xff]
        %v6397 = vld [vmem:[#allocation7 + $0x338] sm:$0xff]
        %v6398 = vld [vmem:[#allocation7 + $0x340] sm:$0xff]
        %v6399 = vld [vmem:[#allocation7 + $0x348] sm:$0xff]
        %v6400 = vld [vmem:[#allocation7 + $0x350] sm:$0xff]
        %v6401 = vld [vmem:[#allocation7 + $0x358] sm:$0xff]
        %v6402 = vld [vmem:[#allocation7 + $0x360] sm:$0xff]
        %v6403 = vld [vmem:[#allocation7 + $0x368] sm:$0xff]
        %v6404 = vld [vmem:[#allocation7 + $0x370] sm:$0xff]
        %v6405 = vld [vmem:[#allocation7 + $0x378] sm:$0xff]
        %v6406 = vld [vmem:[#allocation7 + $0x380] sm:$0xff]
        %v6407 = vld [vmem:[#allocation7 + $0x388] sm:$0xff]
        %v6408 = vld [vmem:[#allocation7 + $0x390] sm:$0xff]
        %v6409 = vld [vmem:[#allocation7 + $0x398] sm:$0xff]
        %v6410 = vld [vmem:[#allocation7 + $0x3a0] sm:$0xff]
        %v6411 = vld [vmem:[#allocation7 + $0x3a8] sm:$0xff]
        %v6412 = vld [vmem:[#allocation7 + $0x3b0] sm:$0xff]
        %v6413 = vld [vmem:[#allocation7 + $0x3b8] sm:$0xff]
        %v6414 = vld [vmem:[#allocation7 + $0x3c0] sm:$0xff]
        %v6415 = vld [vmem:[#allocation7 + $0x3c8] sm:$0xff]
        %v6416 = vld [vmem:[#allocation7 + $0x3d0] sm:$0xff]
        %v6417 = vld [vmem:[#allocation7 + $0x3d8] sm:$0xff]
        %v6418 = vld [vmem:[#allocation7 + $0x3e0] sm:$0xff]
        %v6419 = vld [vmem:[#allocation7 + $0x3e8] sm:$0xff]
        %v6420 = vld [vmem:[#allocation7 + $0x3f0] sm:$0xff]
        %v6421 = vld [vmem:[#allocation7 + $0x3f8] sm:$0xff]
        %v6422 = vld [vmem:[%s12] sm:$0xf]
        %v6424 = vperm.slane %v6422, 0
        %v6425 = vperm.slane %v6422, 1
        %v6426 = vperm.slane %v6422, 2
        %v6427 = vperm.slane %v6422, 3
        %v6560 = vunpack.c.l.b16 %v6294
        %v6561 = vunpack.c.h.b16 %v6294
        %v6562 = vunpack.c.l.b16 %v6295
        %v6563 = vunpack.c.h.b16 %v6295
        %v6564 = vunpack.c.l.b16 %v6296
        %v6565 = vunpack.c.h.b16 %v6296
        %v6566 = vunpack.c.l.b16 %v6297
        %v6567 = vunpack.c.h.b16 %v6297
        %v6568 = vunpack.c.l.b16 %v6298
        %v6569 = vunpack.c.h.b16 %v6298
        %v6570 = vunpack.c.l.b16 %v6299
        %v6571 = vunpack.c.h.b16 %v6299
        %v6572 = vunpack.c.l.b16 %v6300
        %v6573 = vunpack.c.h.b16 %v6300
        %v6574 = vunpack.c.l.b16 %v6301
        %v6575 = vunpack.c.h.b16 %v6301
        %v6576 = vunpack.c.l.b16 %v6302
        %v6577 = vunpack.c.h.b16 %v6302
        %v6578 = vunpack.c.l.b16 %v6303
        %v6579 = vunpack.c.h.b16 %v6303
        %v6580 = vunpack.c.l.b16 %v6304
        %v6581 = vunpack.c.h.b16 %v6304
        %v6582 = vunpack.c.l.b16 %v6305
        %v6583 = vunpack.c.h.b16 %v6305
        %v6584 = vunpack.c.l.b16 %v6306
        %v6585 = vunpack.c.h.b16 %v6306
        %v6586 = vunpack.c.l.b16 %v6307
        %v6587 = vunpack.c.h.b16 %v6307
        %v6588 = vunpack.c.l.b16 %v6308
        %v6589 = vunpack.c.h.b16 %v6308
        %v6590 = vunpack.c.l.b16 %v6309
        %v6591 = vunpack.c.h.b16 %v6309
        %v6592 = vunpack.c.l.b16 %v6310
        %v6593 = vunpack.c.h.b16 %v6310
        %v6594 = vunpack.c.l.b16 %v6311
        %v6595 = vunpack.c.h.b16 %v6311
        %v6596 = vunpack.c.l.b16 %v6312
        %v6597 = vunpack.c.h.b16 %v6312
        %v6598 = vunpack.c.l.b16 %v6313
        %v6599 = vunpack.c.h.b16 %v6313
        %v6600 = vunpack.c.l.b16 %v6314
        %v6601 = vunpack.c.h.b16 %v6314
        %v6602 = vunpack.c.l.b16 %v6315
        %v6603 = vunpack.c.h.b16 %v6315
        %v6604 = vunpack.c.l.b16 %v6316
        %v6605 = vunpack.c.h.b16 %v6316
        %v6606 = vunpack.c.l.b16 %v6317
        %v6607 = vunpack.c.h.b16 %v6317
        %v6608 = vunpack.c.l.b16 %v6318
        %v6609 = vunpack.c.h.b16 %v6318
        %v6610 = vunpack.c.l.b16 %v6319
        %v6611 = vunpack.c.h.b16 %v6319
        %v6612 = vunpack.c.l.b16 %v6320
        %v6613 = vunpack.c.h.b16 %v6320
        %v6614 = vunpack.c.l.b16 %v6321
        %v6615 = vunpack.c.h.b16 %v6321
        %v6616 = vunpack.c.l.b16 %v6322
        %v6617 = vunpack.c.h.b16 %v6322
        %v6618 = vunpack.c.l.b16 %v6323
        %v6619 = vunpack.c.h.b16 %v6323
        %v6620 = vunpack.c.l.b16 %v6324
        %v6621 = vunpack.c.h.b16 %v6324
        %v6622 = vunpack.c.l.b16 %v6325
        %v6623 = vunpack.c.h.b16 %v6325
        %v6624 = vunpack.c.l.b16 %v6326
        %v6625 = vunpack.c.h.b16 %v6326
        %v6626 = vunpack.c.l.b16 %v6327
        %v6627 = vunpack.c.h.b16 %v6327
        %v6628 = vunpack.c.l.b16 %v6328
        %v6629 = vunpack.c.h.b16 %v6328
        %v6630 = vunpack.c.l.b16 %v6329
        %v6631 = vunpack.c.h.b16 %v6329
        %v6632 = vunpack.c.l.b16 %v6330
        %v6633 = vunpack.c.h.b16 %v6330
        %v6634 = vunpack.c.l.b16 %v6331
        %v6635 = vunpack.c.h.b16 %v6331
        %v6636 = vunpack.c.l.b16 %v6332
        %v6637 = vunpack.c.h.b16 %v6332
        %v6638 = vunpack.c.l.b16 %v6333
        %v6639 = vunpack.c.h.b16 %v6333
        %v6640 = vunpack.c.l.b16 %v6334
        %v6641 = vunpack.c.h.b16 %v6334
        %v6642 = vunpack.c.l.b16 %v6335
        %v6643 = vunpack.c.h.b16 %v6335
        %v6644 = vunpack.c.l.b16 %v6336
        %v6645 = vunpack.c.h.b16 %v6336
        %v6646 = vunpack.c.l.b16 %v6337
        %v6647 = vunpack.c.h.b16 %v6337
        %v6648 = vunpack.c.l.b16 %v6338
        %v6649 = vunpack.c.h.b16 %v6338
        %v6650 = vunpack.c.l.b16 %v6339
        %v6651 = vunpack.c.h.b16 %v6339
        %v6652 = vunpack.c.l.b16 %v6340
        %v6653 = vunpack.c.h.b16 %v6340
        %v6654 = vunpack.c.l.b16 %v6341
        %v6655 = vunpack.c.h.b16 %v6341
        %v6656 = vunpack.c.l.b16 %v6342
        %v6657 = vunpack.c.h.b16 %v6342
        %v6658 = vunpack.c.l.b16 %v6343
        %v6659 = vunpack.c.h.b16 %v6343
        %v6660 = vunpack.c.l.b16 %v6344
        %v6661 = vunpack.c.h.b16 %v6344
        %v6662 = vunpack.c.l.b16 %v6345
        %v6663 = vunpack.c.h.b16 %v6345
        %v6664 = vunpack.c.l.b16 %v6346
        %v6665 = vunpack.c.h.b16 %v6346
        %v6666 = vunpack.c.l.b16 %v6347
        %v6667 = vunpack.c.h.b16 %v6347
        %v6668 = vunpack.c.l.b16 %v6348
        %v6669 = vunpack.c.h.b16 %v6348
        %v6670 = vunpack.c.l.b16 %v6349
        %v6671 = vunpack.c.h.b16 %v6349
        %v6672 = vunpack.c.l.b16 %v6350
        %v6673 = vunpack.c.h.b16 %v6350
        %v6674 = vunpack.c.l.b16 %v6351
        %v6675 = vunpack.c.h.b16 %v6351
        %v6676 = vunpack.c.l.b16 %v6352
        %v6677 = vunpack.c.h.b16 %v6352
        %v6678 = vunpack.c.l.b16 %v6353
        %v6679 = vunpack.c.h.b16 %v6353
        %v6680 = vunpack.c.l.b16 %v6354
        %v6681 = vunpack.c.h.b16 %v6354
        %v6682 = vunpack.c.l.b16 %v6355
        %v6683 = vunpack.c.h.b16 %v6355
        %v6684 = vunpack.c.l.b16 %v6356
        %v6685 = vunpack.c.h.b16 %v6356
        %v6686 = vunpack.c.l.b16 %v6357
        %v6687 = vunpack.c.h.b16 %v6357
        %v6688 = vunpack.c.l.b16 %v6358
        %v6689 = vunpack.c.h.b16 %v6358
        %v6690 = vunpack.c.l.b16 %v6359
        %v6691 = vunpack.c.h.b16 %v6359
        %v6692 = vunpack.c.l.b16 %v6360
        %v6693 = vunpack.c.h.b16 %v6360
        %v6694 = vunpack.c.l.b16 %v6361
        %v6695 = vunpack.c.h.b16 %v6361
        %v6696 = vunpack.c.l.b16 %v6362
        %v6697 = vunpack.c.h.b16 %v6362
        %v6698 = vunpack.c.l.b16 %v6363
        %v6699 = vunpack.c.h.b16 %v6363
        %v6700 = vunpack.c.l.b16 %v6364
        %v6701 = vunpack.c.h.b16 %v6364
        %v6702 = vunpack.c.l.b16 %v6365
        %v6703 = vunpack.c.h.b16 %v6365
        %v6704 = vunpack.c.l.b16 %v6366
        %v6705 = vunpack.c.h.b16 %v6366
        %v6706 = vunpack.c.l.b16 %v6367
        %v6707 = vunpack.c.h.b16 %v6367
        %v6708 = vunpack.c.l.b16 %v6368
        %v6709 = vunpack.c.h.b16 %v6368
        %v6710 = vunpack.c.l.b16 %v6369
        %v6711 = vunpack.c.h.b16 %v6369
        %v6712 = vunpack.c.l.b16 %v6370
        %v6713 = vunpack.c.h.b16 %v6370
        %v6714 = vunpack.c.l.b16 %v6371
        %v6715 = vunpack.c.h.b16 %v6371
        %v6716 = vunpack.c.l.b16 %v6372
        %v6717 = vunpack.c.h.b16 %v6372
        %v6718 = vunpack.c.l.b16 %v6373
        %v6719 = vunpack.c.h.b16 %v6373
        %v6720 = vunpack.c.l.b16 %v6374
        %v6721 = vunpack.c.h.b16 %v6374
        %v6722 = vunpack.c.l.b16 %v6375
        %v6723 = vunpack.c.h.b16 %v6375
        %v6724 = vunpack.c.l.b16 %v6376
        %v6725 = vunpack.c.h.b16 %v6376
        %v6726 = vunpack.c.l.b16 %v6377
        %v6727 = vunpack.c.h.b16 %v6377
        %v6728 = vunpack.c.l.b16 %v6378
        %v6729 = vunpack.c.h.b16 %v6378
        %v6730 = vunpack.c.l.b16 %v6379
        %v6731 = vunpack.c.h.b16 %v6379
        %v6732 = vunpack.c.l.b16 %v6380
        %v6733 = vunpack.c.h.b16 %v6380
        %v6734 = vunpack.c.l.b16 %v6381
        %v6735 = vunpack.c.h.b16 %v6381
        %v6736 = vunpack.c.l.b16 %v6382
        %v6737 = vunpack.c.h.b16 %v6382
        %v6738 = vunpack.c.l.b16 %v6383
        %v6739 = vunpack.c.h.b16 %v6383
        %v6740 = vunpack.c.l.b16 %v6384
        %v6741 = vunpack.c.h.b16 %v6384
        %v6742 = vunpack.c.l.b16 %v6385
        %v6743 = vunpack.c.h.b16 %v6385
        %v6744 = vunpack.c.l.b16 %v6386
        %v6745 = vunpack.c.h.b16 %v6386
        %v6746 = vunpack.c.l.b16 %v6387
        %v6747 = vunpack.c.h.b16 %v6387
        %v6748 = vunpack.c.l.b16 %v6388
        %v6749 = vunpack.c.h.b16 %v6388
        %v6750 = vunpack.c.l.b16 %v6389
        %v6751 = vunpack.c.h.b16 %v6389
        %v6752 = vunpack.c.l.b16 %v6390
        %v6753 = vunpack.c.h.b16 %v6390
        %v6754 = vunpack.c.l.b16 %v6391
        %v6755 = vunpack.c.h.b16 %v6391
        %v6756 = vunpack.c.l.b16 %v6392
        %v6757 = vunpack.c.h.b16 %v6392
        %v6758 = vunpack.c.l.b16 %v6393
        %v6759 = vunpack.c.h.b16 %v6393
        %v6760 = vunpack.c.l.b16 %v6394
        %v6761 = vunpack.c.h.b16 %v6394
        %v6762 = vunpack.c.l.b16 %v6395
        %v6763 = vunpack.c.h.b16 %v6395
        %v6764 = vunpack.c.l.b16 %v6396
        %v6765 = vunpack.c.h.b16 %v6396
        %v6766 = vunpack.c.l.b16 %v6397
        %v6767 = vunpack.c.h.b16 %v6397
        %v6768 = vunpack.c.l.b16 %v6398
        %v6769 = vunpack.c.h.b16 %v6398
        %v6770 = vunpack.c.l.b16 %v6399
        %v6771 = vunpack.c.h.b16 %v6399
        %v6772 = vunpack.c.l.b16 %v6400
        %v6773 = vunpack.c.h.b16 %v6400
        %v6774 = vunpack.c.l.b16 %v6401
        %v6775 = vunpack.c.h.b16 %v6401
        %v6776 = vunpack.c.l.b16 %v6402
        %v6777 = vunpack.c.h.b16 %v6402
        %v6778 = vunpack.c.l.b16 %v6403
        %v6779 = vunpack.c.h.b16 %v6403
        %v6780 = vunpack.c.l.b16 %v6404
        %v6781 = vunpack.c.h.b16 %v6404
        %v6782 = vunpack.c.l.b16 %v6405
        %v6783 = vunpack.c.h.b16 %v6405
        %v6784 = vunpack.c.l.b16 %v6406
        %v6785 = vunpack.c.h.b16 %v6406
        %v6786 = vunpack.c.l.b16 %v6407
        %v6787 = vunpack.c.h.b16 %v6407
        %v6788 = vunpack.c.l.b16 %v6408
        %v6789 = vunpack.c.h.b16 %v6408
        %v6790 = vunpack.c.l.b16 %v6409
        %v6791 = vunpack.c.h.b16 %v6409
        %v6792 = vunpack.c.l.b16 %v6410
        %v6793 = vunpack.c.h.b16 %v6410
        %v6794 = vunpack.c.l.b16 %v6411
        %v6795 = vunpack.c.h.b16 %v6411
        %v6796 = vunpack.c.l.b16 %v6412
        %v6797 = vunpack.c.h.b16 %v6412
        %v6798 = vunpack.c.l.b16 %v6413
        %v6799 = vunpack.c.h.b16 %v6413
        %v6800 = vunpack.c.l.b16 %v6414
        %v6801 = vunpack.c.h.b16 %v6414
        %v6802 = vunpack.c.l.b16 %v6415
        %v6803 = vunpack.c.h.b16 %v6415
        %v6804 = vunpack.c.l.b16 %v6416
        %v6805 = vunpack.c.h.b16 %v6416
        %v6806 = vunpack.c.l.b16 %v6417
        %v6807 = vunpack.c.h.b16 %v6417
        %v6808 = vunpack.c.l.b16 %v6418
        %v6809 = vunpack.c.h.b16 %v6418
        %v6810 = vunpack.c.l.b16 %v6419
        %v6811 = vunpack.c.h.b16 %v6419
        %v6812 = vunpack.c.l.b16 %v6420
        %v6813 = vunpack.c.h.b16 %v6420
        %v6814 = vunpack.c.l.b16 %v6421
        %v6815 = vunpack.c.h.b16 %v6421
        %v6816 = vpack.c.b16 %v6564, %v6560
        %v6817 = vpack.c.b16 %v6565, %v6561
        %v6818 = vpack.c.b16 %v6566, %v6562
        %v6819 = vpack.c.b16 %v6567, %v6563
        %v6820 = vpack.c.b16 %v6572, %v6568
        %v6821 = vpack.c.b16 %v6573, %v6569
        %v6822 = vpack.c.b16 %v6574, %v6570
        %v6823 = vpack.c.b16 %v6575, %v6571
        %v6824 = vpack.c.b16 %v6580, %v6576
        %v6825 = vpack.c.b16 %v6581, %v6577
        %v6826 = vpack.c.b16 %v6582, %v6578
        %v6827 = vpack.c.b16 %v6583, %v6579
        %v6828 = vpack.c.b16 %v6588, %v6584
        %v6829 = vpack.c.b16 %v6589, %v6585
        %v6830 = vpack.c.b16 %v6590, %v6586
        %v6831 = vpack.c.b16 %v6591, %v6587
        %v6832 = vpack.c.b16 %v6596, %v6592
        %v6833 = vpack.c.b16 %v6597, %v6593
        %v6834 = vpack.c.b16 %v6598, %v6594
        %v6835 = vpack.c.b16 %v6599, %v6595
        %v6836 = vpack.c.b16 %v6604, %v6600
        %v6837 = vpack.c.b16 %v6605, %v6601
        %v6838 = vpack.c.b16 %v6606, %v6602
        %v6839 = vpack.c.b16 %v6607, %v6603
        %v6840 = vpack.c.b16 %v6612, %v6608
        %v6841 = vpack.c.b16 %v6613, %v6609
        %v6842 = vpack.c.b16 %v6614, %v6610
        %v6843 = vpack.c.b16 %v6615, %v6611
        %v6844 = vpack.c.b16 %v6620, %v6616
        %v6845 = vpack.c.b16 %v6621, %v6617
        %v6846 = vpack.c.b16 %v6622, %v6618
        %v6847 = vpack.c.b16 %v6623, %v6619
        %v6848 = vpack.c.b16 %v6628, %v6624
        %v6849 = vpack.c.b16 %v6629, %v6625
        %v6850 = vpack.c.b16 %v6630, %v6626
        %v6851 = vpack.c.b16 %v6631, %v6627
        %v6852 = vpack.c.b16 %v6636, %v6632
        %v6853 = vpack.c.b16 %v6637, %v6633
        %v6854 = vpack.c.b16 %v6638, %v6634
        %v6855 = vpack.c.b16 %v6639, %v6635
        %v6856 = vpack.c.b16 %v6644, %v6640
        %v6857 = vpack.c.b16 %v6645, %v6641
        %v6858 = vpack.c.b16 %v6646, %v6642
        %v6859 = vpack.c.b16 %v6647, %v6643
        %v6860 = vpack.c.b16 %v6652, %v6648
        %v6861 = vpack.c.b16 %v6653, %v6649
        %v6862 = vpack.c.b16 %v6654, %v6650
        %v6863 = vpack.c.b16 %v6655, %v6651
        %v6864 = vpack.c.b16 %v6660, %v6656
        %v6865 = vpack.c.b16 %v6661, %v6657
        %v6866 = vpack.c.b16 %v6662, %v6658
        %v6867 = vpack.c.b16 %v6663, %v6659
        %v6868 = vpack.c.b16 %v6668, %v6664
        %v6869 = vpack.c.b16 %v6669, %v6665
        %v6870 = vpack.c.b16 %v6670, %v6666
        %v6871 = vpack.c.b16 %v6671, %v6667
        %v6872 = vpack.c.b16 %v6676, %v6672
        %v6873 = vpack.c.b16 %v6677, %v6673
        %v6874 = vpack.c.b16 %v6678, %v6674
        %v6875 = vpack.c.b16 %v6679, %v6675
        %v6876 = vpack.c.b16 %v6684, %v6680
        %v6877 = vpack.c.b16 %v6685, %v6681
        %v6878 = vpack.c.b16 %v6686, %v6682
        %v6879 = vpack.c.b16 %v6687, %v6683
        %v6880 = vpack.c.b16 %v6692, %v6688
        %v6881 = vpack.c.b16 %v6693, %v6689
        %v6882 = vpack.c.b16 %v6694, %v6690
        %v6883 = vpack.c.b16 %v6695, %v6691
        %v6884 = vpack.c.b16 %v6700, %v6696
        %v6885 = vpack.c.b16 %v6701, %v6697
        %v6886 = vpack.c.b16 %v6702, %v6698
        %v6887 = vpack.c.b16 %v6703, %v6699
        %v6888 = vpack.c.b16 %v6708, %v6704
        %v6889 = vpack.c.b16 %v6709, %v6705
        %v6890 = vpack.c.b16 %v6710, %v6706
        %v6891 = vpack.c.b16 %v6711, %v6707
        %v6892 = vpack.c.b16 %v6716, %v6712
        %v6893 = vpack.c.b16 %v6717, %v6713
        %v6894 = vpack.c.b16 %v6718, %v6714
        %v6895 = vpack.c.b16 %v6719, %v6715
        %v6896 = vpack.c.b16 %v6724, %v6720
        %v6897 = vpack.c.b16 %v6725, %v6721
        %v6898 = vpack.c.b16 %v6726, %v6722
        %v6899 = vpack.c.b16 %v6727, %v6723
        %v6900 = vpack.c.b16 %v6732, %v6728
        %v6901 = vpack.c.b16 %v6733, %v6729
        %v6902 = vpack.c.b16 %v6734, %v6730
        %v6903 = vpack.c.b16 %v6735, %v6731
        %v6904 = vpack.c.b16 %v6740, %v6736
        %v6905 = vpack.c.b16 %v6741, %v6737
        %v6906 = vpack.c.b16 %v6742, %v6738
        %v6907 = vpack.c.b16 %v6743, %v6739
        %v6908 = vpack.c.b16 %v6748, %v6744
        %v6909 = vpack.c.b16 %v6749, %v6745
        %v6910 = vpack.c.b16 %v6750, %v6746
        %v6911 = vpack.c.b16 %v6751, %v6747
        %v6912 = vpack.c.b16 %v6756, %v6752
        %v6913 = vpack.c.b16 %v6757, %v6753
        %v6914 = vpack.c.b16 %v6758, %v6754
        %v6915 = vpack.c.b16 %v6759, %v6755
        %v6916 = vpack.c.b16 %v6764, %v6760
        %v6917 = vpack.c.b16 %v6765, %v6761
        %v6918 = vpack.c.b16 %v6766, %v6762
        %v6919 = vpack.c.b16 %v6767, %v6763
        %v6920 = vpack.c.b16 %v6772, %v6768
        %v6921 = vpack.c.b16 %v6773, %v6769
        %v6922 = vpack.c.b16 %v6774, %v6770
        %v6923 = vpack.c.b16 %v6775, %v6771
        %v6924 = vpack.c.b16 %v6780, %v6776
        %v6925 = vpack.c.b16 %v6781, %v6777
        %v6926 = vpack.c.b16 %v6782, %v6778
        %v6927 = vpack.c.b16 %v6783, %v6779
        %v6928 = vpack.c.b16 %v6788, %v6784
        %v6929 = vpack.c.b16 %v6789, %v6785
        %v6930 = vpack.c.b16 %v6790, %v6786
        %v6931 = vpack.c.b16 %v6791, %v6787
        %v6932 = vpack.c.b16 %v6796, %v6792
        %v6933 = vpack.c.b16 %v6797, %v6793
        %v6934 = vpack.c.b16 %v6798, %v6794
        %v6935 = vpack.c.b16 %v6799, %v6795
        %v6936 = vpack.c.b16 %v6804, %v6800
        %v6937 = vpack.c.b16 %v6805, %v6801
        %v6938 = vpack.c.b16 %v6806, %v6802
        %v6939 = vpack.c.b16 %v6807, %v6803
        %v6940 = vpack.c.b16 %v6812, %v6808
        %v6941 = vpack.c.b16 %v6813, %v6809
        %v6942 = vpack.c.b16 %v6814, %v6810
        %v6943 = vpack.c.b16 %v6815, %v6811
        %7072 = vmatpush.bf16.msra.mxu0 %v6844
        %7073 = vmatpush.bf16.msra.mxu0 %v6840
        %7074 = vmatpush.bf16.msra.mxu0 %v6836
        %7075 = vmatpush.bf16.msra.mxu0 %v6832
        %7076 = vmatpush.bf16.msra.mxu0 %v6828
        %7077 = vmatpush.bf16.msra.mxu0 %v6824
        %7078 = vmatpush.bf16.msra.mxu0 %v6820
        %7079 = vmatpush.bf16.msra.mxu0 %v6816
        %7080 = vmatmul.bf16.gmra.mxu0 %v6262
        %v7081 = vpop.f32.mrf.mxu0
        %v7082 = vadd.f32 %v6424, %v7081
        %v7083 = vpop.f32.mrf.mxu0
        %v7084 = vadd.f32 %v6424, %v7083
        %7085 = vmatmul.bf16.gmra.mxu0 %v6266
        %v7086 = vpop.f32.mrf.mxu0
        %v7087 = vadd.f32 %v6424, %v7086
        %v7088 = vpop.f32.mrf.mxu0
        %v7089 = vadd.f32 %v6424, %v7088
        %7090 = vmatmul.bf16.gmra.mxu0 %v6270
        %v7091 = vpop.f32.mrf.mxu0
        %v7092 = vadd.f32 %v6424, %v7091
        %v7093 = vpop.f32.mrf.mxu0
        %v7094 = vadd.f32 %v6424, %v7093
        %7095 = vmatmul.bf16.gmra.mxu0 %v6274
        %v7096 = vpop.f32.mrf.mxu0
        %v7097 = vadd.f32 %v6424, %v7096
        %v7098 = vpop.f32.mrf.mxu0
        %v7099 = vadd.f32 %v6424, %v7098
        %7100 = vmatmul.bf16.gmra.mxu0 %v6278
        %v7101 = vpop.f32.mrf.mxu0
        %v7102 = vadd.f32 %v6424, %v7101
        %v7103 = vpop.f32.mrf.mxu0
        %v7104 = vadd.f32 %v6424, %v7103
        %7105 = vmatmul.bf16.gmra.mxu0 %v6282
        %v7106 = vpop.f32.mrf.mxu0
        %v7107 = vadd.f32 %v6424, %v7106
        %v7108 = vpop.f32.mrf.mxu0
        %v7109 = vadd.f32 %v6424, %v7108
        %7110 = vmatmul.bf16.gmra.mxu0 %v6286
        %v7111 = vpop.f32.mrf.mxu0
        %v7112 = vadd.f32 %v6424, %v7111
        %v7113 = vpop.f32.mrf.mxu0
        %v7114 = vadd.f32 %v6424, %v7113
        %7115 = vmatmul.bf16.gmra.mxu0 %v6290
        %v7116 = vpop.f32.mrf.mxu0
        %v7117 = vadd.f32 %v6424, %v7116
        %v7118 = vpop.f32.mrf.mxu0
        %v7119 = vadd.f32 %v6424, %v7118
        %7120 = vdwg.mxu0
        %7121 = vmatpush.bf16.msra.mxu0 %v6876
        %7122 = vmatpush.bf16.msra.mxu0 %v6872
        %7123 = vmatpush.bf16.msra.mxu0 %v6868
        %7124 = vmatpush.bf16.msra.mxu0 %v6864
        %7125 = vmatpush.bf16.msra.mxu0 %v6860
        %7126 = vmatpush.bf16.msra.mxu0 %v6856
        %7127 = vmatpush.bf16.msra.mxu0 %v6852
        %7128 = vmatpush.bf16.msra.mxu0 %v6848
        %7129 = vmatmul.bf16.gmra.mxu0 %v6263
        %v7130 = vpop.f32.mrf.mxu0
        %v7131 = vadd.f32 %v7082, %v7130
        %v7132 = vpop.f32.mrf.mxu0
        %v7133 = vadd.f32 %v7084, %v7132
        %7134 = vmatmul.bf16.gmra.mxu0 %v6267
        %v7135 = vpop.f32.mrf.mxu0
        %v7136 = vadd.f32 %v7087, %v7135
        %v7137 = vpop.f32.mrf.mxu0
        %v7138 = vadd.f32 %v7089, %v7137
        %7139 = vmatmul.bf16.gmra.mxu0 %v6271
        %v7140 = vpop.f32.mrf.mxu0
        %v7141 = vadd.f32 %v7092, %v7140
        %v7142 = vpop.f32.mrf.mxu0
        %v7143 = vadd.f32 %v7094, %v7142
        %7144 = vmatmul.bf16.gmra.mxu0 %v6275
        %v7145 = vpop.f32.mrf.mxu0
        %v7146 = vadd.f32 %v7097, %v7145
        %v7147 = vpop.f32.mrf.mxu0
        %v7148 = vadd.f32 %v7099, %v7147
        %7149 = vmatmul.bf16.gmra.mxu0 %v6279
        %v7150 = vpop.f32.mrf.mxu0
        %v7151 = vadd.f32 %v7102, %v7150
        %v7152 = vpop.f32.mrf.mxu0
        %v7153 = vadd.f32 %v7104, %v7152
        %7154 = vmatmul.bf16.gmra.mxu0 %v6283
        %v7155 = vpop.f32.mrf.mxu0
        %v7156 = vadd.f32 %v7107, %v7155
        %v7157 = vpop.f32.mrf.mxu0
        %v7158 = vadd.f32 %v7109, %v7157
        %7159 = vmatmul.bf16.gmra.mxu0 %v6287
        %v7160 = vpop.f32.mrf.mxu0
        %v7161 = vadd.f32 %v7112, %v7160
        %v7162 = vpop.f32.mrf.mxu0
        %v7163 = vadd.f32 %v7114, %v7162
        %7164 = vmatmul.bf16.gmra.mxu0 %v6291
        %v7165 = vpop.f32.mrf.mxu0
        %v7166 = vadd.f32 %v7117, %v7165
        %v7167 = vpop.f32.mrf.mxu0
        %v7168 = vadd.f32 %v7119, %v7167
        %7169 = vdwg.mxu0
        %7170 = vmatpush.bf16.msra.mxu0 %v6908
        %7171 = vmatpush.bf16.msra.mxu0 %v6904
        %7172 = vmatpush.bf16.msra.mxu0 %v6900
        %7173 = vmatpush.bf16.msra.mxu0 %v6896
        %7174 = vmatpush.bf16.msra.mxu0 %v6892
        %7175 = vmatpush.bf16.msra.mxu0 %v6888
        %7176 = vmatpush.bf16.msra.mxu0 %v6884
        %7177 = vmatpush.bf16.msra.mxu0 %v6880
        %7178 = vmatmul.bf16.gmra.mxu0 %v6264
        %v7179 = vpop.f32.mrf.mxu0
        %v7180 = vadd.f32 %v7131, %v7179
        %v7181 = vpop.f32.mrf.mxu0
        %v7182 = vadd.f32 %v7133, %v7181
        %7183 = vmatmul.bf16.gmra.mxu0 %v6268
        %v7184 = vpop.f32.mrf.mxu0
        %v7185 = vadd.f32 %v7136, %v7184
        %v7186 = vpop.f32.mrf.mxu0
        %v7187 = vadd.f32 %v7138, %v7186
        %7188 = vmatmul.bf16.gmra.mxu0 %v6272
        %v7189 = vpop.f32.mrf.mxu0
        %v7190 = vadd.f32 %v7141, %v7189
        %v7191 = vpop.f32.mrf.mxu0
        %v7192 = vadd.f32 %v7143, %v7191
        %7193 = vmatmul.bf16.gmra.mxu0 %v6276
        %v7194 = vpop.f32.mrf.mxu0
        %v7195 = vadd.f32 %v7146, %v7194
        %v7196 = vpop.f32.mrf.mxu0
        %v7197 = vadd.f32 %v7148, %v7196
        %7198 = vmatmul.bf16.gmra.mxu0 %v6280
        %v7199 = vpop.f32.mrf.mxu0
        %v7200 = vadd.f32 %v7151, %v7199
        %v7201 = vpop.f32.mrf.mxu0
        %v7202 = vadd.f32 %v7153, %v7201
        %7203 = vmatmul.bf16.gmra.mxu0 %v6284
        %v7204 = vpop.f32.mrf.mxu0
        %v7205 = vadd.f32 %v7156, %v7204
        %v7206 = vpop.f32.mrf.mxu0
        %v7207 = vadd.f32 %v7158, %v7206
        %7208 = vmatmul.bf16.gmra.mxu0 %v6288
        %v7209 = vpop.f32.mrf.mxu0
        %v7210 = vadd.f32 %v7161, %v7209
        %v7211 = vpop.f32.mrf.mxu0
        %v7212 = vadd.f32 %v7163, %v7211
        %7213 = vmatmul.bf16.gmra.mxu0 %v6292
        %v7214 = vpop.f32.mrf.mxu0
        %v7215 = vadd.f32 %v7166, %v7214
        %v7216 = vpop.f32.mrf.mxu0
        %v7217 = vadd.f32 %v7168, %v7216
        %7218 = vdwg.mxu0
        %7219 = vmatpush.bf16.msra.mxu0 %v6940
        %7220 = vmatpush.bf16.msra.mxu0 %v6936
        %7221 = vmatpush.bf16.msra.mxu0 %v6932
        %7222 = vmatpush.bf16.msra.mxu0 %v6928
        %7223 = vmatpush.bf16.msra.mxu0 %v6924
        %7224 = vmatpush.bf16.msra.mxu0 %v6920
        %7225 = vmatpush.bf16.msra.mxu0 %v6916
        %7226 = vmatpush.bf16.msra.mxu0 %v6912
        %7227 = vmatmul.bf16.gmra.mxu0 %v6265
        %v7228 = vpop.f32.mrf.mxu0
        %v7229 = vadd.f32 %v7180, %v7228
        %v7230 = vpop.f32.mrf.mxu0
        %v7231 = vadd.f32 %v7182, %v7230
        %7232 = vmatmul.bf16.gmra.mxu0 %v6269
        %v7233 = vpop.f32.mrf.mxu0
        %v7234 = vadd.f32 %v7185, %v7233
        %v7235 = vpop.f32.mrf.mxu0
        %v7236 = vadd.f32 %v7187, %v7235
        %7237 = vmatmul.bf16.gmra.mxu0 %v6273
        %v7238 = vpop.f32.mrf.mxu0
        %v7239 = vadd.f32 %v7190, %v7238
        %v7240 = vpop.f32.mrf.mxu0
        %v7241 = vadd.f32 %v7192, %v7240
        %7242 = vmatmul.bf16.gmra.mxu0 %v6277
        %v7243 = vpop.f32.mrf.mxu0
        %v7244 = vadd.f32 %v7195, %v7243
        %v7245 = vpop.f32.mrf.mxu0
        %v7246 = vadd.f32 %v7197, %v7245
        %7247 = vmatmul.bf16.gmra.mxu0 %v6281
        %v7248 = vpop.f32.mrf.mxu0
        %v7249 = vadd.f32 %v7200, %v7248
        %v7250 = vpop.f32.mrf.mxu0
        %v7251 = vadd.f32 %v7202, %v7250
        %7252 = vmatmul.bf16.gmra.mxu0 %v6285
        %v7253 = vpop.f32.mrf.mxu0
        %v7254 = vadd.f32 %v7205, %v7253
        %v7255 = vpop.f32.mrf.mxu0
        %v7256 = vadd.f32 %v7207, %v7255
        %7257 = vmatmul.bf16.gmra.mxu0 %v6289
        %v7258 = vpop.f32.mrf.mxu0
        %v7259 = vadd.f32 %v7210, %v7258
        %v7260 = vpop.f32.mrf.mxu0
        %v7261 = vadd.f32 %v7212, %v7260
        %7262 = vmatmul.bf16.gmra.mxu0 %v6293
        %v7263 = vpop.f32.mrf.mxu0
        %v7264 = vadd.f32 %v7215, %v7263
        %v7265 = vpop.f32.mrf.mxu0
        %v7266 = vadd.f32 %v7217, %v7265
        %7267 = vdwg.mxu0
        %7268 = vmatpush.bf16.msra.mxu0 %v6845
        %7269 = vmatpush.bf16.msra.mxu0 %v6841
        %7270 = vmatpush.bf16.msra.mxu0 %v6837
        %7271 = vmatpush.bf16.msra.mxu0 %v6833
        %7272 = vmatpush.bf16.msra.mxu0 %v6829
        %7273 = vmatpush.bf16.msra.mxu0 %v6825
        %7274 = vmatpush.bf16.msra.mxu0 %v6821
        %7275 = vmatpush.bf16.msra.mxu0 %v6817
        %7276 = vmatmul.bf16.gmra.mxu0 %v6262
        %v7277 = vpop.f32.mrf.mxu0
        %v7278 = vadd.f32 %v6425, %v7277
        %v7279 = vpop.f32.mrf.mxu0
        %v7280 = vadd.f32 %v6425, %v7279
        %7281 = vmatmul.bf16.gmra.mxu0 %v6266
        %v7282 = vpop.f32.mrf.mxu0
        %v7283 = vadd.f32 %v6425, %v7282
        %v7284 = vpop.f32.mrf.mxu0
        %v7285 = vadd.f32 %v6425, %v7284
        %7286 = vmatmul.bf16.gmra.mxu0 %v6270
        %v7287 = vpop.f32.mrf.mxu0
        %v7288 = vadd.f32 %v6425, %v7287
        %v7289 = vpop.f32.mrf.mxu0
        %v7290 = vadd.f32 %v6425, %v7289
        %7291 = vmatmul.bf16.gmra.mxu0 %v6274
        %v7292 = vpop.f32.mrf.mxu0
        %v7293 = vadd.f32 %v6425, %v7292
        %v7294 = vpop.f32.mrf.mxu0
        %v7295 = vadd.f32 %v6425, %v7294
        %7296 = vmatmul.bf16.gmra.mxu0 %v6278
        %v7297 = vpop.f32.mrf.mxu0
        %v7298 = vadd.f32 %v6425, %v7297
        %v7299 = vpop.f32.mrf.mxu0
        %v7300 = vadd.f32 %v6425, %v7299
        %7301 = vmatmul.bf16.gmra.mxu0 %v6282
        %v7302 = vpop.f32.mrf.mxu0
        %v7303 = vadd.f32 %v6425, %v7302
        %v7304 = vpop.f32.mrf.mxu0
        %v7305 = vadd.f32 %v6425, %v7304
        %7306 = vmatmul.bf16.gmra.mxu0 %v6286
        %v7307 = vpop.f32.mrf.mxu0
        %v7308 = vadd.f32 %v6425, %v7307
        %v7309 = vpop.f32.mrf.mxu0
        %v7310 = vadd.f32 %v6425, %v7309
        %7311 = vmatmul.bf16.gmra.mxu0 %v6290
        %v7312 = vpop.f32.mrf.mxu0
        %v7313 = vadd.f32 %v6425, %v7312
        %v7314 = vpop.f32.mrf.mxu0
        %v7315 = vadd.f32 %v6425, %v7314
        %7316 = vdwg.mxu0
        %7317 = vmatpush.bf16.msra.mxu0 %v6877
        %7318 = vmatpush.bf16.msra.mxu0 %v6873
        %7319 = vmatpush.bf16.msra.mxu0 %v6869
        %7320 = vmatpush.bf16.msra.mxu0 %v6865
        %7321 = vmatpush.bf16.msra.mxu0 %v6861
        %7322 = vmatpush.bf16.msra.mxu0 %v6857
        %7323 = vmatpush.bf16.msra.mxu0 %v6853
        %7324 = vmatpush.bf16.msra.mxu0 %v6849
        %7325 = vmatmul.bf16.gmra.mxu0 %v6263
        %v7326 = vpop.f32.mrf.mxu0
        %v7327 = vadd.f32 %v7278, %v7326
        %v7328 = vpop.f32.mrf.mxu0
        %v7329 = vadd.f32 %v7280, %v7328
        %7330 = vmatmul.bf16.gmra.mxu0 %v6267
        %v7331 = vpop.f32.mrf.mxu0
        %v7332 = vadd.f32 %v7283, %v7331
        %v7333 = vpop.f32.mrf.mxu0
        %v7334 = vadd.f32 %v7285, %v7333
        %7335 = vmatmul.bf16.gmra.mxu0 %v6271
        %v7336 = vpop.f32.mrf.mxu0
        %v7337 = vadd.f32 %v7288, %v7336
        %v7338 = vpop.f32.mrf.mxu0
        %v7339 = vadd.f32 %v7290, %v7338
        %7340 = vmatmul.bf16.gmra.mxu0 %v6275
        %v7341 = vpop.f32.mrf.mxu0
        %v7342 = vadd.f32 %v7293, %v7341
        %v7343 = vpop.f32.mrf.mxu0
        %v7344 = vadd.f32 %v7295, %v7343
        %7345 = vmatmul.bf16.gmra.mxu0 %v6279
        %v7346 = vpop.f32.mrf.mxu0
        %v7347 = vadd.f32 %v7298, %v7346
        %v7348 = vpop.f32.mrf.mxu0
        %v7349 = vadd.f32 %v7300, %v7348
        %7350 = vmatmul.bf16.gmra.mxu0 %v6283
        %v7351 = vpop.f32.mrf.mxu0
        %v7352 = vadd.f32 %v7303, %v7351
        %v7353 = vpop.f32.mrf.mxu0
        %v7354 = vadd.f32 %v7305, %v7353
        %7355 = vmatmul.bf16.gmra.mxu0 %v6287
        %v7356 = vpop.f32.mrf.mxu0
        %v7357 = vadd.f32 %v7308, %v7356
        %v7358 = vpop.f32.mrf.mxu0
        %v7359 = vadd.f32 %v7310, %v7358
        %7360 = vmatmul.bf16.gmra.mxu0 %v6291
        %v7361 = vpop.f32.mrf.mxu0
        %v7362 = vadd.f32 %v7313, %v7361
        %v7363 = vpop.f32.mrf.mxu0
        %v7364 = vadd.f32 %v7315, %v7363
        %7365 = vdwg.mxu0
        %7366 = vmatpush.bf16.msra.mxu0 %v6909
        %7367 = vmatpush.bf16.msra.mxu0 %v6905
        %7368 = vmatpush.bf16.msra.mxu0 %v6901
        %7369 = vmatpush.bf16.msra.mxu0 %v6897
        %7370 = vmatpush.bf16.msra.mxu0 %v6893
        %7371 = vmatpush.bf16.msra.mxu0 %v6889
        %7372 = vmatpush.bf16.msra.mxu0 %v6885
        %7373 = vmatpush.bf16.msra.mxu0 %v6881
        %7374 = vmatmul.bf16.gmra.mxu0 %v6264
        %v7375 = vpop.f32.mrf.mxu0
        %v7376 = vadd.f32 %v7327, %v7375
        %v7377 = vpop.f32.mrf.mxu0
        %v7378 = vadd.f32 %v7329, %v7377
        %7379 = vmatmul.bf16.gmra.mxu0 %v6268
        %v7380 = vpop.f32.mrf.mxu0
        %v7381 = vadd.f32 %v7332, %v7380
        %v7382 = vpop.f32.mrf.mxu0
        %v7383 = vadd.f32 %v7334, %v7382
        %7384 = vmatmul.bf16.gmra.mxu0 %v6272
        %v7385 = vpop.f32.mrf.mxu0
        %v7386 = vadd.f32 %v7337, %v7385
        %v7387 = vpop.f32.mrf.mxu0
        %v7388 = vadd.f32 %v7339, %v7387
        %7389 = vmatmul.bf16.gmra.mxu0 %v6276
        %v7390 = vpop.f32.mrf.mxu0
        %v7391 = vadd.f32 %v7342, %v7390
        %v7392 = vpop.f32.mrf.mxu0
        %v7393 = vadd.f32 %v7344, %v7392
        %7394 = vmatmul.bf16.gmra.mxu0 %v6280
        %v7395 = vpop.f32.mrf.mxu0
        %v7396 = vadd.f32 %v7347, %v7395
        %v7397 = vpop.f32.mrf.mxu0
        %v7398 = vadd.f32 %v7349, %v7397
        %7399 = vmatmul.bf16.gmra.mxu0 %v6284
        %v7400 = vpop.f32.mrf.mxu0
        %v7401 = vadd.f32 %v7352, %v7400
        %v7402 = vpop.f32.mrf.mxu0
        %v7403 = vadd.f32 %v7354, %v7402
        %7404 = vmatmul.bf16.gmra.mxu0 %v6288
        %v7405 = vpop.f32.mrf.mxu0
        %v7406 = vadd.f32 %v7357, %v7405
        %v7407 = vpop.f32.mrf.mxu0
        %v7408 = vadd.f32 %v7359, %v7407
        %7409 = vmatmul.bf16.gmra.mxu0 %v6292
        %v7410 = vpop.f32.mrf.mxu0
        %v7411 = vadd.f32 %v7362, %v7410
        %v7412 = vpop.f32.mrf.mxu0
        %v7413 = vadd.f32 %v7364, %v7412
        %7414 = vdwg.mxu0
        %7415 = vmatpush.bf16.msra.mxu0 %v6941
        %7416 = vmatpush.bf16.msra.mxu0 %v6937
        %7417 = vmatpush.bf16.msra.mxu0 %v6933
        %7418 = vmatpush.bf16.msra.mxu0 %v6929
        %7419 = vmatpush.bf16.msra.mxu0 %v6925
        %7420 = vmatpush.bf16.msra.mxu0 %v6921
        %7421 = vmatpush.bf16.msra.mxu0 %v6917
        %7422 = vmatpush.bf16.msra.mxu0 %v6913
        %7423 = vmatmul.bf16.gmra.mxu0 %v6265
        %v7424 = vpop.f32.mrf.mxu0
        %v7425 = vadd.f32 %v7376, %v7424
        %v7426 = vpop.f32.mrf.mxu0
        %v7427 = vadd.f32 %v7378, %v7426
        %7428 = vmatmul.bf16.gmra.mxu0 %v6269
        %v7429 = vpop.f32.mrf.mxu0
        %v7430 = vadd.f32 %v7381, %v7429
        %v7431 = vpop.f32.mrf.mxu0
        %v7432 = vadd.f32 %v7383, %v7431
        %7433 = vmatmul.bf16.gmra.mxu0 %v6273
        %v7434 = vpop.f32.mrf.mxu0
        %v7435 = vadd.f32 %v7386, %v7434
        %v7436 = vpop.f32.mrf.mxu0
        %v7437 = vadd.f32 %v7388, %v7436
        %7438 = vmatmul.bf16.gmra.mxu0 %v6277
        %v7439 = vpop.f32.mrf.mxu0
        %v7440 = vadd.f32 %v7391, %v7439
        %v7441 = vpop.f32.mrf.mxu0
        %v7442 = vadd.f32 %v7393, %v7441
        %7443 = vmatmul.bf16.gmra.mxu0 %v6281
        %v7444 = vpop.f32.mrf.mxu0
        %v7445 = vadd.f32 %v7396, %v7444
        %v7446 = vpop.f32.mrf.mxu0
        %v7447 = vadd.f32 %v7398, %v7446
        %7448 = vmatmul.bf16.gmra.mxu0 %v6285
        %v7449 = vpop.f32.mrf.mxu0
        %v7450 = vadd.f32 %v7401, %v7449
        %v7451 = vpop.f32.mrf.mxu0
        %v7452 = vadd.f32 %v7403, %v7451
        %7453 = vmatmul.bf16.gmra.mxu0 %v6289
        %v7454 = vpop.f32.mrf.mxu0
        %v7455 = vadd.f32 %v7406, %v7454
        %v7456 = vpop.f32.mrf.mxu0
        %v7457 = vadd.f32 %v7408, %v7456
        %7458 = vmatmul.bf16.gmra.mxu0 %v6293
        %v7459 = vpop.f32.mrf.mxu0
        %v7460 = vadd.f32 %v7411, %v7459
        %v7461 = vpop.f32.mrf.mxu0
        %v7462 = vadd.f32 %v7413, %v7461
        %7463 = vdwg.mxu0
        %7464 = vmatpush.bf16.msra.mxu0 %v6846
        %7465 = vmatpush.bf16.msra.mxu0 %v6842
        %7466 = vmatpush.bf16.msra.mxu0 %v6838
        %7467 = vmatpush.bf16.msra.mxu0 %v6834
        %7468 = vmatpush.bf16.msra.mxu0 %v6830
        %7469 = vmatpush.bf16.msra.mxu0 %v6826
        %7470 = vmatpush.bf16.msra.mxu0 %v6822
        %7471 = vmatpush.bf16.msra.mxu0 %v6818
        %7472 = vmatmul.bf16.gmra.mxu0 %v6262
        %v7473 = vpop.f32.mrf.mxu0
        %v7474 = vadd.f32 %v6426, %v7473
        %v7475 = vpop.f32.mrf.mxu0
        %v7476 = vadd.f32 %v6426, %v7475
        %7477 = vmatmul.bf16.gmra.mxu0 %v6266
        %v7478 = vpop.f32.mrf.mxu0
        %v7479 = vadd.f32 %v6426, %v7478
        %v7480 = vpop.f32.mrf.mxu0
        %v7481 = vadd.f32 %v6426, %v7480
        %7482 = vmatmul.bf16.gmra.mxu0 %v6270
        %v7483 = vpop.f32.mrf.mxu0
        %v7484 = vadd.f32 %v6426, %v7483
        %v7485 = vpop.f32.mrf.mxu0
        %v7486 = vadd.f32 %v6426, %v7485
        %7487 = vmatmul.bf16.gmra.mxu0 %v6274
        %v7488 = vpop.f32.mrf.mxu0
        %v7489 = vadd.f32 %v6426, %v7488
        %v7490 = vpop.f32.mrf.mxu0
        %v7491 = vadd.f32 %v6426, %v7490
        %7492 = vmatmul.bf16.gmra.mxu0 %v6278
        %v7493 = vpop.f32.mrf.mxu0
        %v7494 = vadd.f32 %v6426, %v7493
        %v7495 = vpop.f32.mrf.mxu0
        %v7496 = vadd.f32 %v6426, %v7495
        %7497 = vmatmul.bf16.gmra.mxu0 %v6282
        %v7498 = vpop.f32.mrf.mxu0
        %v7499 = vadd.f32 %v6426, %v7498
        %v7500 = vpop.f32.mrf.mxu0
        %v7501 = vadd.f32 %v6426, %v7500
        %7502 = vmatmul.bf16.gmra.mxu0 %v6286
        %v7503 = vpop.f32.mrf.mxu0
        %v7504 = vadd.f32 %v6426, %v7503
        %v7505 = vpop.f32.mrf.mxu0
        %v7506 = vadd.f32 %v6426, %v7505
        %7507 = vmatmul.bf16.gmra.mxu0 %v6290
        %v7508 = vpop.f32.mrf.mxu0
        %v7509 = vadd.f32 %v6426, %v7508
        %v7510 = vpop.f32.mrf.mxu0
        %v7511 = vadd.f32 %v6426, %v7510
        %7512 = vdwg.mxu0
        %7513 = vmatpush.bf16.msra.mxu0 %v6878
        %7514 = vmatpush.bf16.msra.mxu0 %v6874
        %7515 = vmatpush.bf16.msra.mxu0 %v6870
        %7516 = vmatpush.bf16.msra.mxu0 %v6866
        %7517 = vmatpush.bf16.msra.mxu0 %v6862
        %7518 = vmatpush.bf16.msra.mxu0 %v6858
        %7519 = vmatpush.bf16.msra.mxu0 %v6854
        %7520 = vmatpush.bf16.msra.mxu0 %v6850
        %7521 = vmatmul.bf16.gmra.mxu0 %v6263
        %v7522 = vpop.f32.mrf.mxu0
        %v7523 = vadd.f32 %v7474, %v7522
        %v7524 = vpop.f32.mrf.mxu0
        %v7525 = vadd.f32 %v7476, %v7524
        %7526 = vmatmul.bf16.gmra.mxu0 %v6267
        %v7527 = vpop.f32.mrf.mxu0
        %v7528 = vadd.f32 %v7479, %v7527
        %v7529 = vpop.f32.mrf.mxu0
        %v7530 = vadd.f32 %v7481, %v7529
        %7531 = vmatmul.bf16.gmra.mxu0 %v6271
        %v7532 = vpop.f32.mrf.mxu0
        %v7533 = vadd.f32 %v7484, %v7532
        %v7534 = vpop.f32.mrf.mxu0
        %v7535 = vadd.f32 %v7486, %v7534
        %7536 = vmatmul.bf16.gmra.mxu0 %v6275
        %v7537 = vpop.f32.mrf.mxu0
        %v7538 = vadd.f32 %v7489, %v7537
        %v7539 = vpop.f32.mrf.mxu0
        %v7540 = vadd.f32 %v7491, %v7539
        %7541 = vmatmul.bf16.gmra.mxu0 %v6279
        %v7542 = vpop.f32.mrf.mxu0
        %v7543 = vadd.f32 %v7494, %v7542
        %v7544 = vpop.f32.mrf.mxu0
        %v7545 = vadd.f32 %v7496, %v7544
        %7546 = vmatmul.bf16.gmra.mxu0 %v6283
        %v7547 = vpop.f32.mrf.mxu0
        %v7548 = vadd.f32 %v7499, %v7547
        %v7549 = vpop.f32.mrf.mxu0
        %v7550 = vadd.f32 %v7501, %v7549
        %7551 = vmatmul.bf16.gmra.mxu0 %v6287
        %v7552 = vpop.f32.mrf.mxu0
        %v7553 = vadd.f32 %v7504, %v7552
        %v7554 = vpop.f32.mrf.mxu0
        %v7555 = vadd.f32 %v7506, %v7554
        %7556 = vmatmul.bf16.gmra.mxu0 %v6291
        %v7557 = vpop.f32.mrf.mxu0
        %v7558 = vadd.f32 %v7509, %v7557
        %v7559 = vpop.f32.mrf.mxu0
        %v7560 = vadd.f32 %v7511, %v7559
        %7561 = vdwg.mxu0
        %7562 = vmatpush.bf16.msra.mxu0 %v6910
        %7563 = vmatpush.bf16.msra.mxu0 %v6906
        %7564 = vmatpush.bf16.msra.mxu0 %v6902
        %7565 = vmatpush.bf16.msra.mxu0 %v6898
        %7566 = vmatpush.bf16.msra.mxu0 %v6894
        %7567 = vmatpush.bf16.msra.mxu0 %v6890
        %7568 = vmatpush.bf16.msra.mxu0 %v6886
        %7569 = vmatpush.bf16.msra.mxu0 %v6882
        %7570 = vmatmul.bf16.gmra.mxu0 %v6264
        %v7571 = vpop.f32.mrf.mxu0
        %v7572 = vadd.f32 %v7523, %v7571
        %v7573 = vpop.f32.mrf.mxu0
        %v7574 = vadd.f32 %v7525, %v7573
        %7575 = vmatmul.bf16.gmra.mxu0 %v6268
        %v7576 = vpop.f32.mrf.mxu0
        %v7577 = vadd.f32 %v7528, %v7576
        %v7578 = vpop.f32.mrf.mxu0
        %v7579 = vadd.f32 %v7530, %v7578
        %7580 = vmatmul.bf16.gmra.mxu0 %v6272
        %v7581 = vpop.f32.mrf.mxu0
        %v7582 = vadd.f32 %v7533, %v7581
        %v7583 = vpop.f32.mrf.mxu0
        %v7584 = vadd.f32 %v7535, %v7583
        %7585 = vmatmul.bf16.gmra.mxu0 %v6276
        %v7586 = vpop.f32.mrf.mxu0
        %v7587 = vadd.f32 %v7538, %v7586
        %v7588 = vpop.f32.mrf.mxu0
        %v7589 = vadd.f32 %v7540, %v7588
        %7590 = vmatmul.bf16.gmra.mxu0 %v6280
        %v7591 = vpop.f32.mrf.mxu0
        %v7592 = vadd.f32 %v7543, %v7591
        %v7593 = vpop.f32.mrf.mxu0
        %v7594 = vadd.f32 %v7545, %v7593
        %7595 = vmatmul.bf16.gmra.mxu0 %v6284
        %v7596 = vpop.f32.mrf.mxu0
        %v7597 = vadd.f32 %v7548, %v7596
        %v7598 = vpop.f32.mrf.mxu0
        %v7599 = vadd.f32 %v7550, %v7598
        %7600 = vmatmul.bf16.gmra.mxu0 %v6288
        %v7601 = vpop.f32.mrf.mxu0
        %v7602 = vadd.f32 %v7553, %v7601
        %v7603 = vpop.f32.mrf.mxu0
        %v7604 = vadd.f32 %v7555, %v7603
        %7605 = vmatmul.bf16.gmra.mxu0 %v6292
        %v7606 = vpop.f32.mrf.mxu0
        %v7607 = vadd.f32 %v7558, %v7606
        %v7608 = vpop.f32.mrf.mxu0
        %v7609 = vadd.f32 %v7560, %v7608
        %7610 = vdwg.mxu0
        %7611 = vmatpush.bf16.msra.mxu0 %v6942
        %7612 = vmatpush.bf16.msra.mxu0 %v6938
        %7613 = vmatpush.bf16.msra.mxu0 %v6934
        %7614 = vmatpush.bf16.msra.mxu0 %v6930
        %7615 = vmatpush.bf16.msra.mxu0 %v6926
        %7616 = vmatpush.bf16.msra.mxu0 %v6922
        %7617 = vmatpush.bf16.msra.mxu0 %v6918
        %7618 = vmatpush.bf16.msra.mxu0 %v6914
        %7619 = vmatmul.bf16.gmra.mxu0 %v6265
        %v7620 = vpop.f32.mrf.mxu0
        %v7621 = vadd.f32 %v7572, %v7620
        %v7622 = vpop.f32.mrf.mxu0
        %v7623 = vadd.f32 %v7574, %v7622
        %7624 = vmatmul.bf16.gmra.mxu0 %v6269
        %v7625 = vpop.f32.mrf.mxu0
        %v7626 = vadd.f32 %v7577, %v7625
        %v7627 = vpop.f32.mrf.mxu0
        %v7628 = vadd.f32 %v7579, %v7627
        %7629 = vmatmul.bf16.gmra.mxu0 %v6273
        %v7630 = vpop.f32.mrf.mxu0
        %v7631 = vadd.f32 %v7582, %v7630
        %v7632 = vpop.f32.mrf.mxu0
        %v7633 = vadd.f32 %v7584, %v7632
        %7634 = vmatmul.bf16.gmra.mxu0 %v6277
        %v7635 = vpop.f32.mrf.mxu0
        %v7636 = vadd.f32 %v7587, %v7635
        %v7637 = vpop.f32.mrf.mxu0
        %v7638 = vadd.f32 %v7589, %v7637
        %7639 = vmatmul.bf16.gmra.mxu0 %v6281
        %v7640 = vpop.f32.mrf.mxu0
        %v7641 = vadd.f32 %v7592, %v7640
        %v7642 = vpop.f32.mrf.mxu0
        %v7643 = vadd.f32 %v7594, %v7642
        %7644 = vmatmul.bf16.gmra.mxu0 %v6285
        %v7645 = vpop.f32.mrf.mxu0
        %v7646 = vadd.f32 %v7597, %v7645
        %v7647 = vpop.f32.mrf.mxu0
        %v7648 = vadd.f32 %v7599, %v7647
        %7649 = vmatmul.bf16.gmra.mxu0 %v6289
        %v7650 = vpop.f32.mrf.mxu0
        %v7651 = vadd.f32 %v7602, %v7650
        %v7652 = vpop.f32.mrf.mxu0
        %v7653 = vadd.f32 %v7604, %v7652
        %7654 = vmatmul.bf16.gmra.mxu0 %v6293
        %v7655 = vpop.f32.mrf.mxu0
        %v7656 = vadd.f32 %v7607, %v7655
        %v7657 = vpop.f32.mrf.mxu0
        %v7658 = vadd.f32 %v7609, %v7657
        %7659 = vdwg.mxu0
        %7660 = vmatpush.bf16.msra.mxu0 %v6847
        %7661 = vmatpush.bf16.msra.mxu0 %v6843
        %7662 = vmatpush.bf16.msra.mxu0 %v6839
        %7663 = vmatpush.bf16.msra.mxu0 %v6835
        %7664 = vmatpush.bf16.msra.mxu0 %v6831
        %7665 = vmatpush.bf16.msra.mxu0 %v6827
        %7666 = vmatpush.bf16.msra.mxu0 %v6823
        %7667 = vmatpush.bf16.msra.mxu0 %v6819
        %7668 = vmatmul.bf16.gmra.mxu0 %v6262
        %v7669 = vpop.f32.mrf.mxu0
        %v7670 = vadd.f32 %v6427, %v7669
        %v7671 = vpop.f32.mrf.mxu0
        %v7672 = vadd.f32 %v6427, %v7671
        %7673 = vmatmul.bf16.gmra.mxu0 %v6266
        %v7674 = vpop.f32.mrf.mxu0
        %v7675 = vadd.f32 %v6427, %v7674
        %v7676 = vpop.f32.mrf.mxu0
        %v7677 = vadd.f32 %v6427, %v7676
        %7678 = vmatmul.bf16.gmra.mxu0 %v6270
        %v7679 = vpop.f32.mrf.mxu0
        %v7680 = vadd.f32 %v6427, %v7679
        %v7681 = vpop.f32.mrf.mxu0
        %v7682 = vadd.f32 %v6427, %v7681
        %7683 = vmatmul.bf16.gmra.mxu0 %v6274
        %v7684 = vpop.f32.mrf.mxu0
        %v7685 = vadd.f32 %v6427, %v7684
        %v7686 = vpop.f32.mrf.mxu0
        %v7687 = vadd.f32 %v6427, %v7686
        %7688 = vmatmul.bf16.gmra.mxu0 %v6278
        %v7689 = vpop.f32.mrf.mxu0
        %v7690 = vadd.f32 %v6427, %v7689
        %v7691 = vpop.f32.mrf.mxu0
        %v7692 = vadd.f32 %v6427, %v7691
        %7693 = vmatmul.bf16.gmra.mxu0 %v6282
        %v7694 = vpop.f32.mrf.mxu0
        %v7695 = vadd.f32 %v6427, %v7694
        %v7696 = vpop.f32.mrf.mxu0
        %v7697 = vadd.f32 %v6427, %v7696
        %7698 = vmatmul.bf16.gmra.mxu0 %v6286
        %v7699 = vpop.f32.mrf.mxu0
        %v7700 = vadd.f32 %v6427, %v7699
        %v7701 = vpop.f32.mrf.mxu0
        %v7702 = vadd.f32 %v6427, %v7701
        %7703 = vmatmul.bf16.gmra.mxu0 %v6290
        %v7704 = vpop.f32.mrf.mxu0
        %v7705 = vadd.f32 %v6427, %v7704
        %v7706 = vpop.f32.mrf.mxu0
        %v7707 = vadd.f32 %v6427, %v7706
        %7708 = vdwg.mxu0
        %7709 = vmatpush.bf16.msra.mxu0 %v6879
        %7710 = vmatpush.bf16.msra.mxu0 %v6875
        %7711 = vmatpush.bf16.msra.mxu0 %v6871
        %7712 = vmatpush.bf16.msra.mxu0 %v6867
        %7713 = vmatpush.bf16.msra.mxu0 %v6863
        %7714 = vmatpush.bf16.msra.mxu0 %v6859
        %7715 = vmatpush.bf16.msra.mxu0 %v6855
        %7716 = vmatpush.bf16.msra.mxu0 %v6851
        %7717 = vmatmul.bf16.gmra.mxu0 %v6263
        %v7718 = vpop.f32.mrf.mxu0
        %v7719 = vadd.f32 %v7670, %v7718
        %v7720 = vpop.f32.mrf.mxu0
        %v7721 = vadd.f32 %v7672, %v7720
        %7722 = vmatmul.bf16.gmra.mxu0 %v6267
        %v7723 = vpop.f32.mrf.mxu0
        %v7724 = vadd.f32 %v7675, %v7723
        %v7725 = vpop.f32.mrf.mxu0
        %v7726 = vadd.f32 %v7677, %v7725
        %7727 = vmatmul.bf16.gmra.mxu0 %v6271
        %v7728 = vpop.f32.mrf.mxu0
        %v7729 = vadd.f32 %v7680, %v7728
        %v7730 = vpop.f32.mrf.mxu0
        %v7731 = vadd.f32 %v7682, %v7730
        %7732 = vmatmul.bf16.gmra.mxu0 %v6275
        %v7733 = vpop.f32.mrf.mxu0
        %v7734 = vadd.f32 %v7685, %v7733
        %v7735 = vpop.f32.mrf.mxu0
        %v7736 = vadd.f32 %v7687, %v7735
        %7737 = vmatmul.bf16.gmra.mxu0 %v6279
        %v7738 = vpop.f32.mrf.mxu0
        %v7739 = vadd.f32 %v7690, %v7738
        %v7740 = vpop.f32.mrf.mxu0
        %v7741 = vadd.f32 %v7692, %v7740
        %7742 = vmatmul.bf16.gmra.mxu0 %v6283
        %v7743 = vpop.f32.mrf.mxu0
        %v7744 = vadd.f32 %v7695, %v7743
        %v7745 = vpop.f32.mrf.mxu0
        %v7746 = vadd.f32 %v7697, %v7745
        %7747 = vmatmul.bf16.gmra.mxu0 %v6287
        %v7748 = vpop.f32.mrf.mxu0
        %v7749 = vadd.f32 %v7700, %v7748
        %v7750 = vpop.f32.mrf.mxu0
        %v7751 = vadd.f32 %v7702, %v7750
        %7752 = vmatmul.bf16.gmra.mxu0 %v6291
        %v7753 = vpop.f32.mrf.mxu0
        %v7754 = vadd.f32 %v7705, %v7753
        %v7755 = vpop.f32.mrf.mxu0
        %v7756 = vadd.f32 %v7707, %v7755
        %7757 = vdwg.mxu0
        %7758 = vmatpush.bf16.msra.mxu0 %v6911
        %7759 = vmatpush.bf16.msra.mxu0 %v6907
        %7760 = vmatpush.bf16.msra.mxu0 %v6903
        %7761 = vmatpush.bf16.msra.mxu0 %v6899
        %7762 = vmatpush.bf16.msra.mxu0 %v6895
        %7763 = vmatpush.bf16.msra.mxu0 %v6891
        %7764 = vmatpush.bf16.msra.mxu0 %v6887
        %7765 = vmatpush.bf16.msra.mxu0 %v6883
        %7766 = vmatmul.bf16.gmra.mxu0 %v6264
        %v7767 = vpop.f32.mrf.mxu0
        %v7768 = vadd.f32 %v7719, %v7767
        %v7769 = vpop.f32.mrf.mxu0
        %v7770 = vadd.f32 %v7721, %v7769
        %7771 = vmatmul.bf16.gmra.mxu0 %v6268
        %v7772 = vpop.f32.mrf.mxu0
        %v7773 = vadd.f32 %v7724, %v7772
        %v7774 = vpop.f32.mrf.mxu0
        %v7775 = vadd.f32 %v7726, %v7774
        %7776 = vmatmul.bf16.gmra.mxu0 %v6272
        %v7777 = vpop.f32.mrf.mxu0
        %v7778 = vadd.f32 %v7729, %v7777
        %v7779 = vpop.f32.mrf.mxu0
        %v7780 = vadd.f32 %v7731, %v7779
        %7781 = vmatmul.bf16.gmra.mxu0 %v6276
        %v7782 = vpop.f32.mrf.mxu0
        %v7783 = vadd.f32 %v7734, %v7782
        %v7784 = vpop.f32.mrf.mxu0
        %v7785 = vadd.f32 %v7736, %v7784
        %7786 = vmatmul.bf16.gmra.mxu0 %v6280
        %v7787 = vpop.f32.mrf.mxu0
        %v7788 = vadd.f32 %v7739, %v7787
        %v7789 = vpop.f32.mrf.mxu0
        %v7790 = vadd.f32 %v7741, %v7789
        %7791 = vmatmul.bf16.gmra.mxu0 %v6284
        %v7792 = vpop.f32.mrf.mxu0
        %v7793 = vadd.f32 %v7744, %v7792
        %v7794 = vpop.f32.mrf.mxu0
        %v7795 = vadd.f32 %v7746, %v7794
        %7796 = vmatmul.bf16.gmra.mxu0 %v6288
        %v7797 = vpop.f32.mrf.mxu0
        %v7798 = vadd.f32 %v7749, %v7797
        %v7799 = vpop.f32.mrf.mxu0
        %v7800 = vadd.f32 %v7751, %v7799
        %7801 = vmatmul.bf16.gmra.mxu0 %v6292
        %v7802 = vpop.f32.mrf.mxu0
        %v7803 = vadd.f32 %v7754, %v7802
        %v7804 = vpop.f32.mrf.mxu0
        %v7805 = vadd.f32 %v7756, %v7804
        %7806 = vdwg.mxu0
        %7807 = vmatpush.bf16.msra.mxu0 %v6943
        %7808 = vmatpush.bf16.msra.mxu0 %v6939
        %7809 = vmatpush.bf16.msra.mxu0 %v6935
        %7810 = vmatpush.bf16.msra.mxu0 %v6931
        %7811 = vmatpush.bf16.msra.mxu0 %v6927
        %7812 = vmatpush.bf16.msra.mxu0 %v6923
        %7813 = vmatpush.bf16.msra.mxu0 %v6919
        %7814 = vmatpush.bf16.msra.mxu0 %v6915
        %7815 = vmatmul.bf16.gmra.mxu0 %v6265
        %v7816 = vpop.f32.mrf.mxu0
        %v7817 = vadd.f32 %v7768, %v7816
        %v7818 = vpop.f32.mrf.mxu0
        %v7819 = vadd.f32 %v7770, %v7818
        %7820 = vmatmul.bf16.gmra.mxu0 %v6269
        %v7821 = vpop.f32.mrf.mxu0
        %v7822 = vadd.f32 %v7773, %v7821
        %v7823 = vpop.f32.mrf.mxu0
        %v7824 = vadd.f32 %v7775, %v7823
        %7825 = vmatmul.bf16.gmra.mxu0 %v6273
        %v7826 = vpop.f32.mrf.mxu0
        %v7827 = vadd.f32 %v7778, %v7826
        %v7828 = vpop.f32.mrf.mxu0
        %v7829 = vadd.f32 %v7780, %v7828
        %7830 = vmatmul.bf16.gmra.mxu0 %v6277
        %v7831 = vpop.f32.mrf.mxu0
        %v7832 = vadd.f32 %v7783, %v7831
        %v7833 = vpop.f32.mrf.mxu0
        %v7834 = vadd.f32 %v7785, %v7833
        %7835 = vmatmul.bf16.gmra.mxu0 %v6281
        %v7836 = vpop.f32.mrf.mxu0
        %v7837 = vadd.f32 %v7788, %v7836
        %v7838 = vpop.f32.mrf.mxu0
        %v7839 = vadd.f32 %v7790, %v7838
        %7840 = vmatmul.bf16.gmra.mxu0 %v6285
        %v7841 = vpop.f32.mrf.mxu0
        %v7842 = vadd.f32 %v7793, %v7841
        %v7843 = vpop.f32.mrf.mxu0
        %v7844 = vadd.f32 %v7795, %v7843
        %7845 = vmatmul.bf16.gmra.mxu0 %v6289
        %v7846 = vpop.f32.mrf.mxu0
        %v7847 = vadd.f32 %v7798, %v7846
        %v7848 = vpop.f32.mrf.mxu0
        %v7849 = vadd.f32 %v7800, %v7848
        %7850 = vmatmul.bf16.gmra.mxu0 %v6293
        %v7851 = vpop.f32.mrf.mxu0
        %v7852 = vadd.f32 %v7803, %v7851
        %v7853 = vpop.f32.mrf.mxu0
        %v7854 = vadd.f32 %v7805, %v7853
        %7855 = vdwg.mxu0
        %v7856 = vmax.f32 %v7229, 0.0
        %v7857 = vmax.f32 %v7425, 0.0
        %v7858 = vmax.f32 %v7621, 0.0
        %v7859 = vmax.f32 %v7817, 0.0
        %v7860 = vmax.f32 %v7231, 0.0
        %v7861 = vmax.f32 %v7427, 0.0
        %v7862 = vmax.f32 %v7623, 0.0
        %v7863 = vmax.f32 %v7819, 0.0
        %v7864 = vmax.f32 %v7234, 0.0
        %v7865 = vmax.f32 %v7430, 0.0
        %v7866 = vmax.f32 %v7626, 0.0
        %v7867 = vmax.f32 %v7822, 0.0
        %v7868 = vmax.f32 %v7236, 0.0
        %v7869 = vmax.f32 %v7432, 0.0
        %v7870 = vmax.f32 %v7628, 0.0
        %v7871 = vmax.f32 %v7824, 0.0
        %v7872 = vmax.f32 %v7239, 0.0
        %v7873 = vmax.f32 %v7435, 0.0
        %v7874 = vmax.f32 %v7631, 0.0
        %v7875 = vmax.f32 %v7827, 0.0
        %v7876 = vmax.f32 %v7241, 0.0
        %v7877 = vmax.f32 %v7437, 0.0
        %v7878 = vmax.f32 %v7633, 0.0
        %v7879 = vmax.f32 %v7829, 0.0
        %v7880 = vmax.f32 %v7244, 0.0
        %v7881 = vmax.f32 %v7440, 0.0
        %v7882 = vmax.f32 %v7636, 0.0
        %v7883 = vmax.f32 %v7832, 0.0
        %v7884 = vmax.f32 %v7246, 0.0
        %v7885 = vmax.f32 %v7442, 0.0
        %v7886 = vmax.f32 %v7638, 0.0
        %v7887 = vmax.f32 %v7834, 0.0
        %v7888 = vmax.f32 %v7249, 0.0
        %v7889 = vmax.f32 %v7445, 0.0
        %v7890 = vmax.f32 %v7641, 0.0
        %v7891 = vmax.f32 %v7837, 0.0
        %v7892 = vmax.f32 %v7251, 0.0
        %v7893 = vmax.f32 %v7447, 0.0
        %v7894 = vmax.f32 %v7643, 0.0
        %v7895 = vmax.f32 %v7839, 0.0
        %v7896 = vmax.f32 %v7254, 0.0
        %v7897 = vmax.f32 %v7450, 0.0
        %v7898 = vmax.f32 %v7646, 0.0
        %v7899 = vmax.f32 %v7842, 0.0
        %v7900 = vmax.f32 %v7256, 0.0
        %v7901 = vmax.f32 %v7452, 0.0
        %v7902 = vmax.f32 %v7648, 0.0
        %v7903 = vmax.f32 %v7844, 0.0
        %v7904 = vmax.f32 %v7259, 0.0
        %v7905 = vmax.f32 %v7455, 0.0
        %v7906 = vmax.f32 %v7651, 0.0
        %v7907 = vmax.f32 %v7847, 0.0
        %v7908 = vmax.f32 %v7261, 0.0
        %v7909 = vmax.f32 %v7457, 0.0
        %v7910 = vmax.f32 %v7653, 0.0
        %v7911 = vmax.f32 %v7849, 0.0
        %v7912 = vmax.f32 %v7264, 0.0
        %v7913 = vmax.f32 %v7460, 0.0
        %v7914 = vmax.f32 %v7656, 0.0
        %v7915 = vmax.f32 %v7852, 0.0
        %v7916 = vmax.f32 %v7266, 0.0
        %v7917 = vmax.f32 %v7462, 0.0
        %v7918 = vmax.f32 %v7658, 0.0
        %v7919 = vmax.f32 %v7854, 0.0
        %v7920 = vpack.c.bf16 %v7860, %v7856
        %v7921 = vpack.c.bf16 %v7861, %v7857
        %v7922 = vpack.c.bf16 %v7862, %v7858
        %v7923 = vpack.c.bf16 %v7863, %v7859
        %v7924 = vpack.c.bf16 %v7868, %v7864
        %v7925 = vpack.c.bf16 %v7869, %v7865
        %v7926 = vpack.c.bf16 %v7870, %v7866
        %v7927 = vpack.c.bf16 %v7871, %v7867
        %v7928 = vpack.c.bf16 %v7876, %v7872
        %v7929 = vpack.c.bf16 %v7877, %v7873
        %v7930 = vpack.c.bf16 %v7878, %v7874
        %v7931 = vpack.c.bf16 %v7879, %v7875
        %v7932 = vpack.c.bf16 %v7884, %v7880
        %v7933 = vpack.c.bf16 %v7885, %v7881
        %v7934 = vpack.c.bf16 %v7886, %v7882
        %v7935 = vpack.c.bf16 %v7887, %v7883
        %v7936 = vpack.c.bf16 %v7892, %v7888
        %v7937 = vpack.c.bf16 %v7893, %v7889
        %v7938 = vpack.c.bf16 %v7894, %v7890
        %v7939 = vpack.c.bf16 %v7895, %v7891
        %v7940 = vpack.c.bf16 %v7900, %v7896
        %v7941 = vpack.c.bf16 %v7901, %v7897
        %v7942 = vpack.c.bf16 %v7902, %v7898
        %v7943 = vpack.c.bf16 %v7903, %v7899
        %v7944 = vpack.c.bf16 %v7908, %v7904
        %v7945 = vpack.c.bf16 %v7909, %v7905
        %v7946 = vpack.c.bf16 %v7910, %v7906
        %v7947 = vpack.c.bf16 %v7911, %v7907
        %v7948 = vpack.c.bf16 %v7916, %v7912
        %v7949 = vpack.c.bf16 %v7917, %v7913
        %v7950 = vpack.c.bf16 %v7918, %v7914
        %v7951 = vpack.c.bf16 %v7919, %v7915
        %v7952 = vld [vmem:[#allocation9] sm:$0xff]
        %v7953 = vld [vmem:[#allocation9 + $0x8] sm:$0xff]
        %v7954 = vld [vmem:[#allocation9 + $0x10] sm:$0xff]
        %v7955 = vld [vmem:[#allocation9 + $0x18] sm:$0xff]
        %v7956 = vld [vmem:[#allocation9 + $0x20] sm:$0xff]
        %v7957 = vld [vmem:[#allocation9 + $0x28] sm:$0xff]
        %v7958 = vld [vmem:[#allocation9 + $0x30] sm:$0xff]
        %v7959 = vld [vmem:[#allocation9 + $0x38] sm:$0xff]
        %v7960 = vld [vmem:[#allocation9 + $0x40] sm:$0xff]
        %v7961 = vld [vmem:[#allocation9 + $0x48] sm:$0xff]
        %v7962 = vld [vmem:[#allocation9 + $0x50] sm:$0xff]
        %v7963 = vld [vmem:[#allocation9 + $0x58] sm:$0xff]
        %v7964 = vld [vmem:[#allocation9 + $0x60] sm:$0xff]
        %v7965 = vld [vmem:[#allocation9 + $0x68] sm:$0xff]
        %v7966 = vld [vmem:[#allocation9 + $0x70] sm:$0xff]
        %v7967 = vld [vmem:[#allocation9 + $0x78] sm:$0xff]
        %v7968 = vld [vmem:[#allocation9 + $0x80] sm:$0xff]
        %v7969 = vld [vmem:[#allocation9 + $0x88] sm:$0xff]
        %v7970 = vld [vmem:[#allocation9 + $0x90] sm:$0xff]
        %v7971 = vld [vmem:[#allocation9 + $0x98] sm:$0xff]
        %v7972 = vld [vmem:[#allocation9 + $0xa0] sm:$0xff]
        %v7973 = vld [vmem:[#allocation9 + $0xa8] sm:$0xff]
        %v7974 = vld [vmem:[#allocation9 + $0xb0] sm:$0xff]
        %v7975 = vld [vmem:[#allocation9 + $0xb8] sm:$0xff]
        %v7976 = vld [vmem:[#allocation9 + $0xc0] sm:$0xff]
        %v7977 = vld [vmem:[#allocation9 + $0xc8] sm:$0xff]
        %v7978 = vld [vmem:[#allocation9 + $0xd0] sm:$0xff]
        %v7979 = vld [vmem:[#allocation9 + $0xd8] sm:$0xff]
        %v7980 = vld [vmem:[#allocation9 + $0xe0] sm:$0xff]
        %v7981 = vld [vmem:[#allocation9 + $0xe8] sm:$0xff]
        %v7982 = vld [vmem:[#allocation9 + $0xf0] sm:$0xff]
        %v7983 = vld [vmem:[#allocation9 + $0xf8] sm:$0xff]
        %v7984 = vld [vmem:[#allocation9 + $0x100] sm:$0xff]
        %v7985 = vld [vmem:[#allocation9 + $0x108] sm:$0xff]
        %v7986 = vld [vmem:[#allocation9 + $0x110] sm:$0xff]
        %v7987 = vld [vmem:[#allocation9 + $0x118] sm:$0xff]
        %v7988 = vld [vmem:[#allocation9 + $0x120] sm:$0xff]
        %v7989 = vld [vmem:[#allocation9 + $0x128] sm:$0xff]
        %v7990 = vld [vmem:[#allocation9 + $0x130] sm:$0xff]
        %v7991 = vld [vmem:[#allocation9 + $0x138] sm:$0xff]
        %v7992 = vld [vmem:[#allocation9 + $0x140] sm:$0xff]
        %v7993 = vld [vmem:[#allocation9 + $0x148] sm:$0xff]
        %v7994 = vld [vmem:[#allocation9 + $0x150] sm:$0xff]
        %v7995 = vld [vmem:[#allocation9 + $0x158] sm:$0xff]
        %v7996 = vld [vmem:[#allocation9 + $0x160] sm:$0xff]
        %v7997 = vld [vmem:[#allocation9 + $0x168] sm:$0xff]
        %v7998 = vld [vmem:[#allocation9 + $0x170] sm:$0xff]
        %v7999 = vld [vmem:[#allocation9 + $0x178] sm:$0xff]
        %v8000 = vld [vmem:[#allocation9 + $0x180] sm:$0xff]
        %v8001 = vld [vmem:[#allocation9 + $0x188] sm:$0xff]
        %v8002 = vld [vmem:[#allocation9 + $0x190] sm:$0xff]
        %v8003 = vld [vmem:[#allocation9 + $0x198] sm:$0xff]
        %v8004 = vld [vmem:[#allocation9 + $0x1a0] sm:$0xff]
        %v8005 = vld [vmem:[#allocation9 + $0x1a8] sm:$0xff]
        %v8006 = vld [vmem:[#allocation9 + $0x1b0] sm:$0xff]
        %v8007 = vld [vmem:[#allocation9 + $0x1b8] sm:$0xff]
        %v8008 = vld [vmem:[#allocation9 + $0x1c0] sm:$0xff]
        %v8009 = vld [vmem:[#allocation9 + $0x1c8] sm:$0xff]
        %v8010 = vld [vmem:[#allocation9 + $0x1d0] sm:$0xff]
        %v8011 = vld [vmem:[#allocation9 + $0x1d8] sm:$0xff]
        %v8012 = vld [vmem:[#allocation9 + $0x1e0] sm:$0xff]
        %v8013 = vld [vmem:[#allocation9 + $0x1e8] sm:$0xff]
        %v8014 = vld [vmem:[#allocation9 + $0x1f0] sm:$0xff]
        %v8015 = vld [vmem:[#allocation9 + $0x1f8] sm:$0xff]
        %v8016 = vld [vmem:[#allocation9 + $0x200] sm:$0xff]
        %v8017 = vld [vmem:[#allocation9 + $0x208] sm:$0xff]
        %v8018 = vld [vmem:[#allocation9 + $0x210] sm:$0xff]
        %v8019 = vld [vmem:[#allocation9 + $0x218] sm:$0xff]
        %v8020 = vld [vmem:[#allocation9 + $0x220] sm:$0xff]
        %v8021 = vld [vmem:[#allocation9 + $0x228] sm:$0xff]
        %v8022 = vld [vmem:[#allocation9 + $0x230] sm:$0xff]
        %v8023 = vld [vmem:[#allocation9 + $0x238] sm:$0xff]
        %v8024 = vld [vmem:[#allocation9 + $0x240] sm:$0xff]
        %v8025 = vld [vmem:[#allocation9 + $0x248] sm:$0xff]
        %v8026 = vld [vmem:[#allocation9 + $0x250] sm:$0xff]
        %v8027 = vld [vmem:[#allocation9 + $0x258] sm:$0xff]
        %v8028 = vld [vmem:[#allocation9 + $0x260] sm:$0xff]
        %v8029 = vld [vmem:[#allocation9 + $0x268] sm:$0xff]
        %v8030 = vld [vmem:[#allocation9 + $0x270] sm:$0xff]
        %v8031 = vld [vmem:[#allocation9 + $0x278] sm:$0xff]
        %v8032 = vld [vmem:[#allocation9 + $0x280] sm:$0xff]
        %v8033 = vld [vmem:[#allocation9 + $0x288] sm:$0xff]
        %v8034 = vld [vmem:[#allocation9 + $0x290] sm:$0xff]
        %v8035 = vld [vmem:[#allocation9 + $0x298] sm:$0xff]
        %v8036 = vld [vmem:[#allocation9 + $0x2a0] sm:$0xff]
        %v8037 = vld [vmem:[#allocation9 + $0x2a8] sm:$0xff]
        %v8038 = vld [vmem:[#allocation9 + $0x2b0] sm:$0xff]
        %v8039 = vld [vmem:[#allocation9 + $0x2b8] sm:$0xff]
        %v8040 = vld [vmem:[#allocation9 + $0x2c0] sm:$0xff]
        %v8041 = vld [vmem:[#allocation9 + $0x2c8] sm:$0xff]
        %v8042 = vld [vmem:[#allocation9 + $0x2d0] sm:$0xff]
        %v8043 = vld [vmem:[#allocation9 + $0x2d8] sm:$0xff]
        %v8044 = vld [vmem:[#allocation9 + $0x2e0] sm:$0xff]
        %v8045 = vld [vmem:[#allocation9 + $0x2e8] sm:$0xff]
        %v8046 = vld [vmem:[#allocation9 + $0x2f0] sm:$0xff]
        %v8047 = vld [vmem:[#allocation9 + $0x2f8] sm:$0xff]
        %v8048 = vld [vmem:[#allocation9 + $0x300] sm:$0xff]
        %v8049 = vld [vmem:[#allocation9 + $0x308] sm:$0xff]
        %v8050 = vld [vmem:[#allocation9 + $0x310] sm:$0xff]
        %v8051 = vld [vmem:[#allocation9 + $0x318] sm:$0xff]
        %v8052 = vld [vmem:[#allocation9 + $0x320] sm:$0xff]
        %v8053 = vld [vmem:[#allocation9 + $0x328] sm:$0xff]
        %v8054 = vld [vmem:[#allocation9 + $0x330] sm:$0xff]
        %v8055 = vld [vmem:[#allocation9 + $0x338] sm:$0xff]
        %v8056 = vld [vmem:[#allocation9 + $0x340] sm:$0xff]
        %v8057 = vld [vmem:[#allocation9 + $0x348] sm:$0xff]
        %v8058 = vld [vmem:[#allocation9 + $0x350] sm:$0xff]
        %v8059 = vld [vmem:[#allocation9 + $0x358] sm:$0xff]
        %v8060 = vld [vmem:[#allocation9 + $0x360] sm:$0xff]
        %v8061 = vld [vmem:[#allocation9 + $0x368] sm:$0xff]
        %v8062 = vld [vmem:[#allocation9 + $0x370] sm:$0xff]
        %v8063 = vld [vmem:[#allocation9 + $0x378] sm:$0xff]
        %v8064 = vld [vmem:[#allocation9 + $0x380] sm:$0xff]
        %v8065 = vld [vmem:[#allocation9 + $0x388] sm:$0xff]
        %v8066 = vld [vmem:[#allocation9 + $0x390] sm:$0xff]
        %v8067 = vld [vmem:[#allocation9 + $0x398] sm:$0xff]
        %v8068 = vld [vmem:[#allocation9 + $0x3a0] sm:$0xff]
        %v8069 = vld [vmem:[#allocation9 + $0x3a8] sm:$0xff]
        %v8070 = vld [vmem:[#allocation9 + $0x3b0] sm:$0xff]
        %v8071 = vld [vmem:[#allocation9 + $0x3b8] sm:$0xff]
        %v8072 = vld [vmem:[#allocation9 + $0x3c0] sm:$0xff]
        %v8073 = vld [vmem:[#allocation9 + $0x3c8] sm:$0xff]
        %v8074 = vld [vmem:[#allocation9 + $0x3d0] sm:$0xff]
        %v8075 = vld [vmem:[#allocation9 + $0x3d8] sm:$0xff]
        %v8076 = vld [vmem:[#allocation9 + $0x3e0] sm:$0xff]
        %v8077 = vld [vmem:[#allocation9 + $0x3e8] sm:$0xff]
        %v8078 = vld [vmem:[#allocation9 + $0x3f0] sm:$0xff]
        %v8079 = vld [vmem:[#allocation9 + $0x3f8] sm:$0xff]
        %v8080 = vld [vmem:[%s13] sm:$0xf]
        %v8082 = vperm.slane %v8080, 0
        %v8083 = vperm.slane %v8080, 1
        %v8084 = vperm.slane %v8080, 2
        %v8085 = vperm.slane %v8080, 3
        %v8218 = vunpack.c.l.b16 %v7952
        %v8219 = vunpack.c.h.b16 %v7952
        %v8220 = vunpack.c.l.b16 %v7953
        %v8221 = vunpack.c.h.b16 %v7953
        %v8222 = vunpack.c.l.b16 %v7954
        %v8223 = vunpack.c.h.b16 %v7954
        %v8224 = vunpack.c.l.b16 %v7955
        %v8225 = vunpack.c.h.b16 %v7955
        %v8226 = vunpack.c.l.b16 %v7956
        %v8227 = vunpack.c.h.b16 %v7956
        %v8228 = vunpack.c.l.b16 %v7957
        %v8229 = vunpack.c.h.b16 %v7957
        %v8230 = vunpack.c.l.b16 %v7958
        %v8231 = vunpack.c.h.b16 %v7958
        %v8232 = vunpack.c.l.b16 %v7959
        %v8233 = vunpack.c.h.b16 %v7959
        %v8234 = vunpack.c.l.b16 %v7960
        %v8235 = vunpack.c.h.b16 %v7960
        %v8236 = vunpack.c.l.b16 %v7961
        %v8237 = vunpack.c.h.b16 %v7961
        %v8238 = vunpack.c.l.b16 %v7962
        %v8239 = vunpack.c.h.b16 %v7962
        %v8240 = vunpack.c.l.b16 %v7963
        %v8241 = vunpack.c.h.b16 %v7963
        %v8242 = vunpack.c.l.b16 %v7964
        %v8243 = vunpack.c.h.b16 %v7964
        %v8244 = vunpack.c.l.b16 %v7965
        %v8245 = vunpack.c.h.b16 %v7965
        %v8246 = vunpack.c.l.b16 %v7966
        %v8247 = vunpack.c.h.b16 %v7966
        %v8248 = vunpack.c.l.b16 %v7967
        %v8249 = vunpack.c.h.b16 %v7967
        %v8250 = vunpack.c.l.b16 %v7968
        %v8251 = vunpack.c.h.b16 %v7968
        %v8252 = vunpack.c.l.b16 %v7969
        %v8253 = vunpack.c.h.b16 %v7969
        %v8254 = vunpack.c.l.b16 %v7970
        %v8255 = vunpack.c.h.b16 %v7970
        %v8256 = vunpack.c.l.b16 %v7971
        %v8257 = vunpack.c.h.b16 %v7971
        %v8258 = vunpack.c.l.b16 %v7972
        %v8259 = vunpack.c.h.b16 %v7972
        %v8260 = vunpack.c.l.b16 %v7973
        %v8261 = vunpack.c.h.b16 %v7973
        %v8262 = vunpack.c.l.b16 %v7974
        %v8263 = vunpack.c.h.b16 %v7974
        %v8264 = vunpack.c.l.b16 %v7975
        %v8265 = vunpack.c.h.b16 %v7975
        %v8266 = vunpack.c.l.b16 %v7976
        %v8267 = vunpack.c.h.b16 %v7976
        %v8268 = vunpack.c.l.b16 %v7977
        %v8269 = vunpack.c.h.b16 %v7977
        %v8270 = vunpack.c.l.b16 %v7978
        %v8271 = vunpack.c.h.b16 %v7978
        %v8272 = vunpack.c.l.b16 %v7979
        %v8273 = vunpack.c.h.b16 %v7979
        %v8274 = vunpack.c.l.b16 %v7980
        %v8275 = vunpack.c.h.b16 %v7980
        %v8276 = vunpack.c.l.b16 %v7981
        %v8277 = vunpack.c.h.b16 %v7981
        %v8278 = vunpack.c.l.b16 %v7982
        %v8279 = vunpack.c.h.b16 %v7982
        %v8280 = vunpack.c.l.b16 %v7983
        %v8281 = vunpack.c.h.b16 %v7983
        %v8282 = vunpack.c.l.b16 %v7984
        %v8283 = vunpack.c.h.b16 %v7984
        %v8284 = vunpack.c.l.b16 %v7985
        %v8285 = vunpack.c.h.b16 %v7985
        %v8286 = vunpack.c.l.b16 %v7986
        %v8287 = vunpack.c.h.b16 %v7986
        %v8288 = vunpack.c.l.b16 %v7987
        %v8289 = vunpack.c.h.b16 %v7987
        %v8290 = vunpack.c.l.b16 %v7988
        %v8291 = vunpack.c.h.b16 %v7988
        %v8292 = vunpack.c.l.b16 %v7989
        %v8293 = vunpack.c.h.b16 %v7989
        %v8294 = vunpack.c.l.b16 %v7990
        %v8295 = vunpack.c.h.b16 %v7990
        %v8296 = vunpack.c.l.b16 %v7991
        %v8297 = vunpack.c.h.b16 %v7991
        %v8298 = vunpack.c.l.b16 %v7992
        %v8299 = vunpack.c.h.b16 %v7992
        %v8300 = vunpack.c.l.b16 %v7993
        %v8301 = vunpack.c.h.b16 %v7993
        %v8302 = vunpack.c.l.b16 %v7994
        %v8303 = vunpack.c.h.b16 %v7994
        %v8304 = vunpack.c.l.b16 %v7995
        %v8305 = vunpack.c.h.b16 %v7995
        %v8306 = vunpack.c.l.b16 %v7996
        %v8307 = vunpack.c.h.b16 %v7996
        %v8308 = vunpack.c.l.b16 %v7997
        %v8309 = vunpack.c.h.b16 %v7997
        %v8310 = vunpack.c.l.b16 %v7998
        %v8311 = vunpack.c.h.b16 %v7998
        %v8312 = vunpack.c.l.b16 %v7999
        %v8313 = vunpack.c.h.b16 %v7999
        %v8314 = vunpack.c.l.b16 %v8000
        %v8315 = vunpack.c.h.b16 %v8000
        %v8316 = vunpack.c.l.b16 %v8001
        %v8317 = vunpack.c.h.b16 %v8001
        %v8318 = vunpack.c.l.b16 %v8002
        %v8319 = vunpack.c.h.b16 %v8002
        %v8320 = vunpack.c.l.b16 %v8003
        %v8321 = vunpack.c.h.b16 %v8003
        %v8322 = vunpack.c.l.b16 %v8004
        %v8323 = vunpack.c.h.b16 %v8004
        %v8324 = vunpack.c.l.b16 %v8005
        %v8325 = vunpack.c.h.b16 %v8005
        %v8326 = vunpack.c.l.b16 %v8006
        %v8327 = vunpack.c.h.b16 %v8006
        %v8328 = vunpack.c.l.b16 %v8007
        %v8329 = vunpack.c.h.b16 %v8007
        %v8330 = vunpack.c.l.b16 %v8008
        %v8331 = vunpack.c.h.b16 %v8008
        %v8332 = vunpack.c.l.b16 %v8009
        %v8333 = vunpack.c.h.b16 %v8009
        %v8334 = vunpack.c.l.b16 %v8010
        %v8335 = vunpack.c.h.b16 %v8010
        %v8336 = vunpack.c.l.b16 %v8011
        %v8337 = vunpack.c.h.b16 %v8011
        %v8338 = vunpack.c.l.b16 %v8012
        %v8339 = vunpack.c.h.b16 %v8012
        %v8340 = vunpack.c.l.b16 %v8013
        %v8341 = vunpack.c.h.b16 %v8013
        %v8342 = vunpack.c.l.b16 %v8014
        %v8343 = vunpack.c.h.b16 %v8014
        %v8344 = vunpack.c.l.b16 %v8015
        %v8345 = vunpack.c.h.b16 %v8015
        %v8346 = vunpack.c.l.b16 %v8016
        %v8347 = vunpack.c.h.b16 %v8016
        %v8348 = vunpack.c.l.b16 %v8017
        %v8349 = vunpack.c.h.b16 %v8017
        %v8350 = vunpack.c.l.b16 %v8018
        %v8351 = vunpack.c.h.b16 %v8018
        %v8352 = vunpack.c.l.b16 %v8019
        %v8353 = vunpack.c.h.b16 %v8019
        %v8354 = vunpack.c.l.b16 %v8020
        %v8355 = vunpack.c.h.b16 %v8020
        %v8356 = vunpack.c.l.b16 %v8021
        %v8357 = vunpack.c.h.b16 %v8021
        %v8358 = vunpack.c.l.b16 %v8022
        %v8359 = vunpack.c.h.b16 %v8022
        %v8360 = vunpack.c.l.b16 %v8023
        %v8361 = vunpack.c.h.b16 %v8023
        %v8362 = vunpack.c.l.b16 %v8024
        %v8363 = vunpack.c.h.b16 %v8024
        %v8364 = vunpack.c.l.b16 %v8025
        %v8365 = vunpack.c.h.b16 %v8025
        %v8366 = vunpack.c.l.b16 %v8026
        %v8367 = vunpack.c.h.b16 %v8026
        %v8368 = vunpack.c.l.b16 %v8027
        %v8369 = vunpack.c.h.b16 %v8027
        %v8370 = vunpack.c.l.b16 %v8028
        %v8371 = vunpack.c.h.b16 %v8028
        %v8372 = vunpack.c.l.b16 %v8029
        %v8373 = vunpack.c.h.b16 %v8029
        %v8374 = vunpack.c.l.b16 %v8030
        %v8375 = vunpack.c.h.b16 %v8030
        %v8376 = vunpack.c.l.b16 %v8031
        %v8377 = vunpack.c.h.b16 %v8031
        %v8378 = vunpack.c.l.b16 %v8032
        %v8379 = vunpack.c.h.b16 %v8032
        %v8380 = vunpack.c.l.b16 %v8033
        %v8381 = vunpack.c.h.b16 %v8033
        %v8382 = vunpack.c.l.b16 %v8034
        %v8383 = vunpack.c.h.b16 %v8034
        %v8384 = vunpack.c.l.b16 %v8035
        %v8385 = vunpack.c.h.b16 %v8035
        %v8386 = vunpack.c.l.b16 %v8036
        %v8387 = vunpack.c.h.b16 %v8036
        %v8388 = vunpack.c.l.b16 %v8037
        %v8389 = vunpack.c.h.b16 %v8037
        %v8390 = vunpack.c.l.b16 %v8038
        %v8391 = vunpack.c.h.b16 %v8038
        %v8392 = vunpack.c.l.b16 %v8039
        %v8393 = vunpack.c.h.b16 %v8039
        %v8394 = vunpack.c.l.b16 %v8040
        %v8395 = vunpack.c.h.b16 %v8040
        %v8396 = vunpack.c.l.b16 %v8041
        %v8397 = vunpack.c.h.b16 %v8041
        %v8398 = vunpack.c.l.b16 %v8042
        %v8399 = vunpack.c.h.b16 %v8042
        %v8400 = vunpack.c.l.b16 %v8043
        %v8401 = vunpack.c.h.b16 %v8043
        %v8402 = vunpack.c.l.b16 %v8044
        %v8403 = vunpack.c.h.b16 %v8044
        %v8404 = vunpack.c.l.b16 %v8045
        %v8405 = vunpack.c.h.b16 %v8045
        %v8406 = vunpack.c.l.b16 %v8046
        %v8407 = vunpack.c.h.b16 %v8046
        %v8408 = vunpack.c.l.b16 %v8047
        %v8409 = vunpack.c.h.b16 %v8047
        %v8410 = vunpack.c.l.b16 %v8048
        %v8411 = vunpack.c.h.b16 %v8048
        %v8412 = vunpack.c.l.b16 %v8049
        %v8413 = vunpack.c.h.b16 %v8049
        %v8414 = vunpack.c.l.b16 %v8050
        %v8415 = vunpack.c.h.b16 %v8050
        %v8416 = vunpack.c.l.b16 %v8051
        %v8417 = vunpack.c.h.b16 %v8051
        %v8418 = vunpack.c.l.b16 %v8052
        %v8419 = vunpack.c.h.b16 %v8052
        %v8420 = vunpack.c.l.b16 %v8053
        %v8421 = vunpack.c.h.b16 %v8053
        %v8422 = vunpack.c.l.b16 %v8054
        %v8423 = vunpack.c.h.b16 %v8054
        %v8424 = vunpack.c.l.b16 %v8055
        %v8425 = vunpack.c.h.b16 %v8055
        %v8426 = vunpack.c.l.b16 %v8056
        %v8427 = vunpack.c.h.b16 %v8056
        %v8428 = vunpack.c.l.b16 %v8057
        %v8429 = vunpack.c.h.b16 %v8057
        %v8430 = vunpack.c.l.b16 %v8058
        %v8431 = vunpack.c.h.b16 %v8058
        %v8432 = vunpack.c.l.b16 %v8059
        %v8433 = vunpack.c.h.b16 %v8059
        %v8434 = vunpack.c.l.b16 %v8060
        %v8435 = vunpack.c.h.b16 %v8060
        %v8436 = vunpack.c.l.b16 %v8061
        %v8437 = vunpack.c.h.b16 %v8061
        %v8438 = vunpack.c.l.b16 %v8062
        %v8439 = vunpack.c.h.b16 %v8062
        %v8440 = vunpack.c.l.b16 %v8063
        %v8441 = vunpack.c.h.b16 %v8063
        %v8442 = vunpack.c.l.b16 %v8064
        %v8443 = vunpack.c.h.b16 %v8064
        %v8444 = vunpack.c.l.b16 %v8065
        %v8445 = vunpack.c.h.b16 %v8065
        %v8446 = vunpack.c.l.b16 %v8066
        %v8447 = vunpack.c.h.b16 %v8066
        %v8448 = vunpack.c.l.b16 %v8067
        %v8449 = vunpack.c.h.b16 %v8067
        %v8450 = vunpack.c.l.b16 %v8068
        %v8451 = vunpack.c.h.b16 %v8068
        %v8452 = vunpack.c.l.b16 %v8069
        %v8453 = vunpack.c.h.b16 %v8069
        %v8454 = vunpack.c.l.b16 %v8070
        %v8455 = vunpack.c.h.b16 %v8070
        %v8456 = vunpack.c.l.b16 %v8071
        %v8457 = vunpack.c.h.b16 %v8071
        %v8458 = vunpack.c.l.b16 %v8072
        %v8459 = vunpack.c.h.b16 %v8072
        %v8460 = vunpack.c.l.b16 %v8073
        %v8461 = vunpack.c.h.b16 %v8073
        %v8462 = vunpack.c.l.b16 %v8074
        %v8463 = vunpack.c.h.b16 %v8074
        %v8464 = vunpack.c.l.b16 %v8075
        %v8465 = vunpack.c.h.b16 %v8075
        %v8466 = vunpack.c.l.b16 %v8076
        %v8467 = vunpack.c.h.b16 %v8076
        %v8468 = vunpack.c.l.b16 %v8077
        %v8469 = vunpack.c.h.b16 %v8077
        %v8470 = vunpack.c.l.b16 %v8078
        %v8471 = vunpack.c.h.b16 %v8078
        %v8472 = vunpack.c.l.b16 %v8079
        %v8473 = vunpack.c.h.b16 %v8079
        %v8474 = vpack.c.b16 %v8222, %v8218
        %v8475 = vpack.c.b16 %v8223, %v8219
        %v8476 = vpack.c.b16 %v8224, %v8220
        %v8477 = vpack.c.b16 %v8225, %v8221
        %v8478 = vpack.c.b16 %v8230, %v8226
        %v8479 = vpack.c.b16 %v8231, %v8227
        %v8480 = vpack.c.b16 %v8232, %v8228
        %v8481 = vpack.c.b16 %v8233, %v8229
        %v8482 = vpack.c.b16 %v8238, %v8234
        %v8483 = vpack.c.b16 %v8239, %v8235
        %v8484 = vpack.c.b16 %v8240, %v8236
        %v8485 = vpack.c.b16 %v8241, %v8237
        %v8486 = vpack.c.b16 %v8246, %v8242
        %v8487 = vpack.c.b16 %v8247, %v8243
        %v8488 = vpack.c.b16 %v8248, %v8244
        %v8489 = vpack.c.b16 %v8249, %v8245
        %v8490 = vpack.c.b16 %v8254, %v8250
        %v8491 = vpack.c.b16 %v8255, %v8251
        %v8492 = vpack.c.b16 %v8256, %v8252
        %v8493 = vpack.c.b16 %v8257, %v8253
        %v8494 = vpack.c.b16 %v8262, %v8258
        %v8495 = vpack.c.b16 %v8263, %v8259
        %v8496 = vpack.c.b16 %v8264, %v8260
        %v8497 = vpack.c.b16 %v8265, %v8261
        %v8498 = vpack.c.b16 %v8270, %v8266
        %v8499 = vpack.c.b16 %v8271, %v8267
        %v8500 = vpack.c.b16 %v8272, %v8268
        %v8501 = vpack.c.b16 %v8273, %v8269
        %v8502 = vpack.c.b16 %v8278, %v8274
        %v8503 = vpack.c.b16 %v8279, %v8275
        %v8504 = vpack.c.b16 %v8280, %v8276
        %v8505 = vpack.c.b16 %v8281, %v8277
        %v8506 = vpack.c.b16 %v8286, %v8282
        %v8507 = vpack.c.b16 %v8287, %v8283
        %v8508 = vpack.c.b16 %v8288, %v8284
        %v8509 = vpack.c.b16 %v8289, %v8285
        %v8510 = vpack.c.b16 %v8294, %v8290
        %v8511 = vpack.c.b16 %v8295, %v8291
        %v8512 = vpack.c.b16 %v8296, %v8292
        %v8513 = vpack.c.b16 %v8297, %v8293
        %v8514 = vpack.c.b16 %v8302, %v8298
        %v8515 = vpack.c.b16 %v8303, %v8299
        %v8516 = vpack.c.b16 %v8304, %v8300
        %v8517 = vpack.c.b16 %v8305, %v8301
        %v8518 = vpack.c.b16 %v8310, %v8306
        %v8519 = vpack.c.b16 %v8311, %v8307
        %v8520 = vpack.c.b16 %v8312, %v8308
        %v8521 = vpack.c.b16 %v8313, %v8309
        %v8522 = vpack.c.b16 %v8318, %v8314
        %v8523 = vpack.c.b16 %v8319, %v8315
        %v8524 = vpack.c.b16 %v8320, %v8316
        %v8525 = vpack.c.b16 %v8321, %v8317
        %v8526 = vpack.c.b16 %v8326, %v8322
        %v8527 = vpack.c.b16 %v8327, %v8323
        %v8528 = vpack.c.b16 %v8328, %v8324
        %v8529 = vpack.c.b16 %v8329, %v8325
        %v8530 = vpack.c.b16 %v8334, %v8330
        %v8531 = vpack.c.b16 %v8335, %v8331
        %v8532 = vpack.c.b16 %v8336, %v8332
        %v8533 = vpack.c.b16 %v8337, %v8333
        %v8534 = vpack.c.b16 %v8342, %v8338
        %v8535 = vpack.c.b16 %v8343, %v8339
        %v8536 = vpack.c.b16 %v8344, %v8340
        %v8537 = vpack.c.b16 %v8345, %v8341
        %v8538 = vpack.c.b16 %v8350, %v8346
        %v8539 = vpack.c.b16 %v8351, %v8347
        %v8540 = vpack.c.b16 %v8352, %v8348
        %v8541 = vpack.c.b16 %v8353, %v8349
        %v8542 = vpack.c.b16 %v8358, %v8354
        %v8543 = vpack.c.b16 %v8359, %v8355
        %v8544 = vpack.c.b16 %v8360, %v8356
        %v8545 = vpack.c.b16 %v8361, %v8357
        %v8546 = vpack.c.b16 %v8366, %v8362
        %v8547 = vpack.c.b16 %v8367, %v8363
        %v8548 = vpack.c.b16 %v8368, %v8364
        %v8549 = vpack.c.b16 %v8369, %v8365
        %v8550 = vpack.c.b16 %v8374, %v8370
        %v8551 = vpack.c.b16 %v8375, %v8371
        %v8552 = vpack.c.b16 %v8376, %v8372
        %v8553 = vpack.c.b16 %v8377, %v8373
        %v8554 = vpack.c.b16 %v8382, %v8378
        %v8555 = vpack.c.b16 %v8383, %v8379
        %v8556 = vpack.c.b16 %v8384, %v8380
        %v8557 = vpack.c.b16 %v8385, %v8381
        %v8558 = vpack.c.b16 %v8390, %v8386
        %v8559 = vpack.c.b16 %v8391, %v8387
        %v8560 = vpack.c.b16 %v8392, %v8388
        %v8561 = vpack.c.b16 %v8393, %v8389
        %v8562 = vpack.c.b16 %v8398, %v8394
        %v8563 = vpack.c.b16 %v8399, %v8395
        %v8564 = vpack.c.b16 %v8400, %v8396
        %v8565 = vpack.c.b16 %v8401, %v8397
        %v8566 = vpack.c.b16 %v8406, %v8402
        %v8567 = vpack.c.b16 %v8407, %v8403
        %v8568 = vpack.c.b16 %v8408, %v8404
        %v8569 = vpack.c.b16 %v8409, %v8405
        %v8570 = vpack.c.b16 %v8414, %v8410
        %v8571 = vpack.c.b16 %v8415, %v8411
        %v8572 = vpack.c.b16 %v8416, %v8412
        %v8573 = vpack.c.b16 %v8417, %v8413
        %v8574 = vpack.c.b16 %v8422, %v8418
        %v8575 = vpack.c.b16 %v8423, %v8419
        %v8576 = vpack.c.b16 %v8424, %v8420
        %v8577 = vpack.c.b16 %v8425, %v8421
        %v8578 = vpack.c.b16 %v8430, %v8426
        %v8579 = vpack.c.b16 %v8431, %v8427
        %v8580 = vpack.c.b16 %v8432, %v8428
        %v8581 = vpack.c.b16 %v8433, %v8429
        %v8582 = vpack.c.b16 %v8438, %v8434
        %v8583 = vpack.c.b16 %v8439, %v8435
        %v8584 = vpack.c.b16 %v8440, %v8436
        %v8585 = vpack.c.b16 %v8441, %v8437
        %v8586 = vpack.c.b16 %v8446, %v8442
        %v8587 = vpack.c.b16 %v8447, %v8443
        %v8588 = vpack.c.b16 %v8448, %v8444
        %v8589 = vpack.c.b16 %v8449, %v8445
        %v8590 = vpack.c.b16 %v8454, %v8450
        %v8591 = vpack.c.b16 %v8455, %v8451
        %v8592 = vpack.c.b16 %v8456, %v8452
        %v8593 = vpack.c.b16 %v8457, %v8453
        %v8594 = vpack.c.b16 %v8462, %v8458
        %v8595 = vpack.c.b16 %v8463, %v8459
        %v8596 = vpack.c.b16 %v8464, %v8460
        %v8597 = vpack.c.b16 %v8465, %v8461
        %v8598 = vpack.c.b16 %v8470, %v8466
        %v8599 = vpack.c.b16 %v8471, %v8467
        %v8600 = vpack.c.b16 %v8472, %v8468
        %v8601 = vpack.c.b16 %v8473, %v8469
        %8730 = vmatpush.bf16.msra.mxu0 %v8502
        %8731 = vmatpush.bf16.msra.mxu0 %v8498
        %8732 = vmatpush.bf16.msra.mxu0 %v8494
        %8733 = vmatpush.bf16.msra.mxu0 %v8490
        %8734 = vmatpush.bf16.msra.mxu0 %v8486
        %8735 = vmatpush.bf16.msra.mxu0 %v8482
        %8736 = vmatpush.bf16.msra.mxu0 %v8478
        %8737 = vmatpush.bf16.msra.mxu0 %v8474
        %8738 = vmatmul.bf16.gmra.mxu0 %v7920
        %v8739 = vpop.f32.mrf.mxu0
        %v8740 = vadd.f32 %v8082, %v8739
        %v8741 = vpop.f32.mrf.mxu0
        %v8742 = vadd.f32 %v8082, %v8741
        %8743 = vmatmul.bf16.gmra.mxu0 %v7924
        %v8744 = vpop.f32.mrf.mxu0
        %v8745 = vadd.f32 %v8082, %v8744
        %v8746 = vpop.f32.mrf.mxu0
        %v8747 = vadd.f32 %v8082, %v8746
        %8748 = vmatmul.bf16.gmra.mxu0 %v7928
        %v8749 = vpop.f32.mrf.mxu0
        %v8750 = vadd.f32 %v8082, %v8749
        %v8751 = vpop.f32.mrf.mxu0
        %v8752 = vadd.f32 %v8082, %v8751
        %8753 = vmatmul.bf16.gmra.mxu0 %v7932
        %v8754 = vpop.f32.mrf.mxu0
        %v8755 = vadd.f32 %v8082, %v8754
        %v8756 = vpop.f32.mrf.mxu0
        %v8757 = vadd.f32 %v8082, %v8756
        %8758 = vmatmul.bf16.gmra.mxu0 %v7936
        %v8759 = vpop.f32.mrf.mxu0
        %v8760 = vadd.f32 %v8082, %v8759
        %v8761 = vpop.f32.mrf.mxu0
        %v8762 = vadd.f32 %v8082, %v8761
        %8763 = vmatmul.bf16.gmra.mxu0 %v7940
        %v8764 = vpop.f32.mrf.mxu0
        %v8765 = vadd.f32 %v8082, %v8764
        %v8766 = vpop.f32.mrf.mxu0
        %v8767 = vadd.f32 %v8082, %v8766
        %8768 = vmatmul.bf16.gmra.mxu0 %v7944
        %v8769 = vpop.f32.mrf.mxu0
        %v8770 = vadd.f32 %v8082, %v8769
        %v8771 = vpop.f32.mrf.mxu0
        %v8772 = vadd.f32 %v8082, %v8771
        %8773 = vmatmul.bf16.gmra.mxu0 %v7948
        %v8774 = vpop.f32.mrf.mxu0
        %v8775 = vadd.f32 %v8082, %v8774
        %v8776 = vpop.f32.mrf.mxu0
        %v8777 = vadd.f32 %v8082, %v8776
        %8778 = vdwg.mxu0
        %8779 = vmatpush.bf16.msra.mxu0 %v8534
        %8780 = vmatpush.bf16.msra.mxu0 %v8530
        %8781 = vmatpush.bf16.msra.mxu0 %v8526
        %8782 = vmatpush.bf16.msra.mxu0 %v8522
        %8783 = vmatpush.bf16.msra.mxu0 %v8518
        %8784 = vmatpush.bf16.msra.mxu0 %v8514
        %8785 = vmatpush.bf16.msra.mxu0 %v8510
        %8786 = vmatpush.bf16.msra.mxu0 %v8506
        %8787 = vmatmul.bf16.gmra.mxu0 %v7921
        %v8788 = vpop.f32.mrf.mxu0
        %v8789 = vadd.f32 %v8740, %v8788
        %v8790 = vpop.f32.mrf.mxu0
        %v8791 = vadd.f32 %v8742, %v8790
        %8792 = vmatmul.bf16.gmra.mxu0 %v7925
        %v8793 = vpop.f32.mrf.mxu0
        %v8794 = vadd.f32 %v8745, %v8793
        %v8795 = vpop.f32.mrf.mxu0
        %v8796 = vadd.f32 %v8747, %v8795
        %8797 = vmatmul.bf16.gmra.mxu0 %v7929
        %v8798 = vpop.f32.mrf.mxu0
        %v8799 = vadd.f32 %v8750, %v8798
        %v8800 = vpop.f32.mrf.mxu0
        %v8801 = vadd.f32 %v8752, %v8800
        %8802 = vmatmul.bf16.gmra.mxu0 %v7933
        %v8803 = vpop.f32.mrf.mxu0
        %v8804 = vadd.f32 %v8755, %v8803
        %v8805 = vpop.f32.mrf.mxu0
        %v8806 = vadd.f32 %v8757, %v8805
        %8807 = vmatmul.bf16.gmra.mxu0 %v7937
        %v8808 = vpop.f32.mrf.mxu0
        %v8809 = vadd.f32 %v8760, %v8808
        %v8810 = vpop.f32.mrf.mxu0
        %v8811 = vadd.f32 %v8762, %v8810
        %8812 = vmatmul.bf16.gmra.mxu0 %v7941
        %v8813 = vpop.f32.mrf.mxu0
        %v8814 = vadd.f32 %v8765, %v8813
        %v8815 = vpop.f32.mrf.mxu0
        %v8816 = vadd.f32 %v8767, %v8815
        %8817 = vmatmul.bf16.gmra.mxu0 %v7945
        %v8818 = vpop.f32.mrf.mxu0
        %v8819 = vadd.f32 %v8770, %v8818
        %v8820 = vpop.f32.mrf.mxu0
        %v8821 = vadd.f32 %v8772, %v8820
        %8822 = vmatmul.bf16.gmra.mxu0 %v7949
        %v8823 = vpop.f32.mrf.mxu0
        %v8824 = vadd.f32 %v8775, %v8823
        %v8825 = vpop.f32.mrf.mxu0
        %v8826 = vadd.f32 %v8777, %v8825
        %8827 = vdwg.mxu0
        %8828 = vmatpush.bf16.msra.mxu0 %v8566
        %8829 = vmatpush.bf16.msra.mxu0 %v8562
        %8830 = vmatpush.bf16.msra.mxu0 %v8558
        %8831 = vmatpush.bf16.msra.mxu0 %v8554
        %8832 = vmatpush.bf16.msra.mxu0 %v8550
        %8833 = vmatpush.bf16.msra.mxu0 %v8546
        %8834 = vmatpush.bf16.msra.mxu0 %v8542
        %8835 = vmatpush.bf16.msra.mxu0 %v8538
        %8836 = vmatmul.bf16.gmra.mxu0 %v7922
        %v8837 = vpop.f32.mrf.mxu0
        %v8838 = vadd.f32 %v8789, %v8837
        %v8839 = vpop.f32.mrf.mxu0
        %v8840 = vadd.f32 %v8791, %v8839
        %8841 = vmatmul.bf16.gmra.mxu0 %v7926
        %v8842 = vpop.f32.mrf.mxu0
        %v8843 = vadd.f32 %v8794, %v8842
        %v8844 = vpop.f32.mrf.mxu0
        %v8845 = vadd.f32 %v8796, %v8844
        %8846 = vmatmul.bf16.gmra.mxu0 %v7930
        %v8847 = vpop.f32.mrf.mxu0
        %v8848 = vadd.f32 %v8799, %v8847
        %v8849 = vpop.f32.mrf.mxu0
        %v8850 = vadd.f32 %v8801, %v8849
        %8851 = vmatmul.bf16.gmra.mxu0 %v7934
        %v8852 = vpop.f32.mrf.mxu0
        %v8853 = vadd.f32 %v8804, %v8852
        %v8854 = vpop.f32.mrf.mxu0
        %v8855 = vadd.f32 %v8806, %v8854
        %8856 = vmatmul.bf16.gmra.mxu0 %v7938
        %v8857 = vpop.f32.mrf.mxu0
        %v8858 = vadd.f32 %v8809, %v8857
        %v8859 = vpop.f32.mrf.mxu0
        %v8860 = vadd.f32 %v8811, %v8859
        %8861 = vmatmul.bf16.gmra.mxu0 %v7942
        %v8862 = vpop.f32.mrf.mxu0
        %v8863 = vadd.f32 %v8814, %v8862
        %v8864 = vpop.f32.mrf.mxu0
        %v8865 = vadd.f32 %v8816, %v8864
        %8866 = vmatmul.bf16.gmra.mxu0 %v7946
        %v8867 = vpop.f32.mrf.mxu0
        %v8868 = vadd.f32 %v8819, %v8867
        %v8869 = vpop.f32.mrf.mxu0
        %v8870 = vadd.f32 %v8821, %v8869
        %8871 = vmatmul.bf16.gmra.mxu0 %v7950
        %v8872 = vpop.f32.mrf.mxu0
        %v8873 = vadd.f32 %v8824, %v8872
        %v8874 = vpop.f32.mrf.mxu0
        %v8875 = vadd.f32 %v8826, %v8874
        %8876 = vdwg.mxu0
        %8877 = vmatpush.bf16.msra.mxu0 %v8598
        %8878 = vmatpush.bf16.msra.mxu0 %v8594
        %8879 = vmatpush.bf16.msra.mxu0 %v8590
        %8880 = vmatpush.bf16.msra.mxu0 %v8586
        %8881 = vmatpush.bf16.msra.mxu0 %v8582
        %8882 = vmatpush.bf16.msra.mxu0 %v8578
        %8883 = vmatpush.bf16.msra.mxu0 %v8574
        %8884 = vmatpush.bf16.msra.mxu0 %v8570
        %8885 = vmatmul.bf16.gmra.mxu0 %v7923
        %v8886 = vpop.f32.mrf.mxu0
        %v8887 = vadd.f32 %v8838, %v8886
        %v8888 = vpop.f32.mrf.mxu0
        %v8889 = vadd.f32 %v8840, %v8888
        %8890 = vmatmul.bf16.gmra.mxu0 %v7927
        %v8891 = vpop.f32.mrf.mxu0
        %v8892 = vadd.f32 %v8843, %v8891
        %v8893 = vpop.f32.mrf.mxu0
        %v8894 = vadd.f32 %v8845, %v8893
        %8895 = vmatmul.bf16.gmra.mxu0 %v7931
        %v8896 = vpop.f32.mrf.mxu0
        %v8897 = vadd.f32 %v8848, %v8896
        %v8898 = vpop.f32.mrf.mxu0
        %v8899 = vadd.f32 %v8850, %v8898
        %8900 = vmatmul.bf16.gmra.mxu0 %v7935
        %v8901 = vpop.f32.mrf.mxu0
        %v8902 = vadd.f32 %v8853, %v8901
        %v8903 = vpop.f32.mrf.mxu0
        %v8904 = vadd.f32 %v8855, %v8903
        %8905 = vmatmul.bf16.gmra.mxu0 %v7939
        %v8906 = vpop.f32.mrf.mxu0
        %v8907 = vadd.f32 %v8858, %v8906
        %v8908 = vpop.f32.mrf.mxu0
        %v8909 = vadd.f32 %v8860, %v8908
        %8910 = vmatmul.bf16.gmra.mxu0 %v7943
        %v8911 = vpop.f32.mrf.mxu0
        %v8912 = vadd.f32 %v8863, %v8911
        %v8913 = vpop.f32.mrf.mxu0
        %v8914 = vadd.f32 %v8865, %v8913
        %8915 = vmatmul.bf16.gmra.mxu0 %v7947
        %v8916 = vpop.f32.mrf.mxu0
        %v8917 = vadd.f32 %v8868, %v8916
        %v8918 = vpop.f32.mrf.mxu0
        %v8919 = vadd.f32 %v8870, %v8918
        %8920 = vmatmul.bf16.gmra.mxu0 %v7951
        %v8921 = vpop.f32.mrf.mxu0
        %v8922 = vadd.f32 %v8873, %v8921
        %v8923 = vpop.f32.mrf.mxu0
        %v8924 = vadd.f32 %v8875, %v8923
        %8925 = vdwg.mxu0
        %8926 = vmatpush.bf16.msra.mxu0 %v8503
        %8927 = vmatpush.bf16.msra.mxu0 %v8499
        %8928 = vmatpush.bf16.msra.mxu0 %v8495
        %8929 = vmatpush.bf16.msra.mxu0 %v8491
        %8930 = vmatpush.bf16.msra.mxu0 %v8487
        %8931 = vmatpush.bf16.msra.mxu0 %v8483
        %8932 = vmatpush.bf16.msra.mxu0 %v8479
        %8933 = vmatpush.bf16.msra.mxu0 %v8475
        %8934 = vmatmul.bf16.gmra.mxu0 %v7920
        %v8935 = vpop.f32.mrf.mxu0
        %v8936 = vadd.f32 %v8083, %v8935
        %v8937 = vpop.f32.mrf.mxu0
        %v8938 = vadd.f32 %v8083, %v8937
        %8939 = vmatmul.bf16.gmra.mxu0 %v7924
        %v8940 = vpop.f32.mrf.mxu0
        %v8941 = vadd.f32 %v8083, %v8940
        %v8942 = vpop.f32.mrf.mxu0
        %v8943 = vadd.f32 %v8083, %v8942
        %8944 = vmatmul.bf16.gmra.mxu0 %v7928
        %v8945 = vpop.f32.mrf.mxu0
        %v8946 = vadd.f32 %v8083, %v8945
        %v8947 = vpop.f32.mrf.mxu0
        %v8948 = vadd.f32 %v8083, %v8947
        %8949 = vmatmul.bf16.gmra.mxu0 %v7932
        %v8950 = vpop.f32.mrf.mxu0
        %v8951 = vadd.f32 %v8083, %v8950
        %v8952 = vpop.f32.mrf.mxu0
        %v8953 = vadd.f32 %v8083, %v8952
        %8954 = vmatmul.bf16.gmra.mxu0 %v7936
        %v8955 = vpop.f32.mrf.mxu0
        %v8956 = vadd.f32 %v8083, %v8955
        %v8957 = vpop.f32.mrf.mxu0
        %v8958 = vadd.f32 %v8083, %v8957
        %8959 = vmatmul.bf16.gmra.mxu0 %v7940
        %v8960 = vpop.f32.mrf.mxu0
        %v8961 = vadd.f32 %v8083, %v8960
        %v8962 = vpop.f32.mrf.mxu0
        %v8963 = vadd.f32 %v8083, %v8962
        %8964 = vmatmul.bf16.gmra.mxu0 %v7944
        %v8965 = vpop.f32.mrf.mxu0
        %v8966 = vadd.f32 %v8083, %v8965
        %v8967 = vpop.f32.mrf.mxu0
        %v8968 = vadd.f32 %v8083, %v8967
        %8969 = vmatmul.bf16.gmra.mxu0 %v7948
        %v8970 = vpop.f32.mrf.mxu0
        %v8971 = vadd.f32 %v8083, %v8970
        %v8972 = vpop.f32.mrf.mxu0
        %v8973 = vadd.f32 %v8083, %v8972
        %8974 = vdwg.mxu0
        %8975 = vmatpush.bf16.msra.mxu0 %v8535
        %8976 = vmatpush.bf16.msra.mxu0 %v8531
        %8977 = vmatpush.bf16.msra.mxu0 %v8527
        %8978 = vmatpush.bf16.msra.mxu0 %v8523
        %8979 = vmatpush.bf16.msra.mxu0 %v8519
        %8980 = vmatpush.bf16.msra.mxu0 %v8515
        %8981 = vmatpush.bf16.msra.mxu0 %v8511
        %8982 = vmatpush.bf16.msra.mxu0 %v8507
        %8983 = vmatmul.bf16.gmra.mxu0 %v7921
        %v8984 = vpop.f32.mrf.mxu0
        %v8985 = vadd.f32 %v8936, %v8984
        %v8986 = vpop.f32.mrf.mxu0
        %v8987 = vadd.f32 %v8938, %v8986
        %8988 = vmatmul.bf16.gmra.mxu0 %v7925
        %v8989 = vpop.f32.mrf.mxu0
        %v8990 = vadd.f32 %v8941, %v8989
        %v8991 = vpop.f32.mrf.mxu0
        %v8992 = vadd.f32 %v8943, %v8991
        %8993 = vmatmul.bf16.gmra.mxu0 %v7929
        %v8994 = vpop.f32.mrf.mxu0
        %v8995 = vadd.f32 %v8946, %v8994
        %v8996 = vpop.f32.mrf.mxu0
        %v8997 = vadd.f32 %v8948, %v8996
        %8998 = vmatmul.bf16.gmra.mxu0 %v7933
        %v8999 = vpop.f32.mrf.mxu0
        %v9000 = vadd.f32 %v8951, %v8999
        %v9001 = vpop.f32.mrf.mxu0
        %v9002 = vadd.f32 %v8953, %v9001
        %9003 = vmatmul.bf16.gmra.mxu0 %v7937
        %v9004 = vpop.f32.mrf.mxu0
        %v9005 = vadd.f32 %v8956, %v9004
        %v9006 = vpop.f32.mrf.mxu0
        %v9007 = vadd.f32 %v8958, %v9006
        %9008 = vmatmul.bf16.gmra.mxu0 %v7941
        %v9009 = vpop.f32.mrf.mxu0
        %v9010 = vadd.f32 %v8961, %v9009
        %v9011 = vpop.f32.mrf.mxu0
        %v9012 = vadd.f32 %v8963, %v9011
        %9013 = vmatmul.bf16.gmra.mxu0 %v7945
        %v9014 = vpop.f32.mrf.mxu0
        %v9015 = vadd.f32 %v8966, %v9014
        %v9016 = vpop.f32.mrf.mxu0
        %v9017 = vadd.f32 %v8968, %v9016
        %9018 = vmatmul.bf16.gmra.mxu0 %v7949
        %v9019 = vpop.f32.mrf.mxu0
        %v9020 = vadd.f32 %v8971, %v9019
        %v9021 = vpop.f32.mrf.mxu0
        %v9022 = vadd.f32 %v8973, %v9021
        %9023 = vdwg.mxu0
        %9024 = vmatpush.bf16.msra.mxu0 %v8567
        %9025 = vmatpush.bf16.msra.mxu0 %v8563
        %9026 = vmatpush.bf16.msra.mxu0 %v8559
        %9027 = vmatpush.bf16.msra.mxu0 %v8555
        %9028 = vmatpush.bf16.msra.mxu0 %v8551
        %9029 = vmatpush.bf16.msra.mxu0 %v8547
        %9030 = vmatpush.bf16.msra.mxu0 %v8543
        %9031 = vmatpush.bf16.msra.mxu0 %v8539
        %9032 = vmatmul.bf16.gmra.mxu0 %v7922
        %v9033 = vpop.f32.mrf.mxu0
        %v9034 = vadd.f32 %v8985, %v9033
        %v9035 = vpop.f32.mrf.mxu0
        %v9036 = vadd.f32 %v8987, %v9035
        %9037 = vmatmul.bf16.gmra.mxu0 %v7926
        %v9038 = vpop.f32.mrf.mxu0
        %v9039 = vadd.f32 %v8990, %v9038
        %v9040 = vpop.f32.mrf.mxu0
        %v9041 = vadd.f32 %v8992, %v9040
        %9042 = vmatmul.bf16.gmra.mxu0 %v7930
        %v9043 = vpop.f32.mrf.mxu0
        %v9044 = vadd.f32 %v8995, %v9043
        %v9045 = vpop.f32.mrf.mxu0
        %v9046 = vadd.f32 %v8997, %v9045
        %9047 = vmatmul.bf16.gmra.mxu0 %v7934
        %v9048 = vpop.f32.mrf.mxu0
        %v9049 = vadd.f32 %v9000, %v9048
        %v9050 = vpop.f32.mrf.mxu0
        %v9051 = vadd.f32 %v9002, %v9050
        %9052 = vmatmul.bf16.gmra.mxu0 %v7938
        %v9053 = vpop.f32.mrf.mxu0
        %v9054 = vadd.f32 %v9005, %v9053
        %v9055 = vpop.f32.mrf.mxu0
        %v9056 = vadd.f32 %v9007, %v9055
        %9057 = vmatmul.bf16.gmra.mxu0 %v7942
        %v9058 = vpop.f32.mrf.mxu0
        %v9059 = vadd.f32 %v9010, %v9058
        %v9060 = vpop.f32.mrf.mxu0
        %v9061 = vadd.f32 %v9012, %v9060
        %9062 = vmatmul.bf16.gmra.mxu0 %v7946
        %v9063 = vpop.f32.mrf.mxu0
        %v9064 = vadd.f32 %v9015, %v9063
        %v9065 = vpop.f32.mrf.mxu0
        %v9066 = vadd.f32 %v9017, %v9065
        %9067 = vmatmul.bf16.gmra.mxu0 %v7950
        %v9068 = vpop.f32.mrf.mxu0
        %v9069 = vadd.f32 %v9020, %v9068
        %v9070 = vpop.f32.mrf.mxu0
        %v9071 = vadd.f32 %v9022, %v9070
        %9072 = vdwg.mxu0
        %9073 = vmatpush.bf16.msra.mxu0 %v8599
        %9074 = vmatpush.bf16.msra.mxu0 %v8595
        %9075 = vmatpush.bf16.msra.mxu0 %v8591
        %9076 = vmatpush.bf16.msra.mxu0 %v8587
        %9077 = vmatpush.bf16.msra.mxu0 %v8583
        %9078 = vmatpush.bf16.msra.mxu0 %v8579
        %9079 = vmatpush.bf16.msra.mxu0 %v8575
        %9080 = vmatpush.bf16.msra.mxu0 %v8571
        %9081 = vmatmul.bf16.gmra.mxu0 %v7923
        %v9082 = vpop.f32.mrf.mxu0
        %v9083 = vadd.f32 %v9034, %v9082
        %v9084 = vpop.f32.mrf.mxu0
        %v9085 = vadd.f32 %v9036, %v9084
        %9086 = vmatmul.bf16.gmra.mxu0 %v7927
        %v9087 = vpop.f32.mrf.mxu0
        %v9088 = vadd.f32 %v9039, %v9087
        %v9089 = vpop.f32.mrf.mxu0
        %v9090 = vadd.f32 %v9041, %v9089
        %9091 = vmatmul.bf16.gmra.mxu0 %v7931
        %v9092 = vpop.f32.mrf.mxu0
        %v9093 = vadd.f32 %v9044, %v9092
        %v9094 = vpop.f32.mrf.mxu0
        %v9095 = vadd.f32 %v9046, %v9094
        %9096 = vmatmul.bf16.gmra.mxu0 %v7935
        %v9097 = vpop.f32.mrf.mxu0
        %v9098 = vadd.f32 %v9049, %v9097
        %v9099 = vpop.f32.mrf.mxu0
        %v9100 = vadd.f32 %v9051, %v9099
        %9101 = vmatmul.bf16.gmra.mxu0 %v7939
        %v9102 = vpop.f32.mrf.mxu0
        %v9103 = vadd.f32 %v9054, %v9102
        %v9104 = vpop.f32.mrf.mxu0
        %v9105 = vadd.f32 %v9056, %v9104
        %9106 = vmatmul.bf16.gmra.mxu0 %v7943
        %v9107 = vpop.f32.mrf.mxu0
        %v9108 = vadd.f32 %v9059, %v9107
        %v9109 = vpop.f32.mrf.mxu0
        %v9110 = vadd.f32 %v9061, %v9109
        %9111 = vmatmul.bf16.gmra.mxu0 %v7947
        %v9112 = vpop.f32.mrf.mxu0
        %v9113 = vadd.f32 %v9064, %v9112
        %v9114 = vpop.f32.mrf.mxu0
        %v9115 = vadd.f32 %v9066, %v9114
        %9116 = vmatmul.bf16.gmra.mxu0 %v7951
        %v9117 = vpop.f32.mrf.mxu0
        %v9118 = vadd.f32 %v9069, %v9117
        %v9119 = vpop.f32.mrf.mxu0
        %v9120 = vadd.f32 %v9071, %v9119
        %9121 = vdwg.mxu0
        %9122 = vmatpush.bf16.msra.mxu0 %v8504
        %9123 = vmatpush.bf16.msra.mxu0 %v8500
        %9124 = vmatpush.bf16.msra.mxu0 %v8496
        %9125 = vmatpush.bf16.msra.mxu0 %v8492
        %9126 = vmatpush.bf16.msra.mxu0 %v8488
        %9127 = vmatpush.bf16.msra.mxu0 %v8484
        %9128 = vmatpush.bf16.msra.mxu0 %v8480
        %9129 = vmatpush.bf16.msra.mxu0 %v8476
        %9130 = vmatmul.bf16.gmra.mxu0 %v7920
        %v9131 = vpop.f32.mrf.mxu0
        %v9132 = vadd.f32 %v8084, %v9131
        %v9133 = vpop.f32.mrf.mxu0
        %v9134 = vadd.f32 %v8084, %v9133
        %9135 = vmatmul.bf16.gmra.mxu0 %v7924
        %v9136 = vpop.f32.mrf.mxu0
        %v9137 = vadd.f32 %v8084, %v9136
        %v9138 = vpop.f32.mrf.mxu0
        %v9139 = vadd.f32 %v8084, %v9138
        %9140 = vmatmul.bf16.gmra.mxu0 %v7928
        %v9141 = vpop.f32.mrf.mxu0
        %v9142 = vadd.f32 %v8084, %v9141
        %v9143 = vpop.f32.mrf.mxu0
        %v9144 = vadd.f32 %v8084, %v9143
        %9145 = vmatmul.bf16.gmra.mxu0 %v7932
        %v9146 = vpop.f32.mrf.mxu0
        %v9147 = vadd.f32 %v8084, %v9146
        %v9148 = vpop.f32.mrf.mxu0
        %v9149 = vadd.f32 %v8084, %v9148
        %9150 = vmatmul.bf16.gmra.mxu0 %v7936
        %v9151 = vpop.f32.mrf.mxu0
        %v9152 = vadd.f32 %v8084, %v9151
        %v9153 = vpop.f32.mrf.mxu0
        %v9154 = vadd.f32 %v8084, %v9153
        %9155 = vmatmul.bf16.gmra.mxu0 %v7940
        %v9156 = vpop.f32.mrf.mxu0
        %v9157 = vadd.f32 %v8084, %v9156
        %v9158 = vpop.f32.mrf.mxu0
        %v9159 = vadd.f32 %v8084, %v9158
        %9160 = vmatmul.bf16.gmra.mxu0 %v7944
        %v9161 = vpop.f32.mrf.mxu0
        %v9162 = vadd.f32 %v8084, %v9161
        %v9163 = vpop.f32.mrf.mxu0
        %v9164 = vadd.f32 %v8084, %v9163
        %9165 = vmatmul.bf16.gmra.mxu0 %v7948
        %v9166 = vpop.f32.mrf.mxu0
        %v9167 = vadd.f32 %v8084, %v9166
        %v9168 = vpop.f32.mrf.mxu0
        %v9169 = vadd.f32 %v8084, %v9168
        %9170 = vdwg.mxu0
        %9171 = vmatpush.bf16.msra.mxu0 %v8536
        %9172 = vmatpush.bf16.msra.mxu0 %v8532
        %9173 = vmatpush.bf16.msra.mxu0 %v8528
        %9174 = vmatpush.bf16.msra.mxu0 %v8524
        %9175 = vmatpush.bf16.msra.mxu0 %v8520
        %9176 = vmatpush.bf16.msra.mxu0 %v8516
        %9177 = vmatpush.bf16.msra.mxu0 %v8512
        %9178 = vmatpush.bf16.msra.mxu0 %v8508
        %9179 = vmatmul.bf16.gmra.mxu0 %v7921
        %v9180 = vpop.f32.mrf.mxu0
        %v9181 = vadd.f32 %v9132, %v9180
        %v9182 = vpop.f32.mrf.mxu0
        %v9183 = vadd.f32 %v9134, %v9182
        %9184 = vmatmul.bf16.gmra.mxu0 %v7925
        %v9185 = vpop.f32.mrf.mxu0
        %v9186 = vadd.f32 %v9137, %v9185
        %v9187 = vpop.f32.mrf.mxu0
        %v9188 = vadd.f32 %v9139, %v9187
        %9189 = vmatmul.bf16.gmra.mxu0 %v7929
        %v9190 = vpop.f32.mrf.mxu0
        %v9191 = vadd.f32 %v9142, %v9190
        %v9192 = vpop.f32.mrf.mxu0
        %v9193 = vadd.f32 %v9144, %v9192
        %9194 = vmatmul.bf16.gmra.mxu0 %v7933
        %v9195 = vpop.f32.mrf.mxu0
        %v9196 = vadd.f32 %v9147, %v9195
        %v9197 = vpop.f32.mrf.mxu0
        %v9198 = vadd.f32 %v9149, %v9197
        %9199 = vmatmul.bf16.gmra.mxu0 %v7937
        %v9200 = vpop.f32.mrf.mxu0
        %v9201 = vadd.f32 %v9152, %v9200
        %v9202 = vpop.f32.mrf.mxu0
        %v9203 = vadd.f32 %v9154, %v9202
        %9204 = vmatmul.bf16.gmra.mxu0 %v7941
        %v9205 = vpop.f32.mrf.mxu0
        %v9206 = vadd.f32 %v9157, %v9205
        %v9207 = vpop.f32.mrf.mxu0
        %v9208 = vadd.f32 %v9159, %v9207
        %9209 = vmatmul.bf16.gmra.mxu0 %v7945
        %v9210 = vpop.f32.mrf.mxu0
        %v9211 = vadd.f32 %v9162, %v9210
        %v9212 = vpop.f32.mrf.mxu0
        %v9213 = vadd.f32 %v9164, %v9212
        %9214 = vmatmul.bf16.gmra.mxu0 %v7949
        %v9215 = vpop.f32.mrf.mxu0
        %v9216 = vadd.f32 %v9167, %v9215
        %v9217 = vpop.f32.mrf.mxu0
        %v9218 = vadd.f32 %v9169, %v9217
        %9219 = vdwg.mxu0
        %9220 = vmatpush.bf16.msra.mxu0 %v8568
        %9221 = vmatpush.bf16.msra.mxu0 %v8564
        %9222 = vmatpush.bf16.msra.mxu0 %v8560
        %9223 = vmatpush.bf16.msra.mxu0 %v8556
        %9224 = vmatpush.bf16.msra.mxu0 %v8552
        %9225 = vmatpush.bf16.msra.mxu0 %v8548
        %9226 = vmatpush.bf16.msra.mxu0 %v8544
        %9227 = vmatpush.bf16.msra.mxu0 %v8540
        %9228 = vmatmul.bf16.gmra.mxu0 %v7922
        %v9229 = vpop.f32.mrf.mxu0
        %v9230 = vadd.f32 %v9181, %v9229
        %v9231 = vpop.f32.mrf.mxu0
        %v9232 = vadd.f32 %v9183, %v9231
        %9233 = vmatmul.bf16.gmra.mxu0 %v7926
        %v9234 = vpop.f32.mrf.mxu0
        %v9235 = vadd.f32 %v9186, %v9234
        %v9236 = vpop.f32.mrf.mxu0
        %v9237 = vadd.f32 %v9188, %v9236
        %9238 = vmatmul.bf16.gmra.mxu0 %v7930
        %v9239 = vpop.f32.mrf.mxu0
        %v9240 = vadd.f32 %v9191, %v9239
        %v9241 = vpop.f32.mrf.mxu0
        %v9242 = vadd.f32 %v9193, %v9241
        %9243 = vmatmul.bf16.gmra.mxu0 %v7934
        %v9244 = vpop.f32.mrf.mxu0
        %v9245 = vadd.f32 %v9196, %v9244
        %v9246 = vpop.f32.mrf.mxu0
        %v9247 = vadd.f32 %v9198, %v9246
        %9248 = vmatmul.bf16.gmra.mxu0 %v7938
        %v9249 = vpop.f32.mrf.mxu0
        %v9250 = vadd.f32 %v9201, %v9249
        %v9251 = vpop.f32.mrf.mxu0
        %v9252 = vadd.f32 %v9203, %v9251
        %9253 = vmatmul.bf16.gmra.mxu0 %v7942
        %v9254 = vpop.f32.mrf.mxu0
        %v9255 = vadd.f32 %v9206, %v9254
        %v9256 = vpop.f32.mrf.mxu0
        %v9257 = vadd.f32 %v9208, %v9256
        %9258 = vmatmul.bf16.gmra.mxu0 %v7946
        %v9259 = vpop.f32.mrf.mxu0
        %v9260 = vadd.f32 %v9211, %v9259
        %v9261 = vpop.f32.mrf.mxu0
        %v9262 = vadd.f32 %v9213, %v9261
        %9263 = vmatmul.bf16.gmra.mxu0 %v7950
        %v9264 = vpop.f32.mrf.mxu0
        %v9265 = vadd.f32 %v9216, %v9264
        %v9266 = vpop.f32.mrf.mxu0
        %v9267 = vadd.f32 %v9218, %v9266
        %9268 = vdwg.mxu0
        %9269 = vmatpush.bf16.msra.mxu0 %v8600
        %9270 = vmatpush.bf16.msra.mxu0 %v8596
        %9271 = vmatpush.bf16.msra.mxu0 %v8592
        %9272 = vmatpush.bf16.msra.mxu0 %v8588
        %9273 = vmatpush.bf16.msra.mxu0 %v8584
        %9274 = vmatpush.bf16.msra.mxu0 %v8580
        %9275 = vmatpush.bf16.msra.mxu0 %v8576
        %9276 = vmatpush.bf16.msra.mxu0 %v8572
        %9277 = vmatmul.bf16.gmra.mxu0 %v7923
        %v9278 = vpop.f32.mrf.mxu0
        %v9279 = vadd.f32 %v9230, %v9278
        %v9280 = vpop.f32.mrf.mxu0
        %v9281 = vadd.f32 %v9232, %v9280
        %9282 = vmatmul.bf16.gmra.mxu0 %v7927
        %v9283 = vpop.f32.mrf.mxu0
        %v9284 = vadd.f32 %v9235, %v9283
        %v9285 = vpop.f32.mrf.mxu0
        %v9286 = vadd.f32 %v9237, %v9285
        %9287 = vmatmul.bf16.gmra.mxu0 %v7931
        %v9288 = vpop.f32.mrf.mxu0
        %v9289 = vadd.f32 %v9240, %v9288
        %v9290 = vpop.f32.mrf.mxu0
        %v9291 = vadd.f32 %v9242, %v9290
        %9292 = vmatmul.bf16.gmra.mxu0 %v7935
        %v9293 = vpop.f32.mrf.mxu0
        %v9294 = vadd.f32 %v9245, %v9293
        %v9295 = vpop.f32.mrf.mxu0
        %v9296 = vadd.f32 %v9247, %v9295
        %9297 = vmatmul.bf16.gmra.mxu0 %v7939
        %v9298 = vpop.f32.mrf.mxu0
        %v9299 = vadd.f32 %v9250, %v9298
        %v9300 = vpop.f32.mrf.mxu0
        %v9301 = vadd.f32 %v9252, %v9300
        %9302 = vmatmul.bf16.gmra.mxu0 %v7943
        %v9303 = vpop.f32.mrf.mxu0
        %v9304 = vadd.f32 %v9255, %v9303
        %v9305 = vpop.f32.mrf.mxu0
        %v9306 = vadd.f32 %v9257, %v9305
        %9307 = vmatmul.bf16.gmra.mxu0 %v7947
        %v9308 = vpop.f32.mrf.mxu0
        %v9309 = vadd.f32 %v9260, %v9308
        %v9310 = vpop.f32.mrf.mxu0
        %v9311 = vadd.f32 %v9262, %v9310
        %9312 = vmatmul.bf16.gmra.mxu0 %v7951
        %v9313 = vpop.f32.mrf.mxu0
        %v9314 = vadd.f32 %v9265, %v9313
        %v9315 = vpop.f32.mrf.mxu0
        %v9316 = vadd.f32 %v9267, %v9315
        %9317 = vdwg.mxu0
        %9318 = vmatpush.bf16.msra.mxu0 %v8505
        %9319 = vmatpush.bf16.msra.mxu0 %v8501
        %9320 = vmatpush.bf16.msra.mxu0 %v8497
        %9321 = vmatpush.bf16.msra.mxu0 %v8493
        %9322 = vmatpush.bf16.msra.mxu0 %v8489
        %9323 = vmatpush.bf16.msra.mxu0 %v8485
        %9324 = vmatpush.bf16.msra.mxu0 %v8481
        %9325 = vmatpush.bf16.msra.mxu0 %v8477
        %9326 = vmatmul.bf16.gmra.mxu0 %v7920
        %v9327 = vpop.f32.mrf.mxu0
        %v9328 = vadd.f32 %v8085, %v9327
        %v9329 = vpop.f32.mrf.mxu0
        %v9330 = vadd.f32 %v8085, %v9329
        %9331 = vmatmul.bf16.gmra.mxu0 %v7924
        %v9332 = vpop.f32.mrf.mxu0
        %v9333 = vadd.f32 %v8085, %v9332
        %v9334 = vpop.f32.mrf.mxu0
        %v9335 = vadd.f32 %v8085, %v9334
        %9336 = vmatmul.bf16.gmra.mxu0 %v7928
        %v9337 = vpop.f32.mrf.mxu0
        %v9338 = vadd.f32 %v8085, %v9337
        %v9339 = vpop.f32.mrf.mxu0
        %v9340 = vadd.f32 %v8085, %v9339
        %9341 = vmatmul.bf16.gmra.mxu0 %v7932
        %v9342 = vpop.f32.mrf.mxu0
        %v9343 = vadd.f32 %v8085, %v9342
        %v9344 = vpop.f32.mrf.mxu0
        %v9345 = vadd.f32 %v8085, %v9344
        %9346 = vmatmul.bf16.gmra.mxu0 %v7936
        %v9347 = vpop.f32.mrf.mxu0
        %v9348 = vadd.f32 %v8085, %v9347
        %v9349 = vpop.f32.mrf.mxu0
        %v9350 = vadd.f32 %v8085, %v9349
        %9351 = vmatmul.bf16.gmra.mxu0 %v7940
        %v9352 = vpop.f32.mrf.mxu0
        %v9353 = vadd.f32 %v8085, %v9352
        %v9354 = vpop.f32.mrf.mxu0
        %v9355 = vadd.f32 %v8085, %v9354
        %9356 = vmatmul.bf16.gmra.mxu0 %v7944
        %v9357 = vpop.f32.mrf.mxu0
        %v9358 = vadd.f32 %v8085, %v9357
        %v9359 = vpop.f32.mrf.mxu0
        %v9360 = vadd.f32 %v8085, %v9359
        %9361 = vmatmul.bf16.gmra.mxu0 %v7948
        %v9362 = vpop.f32.mrf.mxu0
        %v9363 = vadd.f32 %v8085, %v9362
        %v9364 = vpop.f32.mrf.mxu0
        %v9365 = vadd.f32 %v8085, %v9364
        %9366 = vdwg.mxu0
        %9367 = vmatpush.bf16.msra.mxu0 %v8537
        %9368 = vmatpush.bf16.msra.mxu0 %v8533
        %9369 = vmatpush.bf16.msra.mxu0 %v8529
        %9370 = vmatpush.bf16.msra.mxu0 %v8525
        %9371 = vmatpush.bf16.msra.mxu0 %v8521
        %9372 = vmatpush.bf16.msra.mxu0 %v8517
        %9373 = vmatpush.bf16.msra.mxu0 %v8513
        %9374 = vmatpush.bf16.msra.mxu0 %v8509
        %9375 = vmatmul.bf16.gmra.mxu0 %v7921
        %v9376 = vpop.f32.mrf.mxu0
        %v9377 = vadd.f32 %v9328, %v9376
        %v9378 = vpop.f32.mrf.mxu0
        %v9379 = vadd.f32 %v9330, %v9378
        %9380 = vmatmul.bf16.gmra.mxu0 %v7925
        %v9381 = vpop.f32.mrf.mxu0
        %v9382 = vadd.f32 %v9333, %v9381
        %v9383 = vpop.f32.mrf.mxu0
        %v9384 = vadd.f32 %v9335, %v9383
        %9385 = vmatmul.bf16.gmra.mxu0 %v7929
        %v9386 = vpop.f32.mrf.mxu0
        %v9387 = vadd.f32 %v9338, %v9386
        %v9388 = vpop.f32.mrf.mxu0
        %v9389 = vadd.f32 %v9340, %v9388
        %9390 = vmatmul.bf16.gmra.mxu0 %v7933
        %v9391 = vpop.f32.mrf.mxu0
        %v9392 = vadd.f32 %v9343, %v9391
        %v9393 = vpop.f32.mrf.mxu0
        %v9394 = vadd.f32 %v9345, %v9393
        %9395 = vmatmul.bf16.gmra.mxu0 %v7937
        %v9396 = vpop.f32.mrf.mxu0
        %v9397 = vadd.f32 %v9348, %v9396
        %v9398 = vpop.f32.mrf.mxu0
        %v9399 = vadd.f32 %v9350, %v9398
        %9400 = vmatmul.bf16.gmra.mxu0 %v7941
        %v9401 = vpop.f32.mrf.mxu0
        %v9402 = vadd.f32 %v9353, %v9401
        %v9403 = vpop.f32.mrf.mxu0
        %v9404 = vadd.f32 %v9355, %v9403
        %9405 = vmatmul.bf16.gmra.mxu0 %v7945
        %v9406 = vpop.f32.mrf.mxu0
        %v9407 = vadd.f32 %v9358, %v9406
        %v9408 = vpop.f32.mrf.mxu0
        %v9409 = vadd.f32 %v9360, %v9408
        %9410 = vmatmul.bf16.gmra.mxu0 %v7949
        %v9411 = vpop.f32.mrf.mxu0
        %v9412 = vadd.f32 %v9363, %v9411
        %v9413 = vpop.f32.mrf.mxu0
        %v9414 = vadd.f32 %v9365, %v9413
        %9415 = vdwg.mxu0
        %9416 = vmatpush.bf16.msra.mxu0 %v8569
        %9417 = vmatpush.bf16.msra.mxu0 %v8565
        %9418 = vmatpush.bf16.msra.mxu0 %v8561
        %9419 = vmatpush.bf16.msra.mxu0 %v8557
        %9420 = vmatpush.bf16.msra.mxu0 %v8553
        %9421 = vmatpush.bf16.msra.mxu0 %v8549
        %9422 = vmatpush.bf16.msra.mxu0 %v8545
        %9423 = vmatpush.bf16.msra.mxu0 %v8541
        %9424 = vmatmul.bf16.gmra.mxu0 %v7922
        %v9425 = vpop.f32.mrf.mxu0
        %v9426 = vadd.f32 %v9377, %v9425
        %v9427 = vpop.f32.mrf.mxu0
        %v9428 = vadd.f32 %v9379, %v9427
        %9429 = vmatmul.bf16.gmra.mxu0 %v7926
        %v9430 = vpop.f32.mrf.mxu0
        %v9431 = vadd.f32 %v9382, %v9430
        %v9432 = vpop.f32.mrf.mxu0
        %v9433 = vadd.f32 %v9384, %v9432
        %9434 = vmatmul.bf16.gmra.mxu0 %v7930
        %v9435 = vpop.f32.mrf.mxu0
        %v9436 = vadd.f32 %v9387, %v9435
        %v9437 = vpop.f32.mrf.mxu0
        %v9438 = vadd.f32 %v9389, %v9437
        %9439 = vmatmul.bf16.gmra.mxu0 %v7934
        %v9440 = vpop.f32.mrf.mxu0
        %v9441 = vadd.f32 %v9392, %v9440
        %v9442 = vpop.f32.mrf.mxu0
        %v9443 = vadd.f32 %v9394, %v9442
        %9444 = vmatmul.bf16.gmra.mxu0 %v7938
        %v9445 = vpop.f32.mrf.mxu0
        %v9446 = vadd.f32 %v9397, %v9445
        %v9447 = vpop.f32.mrf.mxu0
        %v9448 = vadd.f32 %v9399, %v9447
        %9449 = vmatmul.bf16.gmra.mxu0 %v7942
        %v9450 = vpop.f32.mrf.mxu0
        %v9451 = vadd.f32 %v9402, %v9450
        %v9452 = vpop.f32.mrf.mxu0
        %v9453 = vadd.f32 %v9404, %v9452
        %9454 = vmatmul.bf16.gmra.mxu0 %v7946
        %v9455 = vpop.f32.mrf.mxu0
        %v9456 = vadd.f32 %v9407, %v9455
        %v9457 = vpop.f32.mrf.mxu0
        %v9458 = vadd.f32 %v9409, %v9457
        %9459 = vmatmul.bf16.gmra.mxu0 %v7950
        %v9460 = vpop.f32.mrf.mxu0
        %v9461 = vadd.f32 %v9412, %v9460
        %v9462 = vpop.f32.mrf.mxu0
        %v9463 = vadd.f32 %v9414, %v9462
        %9464 = vdwg.mxu0
        %9465 = vmatpush.bf16.msra.mxu0 %v8601
        %9466 = vmatpush.bf16.msra.mxu0 %v8597
        %9467 = vmatpush.bf16.msra.mxu0 %v8593
        %9468 = vmatpush.bf16.msra.mxu0 %v8589
        %9469 = vmatpush.bf16.msra.mxu0 %v8585
        %9470 = vmatpush.bf16.msra.mxu0 %v8581
        %9471 = vmatpush.bf16.msra.mxu0 %v8577
        %9472 = vmatpush.bf16.msra.mxu0 %v8573
        %9473 = vmatmul.bf16.gmra.mxu0 %v7923
        %v9474 = vpop.f32.mrf.mxu0
        %v9475 = vadd.f32 %v9426, %v9474
        %v9476 = vpop.f32.mrf.mxu0
        %v9477 = vadd.f32 %v9428, %v9476
        %9478 = vmatmul.bf16.gmra.mxu0 %v7927
        %v9479 = vpop.f32.mrf.mxu0
        %v9480 = vadd.f32 %v9431, %v9479
        %v9481 = vpop.f32.mrf.mxu0
        %v9482 = vadd.f32 %v9433, %v9481
        %9483 = vmatmul.bf16.gmra.mxu0 %v7931
        %v9484 = vpop.f32.mrf.mxu0
        %v9485 = vadd.f32 %v9436, %v9484
        %v9486 = vpop.f32.mrf.mxu0
        %v9487 = vadd.f32 %v9438, %v9486
        %9488 = vmatmul.bf16.gmra.mxu0 %v7935
        %v9489 = vpop.f32.mrf.mxu0
        %v9490 = vadd.f32 %v9441, %v9489
        %v9491 = vpop.f32.mrf.mxu0
        %v9492 = vadd.f32 %v9443, %v9491
        %9493 = vmatmul.bf16.gmra.mxu0 %v7939
        %v9494 = vpop.f32.mrf.mxu0
        %v9495 = vadd.f32 %v9446, %v9494
        %v9496 = vpop.f32.mrf.mxu0
        %v9497 = vadd.f32 %v9448, %v9496
        %9498 = vmatmul.bf16.gmra.mxu0 %v7943
        %v9499 = vpop.f32.mrf.mxu0
        %v9500 = vadd.f32 %v9451, %v9499
        %v9501 = vpop.f32.mrf.mxu0
        %v9502 = vadd.f32 %v9453, %v9501
        %9503 = vmatmul.bf16.gmra.mxu0 %v7947
        %v9504 = vpop.f32.mrf.mxu0
        %v9505 = vadd.f32 %v9456, %v9504
        %v9506 = vpop.f32.mrf.mxu0
        %v9507 = vadd.f32 %v9458, %v9506
        %9508 = vmatmul.bf16.gmra.mxu0 %v7951
        %v9509 = vpop.f32.mrf.mxu0
        %v9510 = vadd.f32 %v9461, %v9509
        %v9511 = vpop.f32.mrf.mxu0
        %v9512 = vadd.f32 %v9463, %v9511
        %9513 = vdwg.mxu0
        %v9514 = vmax.f32 %v8887, 0.0
        %v9515 = vmax.f32 %v9083, 0.0
        %v9516 = vmax.f32 %v9279, 0.0
        %v9517 = vmax.f32 %v9475, 0.0
        %v9518 = vmax.f32 %v8889, 0.0
        %v9519 = vmax.f32 %v9085, 0.0
        %v9520 = vmax.f32 %v9281, 0.0
        %v9521 = vmax.f32 %v9477, 0.0
        %v9522 = vmax.f32 %v8892, 0.0
        %v9523 = vmax.f32 %v9088, 0.0
        %v9524 = vmax.f32 %v9284, 0.0
        %v9525 = vmax.f32 %v9480, 0.0
        %v9526 = vmax.f32 %v8894, 0.0
        %v9527 = vmax.f32 %v9090, 0.0
        %v9528 = vmax.f32 %v9286, 0.0
        %v9529 = vmax.f32 %v9482, 0.0
        %v9530 = vmax.f32 %v8897, 0.0
        %v9531 = vmax.f32 %v9093, 0.0
        %v9532 = vmax.f32 %v9289, 0.0
        %v9533 = vmax.f32 %v9485, 0.0
        %v9534 = vmax.f32 %v8899, 0.0
        %v9535 = vmax.f32 %v9095, 0.0
        %v9536 = vmax.f32 %v9291, 0.0
        %v9537 = vmax.f32 %v9487, 0.0
        %v9538 = vmax.f32 %v8902, 0.0
        %v9539 = vmax.f32 %v9098, 0.0
        %v9540 = vmax.f32 %v9294, 0.0
        %v9541 = vmax.f32 %v9490, 0.0
        %v9542 = vmax.f32 %v8904, 0.0
        %v9543 = vmax.f32 %v9100, 0.0
        %v9544 = vmax.f32 %v9296, 0.0
        %v9545 = vmax.f32 %v9492, 0.0
        %v9546 = vmax.f32 %v8907, 0.0
        %v9547 = vmax.f32 %v9103, 0.0
        %v9548 = vmax.f32 %v9299, 0.0
        %v9549 = vmax.f32 %v9495, 0.0
        %v9550 = vmax.f32 %v8909, 0.0
        %v9551 = vmax.f32 %v9105, 0.0
        %v9552 = vmax.f32 %v9301, 0.0
        %v9553 = vmax.f32 %v9497, 0.0
        %v9554 = vmax.f32 %v8912, 0.0
        %v9555 = vmax.f32 %v9108, 0.0
        %v9556 = vmax.f32 %v9304, 0.0
        %v9557 = vmax.f32 %v9500, 0.0
        %v9558 = vmax.f32 %v8914, 0.0
        %v9559 = vmax.f32 %v9110, 0.0
        %v9560 = vmax.f32 %v9306, 0.0
        %v9561 = vmax.f32 %v9502, 0.0
        %v9562 = vmax.f32 %v8917, 0.0
        %v9563 = vmax.f32 %v9113, 0.0
        %v9564 = vmax.f32 %v9309, 0.0
        %v9565 = vmax.f32 %v9505, 0.0
        %v9566 = vmax.f32 %v8919, 0.0
        %v9567 = vmax.f32 %v9115, 0.0
        %v9568 = vmax.f32 %v9311, 0.0
        %v9569 = vmax.f32 %v9507, 0.0
        %v9570 = vmax.f32 %v8922, 0.0
        %v9571 = vmax.f32 %v9118, 0.0
        %v9572 = vmax.f32 %v9314, 0.0
        %v9573 = vmax.f32 %v9510, 0.0
        %v9574 = vmax.f32 %v8924, 0.0
        %v9575 = vmax.f32 %v9120, 0.0
        %v9576 = vmax.f32 %v9316, 0.0
        %v9577 = vmax.f32 %v9512, 0.0
        %v9578 = vpack.c.bf16 %v9518, %v9514
        %v9579 = vpack.c.bf16 %v9519, %v9515
        %v9580 = vpack.c.bf16 %v9520, %v9516
        %v9581 = vpack.c.bf16 %v9521, %v9517
        %v9582 = vpack.c.bf16 %v9526, %v9522
        %v9583 = vpack.c.bf16 %v9527, %v9523
        %v9584 = vpack.c.bf16 %v9528, %v9524
        %v9585 = vpack.c.bf16 %v9529, %v9525
        %v9586 = vpack.c.bf16 %v9534, %v9530
        %v9587 = vpack.c.bf16 %v9535, %v9531
        %v9588 = vpack.c.bf16 %v9536, %v9532
        %v9589 = vpack.c.bf16 %v9537, %v9533
        %v9590 = vpack.c.bf16 %v9542, %v9538
        %v9591 = vpack.c.bf16 %v9543, %v9539
        %v9592 = vpack.c.bf16 %v9544, %v9540
        %v9593 = vpack.c.bf16 %v9545, %v9541
        %v9594 = vpack.c.bf16 %v9550, %v9546
        %v9595 = vpack.c.bf16 %v9551, %v9547
        %v9596 = vpack.c.bf16 %v9552, %v9548
        %v9597 = vpack.c.bf16 %v9553, %v9549
        %v9598 = vpack.c.bf16 %v9558, %v9554
        %v9599 = vpack.c.bf16 %v9559, %v9555
        %v9600 = vpack.c.bf16 %v9560, %v9556
        %v9601 = vpack.c.bf16 %v9561, %v9557
        %v9602 = vpack.c.bf16 %v9566, %v9562
        %v9603 = vpack.c.bf16 %v9567, %v9563
        %v9604 = vpack.c.bf16 %v9568, %v9564
        %v9605 = vpack.c.bf16 %v9569, %v9565
        %v9606 = vpack.c.bf16 %v9574, %v9570
        %v9607 = vpack.c.bf16 %v9575, %v9571
        %v9608 = vpack.c.bf16 %v9576, %v9572
        %v9609 = vpack.c.bf16 %v9577, %v9573
        %v9610 = vld [vmem:[#allocation10] sm:$0xff]
        %v9611 = vld [vmem:[#allocation10 + $0x8] sm:$0xff]
        %v9612 = vld [vmem:[#allocation10 + $0x10] sm:$0xff]
        %v9613 = vld [vmem:[#allocation10 + $0x18] sm:$0xff]
        %v9614 = vld [vmem:[#allocation10 + $0x20] sm:$0xff]
        %v9615 = vld [vmem:[#allocation10 + $0x28] sm:$0xff]
        %v9616 = vld [vmem:[#allocation10 + $0x30] sm:$0xff]
        %v9617 = vld [vmem:[#allocation10 + $0x38] sm:$0xff]
        %v9618 = vld [vmem:[#allocation10 + $0x40] sm:$0xff]
        %v9619 = vld [vmem:[#allocation10 + $0x48] sm:$0xff]
        %v9620 = vld [vmem:[#allocation10 + $0x50] sm:$0xff]
        %v9621 = vld [vmem:[#allocation10 + $0x58] sm:$0xff]
        %v9622 = vld [vmem:[#allocation10 + $0x60] sm:$0xff]
        %v9623 = vld [vmem:[#allocation10 + $0x68] sm:$0xff]
        %v9624 = vld [vmem:[#allocation10 + $0x70] sm:$0xff]
        %v9625 = vld [vmem:[#allocation10 + $0x78] sm:$0xff]
        %v9626 = vld [vmem:[#allocation10 + $0x80] sm:$0xff]
        %v9627 = vld [vmem:[#allocation10 + $0x88] sm:$0xff]
        %v9628 = vld [vmem:[#allocation10 + $0x90] sm:$0xff]
        %v9629 = vld [vmem:[#allocation10 + $0x98] sm:$0xff]
        %v9630 = vld [vmem:[#allocation10 + $0xa0] sm:$0xff]
        %v9631 = vld [vmem:[#allocation10 + $0xa8] sm:$0xff]
        %v9632 = vld [vmem:[#allocation10 + $0xb0] sm:$0xff]
        %v9633 = vld [vmem:[#allocation10 + $0xb8] sm:$0xff]
        %v9634 = vld [vmem:[#allocation10 + $0xc0] sm:$0xff]
        %v9635 = vld [vmem:[#allocation10 + $0xc8] sm:$0xff]
        %v9636 = vld [vmem:[#allocation10 + $0xd0] sm:$0xff]
        %v9637 = vld [vmem:[#allocation10 + $0xd8] sm:$0xff]
        %v9638 = vld [vmem:[#allocation10 + $0xe0] sm:$0xff]
        %v9639 = vld [vmem:[#allocation10 + $0xe8] sm:$0xff]
        %v9640 = vld [vmem:[#allocation10 + $0xf0] sm:$0xff]
        %v9641 = vld [vmem:[#allocation10 + $0xf8] sm:$0xff]
        %v9642 = vld [vmem:[#allocation10 + $0x100] sm:$0xff]
        %v9643 = vld [vmem:[#allocation10 + $0x108] sm:$0xff]
        %v9644 = vld [vmem:[#allocation10 + $0x110] sm:$0xff]
        %v9645 = vld [vmem:[#allocation10 + $0x118] sm:$0xff]
        %v9646 = vld [vmem:[#allocation10 + $0x120] sm:$0xff]
        %v9647 = vld [vmem:[#allocation10 + $0x128] sm:$0xff]
        %v9648 = vld [vmem:[#allocation10 + $0x130] sm:$0xff]
        %v9649 = vld [vmem:[#allocation10 + $0x138] sm:$0xff]
        %v9650 = vld [vmem:[#allocation10 + $0x140] sm:$0xff]
        %v9651 = vld [vmem:[#allocation10 + $0x148] sm:$0xff]
        %v9652 = vld [vmem:[#allocation10 + $0x150] sm:$0xff]
        %v9653 = vld [vmem:[#allocation10 + $0x158] sm:$0xff]
        %v9654 = vld [vmem:[#allocation10 + $0x160] sm:$0xff]
        %v9655 = vld [vmem:[#allocation10 + $0x168] sm:$0xff]
        %v9656 = vld [vmem:[#allocation10 + $0x170] sm:$0xff]
        %v9657 = vld [vmem:[#allocation10 + $0x178] sm:$0xff]
        %v9658 = vld [vmem:[#allocation10 + $0x180] sm:$0xff]
        %v9659 = vld [vmem:[#allocation10 + $0x188] sm:$0xff]
        %v9660 = vld [vmem:[#allocation10 + $0x190] sm:$0xff]
        %v9661 = vld [vmem:[#allocation10 + $0x198] sm:$0xff]
        %v9662 = vld [vmem:[#allocation10 + $0x1a0] sm:$0xff]
        %v9663 = vld [vmem:[#allocation10 + $0x1a8] sm:$0xff]
        %v9664 = vld [vmem:[#allocation10 + $0x1b0] sm:$0xff]
        %v9665 = vld [vmem:[#allocation10 + $0x1b8] sm:$0xff]
        %v9666 = vld [vmem:[#allocation10 + $0x1c0] sm:$0xff]
        %v9667 = vld [vmem:[#allocation10 + $0x1c8] sm:$0xff]
        %v9668 = vld [vmem:[#allocation10 + $0x1d0] sm:$0xff]
        %v9669 = vld [vmem:[#allocation10 + $0x1d8] sm:$0xff]
        %v9670 = vld [vmem:[#allocation10 + $0x1e0] sm:$0xff]
        %v9671 = vld [vmem:[#allocation10 + $0x1e8] sm:$0xff]
        %v9672 = vld [vmem:[#allocation10 + $0x1f0] sm:$0xff]
        %v9673 = vld [vmem:[#allocation10 + $0x1f8] sm:$0xff]
        %v9674 = vld [vmem:[#allocation10 + $0x200] sm:$0xff]
        %v9675 = vld [vmem:[#allocation10 + $0x208] sm:$0xff]
        %v9676 = vld [vmem:[#allocation10 + $0x210] sm:$0xff]
        %v9677 = vld [vmem:[#allocation10 + $0x218] sm:$0xff]
        %v9678 = vld [vmem:[#allocation10 + $0x220] sm:$0xff]
        %v9679 = vld [vmem:[#allocation10 + $0x228] sm:$0xff]
        %v9680 = vld [vmem:[#allocation10 + $0x230] sm:$0xff]
        %v9681 = vld [vmem:[#allocation10 + $0x238] sm:$0xff]
        %v9682 = vld [vmem:[#allocation10 + $0x240] sm:$0xff]
        %v9683 = vld [vmem:[#allocation10 + $0x248] sm:$0xff]
        %v9684 = vld [vmem:[#allocation10 + $0x250] sm:$0xff]
        %v9685 = vld [vmem:[#allocation10 + $0x258] sm:$0xff]
        %v9686 = vld [vmem:[#allocation10 + $0x260] sm:$0xff]
        %v9687 = vld [vmem:[#allocation10 + $0x268] sm:$0xff]
        %v9688 = vld [vmem:[#allocation10 + $0x270] sm:$0xff]
        %v9689 = vld [vmem:[#allocation10 + $0x278] sm:$0xff]
        %v9690 = vld [vmem:[#allocation10 + $0x280] sm:$0xff]
        %v9691 = vld [vmem:[#allocation10 + $0x288] sm:$0xff]
        %v9692 = vld [vmem:[#allocation10 + $0x290] sm:$0xff]
        %v9693 = vld [vmem:[#allocation10 + $0x298] sm:$0xff]
        %v9694 = vld [vmem:[#allocation10 + $0x2a0] sm:$0xff]
        %v9695 = vld [vmem:[#allocation10 + $0x2a8] sm:$0xff]
        %v9696 = vld [vmem:[#allocation10 + $0x2b0] sm:$0xff]
        %v9697 = vld [vmem:[#allocation10 + $0x2b8] sm:$0xff]
        %v9698 = vld [vmem:[#allocation10 + $0x2c0] sm:$0xff]
        %v9699 = vld [vmem:[#allocation10 + $0x2c8] sm:$0xff]
        %v9700 = vld [vmem:[#allocation10 + $0x2d0] sm:$0xff]
        %v9701 = vld [vmem:[#allocation10 + $0x2d8] sm:$0xff]
        %v9702 = vld [vmem:[#allocation10 + $0x2e0] sm:$0xff]
        %v9703 = vld [vmem:[#allocation10 + $0x2e8] sm:$0xff]
        %v9704 = vld [vmem:[#allocation10 + $0x2f0] sm:$0xff]
        %v9705 = vld [vmem:[#allocation10 + $0x2f8] sm:$0xff]
        %v9706 = vld [vmem:[#allocation10 + $0x300] sm:$0xff]
        %v9707 = vld [vmem:[#allocation10 + $0x308] sm:$0xff]
        %v9708 = vld [vmem:[#allocation10 + $0x310] sm:$0xff]
        %v9709 = vld [vmem:[#allocation10 + $0x318] sm:$0xff]
        %v9710 = vld [vmem:[#allocation10 + $0x320] sm:$0xff]
        %v9711 = vld [vmem:[#allocation10 + $0x328] sm:$0xff]
        %v9712 = vld [vmem:[#allocation10 + $0x330] sm:$0xff]
        %v9713 = vld [vmem:[#allocation10 + $0x338] sm:$0xff]
        %v9714 = vld [vmem:[#allocation10 + $0x340] sm:$0xff]
        %v9715 = vld [vmem:[#allocation10 + $0x348] sm:$0xff]
        %v9716 = vld [vmem:[#allocation10 + $0x350] sm:$0xff]
        %v9717 = vld [vmem:[#allocation10 + $0x358] sm:$0xff]
        %v9718 = vld [vmem:[#allocation10 + $0x360] sm:$0xff]
        %v9719 = vld [vmem:[#allocation10 + $0x368] sm:$0xff]
        %v9720 = vld [vmem:[#allocation10 + $0x370] sm:$0xff]
        %v9721 = vld [vmem:[#allocation10 + $0x378] sm:$0xff]
        %v9722 = vld [vmem:[#allocation10 + $0x380] sm:$0xff]
        %v9723 = vld [vmem:[#allocation10 + $0x388] sm:$0xff]
        %v9724 = vld [vmem:[#allocation10 + $0x390] sm:$0xff]
        %v9725 = vld [vmem:[#allocation10 + $0x398] sm:$0xff]
        %v9726 = vld [vmem:[#allocation10 + $0x3a0] sm:$0xff]
        %v9727 = vld [vmem:[#allocation10 + $0x3a8] sm:$0xff]
        %v9728 = vld [vmem:[#allocation10 + $0x3b0] sm:$0xff]
        %v9729 = vld [vmem:[#allocation10 + $0x3b8] sm:$0xff]
        %v9730 = vld [vmem:[#allocation10 + $0x3c0] sm:$0xff]
        %v9731 = vld [vmem:[#allocation10 + $0x3c8] sm:$0xff]
        %v9732 = vld [vmem:[#allocation10 + $0x3d0] sm:$0xff]
        %v9733 = vld [vmem:[#allocation10 + $0x3d8] sm:$0xff]
        %v9734 = vld [vmem:[#allocation10 + $0x3e0] sm:$0xff]
        %v9735 = vld [vmem:[#allocation10 + $0x3e8] sm:$0xff]
        %v9736 = vld [vmem:[#allocation10 + $0x3f0] sm:$0xff]
        %v9737 = vld [vmem:[#allocation10 + $0x3f8] sm:$0xff]
        %v9738 = vld [vmem:[%s14] sm:$0xf]
        %v9740 = vperm.slane %v9738, 0
        %v9741 = vperm.slane %v9738, 1
        %v9742 = vperm.slane %v9738, 2
        %v9743 = vperm.slane %v9738, 3
        %v9876 = vunpack.c.l.b16 %v9610
        %v9877 = vunpack.c.h.b16 %v9610
        %v9878 = vunpack.c.l.b16 %v9611
        %v9879 = vunpack.c.h.b16 %v9611
        %v9880 = vunpack.c.l.b16 %v9612
        %v9881 = vunpack.c.h.b16 %v9612
        %v9882 = vunpack.c.l.b16 %v9613
        %v9883 = vunpack.c.h.b16 %v9613
        %v9884 = vunpack.c.l.b16 %v9614
        %v9885 = vunpack.c.h.b16 %v9614
        %v9886 = vunpack.c.l.b16 %v9615
        %v9887 = vunpack.c.h.b16 %v9615
        %v9888 = vunpack.c.l.b16 %v9616
        %v9889 = vunpack.c.h.b16 %v9616
        %v9890 = vunpack.c.l.b16 %v9617
        %v9891 = vunpack.c.h.b16 %v9617
        %v9892 = vunpack.c.l.b16 %v9618
        %v9893 = vunpack.c.h.b16 %v9618
        %v9894 = vunpack.c.l.b16 %v9619
        %v9895 = vunpack.c.h.b16 %v9619
        %v9896 = vunpack.c.l.b16 %v9620
        %v9897 = vunpack.c.h.b16 %v9620
        %v9898 = vunpack.c.l.b16 %v9621
        %v9899 = vunpack.c.h.b16 %v9621
        %v9900 = vunpack.c.l.b16 %v9622
        %v9901 = vunpack.c.h.b16 %v9622
        %v9902 = vunpack.c.l.b16 %v9623
        %v9903 = vunpack.c.h.b16 %v9623
        %v9904 = vunpack.c.l.b16 %v9624
        %v9905 = vunpack.c.h.b16 %v9624
        %v9906 = vunpack.c.l.b16 %v9625
        %v9907 = vunpack.c.h.b16 %v9625
        %v9908 = vunpack.c.l.b16 %v9626
        %v9909 = vunpack.c.h.b16 %v9626
        %v9910 = vunpack.c.l.b16 %v9627
        %v9911 = vunpack.c.h.b16 %v9627
        %v9912 = vunpack.c.l.b16 %v9628
        %v9913 = vunpack.c.h.b16 %v9628
        %v9914 = vunpack.c.l.b16 %v9629
        %v9915 = vunpack.c.h.b16 %v9629
        %v9916 = vunpack.c.l.b16 %v9630
        %v9917 = vunpack.c.h.b16 %v9630
        %v9918 = vunpack.c.l.b16 %v9631
        %v9919 = vunpack.c.h.b16 %v9631
        %v9920 = vunpack.c.l.b16 %v9632
        %v9921 = vunpack.c.h.b16 %v9632
        %v9922 = vunpack.c.l.b16 %v9633
        %v9923 = vunpack.c.h.b16 %v9633
        %v9924 = vunpack.c.l.b16 %v9634
        %v9925 = vunpack.c.h.b16 %v9634
        %v9926 = vunpack.c.l.b16 %v9635
        %v9927 = vunpack.c.h.b16 %v9635
        %v9928 = vunpack.c.l.b16 %v9636
        %v9929 = vunpack.c.h.b16 %v9636
        %v9930 = vunpack.c.l.b16 %v9637
        %v9931 = vunpack.c.h.b16 %v9637
        %v9932 = vunpack.c.l.b16 %v9638
        %v9933 = vunpack.c.h.b16 %v9638
        %v9934 = vunpack.c.l.b16 %v9639
        %v9935 = vunpack.c.h.b16 %v9639
        %v9936 = vunpack.c.l.b16 %v9640
        %v9937 = vunpack.c.h.b16 %v9640
        %v9938 = vunpack.c.l.b16 %v9641
        %v9939 = vunpack.c.h.b16 %v9641
        %v9940 = vunpack.c.l.b16 %v9642
        %v9941 = vunpack.c.h.b16 %v9642
        %v9942 = vunpack.c.l.b16 %v9643
        %v9943 = vunpack.c.h.b16 %v9643
        %v9944 = vunpack.c.l.b16 %v9644
        %v9945 = vunpack.c.h.b16 %v9644
        %v9946 = vunpack.c.l.b16 %v9645
        %v9947 = vunpack.c.h.b16 %v9645
        %v9948 = vunpack.c.l.b16 %v9646
        %v9949 = vunpack.c.h.b16 %v9646
        %v9950 = vunpack.c.l.b16 %v9647
        %v9951 = vunpack.c.h.b16 %v9647
        %v9952 = vunpack.c.l.b16 %v9648
        %v9953 = vunpack.c.h.b16 %v9648
        %v9954 = vunpack.c.l.b16 %v9649
        %v9955 = vunpack.c.h.b16 %v9649
        %v9956 = vunpack.c.l.b16 %v9650
        %v9957 = vunpack.c.h.b16 %v9650
        %v9958 = vunpack.c.l.b16 %v9651
        %v9959 = vunpack.c.h.b16 %v9651
        %v9960 = vunpack.c.l.b16 %v9652
        %v9961 = vunpack.c.h.b16 %v9652
        %v9962 = vunpack.c.l.b16 %v9653
        %v9963 = vunpack.c.h.b16 %v9653
        %v9964 = vunpack.c.l.b16 %v9654
        %v9965 = vunpack.c.h.b16 %v9654
        %v9966 = vunpack.c.l.b16 %v9655
        %v9967 = vunpack.c.h.b16 %v9655
        %v9968 = vunpack.c.l.b16 %v9656
        %v9969 = vunpack.c.h.b16 %v9656
        %v9970 = vunpack.c.l.b16 %v9657
        %v9971 = vunpack.c.h.b16 %v9657
        %v9972 = vunpack.c.l.b16 %v9658
        %v9973 = vunpack.c.h.b16 %v9658
        %v9974 = vunpack.c.l.b16 %v9659
        %v9975 = vunpack.c.h.b16 %v9659
        %v9976 = vunpack.c.l.b16 %v9660
        %v9977 = vunpack.c.h.b16 %v9660
        %v9978 = vunpack.c.l.b16 %v9661
        %v9979 = vunpack.c.h.b16 %v9661
        %v9980 = vunpack.c.l.b16 %v9662
        %v9981 = vunpack.c.h.b16 %v9662
        %v9982 = vunpack.c.l.b16 %v9663
        %v9983 = vunpack.c.h.b16 %v9663
        %v9984 = vunpack.c.l.b16 %v9664
        %v9985 = vunpack.c.h.b16 %v9664
        %v9986 = vunpack.c.l.b16 %v9665
        %v9987 = vunpack.c.h.b16 %v9665
        %v9988 = vunpack.c.l.b16 %v9666
        %v9989 = vunpack.c.h.b16 %v9666
        %v9990 = vunpack.c.l.b16 %v9667
        %v9991 = vunpack.c.h.b16 %v9667
        %v9992 = vunpack.c.l.b16 %v9668
        %v9993 = vunpack.c.h.b16 %v9668
        %v9994 = vunpack.c.l.b16 %v9669
        %v9995 = vunpack.c.h.b16 %v9669
        %v9996 = vunpack.c.l.b16 %v9670
        %v9997 = vunpack.c.h.b16 %v9670
        %v9998 = vunpack.c.l.b16 %v9671
        %v9999 = vunpack.c.h.b16 %v9671
        %v10000 = vunpack.c.l.b16 %v9672
        %v10001 = vunpack.c.h.b16 %v9672
        %v10002 = vunpack.c.l.b16 %v9673
        %v10003 = vunpack.c.h.b16 %v9673
        %v10004 = vunpack.c.l.b16 %v9674
        %v10005 = vunpack.c.h.b16 %v9674
        %v10006 = vunpack.c.l.b16 %v9675
        %v10007 = vunpack.c.h.b16 %v9675
        %v10008 = vunpack.c.l.b16 %v9676
        %v10009 = vunpack.c.h.b16 %v9676
        %v10010 = vunpack.c.l.b16 %v9677
        %v10011 = vunpack.c.h.b16 %v9677
        %v10012 = vunpack.c.l.b16 %v9678
        %v10013 = vunpack.c.h.b16 %v9678
        %v10014 = vunpack.c.l.b16 %v9679
        %v10015 = vunpack.c.h.b16 %v9679
        %v10016 = vunpack.c.l.b16 %v9680
        %v10017 = vunpack.c.h.b16 %v9680
        %v10018 = vunpack.c.l.b16 %v9681
        %v10019 = vunpack.c.h.b16 %v9681
        %v10020 = vunpack.c.l.b16 %v9682
        %v10021 = vunpack.c.h.b16 %v9682
        %v10022 = vunpack.c.l.b16 %v9683
        %v10023 = vunpack.c.h.b16 %v9683
        %v10024 = vunpack.c.l.b16 %v9684
        %v10025 = vunpack.c.h.b16 %v9684
        %v10026 = vunpack.c.l.b16 %v9685
        %v10027 = vunpack.c.h.b16 %v9685
        %v10028 = vunpack.c.l.b16 %v9686
        %v10029 = vunpack.c.h.b16 %v9686
        %v10030 = vunpack.c.l.b16 %v9687
        %v10031 = vunpack.c.h.b16 %v9687
        %v10032 = vunpack.c.l.b16 %v9688
        %v10033 = vunpack.c.h.b16 %v9688
        %v10034 = vunpack.c.l.b16 %v9689
        %v10035 = vunpack.c.h.b16 %v9689
        %v10036 = vunpack.c.l.b16 %v9690
        %v10037 = vunpack.c.h.b16 %v9690
        %v10038 = vunpack.c.l.b16 %v9691
        %v10039 = vunpack.c.h.b16 %v9691
        %v10040 = vunpack.c.l.b16 %v9692
        %v10041 = vunpack.c.h.b16 %v9692
        %v10042 = vunpack.c.l.b16 %v9693
        %v10043 = vunpack.c.h.b16 %v9693
        %v10044 = vunpack.c.l.b16 %v9694
        %v10045 = vunpack.c.h.b16 %v9694
        %v10046 = vunpack.c.l.b16 %v9695
        %v10047 = vunpack.c.h.b16 %v9695
        %v10048 = vunpack.c.l.b16 %v9696
        %v10049 = vunpack.c.h.b16 %v9696
        %v10050 = vunpack.c.l.b16 %v9697
        %v10051 = vunpack.c.h.b16 %v9697
        %v10052 = vunpack.c.l.b16 %v9698
        %v10053 = vunpack.c.h.b16 %v9698
        %v10054 = vunpack.c.l.b16 %v9699
        %v10055 = vunpack.c.h.b16 %v9699
        %v10056 = vunpack.c.l.b16 %v9700
        %v10057 = vunpack.c.h.b16 %v9700
        %v10058 = vunpack.c.l.b16 %v9701
        %v10059 = vunpack.c.h.b16 %v9701
        %v10060 = vunpack.c.l.b16 %v9702
        %v10061 = vunpack.c.h.b16 %v9702
        %v10062 = vunpack.c.l.b16 %v9703
        %v10063 = vunpack.c.h.b16 %v9703
        %v10064 = vunpack.c.l.b16 %v9704
        %v10065 = vunpack.c.h.b16 %v9704
        %v10066 = vunpack.c.l.b16 %v9705
        %v10067 = vunpack.c.h.b16 %v9705
        %v10068 = vunpack.c.l.b16 %v9706
        %v10069 = vunpack.c.h.b16 %v9706
        %v10070 = vunpack.c.l.b16 %v9707
        %v10071 = vunpack.c.h.b16 %v9707
        %v10072 = vunpack.c.l.b16 %v9708
        %v10073 = vunpack.c.h.b16 %v9708
        %v10074 = vunpack.c.l.b16 %v9709
        %v10075 = vunpack.c.h.b16 %v9709
        %v10076 = vunpack.c.l.b16 %v9710
        %v10077 = vunpack.c.h.b16 %v9710
        %v10078 = vunpack.c.l.b16 %v9711
        %v10079 = vunpack.c.h.b16 %v9711
        %v10080 = vunpack.c.l.b16 %v9712
        %v10081 = vunpack.c.h.b16 %v9712
        %v10082 = vunpack.c.l.b16 %v9713
        %v10083 = vunpack.c.h.b16 %v9713
        %v10084 = vunpack.c.l.b16 %v9714
        %v10085 = vunpack.c.h.b16 %v9714
        %v10086 = vunpack.c.l.b16 %v9715
        %v10087 = vunpack.c.h.b16 %v9715
        %v10088 = vunpack.c.l.b16 %v9716
        %v10089 = vunpack.c.h.b16 %v9716
        %v10090 = vunpack.c.l.b16 %v9717
        %v10091 = vunpack.c.h.b16 %v9717
        %v10092 = vunpack.c.l.b16 %v9718
        %v10093 = vunpack.c.h.b16 %v9718
        %v10094 = vunpack.c.l.b16 %v9719
        %v10095 = vunpack.c.h.b16 %v9719
        %v10096 = vunpack.c.l.b16 %v9720
        %v10097 = vunpack.c.h.b16 %v9720
        %v10098 = vunpack.c.l.b16 %v9721
        %v10099 = vunpack.c.h.b16 %v9721
        %v10100 = vunpack.c.l.b16 %v9722
        %v10101 = vunpack.c.h.b16 %v9722
        %v10102 = vunpack.c.l.b16 %v9723
        %v10103 = vunpack.c.h.b16 %v9723
        %v10104 = vunpack.c.l.b16 %v9724
        %v10105 = vunpack.c.h.b16 %v9724
        %v10106 = vunpack.c.l.b16 %v9725
        %v10107 = vunpack.c.h.b16 %v9725
        %v10108 = vunpack.c.l.b16 %v9726
        %v10109 = vunpack.c.h.b16 %v9726
        %v10110 = vunpack.c.l.b16 %v9727
        %v10111 = vunpack.c.h.b16 %v9727
        %v10112 = vunpack.c.l.b16 %v9728
        %v10113 = vunpack.c.h.b16 %v9728
        %v10114 = vunpack.c.l.b16 %v9729
        %v10115 = vunpack.c.h.b16 %v9729
        %v10116 = vunpack.c.l.b16 %v9730
        %v10117 = vunpack.c.h.b16 %v9730
        %v10118 = vunpack.c.l.b16 %v9731
        %v10119 = vunpack.c.h.b16 %v9731
        %v10120 = vunpack.c.l.b16 %v9732
        %v10121 = vunpack.c.h.b16 %v9732
        %v10122 = vunpack.c.l.b16 %v9733
        %v10123 = vunpack.c.h.b16 %v9733
        %v10124 = vunpack.c.l.b16 %v9734
        %v10125 = vunpack.c.h.b16 %v9734
        %v10126 = vunpack.c.l.b16 %v9735
        %v10127 = vunpack.c.h.b16 %v9735
        %v10128 = vunpack.c.l.b16 %v9736
        %v10129 = vunpack.c.h.b16 %v9736
        %v10130 = vunpack.c.l.b16 %v9737
        %v10131 = vunpack.c.h.b16 %v9737
        %v10132 = vpack.c.b16 %v9880, %v9876
        %v10133 = vpack.c.b16 %v9881, %v9877
        %v10134 = vpack.c.b16 %v9882, %v9878
        %v10135 = vpack.c.b16 %v9883, %v9879
        %v10136 = vpack.c.b16 %v9888, %v9884
        %v10137 = vpack.c.b16 %v9889, %v9885
        %v10138 = vpack.c.b16 %v9890, %v9886
        %v10139 = vpack.c.b16 %v9891, %v9887
        %v10140 = vpack.c.b16 %v9896, %v9892
        %v10141 = vpack.c.b16 %v9897, %v9893
        %v10142 = vpack.c.b16 %v9898, %v9894
        %v10143 = vpack.c.b16 %v9899, %v9895
        %v10144 = vpack.c.b16 %v9904, %v9900
        %v10145 = vpack.c.b16 %v9905, %v9901
        %v10146 = vpack.c.b16 %v9906, %v9902
        %v10147 = vpack.c.b16 %v9907, %v9903
        %v10148 = vpack.c.b16 %v9912, %v9908
        %v10149 = vpack.c.b16 %v9913, %v9909
        %v10150 = vpack.c.b16 %v9914, %v9910
        %v10151 = vpack.c.b16 %v9915, %v9911
        %v10152 = vpack.c.b16 %v9920, %v9916
        %v10153 = vpack.c.b16 %v9921, %v9917
        %v10154 = vpack.c.b16 %v9922, %v9918
        %v10155 = vpack.c.b16 %v9923, %v9919
        %v10156 = vpack.c.b16 %v9928, %v9924
        %v10157 = vpack.c.b16 %v9929, %v9925
        %v10158 = vpack.c.b16 %v9930, %v9926
        %v10159 = vpack.c.b16 %v9931, %v9927
        %v10160 = vpack.c.b16 %v9936, %v9932
        %v10161 = vpack.c.b16 %v9937, %v9933
        %v10162 = vpack.c.b16 %v9938, %v9934
        %v10163 = vpack.c.b16 %v9939, %v9935
        %v10164 = vpack.c.b16 %v9944, %v9940
        %v10165 = vpack.c.b16 %v9945, %v9941
        %v10166 = vpack.c.b16 %v9946, %v9942
        %v10167 = vpack.c.b16 %v9947, %v9943
        %v10168 = vpack.c.b16 %v9952, %v9948
        %v10169 = vpack.c.b16 %v9953, %v9949
        %v10170 = vpack.c.b16 %v9954, %v9950
        %v10171 = vpack.c.b16 %v9955, %v9951
        %v10172 = vpack.c.b16 %v9960, %v9956
        %v10173 = vpack.c.b16 %v9961, %v9957
        %v10174 = vpack.c.b16 %v9962, %v9958
        %v10175 = vpack.c.b16 %v9963, %v9959
        %v10176 = vpack.c.b16 %v9968, %v9964
        %v10177 = vpack.c.b16 %v9969, %v9965
        %v10178 = vpack.c.b16 %v9970, %v9966
        %v10179 = vpack.c.b16 %v9971, %v9967
        %v10180 = vpack.c.b16 %v9976, %v9972
        %v10181 = vpack.c.b16 %v9977, %v9973
        %v10182 = vpack.c.b16 %v9978, %v9974
        %v10183 = vpack.c.b16 %v9979, %v9975
        %v10184 = vpack.c.b16 %v9984, %v9980
        %v10185 = vpack.c.b16 %v9985, %v9981
        %v10186 = vpack.c.b16 %v9986, %v9982
        %v10187 = vpack.c.b16 %v9987, %v9983
        %v10188 = vpack.c.b16 %v9992, %v9988
        %v10189 = vpack.c.b16 %v9993, %v9989
        %v10190 = vpack.c.b16 %v9994, %v9990
        %v10191 = vpack.c.b16 %v9995, %v9991
        %v10192 = vpack.c.b16 %v10000, %v9996
        %v10193 = vpack.c.b16 %v10001, %v9997
        %v10194 = vpack.c.b16 %v10002, %v9998
        %v10195 = vpack.c.b16 %v10003, %v9999
        %v10196 = vpack.c.b16 %v10008, %v10004
        %v10197 = vpack.c.b16 %v10009, %v10005
        %v10198 = vpack.c.b16 %v10010, %v10006
        %v10199 = vpack.c.b16 %v10011, %v10007
        %v10200 = vpack.c.b16 %v10016, %v10012
        %v10201 = vpack.c.b16 %v10017, %v10013
        %v10202 = vpack.c.b16 %v10018, %v10014
        %v10203 = vpack.c.b16 %v10019, %v10015
        %v10204 = vpack.c.b16 %v10024, %v10020
        %v10205 = vpack.c.b16 %v10025, %v10021
        %v10206 = vpack.c.b16 %v10026, %v10022
        %v10207 = vpack.c.b16 %v10027, %v10023
        %v10208 = vpack.c.b16 %v10032, %v10028
        %v10209 = vpack.c.b16 %v10033, %v10029
        %v10210 = vpack.c.b16 %v10034, %v10030
        %v10211 = vpack.c.b16 %v10035, %v10031
        %v10212 = vpack.c.b16 %v10040, %v10036
        %v10213 = vpack.c.b16 %v10041, %v10037
        %v10214 = vpack.c.b16 %v10042, %v10038
        %v10215 = vpack.c.b16 %v10043, %v10039
        %v10216 = vpack.c.b16 %v10048, %v10044
        %v10217 = vpack.c.b16 %v10049, %v10045
        %v10218 = vpack.c.b16 %v10050, %v10046
        %v10219 = vpack.c.b16 %v10051, %v10047
        %v10220 = vpack.c.b16 %v10056, %v10052
        %v10221 = vpack.c.b16 %v10057, %v10053
        %v10222 = vpack.c.b16 %v10058, %v10054
        %v10223 = vpack.c.b16 %v10059, %v10055
        %v10224 = vpack.c.b16 %v10064, %v10060
        %v10225 = vpack.c.b16 %v10065, %v10061
        %v10226 = vpack.c.b16 %v10066, %v10062
        %v10227 = vpack.c.b16 %v10067, %v10063
        %v10228 = vpack.c.b16 %v10072, %v10068
        %v10229 = vpack.c.b16 %v10073, %v10069
        %v10230 = vpack.c.b16 %v10074, %v10070
        %v10231 = vpack.c.b16 %v10075, %v10071
        %v10232 = vpack.c.b16 %v10080, %v10076
        %v10233 = vpack.c.b16 %v10081, %v10077
        %v10234 = vpack.c.b16 %v10082, %v10078
        %v10235 = vpack.c.b16 %v10083, %v10079
        %v10236 = vpack.c.b16 %v10088, %v10084
        %v10237 = vpack.c.b16 %v10089, %v10085
        %v10238 = vpack.c.b16 %v10090, %v10086
        %v10239 = vpack.c.b16 %v10091, %v10087
        %v10240 = vpack.c.b16 %v10096, %v10092
        %v10241 = vpack.c.b16 %v10097, %v10093
        %v10242 = vpack.c.b16 %v10098, %v10094
        %v10243 = vpack.c.b16 %v10099, %v10095
        %v10244 = vpack.c.b16 %v10104, %v10100
        %v10245 = vpack.c.b16 %v10105, %v10101
        %v10246 = vpack.c.b16 %v10106, %v10102
        %v10247 = vpack.c.b16 %v10107, %v10103
        %v10248 = vpack.c.b16 %v10112, %v10108
        %v10249 = vpack.c.b16 %v10113, %v10109
        %v10250 = vpack.c.b16 %v10114, %v10110
        %v10251 = vpack.c.b16 %v10115, %v10111
        %v10252 = vpack.c.b16 %v10120, %v10116
        %v10253 = vpack.c.b16 %v10121, %v10117
        %v10254 = vpack.c.b16 %v10122, %v10118
        %v10255 = vpack.c.b16 %v10123, %v10119
        %v10256 = vpack.c.b16 %v10128, %v10124
        %v10257 = vpack.c.b16 %v10129, %v10125
        %v10258 = vpack.c.b16 %v10130, %v10126
        %v10259 = vpack.c.b16 %v10131, %v10127
        %10388 = vmatpush.bf16.msra.mxu0 %v10160
        %10389 = vmatpush.bf16.msra.mxu0 %v10156
        %10390 = vmatpush.bf16.msra.mxu0 %v10152
        %10391 = vmatpush.bf16.msra.mxu0 %v10148
        %10392 = vmatpush.bf16.msra.mxu0 %v10144
        %10393 = vmatpush.bf16.msra.mxu0 %v10140
        %10394 = vmatpush.bf16.msra.mxu0 %v10136
        %10395 = vmatpush.bf16.msra.mxu0 %v10132
        %10396 = vmatmul.bf16.gmra.mxu0 %v9578
        %v10397 = vpop.f32.mrf.mxu0
        %v10398 = vadd.f32 %v9740, %v10397
        %v10399 = vpop.f32.mrf.mxu0
        %v10400 = vadd.f32 %v9740, %v10399
        %10401 = vmatmul.bf16.gmra.mxu0 %v9582
        %v10402 = vpop.f32.mrf.mxu0
        %v10403 = vadd.f32 %v9740, %v10402
        %v10404 = vpop.f32.mrf.mxu0
        %v10405 = vadd.f32 %v9740, %v10404
        %10406 = vmatmul.bf16.gmra.mxu0 %v9586
        %v10407 = vpop.f32.mrf.mxu0
        %v10408 = vadd.f32 %v9740, %v10407
        %v10409 = vpop.f32.mrf.mxu0
        %v10410 = vadd.f32 %v9740, %v10409
        %10411 = vmatmul.bf16.gmra.mxu0 %v9590
        %v10412 = vpop.f32.mrf.mxu0
        %v10413 = vadd.f32 %v9740, %v10412
        %v10414 = vpop.f32.mrf.mxu0
        %v10415 = vadd.f32 %v9740, %v10414
        %10416 = vmatmul.bf16.gmra.mxu0 %v9594
        %v10417 = vpop.f32.mrf.mxu0
        %v10418 = vadd.f32 %v9740, %v10417
        %v10419 = vpop.f32.mrf.mxu0
        %v10420 = vadd.f32 %v9740, %v10419
        %10421 = vmatmul.bf16.gmra.mxu0 %v9598
        %v10422 = vpop.f32.mrf.mxu0
        %v10423 = vadd.f32 %v9740, %v10422
        %v10424 = vpop.f32.mrf.mxu0
        %v10425 = vadd.f32 %v9740, %v10424
        %10426 = vmatmul.bf16.gmra.mxu0 %v9602
        %v10427 = vpop.f32.mrf.mxu0
        %v10428 = vadd.f32 %v9740, %v10427
        %v10429 = vpop.f32.mrf.mxu0
        %v10430 = vadd.f32 %v9740, %v10429
        %10431 = vmatmul.bf16.gmra.mxu0 %v9606
        %v10432 = vpop.f32.mrf.mxu0
        %v10433 = vadd.f32 %v9740, %v10432
        %v10434 = vpop.f32.mrf.mxu0
        %v10435 = vadd.f32 %v9740, %v10434
        %10436 = vdwg.mxu0
        %10437 = vmatpush.bf16.msra.mxu0 %v10192
        %10438 = vmatpush.bf16.msra.mxu0 %v10188
        %10439 = vmatpush.bf16.msra.mxu0 %v10184
        %10440 = vmatpush.bf16.msra.mxu0 %v10180
        %10441 = vmatpush.bf16.msra.mxu0 %v10176
        %10442 = vmatpush.bf16.msra.mxu0 %v10172
        %10443 = vmatpush.bf16.msra.mxu0 %v10168
        %10444 = vmatpush.bf16.msra.mxu0 %v10164
        %10445 = vmatmul.bf16.gmra.mxu0 %v9579
        %v10446 = vpop.f32.mrf.mxu0
        %v10447 = vadd.f32 %v10398, %v10446
        %v10448 = vpop.f32.mrf.mxu0
        %v10449 = vadd.f32 %v10400, %v10448
        %10450 = vmatmul.bf16.gmra.mxu0 %v9583
        %v10451 = vpop.f32.mrf.mxu0
        %v10452 = vadd.f32 %v10403, %v10451
        %v10453 = vpop.f32.mrf.mxu0
        %v10454 = vadd.f32 %v10405, %v10453
        %10455 = vmatmul.bf16.gmra.mxu0 %v9587
        %v10456 = vpop.f32.mrf.mxu0
        %v10457 = vadd.f32 %v10408, %v10456
        %v10458 = vpop.f32.mrf.mxu0
        %v10459 = vadd.f32 %v10410, %v10458
        %10460 = vmatmul.bf16.gmra.mxu0 %v9591
        %v10461 = vpop.f32.mrf.mxu0
        %v10462 = vadd.f32 %v10413, %v10461
        %v10463 = vpop.f32.mrf.mxu0
        %v10464 = vadd.f32 %v10415, %v10463
        %10465 = vmatmul.bf16.gmra.mxu0 %v9595
        %v10466 = vpop.f32.mrf.mxu0
        %v10467 = vadd.f32 %v10418, %v10466
        %v10468 = vpop.f32.mrf.mxu0
        %v10469 = vadd.f32 %v10420, %v10468
        %10470 = vmatmul.bf16.gmra.mxu0 %v9599
        %v10471 = vpop.f32.mrf.mxu0
        %v10472 = vadd.f32 %v10423, %v10471
        %v10473 = vpop.f32.mrf.mxu0
        %v10474 = vadd.f32 %v10425, %v10473
        %10475 = vmatmul.bf16.gmra.mxu0 %v9603
        %v10476 = vpop.f32.mrf.mxu0
        %v10477 = vadd.f32 %v10428, %v10476
        %v10478 = vpop.f32.mrf.mxu0
        %v10479 = vadd.f32 %v10430, %v10478
        %10480 = vmatmul.bf16.gmra.mxu0 %v9607
        %v10481 = vpop.f32.mrf.mxu0
        %v10482 = vadd.f32 %v10433, %v10481
        %v10483 = vpop.f32.mrf.mxu0
        %v10484 = vadd.f32 %v10435, %v10483
        %10485 = vdwg.mxu0
        %10486 = vmatpush.bf16.msra.mxu0 %v10224
        %10487 = vmatpush.bf16.msra.mxu0 %v10220
        %10488 = vmatpush.bf16.msra.mxu0 %v10216
        %10489 = vmatpush.bf16.msra.mxu0 %v10212
        %10490 = vmatpush.bf16.msra.mxu0 %v10208
        %10491 = vmatpush.bf16.msra.mxu0 %v10204
        %10492 = vmatpush.bf16.msra.mxu0 %v10200
        %10493 = vmatpush.bf16.msra.mxu0 %v10196
        %10494 = vmatmul.bf16.gmra.mxu0 %v9580
        %v10495 = vpop.f32.mrf.mxu0
        %v10496 = vadd.f32 %v10447, %v10495
        %v10497 = vpop.f32.mrf.mxu0
        %v10498 = vadd.f32 %v10449, %v10497
        %10499 = vmatmul.bf16.gmra.mxu0 %v9584
        %v10500 = vpop.f32.mrf.mxu0
        %v10501 = vadd.f32 %v10452, %v10500
        %v10502 = vpop.f32.mrf.mxu0
        %v10503 = vadd.f32 %v10454, %v10502
        %10504 = vmatmul.bf16.gmra.mxu0 %v9588
        %v10505 = vpop.f32.mrf.mxu0
        %v10506 = vadd.f32 %v10457, %v10505
        %v10507 = vpop.f32.mrf.mxu0
        %v10508 = vadd.f32 %v10459, %v10507
        %10509 = vmatmul.bf16.gmra.mxu0 %v9592
        %v10510 = vpop.f32.mrf.mxu0
        %v10511 = vadd.f32 %v10462, %v10510
        %v10512 = vpop.f32.mrf.mxu0
        %v10513 = vadd.f32 %v10464, %v10512
        %10514 = vmatmul.bf16.gmra.mxu0 %v9596
        %v10515 = vpop.f32.mrf.mxu0
        %v10516 = vadd.f32 %v10467, %v10515
        %v10517 = vpop.f32.mrf.mxu0
        %v10518 = vadd.f32 %v10469, %v10517
        %10519 = vmatmul.bf16.gmra.mxu0 %v9600
        %v10520 = vpop.f32.mrf.mxu0
        %v10521 = vadd.f32 %v10472, %v10520
        %v10522 = vpop.f32.mrf.mxu0
        %v10523 = vadd.f32 %v10474, %v10522
        %10524 = vmatmul.bf16.gmra.mxu0 %v9604
        %v10525 = vpop.f32.mrf.mxu0
        %v10526 = vadd.f32 %v10477, %v10525
        %v10527 = vpop.f32.mrf.mxu0
        %v10528 = vadd.f32 %v10479, %v10527
        %10529 = vmatmul.bf16.gmra.mxu0 %v9608
        %v10530 = vpop.f32.mrf.mxu0
        %v10531 = vadd.f32 %v10482, %v10530
        %v10532 = vpop.f32.mrf.mxu0
        %v10533 = vadd.f32 %v10484, %v10532
        %10534 = vdwg.mxu0
        %10535 = vmatpush.bf16.msra.mxu0 %v10256
        %10536 = vmatpush.bf16.msra.mxu0 %v10252
        %10537 = vmatpush.bf16.msra.mxu0 %v10248
        %10538 = vmatpush.bf16.msra.mxu0 %v10244
        %10539 = vmatpush.bf16.msra.mxu0 %v10240
        %10540 = vmatpush.bf16.msra.mxu0 %v10236
        %10541 = vmatpush.bf16.msra.mxu0 %v10232
        %10542 = vmatpush.bf16.msra.mxu0 %v10228
        %10543 = vmatmul.bf16.gmra.mxu0 %v9581
        %v10544 = vpop.f32.mrf.mxu0
        %v10545 = vadd.f32 %v10496, %v10544
        %v10546 = vpop.f32.mrf.mxu0
        %v10547 = vadd.f32 %v10498, %v10546
        %10548 = vmatmul.bf16.gmra.mxu0 %v9585
        %v10549 = vpop.f32.mrf.mxu0
        %v10550 = vadd.f32 %v10501, %v10549
        %v10551 = vpop.f32.mrf.mxu0
        %v10552 = vadd.f32 %v10503, %v10551
        %10553 = vmatmul.bf16.gmra.mxu0 %v9589
        %v10554 = vpop.f32.mrf.mxu0
        %v10555 = vadd.f32 %v10506, %v10554
        %v10556 = vpop.f32.mrf.mxu0
        %v10557 = vadd.f32 %v10508, %v10556
        %10558 = vmatmul.bf16.gmra.mxu0 %v9593
        %v10559 = vpop.f32.mrf.mxu0
        %v10560 = vadd.f32 %v10511, %v10559
        %v10561 = vpop.f32.mrf.mxu0
        %v10562 = vadd.f32 %v10513, %v10561
        %10563 = vmatmul.bf16.gmra.mxu0 %v9597
        %v10564 = vpop.f32.mrf.mxu0
        %v10565 = vadd.f32 %v10516, %v10564
        %v10566 = vpop.f32.mrf.mxu0
        %v10567 = vadd.f32 %v10518, %v10566
        %10568 = vmatmul.bf16.gmra.mxu0 %v9601
        %v10569 = vpop.f32.mrf.mxu0
        %v10570 = vadd.f32 %v10521, %v10569
        %v10571 = vpop.f32.mrf.mxu0
        %v10572 = vadd.f32 %v10523, %v10571
        %10573 = vmatmul.bf16.gmra.mxu0 %v9605
        %v10574 = vpop.f32.mrf.mxu0
        %v10575 = vadd.f32 %v10526, %v10574
        %v10576 = vpop.f32.mrf.mxu0
        %v10577 = vadd.f32 %v10528, %v10576
        %10578 = vmatmul.bf16.gmra.mxu0 %v9609
        %v10579 = vpop.f32.mrf.mxu0
        %v10580 = vadd.f32 %v10531, %v10579
        %v10581 = vpop.f32.mrf.mxu0
        %v10582 = vadd.f32 %v10533, %v10581
        %10583 = vdwg.mxu0
        %10584 = vmatpush.bf16.msra.mxu0 %v10161
        %10585 = vmatpush.bf16.msra.mxu0 %v10157
        %10586 = vmatpush.bf16.msra.mxu0 %v10153
        %10587 = vmatpush.bf16.msra.mxu0 %v10149
        %10588 = vmatpush.bf16.msra.mxu0 %v10145
        %10589 = vmatpush.bf16.msra.mxu0 %v10141
        %10590 = vmatpush.bf16.msra.mxu0 %v10137
        %10591 = vmatpush.bf16.msra.mxu0 %v10133
        %10592 = vmatmul.bf16.gmra.mxu0 %v9578
        %v10593 = vpop.f32.mrf.mxu0
        %v10594 = vadd.f32 %v9741, %v10593
        %v10595 = vpop.f32.mrf.mxu0
        %v10596 = vadd.f32 %v9741, %v10595
        %10597 = vmatmul.bf16.gmra.mxu0 %v9582
        %v10598 = vpop.f32.mrf.mxu0
        %v10599 = vadd.f32 %v9741, %v10598
        %v10600 = vpop.f32.mrf.mxu0
        %v10601 = vadd.f32 %v9741, %v10600
        %10602 = vmatmul.bf16.gmra.mxu0 %v9586
        %v10603 = vpop.f32.mrf.mxu0
        %v10604 = vadd.f32 %v9741, %v10603
        %v10605 = vpop.f32.mrf.mxu0
        %v10606 = vadd.f32 %v9741, %v10605
        %10607 = vmatmul.bf16.gmra.mxu0 %v9590
        %v10608 = vpop.f32.mrf.mxu0
        %v10609 = vadd.f32 %v9741, %v10608
        %v10610 = vpop.f32.mrf.mxu0
        %v10611 = vadd.f32 %v9741, %v10610
        %10612 = vmatmul.bf16.gmra.mxu0 %v9594
        %v10613 = vpop.f32.mrf.mxu0
        %v10614 = vadd.f32 %v9741, %v10613
        %v10615 = vpop.f32.mrf.mxu0
        %v10616 = vadd.f32 %v9741, %v10615
        %10617 = vmatmul.bf16.gmra.mxu0 %v9598
        %v10618 = vpop.f32.mrf.mxu0
        %v10619 = vadd.f32 %v9741, %v10618
        %v10620 = vpop.f32.mrf.mxu0
        %v10621 = vadd.f32 %v9741, %v10620
        %10622 = vmatmul.bf16.gmra.mxu0 %v9602
        %v10623 = vpop.f32.mrf.mxu0
        %v10624 = vadd.f32 %v9741, %v10623
        %v10625 = vpop.f32.mrf.mxu0
        %v10626 = vadd.f32 %v9741, %v10625
        %10627 = vmatmul.bf16.gmra.mxu0 %v9606
        %v10628 = vpop.f32.mrf.mxu0
        %v10629 = vadd.f32 %v9741, %v10628
        %v10630 = vpop.f32.mrf.mxu0
        %v10631 = vadd.f32 %v9741, %v10630
        %10632 = vdwg.mxu0
        %10633 = vmatpush.bf16.msra.mxu0 %v10193
        %10634 = vmatpush.bf16.msra.mxu0 %v10189
        %10635 = vmatpush.bf16.msra.mxu0 %v10185
        %10636 = vmatpush.bf16.msra.mxu0 %v10181
        %10637 = vmatpush.bf16.msra.mxu0 %v10177
        %10638 = vmatpush.bf16.msra.mxu0 %v10173
        %10639 = vmatpush.bf16.msra.mxu0 %v10169
        %10640 = vmatpush.bf16.msra.mxu0 %v10165
        %10641 = vmatmul.bf16.gmra.mxu0 %v9579
        %v10642 = vpop.f32.mrf.mxu0
        %v10643 = vadd.f32 %v10594, %v10642
        %v10644 = vpop.f32.mrf.mxu0
        %v10645 = vadd.f32 %v10596, %v10644
        %10646 = vmatmul.bf16.gmra.mxu0 %v9583
        %v10647 = vpop.f32.mrf.mxu0
        %v10648 = vadd.f32 %v10599, %v10647
        %v10649 = vpop.f32.mrf.mxu0
        %v10650 = vadd.f32 %v10601, %v10649
        %10651 = vmatmul.bf16.gmra.mxu0 %v9587
        %v10652 = vpop.f32.mrf.mxu0
        %v10653 = vadd.f32 %v10604, %v10652
        %v10654 = vpop.f32.mrf.mxu0
        %v10655 = vadd.f32 %v10606, %v10654
        %10656 = vmatmul.bf16.gmra.mxu0 %v9591
        %v10657 = vpop.f32.mrf.mxu0
        %v10658 = vadd.f32 %v10609, %v10657
        %v10659 = vpop.f32.mrf.mxu0
        %v10660 = vadd.f32 %v10611, %v10659
        %10661 = vmatmul.bf16.gmra.mxu0 %v9595
        %v10662 = vpop.f32.mrf.mxu0
        %v10663 = vadd.f32 %v10614, %v10662
        %v10664 = vpop.f32.mrf.mxu0
        %v10665 = vadd.f32 %v10616, %v10664
        %10666 = vmatmul.bf16.gmra.mxu0 %v9599
        %v10667 = vpop.f32.mrf.mxu0
        %v10668 = vadd.f32 %v10619, %v10667
        %v10669 = vpop.f32.mrf.mxu0
        %v10670 = vadd.f32 %v10621, %v10669
        %10671 = vmatmul.bf16.gmra.mxu0 %v9603
        %v10672 = vpop.f32.mrf.mxu0
        %v10673 = vadd.f32 %v10624, %v10672
        %v10674 = vpop.f32.mrf.mxu0
        %v10675 = vadd.f32 %v10626, %v10674
        %10676 = vmatmul.bf16.gmra.mxu0 %v9607
        %v10677 = vpop.f32.mrf.mxu0
        %v10678 = vadd.f32 %v10629, %v10677
        %v10679 = vpop.f32.mrf.mxu0
        %v10680 = vadd.f32 %v10631, %v10679
        %10681 = vdwg.mxu0
        %10682 = vmatpush.bf16.msra.mxu0 %v10225
        %10683 = vmatpush.bf16.msra.mxu0 %v10221
        %10684 = vmatpush.bf16.msra.mxu0 %v10217
        %10685 = vmatpush.bf16.msra.mxu0 %v10213
        %10686 = vmatpush.bf16.msra.mxu0 %v10209
        %10687 = vmatpush.bf16.msra.mxu0 %v10205
        %10688 = vmatpush.bf16.msra.mxu0 %v10201
        %10689 = vmatpush.bf16.msra.mxu0 %v10197
        %10690 = vmatmul.bf16.gmra.mxu0 %v9580
        %v10691 = vpop.f32.mrf.mxu0
        %v10692 = vadd.f32 %v10643, %v10691
        %v10693 = vpop.f32.mrf.mxu0
        %v10694 = vadd.f32 %v10645, %v10693
        %10695 = vmatmul.bf16.gmra.mxu0 %v9584
        %v10696 = vpop.f32.mrf.mxu0
        %v10697 = vadd.f32 %v10648, %v10696
        %v10698 = vpop.f32.mrf.mxu0
        %v10699 = vadd.f32 %v10650, %v10698
        %10700 = vmatmul.bf16.gmra.mxu0 %v9588
        %v10701 = vpop.f32.mrf.mxu0
        %v10702 = vadd.f32 %v10653, %v10701
        %v10703 = vpop.f32.mrf.mxu0
        %v10704 = vadd.f32 %v10655, %v10703
        %10705 = vmatmul.bf16.gmra.mxu0 %v9592
        %v10706 = vpop.f32.mrf.mxu0
        %v10707 = vadd.f32 %v10658, %v10706
        %v10708 = vpop.f32.mrf.mxu0
        %v10709 = vadd.f32 %v10660, %v10708
        %10710 = vmatmul.bf16.gmra.mxu0 %v9596
        %v10711 = vpop.f32.mrf.mxu0
        %v10712 = vadd.f32 %v10663, %v10711
        %v10713 = vpop.f32.mrf.mxu0
        %v10714 = vadd.f32 %v10665, %v10713
        %10715 = vmatmul.bf16.gmra.mxu0 %v9600
        %v10716 = vpop.f32.mrf.mxu0
        %v10717 = vadd.f32 %v10668, %v10716
        %v10718 = vpop.f32.mrf.mxu0
        %v10719 = vadd.f32 %v10670, %v10718
        %10720 = vmatmul.bf16.gmra.mxu0 %v9604
        %v10721 = vpop.f32.mrf.mxu0
        %v10722 = vadd.f32 %v10673, %v10721
        %v10723 = vpop.f32.mrf.mxu0
        %v10724 = vadd.f32 %v10675, %v10723
        %10725 = vmatmul.bf16.gmra.mxu0 %v9608
        %v10726 = vpop.f32.mrf.mxu0
        %v10727 = vadd.f32 %v10678, %v10726
        %v10728 = vpop.f32.mrf.mxu0
        %v10729 = vadd.f32 %v10680, %v10728
        %10730 = vdwg.mxu0
        %10731 = vmatpush.bf16.msra.mxu0 %v10257
        %10732 = vmatpush.bf16.msra.mxu0 %v10253
        %10733 = vmatpush.bf16.msra.mxu0 %v10249
        %10734 = vmatpush.bf16.msra.mxu0 %v10245
        %10735 = vmatpush.bf16.msra.mxu0 %v10241
        %10736 = vmatpush.bf16.msra.mxu0 %v10237
        %10737 = vmatpush.bf16.msra.mxu0 %v10233
        %10738 = vmatpush.bf16.msra.mxu0 %v10229
        %10739 = vmatmul.bf16.gmra.mxu0 %v9581
        %v10740 = vpop.f32.mrf.mxu0
        %v10741 = vadd.f32 %v10692, %v10740
        %v10742 = vpop.f32.mrf.mxu0
        %v10743 = vadd.f32 %v10694, %v10742
        %10744 = vmatmul.bf16.gmra.mxu0 %v9585
        %v10745 = vpop.f32.mrf.mxu0
        %v10746 = vadd.f32 %v10697, %v10745
        %v10747 = vpop.f32.mrf.mxu0
        %v10748 = vadd.f32 %v10699, %v10747
        %10749 = vmatmul.bf16.gmra.mxu0 %v9589
        %v10750 = vpop.f32.mrf.mxu0
        %v10751 = vadd.f32 %v10702, %v10750
        %v10752 = vpop.f32.mrf.mxu0
        %v10753 = vadd.f32 %v10704, %v10752
        %10754 = vmatmul.bf16.gmra.mxu0 %v9593
        %v10755 = vpop.f32.mrf.mxu0
        %v10756 = vadd.f32 %v10707, %v10755
        %v10757 = vpop.f32.mrf.mxu0
        %v10758 = vadd.f32 %v10709, %v10757
        %10759 = vmatmul.bf16.gmra.mxu0 %v9597
        %v10760 = vpop.f32.mrf.mxu0
        %v10761 = vadd.f32 %v10712, %v10760
        %v10762 = vpop.f32.mrf.mxu0
        %v10763 = vadd.f32 %v10714, %v10762
        %10764 = vmatmul.bf16.gmra.mxu0 %v9601
        %v10765 = vpop.f32.mrf.mxu0
        %v10766 = vadd.f32 %v10717, %v10765
        %v10767 = vpop.f32.mrf.mxu0
        %v10768 = vadd.f32 %v10719, %v10767
        %10769 = vmatmul.bf16.gmra.mxu0 %v9605
        %v10770 = vpop.f32.mrf.mxu0
        %v10771 = vadd.f32 %v10722, %v10770
        %v10772 = vpop.f32.mrf.mxu0
        %v10773 = vadd.f32 %v10724, %v10772
        %10774 = vmatmul.bf16.gmra.mxu0 %v9609
        %v10775 = vpop.f32.mrf.mxu0
        %v10776 = vadd.f32 %v10727, %v10775
        %v10777 = vpop.f32.mrf.mxu0
        %v10778 = vadd.f32 %v10729, %v10777
        %10779 = vdwg.mxu0
        %10780 = vmatpush.bf16.msra.mxu0 %v10162
        %10781 = vmatpush.bf16.msra.mxu0 %v10158
        %10782 = vmatpush.bf16.msra.mxu0 %v10154
        %10783 = vmatpush.bf16.msra.mxu0 %v10150
        %10784 = vmatpush.bf16.msra.mxu0 %v10146
        %10785 = vmatpush.bf16.msra.mxu0 %v10142
        %10786 = vmatpush.bf16.msra.mxu0 %v10138
        %10787 = vmatpush.bf16.msra.mxu0 %v10134
        %10788 = vmatmul.bf16.gmra.mxu0 %v9578
        %v10789 = vpop.f32.mrf.mxu0
        %v10790 = vadd.f32 %v9742, %v10789
        %v10791 = vpop.f32.mrf.mxu0
        %v10792 = vadd.f32 %v9742, %v10791
        %10793 = vmatmul.bf16.gmra.mxu0 %v9582
        %v10794 = vpop.f32.mrf.mxu0
        %v10795 = vadd.f32 %v9742, %v10794
        %v10796 = vpop.f32.mrf.mxu0
        %v10797 = vadd.f32 %v9742, %v10796
        %10798 = vmatmul.bf16.gmra.mxu0 %v9586
        %v10799 = vpop.f32.mrf.mxu0
        %v10800 = vadd.f32 %v9742, %v10799
        %v10801 = vpop.f32.mrf.mxu0
        %v10802 = vadd.f32 %v9742, %v10801
        %10803 = vmatmul.bf16.gmra.mxu0 %v9590
        %v10804 = vpop.f32.mrf.mxu0
        %v10805 = vadd.f32 %v9742, %v10804
        %v10806 = vpop.f32.mrf.mxu0
        %v10807 = vadd.f32 %v9742, %v10806
        %10808 = vmatmul.bf16.gmra.mxu0 %v9594
        %v10809 = vpop.f32.mrf.mxu0
        %v10810 = vadd.f32 %v9742, %v10809
        %v10811 = vpop.f32.mrf.mxu0
        %v10812 = vadd.f32 %v9742, %v10811
        %10813 = vmatmul.bf16.gmra.mxu0 %v9598
        %v10814 = vpop.f32.mrf.mxu0
        %v10815 = vadd.f32 %v9742, %v10814
        %v10816 = vpop.f32.mrf.mxu0
        %v10817 = vadd.f32 %v9742, %v10816
        %10818 = vmatmul.bf16.gmra.mxu0 %v9602
        %v10819 = vpop.f32.mrf.mxu0
        %v10820 = vadd.f32 %v9742, %v10819
        %v10821 = vpop.f32.mrf.mxu0
        %v10822 = vadd.f32 %v9742, %v10821
        %10823 = vmatmul.bf16.gmra.mxu0 %v9606
        %v10824 = vpop.f32.mrf.mxu0
        %v10825 = vadd.f32 %v9742, %v10824
        %v10826 = vpop.f32.mrf.mxu0
        %v10827 = vadd.f32 %v9742, %v10826
        %10828 = vdwg.mxu0
        %10829 = vmatpush.bf16.msra.mxu0 %v10194
        %10830 = vmatpush.bf16.msra.mxu0 %v10190
        %10831 = vmatpush.bf16.msra.mxu0 %v10186
        %10832 = vmatpush.bf16.msra.mxu0 %v10182
        %10833 = vmatpush.bf16.msra.mxu0 %v10178
        %10834 = vmatpush.bf16.msra.mxu0 %v10174
        %10835 = vmatpush.bf16.msra.mxu0 %v10170
        %10836 = vmatpush.bf16.msra.mxu0 %v10166
        %10837 = vmatmul.bf16.gmra.mxu0 %v9579
        %v10838 = vpop.f32.mrf.mxu0
        %v10839 = vadd.f32 %v10790, %v10838
        %v10840 = vpop.f32.mrf.mxu0
        %v10841 = vadd.f32 %v10792, %v10840
        %10842 = vmatmul.bf16.gmra.mxu0 %v9583
        %v10843 = vpop.f32.mrf.mxu0
        %v10844 = vadd.f32 %v10795, %v10843
        %v10845 = vpop.f32.mrf.mxu0
        %v10846 = vadd.f32 %v10797, %v10845
        %10847 = vmatmul.bf16.gmra.mxu0 %v9587
        %v10848 = vpop.f32.mrf.mxu0
        %v10849 = vadd.f32 %v10800, %v10848
        %v10850 = vpop.f32.mrf.mxu0
        %v10851 = vadd.f32 %v10802, %v10850
        %10852 = vmatmul.bf16.gmra.mxu0 %v9591
        %v10853 = vpop.f32.mrf.mxu0
        %v10854 = vadd.f32 %v10805, %v10853
        %v10855 = vpop.f32.mrf.mxu0
        %v10856 = vadd.f32 %v10807, %v10855
        %10857 = vmatmul.bf16.gmra.mxu0 %v9595
        %v10858 = vpop.f32.mrf.mxu0
        %v10859 = vadd.f32 %v10810, %v10858
        %v10860 = vpop.f32.mrf.mxu0
        %v10861 = vadd.f32 %v10812, %v10860
        %10862 = vmatmul.bf16.gmra.mxu0 %v9599
        %v10863 = vpop.f32.mrf.mxu0
        %v10864 = vadd.f32 %v10815, %v10863
        %v10865 = vpop.f32.mrf.mxu0
        %v10866 = vadd.f32 %v10817, %v10865
        %10867 = vmatmul.bf16.gmra.mxu0 %v9603
        %v10868 = vpop.f32.mrf.mxu0
        %v10869 = vadd.f32 %v10820, %v10868
        %v10870 = vpop.f32.mrf.mxu0
        %v10871 = vadd.f32 %v10822, %v10870
        %10872 = vmatmul.bf16.gmra.mxu0 %v9607
        %v10873 = vpop.f32.mrf.mxu0
        %v10874 = vadd.f32 %v10825, %v10873
        %v10875 = vpop.f32.mrf.mxu0
        %v10876 = vadd.f32 %v10827, %v10875
        %10877 = vdwg.mxu0
        %10878 = vmatpush.bf16.msra.mxu0 %v10226
        %10879 = vmatpush.bf16.msra.mxu0 %v10222
        %10880 = vmatpush.bf16.msra.mxu0 %v10218
        %10881 = vmatpush.bf16.msra.mxu0 %v10214
        %10882 = vmatpush.bf16.msra.mxu0 %v10210
        %10883 = vmatpush.bf16.msra.mxu0 %v10206
        %10884 = vmatpush.bf16.msra.mxu0 %v10202
        %10885 = vmatpush.bf16.msra.mxu0 %v10198
        %10886 = vmatmul.bf16.gmra.mxu0 %v9580
        %v10887 = vpop.f32.mrf.mxu0
        %v10888 = vadd.f32 %v10839, %v10887
        %v10889 = vpop.f32.mrf.mxu0
        %v10890 = vadd.f32 %v10841, %v10889
        %10891 = vmatmul.bf16.gmra.mxu0 %v9584
        %v10892 = vpop.f32.mrf.mxu0
        %v10893 = vadd.f32 %v10844, %v10892
        %v10894 = vpop.f32.mrf.mxu0
        %v10895 = vadd.f32 %v10846, %v10894
        %10896 = vmatmul.bf16.gmra.mxu0 %v9588
        %v10897 = vpop.f32.mrf.mxu0
        %v10898 = vadd.f32 %v10849, %v10897
        %v10899 = vpop.f32.mrf.mxu0
        %v10900 = vadd.f32 %v10851, %v10899
        %10901 = vmatmul.bf16.gmra.mxu0 %v9592
        %v10902 = vpop.f32.mrf.mxu0
        %v10903 = vadd.f32 %v10854, %v10902
        %v10904 = vpop.f32.mrf.mxu0
        %v10905 = vadd.f32 %v10856, %v10904
        %10906 = vmatmul.bf16.gmra.mxu0 %v9596
        %v10907 = vpop.f32.mrf.mxu0
        %v10908 = vadd.f32 %v10859, %v10907
        %v10909 = vpop.f32.mrf.mxu0
        %v10910 = vadd.f32 %v10861, %v10909
        %10911 = vmatmul.bf16.gmra.mxu0 %v9600
        %v10912 = vpop.f32.mrf.mxu0
        %v10913 = vadd.f32 %v10864, %v10912
        %v10914 = vpop.f32.mrf.mxu0
        %v10915 = vadd.f32 %v10866, %v10914
        %10916 = vmatmul.bf16.gmra.mxu0 %v9604
        %v10917 = vpop.f32.mrf.mxu0
        %v10918 = vadd.f32 %v10869, %v10917
        %v10919 = vpop.f32.mrf.mxu0
        %v10920 = vadd.f32 %v10871, %v10919
        %10921 = vmatmul.bf16.gmra.mxu0 %v9608
        %v10922 = vpop.f32.mrf.mxu0
        %v10923 = vadd.f32 %v10874, %v10922
        %v10924 = vpop.f32.mrf.mxu0
        %v10925 = vadd.f32 %v10876, %v10924
        %10926 = vdwg.mxu0
        %10927 = vmatpush.bf16.msra.mxu0 %v10258
        %10928 = vmatpush.bf16.msra.mxu0 %v10254
        %10929 = vmatpush.bf16.msra.mxu0 %v10250
        %10930 = vmatpush.bf16.msra.mxu0 %v10246
        %10931 = vmatpush.bf16.msra.mxu0 %v10242
        %10932 = vmatpush.bf16.msra.mxu0 %v10238
        %10933 = vmatpush.bf16.msra.mxu0 %v10234
        %10934 = vmatpush.bf16.msra.mxu0 %v10230
        %10935 = vmatmul.bf16.gmra.mxu0 %v9581
        %v10936 = vpop.f32.mrf.mxu0
        %v10937 = vadd.f32 %v10888, %v10936
        %v10938 = vpop.f32.mrf.mxu0
        %v10939 = vadd.f32 %v10890, %v10938
        %10940 = vmatmul.bf16.gmra.mxu0 %v9585
        %v10941 = vpop.f32.mrf.mxu0
        %v10942 = vadd.f32 %v10893, %v10941
        %v10943 = vpop.f32.mrf.mxu0
        %v10944 = vadd.f32 %v10895, %v10943
        %10945 = vmatmul.bf16.gmra.mxu0 %v9589
        %v10946 = vpop.f32.mrf.mxu0
        %v10947 = vadd.f32 %v10898, %v10946
        %v10948 = vpop.f32.mrf.mxu0
        %v10949 = vadd.f32 %v10900, %v10948
        %10950 = vmatmul.bf16.gmra.mxu0 %v9593
        %v10951 = vpop.f32.mrf.mxu0
        %v10952 = vadd.f32 %v10903, %v10951
        %v10953 = vpop.f32.mrf.mxu0
        %v10954 = vadd.f32 %v10905, %v10953
        %10955 = vmatmul.bf16.gmra.mxu0 %v9597
        %v10956 = vpop.f32.mrf.mxu0
        %v10957 = vadd.f32 %v10908, %v10956
        %v10958 = vpop.f32.mrf.mxu0
        %v10959 = vadd.f32 %v10910, %v10958
        %10960 = vmatmul.bf16.gmra.mxu0 %v9601
        %v10961 = vpop.f32.mrf.mxu0
        %v10962 = vadd.f32 %v10913, %v10961
        %v10963 = vpop.f32.mrf.mxu0
        %v10964 = vadd.f32 %v10915, %v10963
        %10965 = vmatmul.bf16.gmra.mxu0 %v9605
        %v10966 = vpop.f32.mrf.mxu0
        %v10967 = vadd.f32 %v10918, %v10966
        %v10968 = vpop.f32.mrf.mxu0
        %v10969 = vadd.f32 %v10920, %v10968
        %10970 = vmatmul.bf16.gmra.mxu0 %v9609
        %v10971 = vpop.f32.mrf.mxu0
        %v10972 = vadd.f32 %v10923, %v10971
        %v10973 = vpop.f32.mrf.mxu0
        %v10974 = vadd.f32 %v10925, %v10973
        %10975 = vdwg.mxu0
        %10976 = vmatpush.bf16.msra.mxu0 %v10163
        %10977 = vmatpush.bf16.msra.mxu0 %v10159
        %10978 = vmatpush.bf16.msra.mxu0 %v10155
        %10979 = vmatpush.bf16.msra.mxu0 %v10151
        %10980 = vmatpush.bf16.msra.mxu0 %v10147
        %10981 = vmatpush.bf16.msra.mxu0 %v10143
        %10982 = vmatpush.bf16.msra.mxu0 %v10139
        %10983 = vmatpush.bf16.msra.mxu0 %v10135
        %10984 = vmatmul.bf16.gmra.mxu0 %v9578
        %v10985 = vpop.f32.mrf.mxu0
        %v10986 = vadd.f32 %v9743, %v10985
        %v10987 = vpop.f32.mrf.mxu0
        %v10988 = vadd.f32 %v9743, %v10987
        %10989 = vmatmul.bf16.gmra.mxu0 %v9582
        %v10990 = vpop.f32.mrf.mxu0
        %v10991 = vadd.f32 %v9743, %v10990
        %v10992 = vpop.f32.mrf.mxu0
        %v10993 = vadd.f32 %v9743, %v10992
        %10994 = vmatmul.bf16.gmra.mxu0 %v9586
        %v10995 = vpop.f32.mrf.mxu0
        %v10996 = vadd.f32 %v9743, %v10995
        %v10997 = vpop.f32.mrf.mxu0
        %v10998 = vadd.f32 %v9743, %v10997
        %10999 = vmatmul.bf16.gmra.mxu0 %v9590
        %v11000 = vpop.f32.mrf.mxu0
        %v11001 = vadd.f32 %v9743, %v11000
        %v11002 = vpop.f32.mrf.mxu0
        %v11003 = vadd.f32 %v9743, %v11002
        %11004 = vmatmul.bf16.gmra.mxu0 %v9594
        %v11005 = vpop.f32.mrf.mxu0
        %v11006 = vadd.f32 %v9743, %v11005
        %v11007 = vpop.f32.mrf.mxu0
        %v11008 = vadd.f32 %v9743, %v11007
        %11009 = vmatmul.bf16.gmra.mxu0 %v9598
        %v11010 = vpop.f32.mrf.mxu0
        %v11011 = vadd.f32 %v9743, %v11010
        %v11012 = vpop.f32.mrf.mxu0
        %v11013 = vadd.f32 %v9743, %v11012
        %11014 = vmatmul.bf16.gmra.mxu0 %v9602
        %v11015 = vpop.f32.mrf.mxu0
        %v11016 = vadd.f32 %v9743, %v11015
        %v11017 = vpop.f32.mrf.mxu0
        %v11018 = vadd.f32 %v9743, %v11017
        %11019 = vmatmul.bf16.gmra.mxu0 %v9606
        %v11020 = vpop.f32.mrf.mxu0
        %v11021 = vadd.f32 %v9743, %v11020
        %v11022 = vpop.f32.mrf.mxu0
        %v11023 = vadd.f32 %v9743, %v11022
        %11024 = vdwg.mxu0
        %11025 = vmatpush.bf16.msra.mxu0 %v10195
        %11026 = vmatpush.bf16.msra.mxu0 %v10191
        %11027 = vmatpush.bf16.msra.mxu0 %v10187
        %11028 = vmatpush.bf16.msra.mxu0 %v10183
        %11029 = vmatpush.bf16.msra.mxu0 %v10179
        %11030 = vmatpush.bf16.msra.mxu0 %v10175
        %11031 = vmatpush.bf16.msra.mxu0 %v10171
        %11032 = vmatpush.bf16.msra.mxu0 %v10167
        %11033 = vmatmul.bf16.gmra.mxu0 %v9579
        %v11034 = vpop.f32.mrf.mxu0
        %v11035 = vadd.f32 %v10986, %v11034
        %v11036 = vpop.f32.mrf.mxu0
        %v11037 = vadd.f32 %v10988, %v11036
        %11038 = vmatmul.bf16.gmra.mxu0 %v9583
        %v11039 = vpop.f32.mrf.mxu0
        %v11040 = vadd.f32 %v10991, %v11039
        %v11041 = vpop.f32.mrf.mxu0
        %v11042 = vadd.f32 %v10993, %v11041
        %11043 = vmatmul.bf16.gmra.mxu0 %v9587
        %v11044 = vpop.f32.mrf.mxu0
        %v11045 = vadd.f32 %v10996, %v11044
        %v11046 = vpop.f32.mrf.mxu0
        %v11047 = vadd.f32 %v10998, %v11046
        %11048 = vmatmul.bf16.gmra.mxu0 %v9591
        %v11049 = vpop.f32.mrf.mxu0
        %v11050 = vadd.f32 %v11001, %v11049
        %v11051 = vpop.f32.mrf.mxu0
        %v11052 = vadd.f32 %v11003, %v11051
        %11053 = vmatmul.bf16.gmra.mxu0 %v9595
        %v11054 = vpop.f32.mrf.mxu0
        %v11055 = vadd.f32 %v11006, %v11054
        %v11056 = vpop.f32.mrf.mxu0
        %v11057 = vadd.f32 %v11008, %v11056
        %11058 = vmatmul.bf16.gmra.mxu0 %v9599
        %v11059 = vpop.f32.mrf.mxu0
        %v11060 = vadd.f32 %v11011, %v11059
        %v11061 = vpop.f32.mrf.mxu0
        %v11062 = vadd.f32 %v11013, %v11061
        %11063 = vmatmul.bf16.gmra.mxu0 %v9603
        %v11064 = vpop.f32.mrf.mxu0
        %v11065 = vadd.f32 %v11016, %v11064
        %v11066 = vpop.f32.mrf.mxu0
        %v11067 = vadd.f32 %v11018, %v11066
        %11068 = vmatmul.bf16.gmra.mxu0 %v9607
        %v11069 = vpop.f32.mrf.mxu0
        %v11070 = vadd.f32 %v11021, %v11069
        %v11071 = vpop.f32.mrf.mxu0
        %v11072 = vadd.f32 %v11023, %v11071
        %11073 = vdwg.mxu0
        %11074 = vmatpush.bf16.msra.mxu0 %v10227
        %11075 = vmatpush.bf16.msra.mxu0 %v10223
        %11076 = vmatpush.bf16.msra.mxu0 %v10219
        %11077 = vmatpush.bf16.msra.mxu0 %v10215
        %11078 = vmatpush.bf16.msra.mxu0 %v10211
        %11079 = vmatpush.bf16.msra.mxu0 %v10207
        %11080 = vmatpush.bf16.msra.mxu0 %v10203
        %11081 = vmatpush.bf16.msra.mxu0 %v10199
        %11082 = vmatmul.bf16.gmra.mxu0 %v9580
        %v11083 = vpop.f32.mrf.mxu0
        %v11084 = vadd.f32 %v11035, %v11083
        %v11085 = vpop.f32.mrf.mxu0
        %v11086 = vadd.f32 %v11037, %v11085
        %11087 = vmatmul.bf16.gmra.mxu0 %v9584
        %v11088 = vpop.f32.mrf.mxu0
        %v11089 = vadd.f32 %v11040, %v11088
        %v11090 = vpop.f32.mrf.mxu0
        %v11091 = vadd.f32 %v11042, %v11090
        %11092 = vmatmul.bf16.gmra.mxu0 %v9588
        %v11093 = vpop.f32.mrf.mxu0
        %v11094 = vadd.f32 %v11045, %v11093
        %v11095 = vpop.f32.mrf.mxu0
        %v11096 = vadd.f32 %v11047, %v11095
        %11097 = vmatmul.bf16.gmra.mxu0 %v9592
        %v11098 = vpop.f32.mrf.mxu0
        %v11099 = vadd.f32 %v11050, %v11098
        %v11100 = vpop.f32.mrf.mxu0
        %v11101 = vadd.f32 %v11052, %v11100
        %11102 = vmatmul.bf16.gmra.mxu0 %v9596
        %v11103 = vpop.f32.mrf.mxu0
        %v11104 = vadd.f32 %v11055, %v11103
        %v11105 = vpop.f32.mrf.mxu0
        %v11106 = vadd.f32 %v11057, %v11105
        %11107 = vmatmul.bf16.gmra.mxu0 %v9600
        %v11108 = vpop.f32.mrf.mxu0
        %v11109 = vadd.f32 %v11060, %v11108
        %v11110 = vpop.f32.mrf.mxu0
        %v11111 = vadd.f32 %v11062, %v11110
        %11112 = vmatmul.bf16.gmra.mxu0 %v9604
        %v11113 = vpop.f32.mrf.mxu0
        %v11114 = vadd.f32 %v11065, %v11113
        %v11115 = vpop.f32.mrf.mxu0
        %v11116 = vadd.f32 %v11067, %v11115
        %11117 = vmatmul.bf16.gmra.mxu0 %v9608
        %v11118 = vpop.f32.mrf.mxu0
        %v11119 = vadd.f32 %v11070, %v11118
        %v11120 = vpop.f32.mrf.mxu0
        %v11121 = vadd.f32 %v11072, %v11120
        %11122 = vdwg.mxu0
        %11123 = vmatpush.bf16.msra.mxu0 %v10259
        %11124 = vmatpush.bf16.msra.mxu0 %v10255
        %11125 = vmatpush.bf16.msra.mxu0 %v10251
        %11126 = vmatpush.bf16.msra.mxu0 %v10247
        %11127 = vmatpush.bf16.msra.mxu0 %v10243
        %11128 = vmatpush.bf16.msra.mxu0 %v10239
        %11129 = vmatpush.bf16.msra.mxu0 %v10235
        %11130 = vmatpush.bf16.msra.mxu0 %v10231
        %11131 = vmatmul.bf16.gmra.mxu0 %v9581
        %v11132 = vpop.f32.mrf.mxu0
        %v11133 = vadd.f32 %v11084, %v11132
        %v11134 = vpop.f32.mrf.mxu0
        %v11135 = vadd.f32 %v11086, %v11134
        %11136 = vmatmul.bf16.gmra.mxu0 %v9585
        %v11137 = vpop.f32.mrf.mxu0
        %v11138 = vadd.f32 %v11089, %v11137
        %v11139 = vpop.f32.mrf.mxu0
        %v11140 = vadd.f32 %v11091, %v11139
        %11141 = vmatmul.bf16.gmra.mxu0 %v9589
        %v11142 = vpop.f32.mrf.mxu0
        %v11143 = vadd.f32 %v11094, %v11142
        %v11144 = vpop.f32.mrf.mxu0
        %v11145 = vadd.f32 %v11096, %v11144
        %11146 = vmatmul.bf16.gmra.mxu0 %v9593
        %v11147 = vpop.f32.mrf.mxu0
        %v11148 = vadd.f32 %v11099, %v11147
        %v11149 = vpop.f32.mrf.mxu0
        %v11150 = vadd.f32 %v11101, %v11149
        %11151 = vmatmul.bf16.gmra.mxu0 %v9597
        %v11152 = vpop.f32.mrf.mxu0
        %v11153 = vadd.f32 %v11104, %v11152
        %v11154 = vpop.f32.mrf.mxu0
        %v11155 = vadd.f32 %v11106, %v11154
        %11156 = vmatmul.bf16.gmra.mxu0 %v9601
        %v11157 = vpop.f32.mrf.mxu0
        %v11158 = vadd.f32 %v11109, %v11157
        %v11159 = vpop.f32.mrf.mxu0
        %v11160 = vadd.f32 %v11111, %v11159
        %11161 = vmatmul.bf16.gmra.mxu0 %v9605
        %v11162 = vpop.f32.mrf.mxu0
        %v11163 = vadd.f32 %v11114, %v11162
        %v11164 = vpop.f32.mrf.mxu0
        %v11165 = vadd.f32 %v11116, %v11164
        %11166 = vmatmul.bf16.gmra.mxu0 %v9609
        %v11167 = vpop.f32.mrf.mxu0
        %v11168 = vadd.f32 %v11119, %v11167
        %v11169 = vpop.f32.mrf.mxu0
        %v11170 = vadd.f32 %v11121, %v11169
        %11171 = vdwg.mxu0
        %v11172 = vmax.f32 %v10545, 0.0
        %v11173 = vmax.f32 %v10741, 0.0
        %v11174 = vmax.f32 %v10937, 0.0
        %v11175 = vmax.f32 %v11133, 0.0
        %v11176 = vmax.f32 %v10547, 0.0
        %v11177 = vmax.f32 %v10743, 0.0
        %v11178 = vmax.f32 %v10939, 0.0
        %v11179 = vmax.f32 %v11135, 0.0
        %v11180 = vmax.f32 %v10550, 0.0
        %v11181 = vmax.f32 %v10746, 0.0
        %v11182 = vmax.f32 %v10942, 0.0
        %v11183 = vmax.f32 %v11138, 0.0
        %v11184 = vmax.f32 %v10552, 0.0
        %v11185 = vmax.f32 %v10748, 0.0
        %v11186 = vmax.f32 %v10944, 0.0
        %v11187 = vmax.f32 %v11140, 0.0
        %v11188 = vmax.f32 %v10555, 0.0
        %v11189 = vmax.f32 %v10751, 0.0
        %v11190 = vmax.f32 %v10947, 0.0
        %v11191 = vmax.f32 %v11143, 0.0
        %v11192 = vmax.f32 %v10557, 0.0
        %v11193 = vmax.f32 %v10753, 0.0
        %v11194 = vmax.f32 %v10949, 0.0
        %v11195 = vmax.f32 %v11145, 0.0
        %v11196 = vmax.f32 %v10560, 0.0
        %v11197 = vmax.f32 %v10756, 0.0
        %v11198 = vmax.f32 %v10952, 0.0
        %v11199 = vmax.f32 %v11148, 0.0
        %v11200 = vmax.f32 %v10562, 0.0
        %v11201 = vmax.f32 %v10758, 0.0
        %v11202 = vmax.f32 %v10954, 0.0
        %v11203 = vmax.f32 %v11150, 0.0
        %v11204 = vmax.f32 %v10565, 0.0
        %v11205 = vmax.f32 %v10761, 0.0
        %v11206 = vmax.f32 %v10957, 0.0
        %v11207 = vmax.f32 %v11153, 0.0
        %v11208 = vmax.f32 %v10567, 0.0
        %v11209 = vmax.f32 %v10763, 0.0
        %v11210 = vmax.f32 %v10959, 0.0
        %v11211 = vmax.f32 %v11155, 0.0
        %v11212 = vmax.f32 %v10570, 0.0
        %v11213 = vmax.f32 %v10766, 0.0
        %v11214 = vmax.f32 %v10962, 0.0
        %v11215 = vmax.f32 %v11158, 0.0
        %v11216 = vmax.f32 %v10572, 0.0
        %v11217 = vmax.f32 %v10768, 0.0
        %v11218 = vmax.f32 %v10964, 0.0
        %v11219 = vmax.f32 %v11160, 0.0
        %v11220 = vmax.f32 %v10575, 0.0
        %v11221 = vmax.f32 %v10771, 0.0
        %v11222 = vmax.f32 %v10967, 0.0
        %v11223 = vmax.f32 %v11163, 0.0
        %v11224 = vmax.f32 %v10577, 0.0
        %v11225 = vmax.f32 %v10773, 0.0
        %v11226 = vmax.f32 %v10969, 0.0
        %v11227 = vmax.f32 %v11165, 0.0
        %v11228 = vmax.f32 %v10580, 0.0
        %v11229 = vmax.f32 %v10776, 0.0
        %v11230 = vmax.f32 %v10972, 0.0
        %v11231 = vmax.f32 %v11168, 0.0
        %v11232 = vmax.f32 %v10582, 0.0
        %v11233 = vmax.f32 %v10778, 0.0
        %v11234 = vmax.f32 %v10974, 0.0
        %v11235 = vmax.f32 %v11170, 0.0
        %v11236 = vpack.c.bf16 %v6202, %v6198
        %v11237 = vpack.c.bf16 %v6203, %v6199
        %v11238 = vpack.c.bf16 %v6204, %v6200
        %v11239 = vpack.c.bf16 %v6205, %v6201
        %v11240 = vpack.c.bf16 %v11176, %v11172
        %v11241 = vpack.c.bf16 %v11177, %v11173
        %v11242 = vpack.c.bf16 %v11178, %v11174
        %v11243 = vpack.c.bf16 %v11179, %v11175
        %v11244 = vpack.c.bf16 %v6210, %v6206
        %v11245 = vpack.c.bf16 %v6211, %v6207
        %v11246 = vpack.c.bf16 %v6212, %v6208
        %v11247 = vpack.c.bf16 %v6213, %v6209
        %v11248 = vpack.c.bf16 %v11184, %v11180
        %v11249 = vpack.c.bf16 %v11185, %v11181
        %v11250 = vpack.c.bf16 %v11186, %v11182
        %v11251 = vpack.c.bf16 %v11187, %v11183
        %v11252 = vpack.c.bf16 %v6218, %v6214
        %v11253 = vpack.c.bf16 %v6219, %v6215
        %v11254 = vpack.c.bf16 %v6220, %v6216
        %v11255 = vpack.c.bf16 %v6221, %v6217
        %v11256 = vpack.c.bf16 %v11192, %v11188
        %v11257 = vpack.c.bf16 %v11193, %v11189
        %v11258 = vpack.c.bf16 %v11194, %v11190
        %v11259 = vpack.c.bf16 %v11195, %v11191
        %v11260 = vpack.c.bf16 %v6226, %v6222
        %v11261 = vpack.c.bf16 %v6227, %v6223
        %v11262 = vpack.c.bf16 %v6228, %v6224
        %v11263 = vpack.c.bf16 %v6229, %v6225
        %v11264 = vpack.c.bf16 %v11200, %v11196
        %v11265 = vpack.c.bf16 %v11201, %v11197
        %v11266 = vpack.c.bf16 %v11202, %v11198
        %v11267 = vpack.c.bf16 %v11203, %v11199
        %v11268 = vpack.c.bf16 %v6234, %v6230
        %v11269 = vpack.c.bf16 %v6235, %v6231
        %v11270 = vpack.c.bf16 %v6236, %v6232
        %v11271 = vpack.c.bf16 %v6237, %v6233
        %v11272 = vpack.c.bf16 %v11208, %v11204
        %v11273 = vpack.c.bf16 %v11209, %v11205
        %v11274 = vpack.c.bf16 %v11210, %v11206
        %v11275 = vpack.c.bf16 %v11211, %v11207
        %v11276 = vpack.c.bf16 %v6242, %v6238
        %v11277 = vpack.c.bf16 %v6243, %v6239
        %v11278 = vpack.c.bf16 %v6244, %v6240
        %v11279 = vpack.c.bf16 %v6245, %v6241
        %v11280 = vpack.c.bf16 %v11216, %v11212
        %v11281 = vpack.c.bf16 %v11217, %v11213
        %v11282 = vpack.c.bf16 %v11218, %v11214
        %v11283 = vpack.c.bf16 %v11219, %v11215
        %v11284 = vpack.c.bf16 %v6250, %v6246
        %v11285 = vpack.c.bf16 %v6251, %v6247
        %v11286 = vpack.c.bf16 %v6252, %v6248
        %v11287 = vpack.c.bf16 %v6253, %v6249
        %v11288 = vpack.c.bf16 %v11224, %v11220
        %v11289 = vpack.c.bf16 %v11225, %v11221
        %v11290 = vpack.c.bf16 %v11226, %v11222
        %v11291 = vpack.c.bf16 %v11227, %v11223
        %v11292 = vpack.c.bf16 %v6258, %v6254
        %v11293 = vpack.c.bf16 %v6259, %v6255
        %v11294 = vpack.c.bf16 %v6260, %v6256
        %v11295 = vpack.c.bf16 %v6261, %v6257
        %v11296 = vpack.c.bf16 %v11232, %v11228
        %v11297 = vpack.c.bf16 %v11233, %v11229
        %v11298 = vpack.c.bf16 %v11234, %v11230
        %v11299 = vpack.c.bf16 %v11235, %v11231
        %v11300 = vld [vmem:[%s15] sm:$0xf]
        %v11301 = vld [vmem:[%s15 + $0x4] sm:$0xf]
        %v11302 = vld [vmem:[%s15 + $0x8] sm:$0xf]
        %v11303 = vld [vmem:[%s15 + $0xc] sm:$0xf]
        %v11304 = vld [vmem:[%s15 + $0x10] sm:$0xf]
        %v11305 = vld [vmem:[%s15 + $0x14] sm:$0xf]
        %v11306 = vld [vmem:[%s15 + $0x18] sm:$0xf]
        %v11307 = vld [vmem:[%s15 + $0x1c] sm:$0xf]
        %v11308 = vld [vmem:[%s15 + $0x20] sm:$0xf]
        %v11309 = vld [vmem:[%s15 + $0x24] sm:$0xf]
        %v11310 = vld [vmem:[%s15 + $0x28] sm:$0xf]
        %v11311 = vld [vmem:[%s15 + $0x2c] sm:$0xf]
        %v11312 = vld [vmem:[%s15 + $0x30] sm:$0xf]
        %v11313 = vld [vmem:[%s15 + $0x34] sm:$0xf]
        %v11314 = vld [vmem:[%s15 + $0x38] sm:$0xf]
        %v11315 = vld [vmem:[%s15 + $0x3c] sm:$0xf]
        %v11316 = vld [vmem:[%s15 + $0x40] sm:$0xf]
        %v11317 = vld [vmem:[%s15 + $0x44] sm:$0xf]
        %v11318 = vld [vmem:[%s15 + $0x48] sm:$0xf]
        %v11319 = vld [vmem:[%s15 + $0x4c] sm:$0xf]
        %v11320 = vld [vmem:[%s15 + $0x50] sm:$0xf]
        %v11321 = vld [vmem:[%s15 + $0x54] sm:$0xf]
        %v11322 = vld [vmem:[%s15 + $0x58] sm:$0xf]
        %v11323 = vld [vmem:[%s15 + $0x5c] sm:$0xf]
        %v11324 = vld [vmem:[%s15 + $0x60] sm:$0xf]
        %v11325 = vld [vmem:[%s15 + $0x64] sm:$0xf]
        %v11326 = vld [vmem:[%s15 + $0x68] sm:$0xf]
        %v11327 = vld [vmem:[%s15 + $0x6c] sm:$0xf]
        %v11328 = vld [vmem:[%s15 + $0x70] sm:$0xf]
        %v11329 = vld [vmem:[%s15 + $0x74] sm:$0xf]
        %v11330 = vld [vmem:[%s15 + $0x78] sm:$0xf]
        %v11331 = vld [vmem:[%s15 + $0x7c] sm:$0xf]
        %v11332 = vld [vmem:[%s15 + $0x80] sm:$0xf]
        %v11333 = vld [vmem:[%s15 + $0x84] sm:$0xf]
        %v11334 = vld [vmem:[%s15 + $0x88] sm:$0xf]
        %v11335 = vld [vmem:[%s15 + $0x8c] sm:$0xf]
        %v11336 = vld [vmem:[%s15 + $0x90] sm:$0xf]
        %v11337 = vld [vmem:[%s15 + $0x94] sm:$0xf]
        %v11338 = vld [vmem:[%s15 + $0x98] sm:$0xf]
        %v11339 = vld [vmem:[%s15 + $0x9c] sm:$0xf]
        %v11340 = vld [vmem:[%s15 + $0xa0] sm:$0xf]
        %v11341 = vld [vmem:[%s15 + $0xa4] sm:$0xf]
        %v11342 = vld [vmem:[%s15 + $0xa8] sm:$0xf]
        %v11343 = vld [vmem:[%s15 + $0xac] sm:$0xf]
        %v11344 = vld [vmem:[%s15 + $0xb0] sm:$0xf]
        %v11345 = vld [vmem:[%s15 + $0xb4] sm:$0xf]
        %v11346 = vld [vmem:[%s15 + $0xb8] sm:$0xf]
        %v11347 = vld [vmem:[%s15 + $0xbc] sm:$0xf]
        %v11348 = vld [vmem:[%s15 + $0xc0] sm:$0xf]
        %v11349 = vld [vmem:[%s15 + $0xc4] sm:$0xf]
        %v11350 = vld [vmem:[%s15 + $0xc8] sm:$0xf]
        %v11351 = vld [vmem:[%s15 + $0xcc] sm:$0xf]
        %v11352 = vld [vmem:[%s15 + $0xd0] sm:$0xf]
        %v11353 = vld [vmem:[%s15 + $0xd4] sm:$0xf]
        %v11354 = vld [vmem:[%s15 + $0xd8] sm:$0xf]
        %v11355 = vld [vmem:[%s15 + $0xdc] sm:$0xf]
        %v11356 = vld [vmem:[%s15 + $0xe0] sm:$0xf]
        %v11357 = vld [vmem:[%s15 + $0xe4] sm:$0xf]
        %v11358 = vld [vmem:[%s15 + $0xe8] sm:$0xf]
        %v11359 = vld [vmem:[%s15 + $0xec] sm:$0xf]
        %v11360 = vld [vmem:[%s15 + $0xf0] sm:$0xf]
        %v11361 = vld [vmem:[%s15 + $0xf4] sm:$0xf]
        %v11362 = vld [vmem:[%s15 + $0xf8] sm:$0xf]
        %v11363 = vld [vmem:[%s15 + $0xfc] sm:$0xf]
        %v11364 = vld [vmem:[%s15 + $0x100] sm:$0xf]
        %v11365 = vld [vmem:[%s15 + $0x104] sm:$0xf]
        %v11366 = vld [vmem:[%s15 + $0x108] sm:$0xf]
        %v11367 = vld [vmem:[%s15 + $0x10c] sm:$0xf]
        %v11368 = vld [vmem:[%s15 + $0x110] sm:$0xf]
        %v11369 = vld [vmem:[%s15 + $0x114] sm:$0xf]
        %v11370 = vld [vmem:[%s15 + $0x118] sm:$0xf]
        %v11371 = vld [vmem:[%s15 + $0x11c] sm:$0xf]
        %v11372 = vld [vmem:[%s15 + $0x120] sm:$0xf]
        %v11373 = vld [vmem:[%s15 + $0x124] sm:$0xf]
        %v11374 = vld [vmem:[%s15 + $0x128] sm:$0xf]
        %v11375 = vld [vmem:[%s15 + $0x12c] sm:$0xf]
        %v11376 = vld [vmem:[%s15 + $0x130] sm:$0xf]
        %v11377 = vld [vmem:[%s15 + $0x134] sm:$0xf]
        %v11378 = vld [vmem:[%s15 + $0x138] sm:$0xf]
        %v11379 = vld [vmem:[%s15 + $0x13c] sm:$0xf]
        %v11380 = vld [vmem:[%s15 + $0x140] sm:$0xf]
        %v11381 = vld [vmem:[%s15 + $0x144] sm:$0xf]
        %v11382 = vld [vmem:[%s15 + $0x148] sm:$0xf]
        %v11383 = vld [vmem:[%s15 + $0x14c] sm:$0xf]
        %v11384 = vld [vmem:[%s15 + $0x150] sm:$0xf]
        %v11385 = vld [vmem:[%s15 + $0x154] sm:$0xf]
        %v11386 = vld [vmem:[%s15 + $0x158] sm:$0xf]
        %v11387 = vld [vmem:[%s15 + $0x15c] sm:$0xf]
        %v11388 = vld [vmem:[%s15 + $0x160] sm:$0xf]
        %v11389 = vld [vmem:[%s15 + $0x164] sm:$0xf]
        %v11390 = vld [vmem:[%s15 + $0x168] sm:$0xf]
        %v11391 = vld [vmem:[%s15 + $0x16c] sm:$0xf]
        %v11392 = vld [vmem:[%s15 + $0x170] sm:$0xf]
        %v11393 = vld [vmem:[%s15 + $0x174] sm:$0xf]
        %v11394 = vld [vmem:[%s15 + $0x178] sm:$0xf]
        %v11395 = vld [vmem:[%s15 + $0x17c] sm:$0xf]
        %v11396 = vld [vmem:[%s15 + $0x180] sm:$0xf]
        %v11397 = vld [vmem:[%s15 + $0x184] sm:$0xf]
        %v11398 = vld [vmem:[%s15 + $0x188] sm:$0xf]
        %v11399 = vld [vmem:[%s15 + $0x18c] sm:$0xf]
        %v11400 = vld [vmem:[%s15 + $0x190] sm:$0xf]
        %v11401 = vld [vmem:[%s15 + $0x194] sm:$0xf]
        %v11402 = vld [vmem:[%s15 + $0x198] sm:$0xf]
        %v11403 = vld [vmem:[%s15 + $0x19c] sm:$0xf]
        %v11404 = vld [vmem:[%s15 + $0x1a0] sm:$0xf]
        %v11405 = vld [vmem:[%s15 + $0x1a4] sm:$0xf]
        %v11406 = vld [vmem:[%s15 + $0x1a8] sm:$0xf]
        %v11407 = vld [vmem:[%s15 + $0x1ac] sm:$0xf]
        %v11408 = vld [vmem:[%s15 + $0x1b0] sm:$0xf]
        %v11409 = vld [vmem:[%s15 + $0x1b4] sm:$0xf]
        %v11410 = vld [vmem:[%s15 + $0x1b8] sm:$0xf]
        %v11411 = vld [vmem:[%s15 + $0x1bc] sm:$0xf]
        %v11412 = vld [vmem:[%s15 + $0x1c0] sm:$0xf]
        %v11413 = vld [vmem:[%s15 + $0x1c4] sm:$0xf]
        %v11414 = vld [vmem:[%s15 + $0x1c8] sm:$0xf]
        %v11415 = vld [vmem:[%s15 + $0x1cc] sm:$0xf]
        %v11416 = vld [vmem:[%s15 + $0x1d0] sm:$0xf]
        %v11417 = vld [vmem:[%s15 + $0x1d4] sm:$0xf]
        %v11418 = vld [vmem:[%s15 + $0x1d8] sm:$0xf]
        %v11419 = vld [vmem:[%s15 + $0x1dc] sm:$0xf]
        %v11420 = vld [vmem:[%s15 + $0x1e0] sm:$0xf]
        %v11421 = vld [vmem:[%s15 + $0x1e4] sm:$0xf]
        %v11422 = vld [vmem:[%s15 + $0x1e8] sm:$0xf]
        %v11423 = vld [vmem:[%s15 + $0x1ec] sm:$0xf]
        %v11424 = vld [vmem:[%s15 + $0x1f0] sm:$0xf]
        %v11425 = vld [vmem:[%s15 + $0x1f4] sm:$0xf]
        %v11426 = vld [vmem:[%s15 + $0x1f8] sm:$0xf]
        %v11427 = vld [vmem:[%s15 + $0x1fc] sm:$0xf]
        %v11428 = vld [vmem:[%s16] sm:$0x1]
        %v11430 = vperm.slane %v11428, 0
        %v11560 = vunpack.c.l.b16 %v11300
        %v11561 = vunpack.c.l.b16 %v11301
        %v11562 = vunpack.c.l.b16 %v11302
        %v11563 = vunpack.c.l.b16 %v11303
        %v11564 = vunpack.c.l.b16 %v11304
        %v11565 = vunpack.c.l.b16 %v11305
        %v11566 = vunpack.c.l.b16 %v11306
        %v11567 = vunpack.c.l.b16 %v11307
        %v11568 = vunpack.c.l.b16 %v11308
        %v11569 = vunpack.c.l.b16 %v11309
        %v11570 = vunpack.c.l.b16 %v11310
        %v11571 = vunpack.c.l.b16 %v11311
        %v11572 = vunpack.c.l.b16 %v11312
        %v11573 = vunpack.c.l.b16 %v11313
        %v11574 = vunpack.c.l.b16 %v11314
        %v11575 = vunpack.c.l.b16 %v11315
        %v11576 = vunpack.c.l.b16 %v11316
        %v11577 = vunpack.c.l.b16 %v11317
        %v11578 = vunpack.c.l.b16 %v11318
        %v11579 = vunpack.c.l.b16 %v11319
        %v11580 = vunpack.c.l.b16 %v11320
        %v11581 = vunpack.c.l.b16 %v11321
        %v11582 = vunpack.c.l.b16 %v11322
        %v11583 = vunpack.c.l.b16 %v11323
        %v11584 = vunpack.c.l.b16 %v11324
        %v11585 = vunpack.c.l.b16 %v11325
        %v11586 = vunpack.c.l.b16 %v11326
        %v11587 = vunpack.c.l.b16 %v11327
        %v11588 = vunpack.c.l.b16 %v11328
        %v11589 = vunpack.c.l.b16 %v11329
        %v11590 = vunpack.c.l.b16 %v11330
        %v11591 = vunpack.c.l.b16 %v11331
        %v11592 = vunpack.c.l.b16 %v11332
        %v11593 = vunpack.c.l.b16 %v11333
        %v11594 = vunpack.c.l.b16 %v11334
        %v11595 = vunpack.c.l.b16 %v11335
        %v11596 = vunpack.c.l.b16 %v11336
        %v11597 = vunpack.c.l.b16 %v11337
        %v11598 = vunpack.c.l.b16 %v11338
        %v11599 = vunpack.c.l.b16 %v11339
        %v11600 = vunpack.c.l.b16 %v11340
        %v11601 = vunpack.c.l.b16 %v11341
        %v11602 = vunpack.c.l.b16 %v11342
        %v11603 = vunpack.c.l.b16 %v11343
        %v11604 = vunpack.c.l.b16 %v11344
        %v11605 = vunpack.c.l.b16 %v11345
        %v11606 = vunpack.c.l.b16 %v11346
        %v11607 = vunpack.c.l.b16 %v11347
        %v11608 = vunpack.c.l.b16 %v11348
        %v11609 = vunpack.c.l.b16 %v11349
        %v11610 = vunpack.c.l.b16 %v11350
        %v11611 = vunpack.c.l.b16 %v11351
        %v11612 = vunpack.c.l.b16 %v11352
        %v11613 = vunpack.c.l.b16 %v11353
        %v11614 = vunpack.c.l.b16 %v11354
        %v11615 = vunpack.c.l.b16 %v11355
        %v11616 = vunpack.c.l.b16 %v11356
        %v11617 = vunpack.c.l.b16 %v11357
        %v11618 = vunpack.c.l.b16 %v11358
        %v11619 = vunpack.c.l.b16 %v11359
        %v11620 = vunpack.c.l.b16 %v11360
        %v11621 = vunpack.c.l.b16 %v11361
        %v11622 = vunpack.c.l.b16 %v11362
        %v11623 = vunpack.c.l.b16 %v11363
        %v11624 = vunpack.c.l.b16 %v11364
        %v11625 = vunpack.c.l.b16 %v11365
        %v11626 = vunpack.c.l.b16 %v11366
        %v11627 = vunpack.c.l.b16 %v11367
        %v11628 = vunpack.c.l.b16 %v11368
        %v11629 = vunpack.c.l.b16 %v11369
        %v11630 = vunpack.c.l.b16 %v11370
        %v11631 = vunpack.c.l.b16 %v11371
        %v11632 = vunpack.c.l.b16 %v11372
        %v11633 = vunpack.c.l.b16 %v11373
        %v11634 = vunpack.c.l.b16 %v11374
        %v11635 = vunpack.c.l.b16 %v11375
        %v11636 = vunpack.c.l.b16 %v11376
        %v11637 = vunpack.c.l.b16 %v11377
        %v11638 = vunpack.c.l.b16 %v11378
        %v11639 = vunpack.c.l.b16 %v11379
        %v11640 = vunpack.c.l.b16 %v11380
        %v11641 = vunpack.c.l.b16 %v11381
        %v11642 = vunpack.c.l.b16 %v11382
        %v11643 = vunpack.c.l.b16 %v11383
        %v11644 = vunpack.c.l.b16 %v11384
        %v11645 = vunpack.c.l.b16 %v11385
        %v11646 = vunpack.c.l.b16 %v11386
        %v11647 = vunpack.c.l.b16 %v11387
        %v11648 = vunpack.c.l.b16 %v11388
        %v11649 = vunpack.c.l.b16 %v11389
        %v11650 = vunpack.c.l.b16 %v11390
        %v11651 = vunpack.c.l.b16 %v11391
        %v11652 = vunpack.c.l.b16 %v11392
        %v11653 = vunpack.c.l.b16 %v11393
        %v11654 = vunpack.c.l.b16 %v11394
        %v11655 = vunpack.c.l.b16 %v11395
        %v11656 = vunpack.c.l.b16 %v11396
        %v11657 = vunpack.c.l.b16 %v11397
        %v11658 = vunpack.c.l.b16 %v11398
        %v11659 = vunpack.c.l.b16 %v11399
        %v11660 = vunpack.c.l.b16 %v11400
        %v11661 = vunpack.c.l.b16 %v11401
        %v11662 = vunpack.c.l.b16 %v11402
        %v11663 = vunpack.c.l.b16 %v11403
        %v11664 = vunpack.c.l.b16 %v11404
        %v11665 = vunpack.c.l.b16 %v11405
        %v11666 = vunpack.c.l.b16 %v11406
        %v11667 = vunpack.c.l.b16 %v11407
        %v11668 = vunpack.c.l.b16 %v11408
        %v11669 = vunpack.c.l.b16 %v11409
        %v11670 = vunpack.c.l.b16 %v11410
        %v11671 = vunpack.c.l.b16 %v11411
        %v11672 = vunpack.c.l.b16 %v11412
        %v11673 = vunpack.c.l.b16 %v11413
        %v11674 = vunpack.c.l.b16 %v11414
        %v11675 = vunpack.c.l.b16 %v11415
        %v11676 = vunpack.c.l.b16 %v11416
        %v11677 = vunpack.c.l.b16 %v11417
        %v11678 = vunpack.c.l.b16 %v11418
        %v11679 = vunpack.c.l.b16 %v11419
        %v11680 = vunpack.c.l.b16 %v11420
        %v11681 = vunpack.c.l.b16 %v11421
        %v11682 = vunpack.c.l.b16 %v11422
        %v11683 = vunpack.c.l.b16 %v11423
        %v11684 = vunpack.c.l.b16 %v11424
        %v11685 = vunpack.c.l.b16 %v11425
        %v11686 = vunpack.c.l.b16 %v11426
        %v11687 = vunpack.c.l.b16 %v11427
        %v11688 = vpack.c.b16 %v11561, %v11560
        %v11689 = vpack.c.b16 %v11563, %v11562
        %v11690 = vpack.c.b16 %v11565, %v11564
        %v11691 = vpack.c.b16 %v11567, %v11566
        %v11692 = vpack.c.b16 %v11569, %v11568
        %v11693 = vpack.c.b16 %v11571, %v11570
        %v11694 = vpack.c.b16 %v11573, %v11572
        %v11695 = vpack.c.b16 %v11575, %v11574
        %v11696 = vpack.c.b16 %v11577, %v11576
        %v11697 = vpack.c.b16 %v11579, %v11578
        %v11698 = vpack.c.b16 %v11581, %v11580
        %v11699 = vpack.c.b16 %v11583, %v11582
        %v11700 = vpack.c.b16 %v11585, %v11584
        %v11701 = vpack.c.b16 %v11587, %v11586
        %v11702 = vpack.c.b16 %v11589, %v11588
        %v11703 = vpack.c.b16 %v11591, %v11590
        %v11704 = vpack.c.b16 %v11593, %v11592
        %v11705 = vpack.c.b16 %v11595, %v11594
        %v11706 = vpack.c.b16 %v11597, %v11596
        %v11707 = vpack.c.b16 %v11599, %v11598
        %v11708 = vpack.c.b16 %v11601, %v11600
        %v11709 = vpack.c.b16 %v11603, %v11602
        %v11710 = vpack.c.b16 %v11605, %v11604
        %v11711 = vpack.c.b16 %v11607, %v11606
        %v11712 = vpack.c.b16 %v11609, %v11608
        %v11713 = vpack.c.b16 %v11611, %v11610
        %v11714 = vpack.c.b16 %v11613, %v11612
        %v11715 = vpack.c.b16 %v11615, %v11614
        %v11716 = vpack.c.b16 %v11617, %v11616
        %v11717 = vpack.c.b16 %v11619, %v11618
        %v11718 = vpack.c.b16 %v11621, %v11620
        %v11719 = vpack.c.b16 %v11623, %v11622
        %v11720 = vpack.c.b16 %v11625, %v11624
        %v11721 = vpack.c.b16 %v11627, %v11626
        %v11722 = vpack.c.b16 %v11629, %v11628
        %v11723 = vpack.c.b16 %v11631, %v11630
        %v11724 = vpack.c.b16 %v11633, %v11632
        %v11725 = vpack.c.b16 %v11635, %v11634
        %v11726 = vpack.c.b16 %v11637, %v11636
        %v11727 = vpack.c.b16 %v11639, %v11638
        %v11728 = vpack.c.b16 %v11641, %v11640
        %v11729 = vpack.c.b16 %v11643, %v11642
        %v11730 = vpack.c.b16 %v11645, %v11644
        %v11731 = vpack.c.b16 %v11647, %v11646
        %v11732 = vpack.c.b16 %v11649, %v11648
        %v11733 = vpack.c.b16 %v11651, %v11650
        %v11734 = vpack.c.b16 %v11653, %v11652
        %v11735 = vpack.c.b16 %v11655, %v11654
        %v11736 = vpack.c.b16 %v11657, %v11656
        %v11737 = vpack.c.b16 %v11659, %v11658
        %v11738 = vpack.c.b16 %v11661, %v11660
        %v11739 = vpack.c.b16 %v11663, %v11662
        %v11740 = vpack.c.b16 %v11665, %v11664
        %v11741 = vpack.c.b16 %v11667, %v11666
        %v11742 = vpack.c.b16 %v11669, %v11668
        %v11743 = vpack.c.b16 %v11671, %v11670
        %v11744 = vpack.c.b16 %v11673, %v11672
        %v11745 = vpack.c.b16 %v11675, %v11674
        %v11746 = vpack.c.b16 %v11677, %v11676
        %v11747 = vpack.c.b16 %v11679, %v11678
        %v11748 = vpack.c.b16 %v11681, %v11680
        %v11749 = vpack.c.b16 %v11683, %v11682
        %v11750 = vpack.c.b16 %v11685, %v11684
        %v11751 = vpack.c.b16 %v11687, %v11686
        %11816 = vmatpush.bf16.msra.mxu0 %v11695
        %11817 = vmatpush.bf16.msra.mxu0 %v11694
        %11818 = vmatpush.bf16.msra.mxu0 %v11693
        %11819 = vmatpush.bf16.msra.mxu0 %v11692
        %11820 = vmatpush.bf16.msra.mxu0 %v11691
        %11821 = vmatpush.bf16.msra.mxu0 %v11690
        %11822 = vmatpush.bf16.msra.mxu0 %v11689
        %11823 = vmatpush.bf16.msra.mxu0 %v11688
        %11824 = vmatmul.bf16.gmra.mxu0 %v11236
        %v11825 = vpop.f32.mrf.mxu0
        %v11826 = vadd.f32 %v11430, %v11825
        %v11827 = vpop.f32.mrf.mxu0
        %v11828 = vadd.f32 %v11430, %v11827
        %11829 = vmatmul.bf16.gmra.mxu0 %v11244
        %v11830 = vpop.f32.mrf.mxu0
        %v11831 = vadd.f32 %v11430, %v11830
        %v11832 = vpop.f32.mrf.mxu0
        %v11833 = vadd.f32 %v11430, %v11832
        %11834 = vmatmul.bf16.gmra.mxu0 %v11252
        %v11835 = vpop.f32.mrf.mxu0
        %v11836 = vadd.f32 %v11430, %v11835
        %v11837 = vpop.f32.mrf.mxu0
        %v11838 = vadd.f32 %v11430, %v11837
        %11839 = vmatmul.bf16.gmra.mxu0 %v11260
        %v11840 = vpop.f32.mrf.mxu0
        %v11841 = vadd.f32 %v11430, %v11840
        %v11842 = vpop.f32.mrf.mxu0
        %v11843 = vadd.f32 %v11430, %v11842
        %11844 = vmatmul.bf16.gmra.mxu0 %v11268
        %v11845 = vpop.f32.mrf.mxu0
        %v11846 = vadd.f32 %v11430, %v11845
        %v11847 = vpop.f32.mrf.mxu0
        %v11848 = vadd.f32 %v11430, %v11847
        %11849 = vmatmul.bf16.gmra.mxu0 %v11276
        %v11850 = vpop.f32.mrf.mxu0
        %v11851 = vadd.f32 %v11430, %v11850
        %v11852 = vpop.f32.mrf.mxu0
        %v11853 = vadd.f32 %v11430, %v11852
        %11854 = vmatmul.bf16.gmra.mxu0 %v11284
        %v11855 = vpop.f32.mrf.mxu0
        %v11856 = vadd.f32 %v11430, %v11855
        %v11857 = vpop.f32.mrf.mxu0
        %v11858 = vadd.f32 %v11430, %v11857
        %11859 = vmatmul.bf16.gmra.mxu0 %v11292
        %v11860 = vpop.f32.mrf.mxu0
        %v11861 = vadd.f32 %v11430, %v11860
        %v11862 = vpop.f32.mrf.mxu0
        %v11863 = vadd.f32 %v11430, %v11862
        %11864 = vdwg.mxu0
        %11865 = vmatpush.bf16.msra.mxu0 %v11703
        %11866 = vmatpush.bf16.msra.mxu0 %v11702
        %11867 = vmatpush.bf16.msra.mxu0 %v11701
        %11868 = vmatpush.bf16.msra.mxu0 %v11700
        %11869 = vmatpush.bf16.msra.mxu0 %v11699
        %11870 = vmatpush.bf16.msra.mxu0 %v11698
        %11871 = vmatpush.bf16.msra.mxu0 %v11697
        %11872 = vmatpush.bf16.msra.mxu0 %v11696
        %11873 = vmatmul.bf16.gmra.mxu0 %v11237
        %v11874 = vpop.f32.mrf.mxu0
        %v11875 = vadd.f32 %v11826, %v11874
        %v11876 = vpop.f32.mrf.mxu0
        %v11877 = vadd.f32 %v11828, %v11876
        %11878 = vmatmul.bf16.gmra.mxu0 %v11245
        %v11879 = vpop.f32.mrf.mxu0
        %v11880 = vadd.f32 %v11831, %v11879
        %v11881 = vpop.f32.mrf.mxu0
        %v11882 = vadd.f32 %v11833, %v11881
        %11883 = vmatmul.bf16.gmra.mxu0 %v11253
        %v11884 = vpop.f32.mrf.mxu0
        %v11885 = vadd.f32 %v11836, %v11884
        %v11886 = vpop.f32.mrf.mxu0
        %v11887 = vadd.f32 %v11838, %v11886
        %11888 = vmatmul.bf16.gmra.mxu0 %v11261
        %v11889 = vpop.f32.mrf.mxu0
        %v11890 = vadd.f32 %v11841, %v11889
        %v11891 = vpop.f32.mrf.mxu0
        %v11892 = vadd.f32 %v11843, %v11891
        %11893 = vmatmul.bf16.gmra.mxu0 %v11269
        %v11894 = vpop.f32.mrf.mxu0
        %v11895 = vadd.f32 %v11846, %v11894
        %v11896 = vpop.f32.mrf.mxu0
        %v11897 = vadd.f32 %v11848, %v11896
        %11898 = vmatmul.bf16.gmra.mxu0 %v11277
        %v11899 = vpop.f32.mrf.mxu0
        %v11900 = vadd.f32 %v11851, %v11899
        %v11901 = vpop.f32.mrf.mxu0
        %v11902 = vadd.f32 %v11853, %v11901
        %11903 = vmatmul.bf16.gmra.mxu0 %v11285
        %v11904 = vpop.f32.mrf.mxu0
        %v11905 = vadd.f32 %v11856, %v11904
        %v11906 = vpop.f32.mrf.mxu0
        %v11907 = vadd.f32 %v11858, %v11906
        %11908 = vmatmul.bf16.gmra.mxu0 %v11293
        %v11909 = vpop.f32.mrf.mxu0
        %v11910 = vadd.f32 %v11861, %v11909
        %v11911 = vpop.f32.mrf.mxu0
        %v11912 = vadd.f32 %v11863, %v11911
        %11913 = vdwg.mxu0
        %11914 = vmatpush.bf16.msra.mxu0 %v11711
        %11915 = vmatpush.bf16.msra.mxu0 %v11710
        %11916 = vmatpush.bf16.msra.mxu0 %v11709
        %11917 = vmatpush.bf16.msra.mxu0 %v11708
        %11918 = vmatpush.bf16.msra.mxu0 %v11707
        %11919 = vmatpush.bf16.msra.mxu0 %v11706
        %11920 = vmatpush.bf16.msra.mxu0 %v11705
        %11921 = vmatpush.bf16.msra.mxu0 %v11704
        %11922 = vmatmul.bf16.gmra.mxu0 %v11238
        %v11923 = vpop.f32.mrf.mxu0
        %v11924 = vadd.f32 %v11875, %v11923
        %v11925 = vpop.f32.mrf.mxu0
        %v11926 = vadd.f32 %v11877, %v11925
        %11927 = vmatmul.bf16.gmra.mxu0 %v11246
        %v11928 = vpop.f32.mrf.mxu0
        %v11929 = vadd.f32 %v11880, %v11928
        %v11930 = vpop.f32.mrf.mxu0
        %v11931 = vadd.f32 %v11882, %v11930
        %11932 = vmatmul.bf16.gmra.mxu0 %v11254
        %v11933 = vpop.f32.mrf.mxu0
        %v11934 = vadd.f32 %v11885, %v11933
        %v11935 = vpop.f32.mrf.mxu0
        %v11936 = vadd.f32 %v11887, %v11935
        %11937 = vmatmul.bf16.gmra.mxu0 %v11262
        %v11938 = vpop.f32.mrf.mxu0
        %v11939 = vadd.f32 %v11890, %v11938
        %v11940 = vpop.f32.mrf.mxu0
        %v11941 = vadd.f32 %v11892, %v11940
        %11942 = vmatmul.bf16.gmra.mxu0 %v11270
        %v11943 = vpop.f32.mrf.mxu0
        %v11944 = vadd.f32 %v11895, %v11943
        %v11945 = vpop.f32.mrf.mxu0
        %v11946 = vadd.f32 %v11897, %v11945
        %11947 = vmatmul.bf16.gmra.mxu0 %v11278
        %v11948 = vpop.f32.mrf.mxu0
        %v11949 = vadd.f32 %v11900, %v11948
        %v11950 = vpop.f32.mrf.mxu0
        %v11951 = vadd.f32 %v11902, %v11950
        %11952 = vmatmul.bf16.gmra.mxu0 %v11286
        %v11953 = vpop.f32.mrf.mxu0
        %v11954 = vadd.f32 %v11905, %v11953
        %v11955 = vpop.f32.mrf.mxu0
        %v11956 = vadd.f32 %v11907, %v11955
        %11957 = vmatmul.bf16.gmra.mxu0 %v11294
        %v11958 = vpop.f32.mrf.mxu0
        %v11959 = vadd.f32 %v11910, %v11958
        %v11960 = vpop.f32.mrf.mxu0
        %v11961 = vadd.f32 %v11912, %v11960
        %11962 = vdwg.mxu0
        %11963 = vmatpush.bf16.msra.mxu0 %v11719
        %11964 = vmatpush.bf16.msra.mxu0 %v11718
        %11965 = vmatpush.bf16.msra.mxu0 %v11717
        %11966 = vmatpush.bf16.msra.mxu0 %v11716
        %11967 = vmatpush.bf16.msra.mxu0 %v11715
        %11968 = vmatpush.bf16.msra.mxu0 %v11714
        %11969 = vmatpush.bf16.msra.mxu0 %v11713
        %11970 = vmatpush.bf16.msra.mxu0 %v11712
        %11971 = vmatmul.bf16.gmra.mxu0 %v11239
        %v11972 = vpop.f32.mrf.mxu0
        %v11973 = vadd.f32 %v11924, %v11972
        %v11974 = vpop.f32.mrf.mxu0
        %v11975 = vadd.f32 %v11926, %v11974
        %11976 = vmatmul.bf16.gmra.mxu0 %v11247
        %v11977 = vpop.f32.mrf.mxu0
        %v11978 = vadd.f32 %v11929, %v11977
        %v11979 = vpop.f32.mrf.mxu0
        %v11980 = vadd.f32 %v11931, %v11979
        %11981 = vmatmul.bf16.gmra.mxu0 %v11255
        %v11982 = vpop.f32.mrf.mxu0
        %v11983 = vadd.f32 %v11934, %v11982
        %v11984 = vpop.f32.mrf.mxu0
        %v11985 = vadd.f32 %v11936, %v11984
        %11986 = vmatmul.bf16.gmra.mxu0 %v11263
        %v11987 = vpop.f32.mrf.mxu0
        %v11988 = vadd.f32 %v11939, %v11987
        %v11989 = vpop.f32.mrf.mxu0
        %v11990 = vadd.f32 %v11941, %v11989
        %11991 = vmatmul.bf16.gmra.mxu0 %v11271
        %v11992 = vpop.f32.mrf.mxu0
        %v11993 = vadd.f32 %v11944, %v11992
        %v11994 = vpop.f32.mrf.mxu0
        %v11995 = vadd.f32 %v11946, %v11994
        %11996 = vmatmul.bf16.gmra.mxu0 %v11279
        %v11997 = vpop.f32.mrf.mxu0
        %v11998 = vadd.f32 %v11949, %v11997
        %v11999 = vpop.f32.mrf.mxu0
        %v12000 = vadd.f32 %v11951, %v11999
        %12001 = vmatmul.bf16.gmra.mxu0 %v11287
        %v12002 = vpop.f32.mrf.mxu0
        %v12003 = vadd.f32 %v11954, %v12002
        %v12004 = vpop.f32.mrf.mxu0
        %v12005 = vadd.f32 %v11956, %v12004
        %12006 = vmatmul.bf16.gmra.mxu0 %v11295
        %v12007 = vpop.f32.mrf.mxu0
        %v12008 = vadd.f32 %v11959, %v12007
        %v12009 = vpop.f32.mrf.mxu0
        %v12010 = vadd.f32 %v11961, %v12009
        %12011 = vdwg.mxu0
        %12012 = vmatpush.bf16.msra.mxu0 %v11727
        %12013 = vmatpush.bf16.msra.mxu0 %v11726
        %12014 = vmatpush.bf16.msra.mxu0 %v11725
        %12015 = vmatpush.bf16.msra.mxu0 %v11724
        %12016 = vmatpush.bf16.msra.mxu0 %v11723
        %12017 = vmatpush.bf16.msra.mxu0 %v11722
        %12018 = vmatpush.bf16.msra.mxu0 %v11721
        %12019 = vmatpush.bf16.msra.mxu0 %v11720
        %12020 = vmatmul.bf16.gmra.mxu0 %v11240
        %v12021 = vpop.f32.mrf.mxu0
        %v12022 = vadd.f32 %v11973, %v12021
        %v12023 = vpop.f32.mrf.mxu0
        %v12024 = vadd.f32 %v11975, %v12023
        %12025 = vmatmul.bf16.gmra.mxu0 %v11248
        %v12026 = vpop.f32.mrf.mxu0
        %v12027 = vadd.f32 %v11978, %v12026
        %v12028 = vpop.f32.mrf.mxu0
        %v12029 = vadd.f32 %v11980, %v12028
        %12030 = vmatmul.bf16.gmra.mxu0 %v11256
        %v12031 = vpop.f32.mrf.mxu0
        %v12032 = vadd.f32 %v11983, %v12031
        %v12033 = vpop.f32.mrf.mxu0
        %v12034 = vadd.f32 %v11985, %v12033
        %12035 = vmatmul.bf16.gmra.mxu0 %v11264
        %v12036 = vpop.f32.mrf.mxu0
        %v12037 = vadd.f32 %v11988, %v12036
        %v12038 = vpop.f32.mrf.mxu0
        %v12039 = vadd.f32 %v11990, %v12038
        %12040 = vmatmul.bf16.gmra.mxu0 %v11272
        %v12041 = vpop.f32.mrf.mxu0
        %v12042 = vadd.f32 %v11993, %v12041
        %v12043 = vpop.f32.mrf.mxu0
        %v12044 = vadd.f32 %v11995, %v12043
        %12045 = vmatmul.bf16.gmra.mxu0 %v11280
        %v12046 = vpop.f32.mrf.mxu0
        %v12047 = vadd.f32 %v11998, %v12046
        %v12048 = vpop.f32.mrf.mxu0
        %v12049 = vadd.f32 %v12000, %v12048
        %12050 = vmatmul.bf16.gmra.mxu0 %v11288
        %v12051 = vpop.f32.mrf.mxu0
        %v12052 = vadd.f32 %v12003, %v12051
        %v12053 = vpop.f32.mrf.mxu0
        %v12054 = vadd.f32 %v12005, %v12053
        %12055 = vmatmul.bf16.gmra.mxu0 %v11296
        %v12056 = vpop.f32.mrf.mxu0
        %v12057 = vadd.f32 %v12008, %v12056
        %v12058 = vpop.f32.mrf.mxu0
        %v12059 = vadd.f32 %v12010, %v12058
        %12060 = vdwg.mxu0
        %12061 = vmatpush.bf16.msra.mxu0 %v11735
        %12062 = vmatpush.bf16.msra.mxu0 %v11734
        %12063 = vmatpush.bf16.msra.mxu0 %v11733
        %12064 = vmatpush.bf16.msra.mxu0 %v11732
        %12065 = vmatpush.bf16.msra.mxu0 %v11731
        %12066 = vmatpush.bf16.msra.mxu0 %v11730
        %12067 = vmatpush.bf16.msra.mxu0 %v11729
        %12068 = vmatpush.bf16.msra.mxu0 %v11728
        %12069 = vmatmul.bf16.gmra.mxu0 %v11241
        %v12070 = vpop.f32.mrf.mxu0
        %v12071 = vadd.f32 %v12022, %v12070
        %v12072 = vpop.f32.mrf.mxu0
        %v12073 = vadd.f32 %v12024, %v12072
        %12074 = vmatmul.bf16.gmra.mxu0 %v11249
        %v12075 = vpop.f32.mrf.mxu0
        %v12076 = vadd.f32 %v12027, %v12075
        %v12077 = vpop.f32.mrf.mxu0
        %v12078 = vadd.f32 %v12029, %v12077
        %12079 = vmatmul.bf16.gmra.mxu0 %v11257
        %v12080 = vpop.f32.mrf.mxu0
        %v12081 = vadd.f32 %v12032, %v12080
        %v12082 = vpop.f32.mrf.mxu0
        %v12083 = vadd.f32 %v12034, %v12082
        %12084 = vmatmul.bf16.gmra.mxu0 %v11265
        %v12085 = vpop.f32.mrf.mxu0
        %v12086 = vadd.f32 %v12037, %v12085
        %v12087 = vpop.f32.mrf.mxu0
        %v12088 = vadd.f32 %v12039, %v12087
        %12089 = vmatmul.bf16.gmra.mxu0 %v11273
        %v12090 = vpop.f32.mrf.mxu0
        %v12091 = vadd.f32 %v12042, %v12090
        %v12092 = vpop.f32.mrf.mxu0
        %v12093 = vadd.f32 %v12044, %v12092
        %12094 = vmatmul.bf16.gmra.mxu0 %v11281
        %v12095 = vpop.f32.mrf.mxu0
        %v12096 = vadd.f32 %v12047, %v12095
        %v12097 = vpop.f32.mrf.mxu0
        %v12098 = vadd.f32 %v12049, %v12097
        %12099 = vmatmul.bf16.gmra.mxu0 %v11289
        %v12100 = vpop.f32.mrf.mxu0
        %v12101 = vadd.f32 %v12052, %v12100
        %v12102 = vpop.f32.mrf.mxu0
        %v12103 = vadd.f32 %v12054, %v12102
        %12104 = vmatmul.bf16.gmra.mxu0 %v11297
        %v12105 = vpop.f32.mrf.mxu0
        %v12106 = vadd.f32 %v12057, %v12105
        %v12107 = vpop.f32.mrf.mxu0
        %v12108 = vadd.f32 %v12059, %v12107
        %12109 = vdwg.mxu0
        %12110 = vmatpush.bf16.msra.mxu0 %v11743
        %12111 = vmatpush.bf16.msra.mxu0 %v11742
        %12112 = vmatpush.bf16.msra.mxu0 %v11741
        %12113 = vmatpush.bf16.msra.mxu0 %v11740
        %12114 = vmatpush.bf16.msra.mxu0 %v11739
        %12115 = vmatpush.bf16.msra.mxu0 %v11738
        %12116 = vmatpush.bf16.msra.mxu0 %v11737
        %12117 = vmatpush.bf16.msra.mxu0 %v11736
        %12118 = vmatmul.bf16.gmra.mxu0 %v11242
        %v12119 = vpop.f32.mrf.mxu0
        %v12120 = vadd.f32 %v12071, %v12119
        %v12121 = vpop.f32.mrf.mxu0
        %v12122 = vadd.f32 %v12073, %v12121
        %12123 = vmatmul.bf16.gmra.mxu0 %v11250
        %v12124 = vpop.f32.mrf.mxu0
        %v12125 = vadd.f32 %v12076, %v12124
        %v12126 = vpop.f32.mrf.mxu0
        %v12127 = vadd.f32 %v12078, %v12126
        %12128 = vmatmul.bf16.gmra.mxu0 %v11258
        %v12129 = vpop.f32.mrf.mxu0
        %v12130 = vadd.f32 %v12081, %v12129
        %v12131 = vpop.f32.mrf.mxu0
        %v12132 = vadd.f32 %v12083, %v12131
        %12133 = vmatmul.bf16.gmra.mxu0 %v11266
        %v12134 = vpop.f32.mrf.mxu0
        %v12135 = vadd.f32 %v12086, %v12134
        %v12136 = vpop.f32.mrf.mxu0
        %v12137 = vadd.f32 %v12088, %v12136
        %12138 = vmatmul.bf16.gmra.mxu0 %v11274
        %v12139 = vpop.f32.mrf.mxu0
        %v12140 = vadd.f32 %v12091, %v12139
        %v12141 = vpop.f32.mrf.mxu0
        %v12142 = vadd.f32 %v12093, %v12141
        %12143 = vmatmul.bf16.gmra.mxu0 %v11282
        %v12144 = vpop.f32.mrf.mxu0
        %v12145 = vadd.f32 %v12096, %v12144
        %v12146 = vpop.f32.mrf.mxu0
        %v12147 = vadd.f32 %v12098, %v12146
        %12148 = vmatmul.bf16.gmra.mxu0 %v11290
        %v12149 = vpop.f32.mrf.mxu0
        %v12150 = vadd.f32 %v12101, %v12149
        %v12151 = vpop.f32.mrf.mxu0
        %v12152 = vadd.f32 %v12103, %v12151
        %12153 = vmatmul.bf16.gmra.mxu0 %v11298
        %v12154 = vpop.f32.mrf.mxu0
        %v12155 = vadd.f32 %v12106, %v12154
        %v12156 = vpop.f32.mrf.mxu0
        %v12157 = vadd.f32 %v12108, %v12156
        %12158 = vdwg.mxu0
        %12159 = vmatpush.bf16.msra.mxu0 %v11751
        %12160 = vmatpush.bf16.msra.mxu0 %v11750
        %12161 = vmatpush.bf16.msra.mxu0 %v11749
        %12162 = vmatpush.bf16.msra.mxu0 %v11748
        %12163 = vmatpush.bf16.msra.mxu0 %v11747
        %12164 = vmatpush.bf16.msra.mxu0 %v11746
        %12165 = vmatpush.bf16.msra.mxu0 %v11745
        %12166 = vmatpush.bf16.msra.mxu0 %v11744
        %12167 = vmatmul.bf16.gmra.mxu0 %v11243
        %v12168 = vpop.f32.mrf.mxu0
        %v12169 = vadd.f32 %v12120, %v12168
        %v12170 = vpop.f32.mrf.mxu0
        %v12171 = vadd.f32 %v12122, %v12170
        %12172 = vmatmul.bf16.gmra.mxu0 %v11251
        %v12173 = vpop.f32.mrf.mxu0
        %v12174 = vadd.f32 %v12125, %v12173
        %v12175 = vpop.f32.mrf.mxu0
        %v12176 = vadd.f32 %v12127, %v12175
        %12177 = vmatmul.bf16.gmra.mxu0 %v11259
        %v12178 = vpop.f32.mrf.mxu0
        %v12179 = vadd.f32 %v12130, %v12178
        %v12180 = vpop.f32.mrf.mxu0
        %v12181 = vadd.f32 %v12132, %v12180
        %12182 = vmatmul.bf16.gmra.mxu0 %v11267
        %v12183 = vpop.f32.mrf.mxu0
        %v12184 = vadd.f32 %v12135, %v12183
        %v12185 = vpop.f32.mrf.mxu0
        %v12186 = vadd.f32 %v12137, %v12185
        %12187 = vmatmul.bf16.gmra.mxu0 %v11275
        %v12188 = vpop.f32.mrf.mxu0
        %v12189 = vadd.f32 %v12140, %v12188
        %v12190 = vpop.f32.mrf.mxu0
        %v12191 = vadd.f32 %v12142, %v12190
        %12192 = vmatmul.bf16.gmra.mxu0 %v11283
        %v12193 = vpop.f32.mrf.mxu0
        %v12194 = vadd.f32 %v12145, %v12193
        %v12195 = vpop.f32.mrf.mxu0
        %v12196 = vadd.f32 %v12147, %v12195
        %12197 = vmatmul.bf16.gmra.mxu0 %v11291
        %v12198 = vpop.f32.mrf.mxu0
        %v12199 = vadd.f32 %v12150, %v12198
        %v12200 = vpop.f32.mrf.mxu0
        %v12201 = vadd.f32 %v12152, %v12200
        %12202 = vmatmul.bf16.gmra.mxu0 %v11299
        %v12203 = vpop.f32.mrf.mxu0
        %v12204 = vadd.f32 %v12155, %v12203
        %v12205 = vpop.f32.mrf.mxu0
        %v12206 = vadd.f32 %v12157, %v12205
        %12207 = vdwg.mxu0
        %12224 = vrot.lane.b32.xlu0 %v12169, 120
        %v12225 = vpop.permute.xlu0 %12224
        %12226 = vrot.lane.b32.xlu0 %v12171, 120
        %v12227 = vpop.permute.xlu0 %12226
        %12228 = vrot.lane.b32.xlu0 %v12174, 120
        %v12229 = vpop.permute.xlu0 %12228
        %12230 = vrot.lane.b32.xlu0 %v12176, 120
        %v12231 = vpop.permute.xlu0 %12230
        %12232 = vrot.lane.b32.xlu0 %v12179, 120
        %v12233 = vpop.permute.xlu0 %12232
        %12234 = vrot.lane.b32.xlu0 %v12181, 120
        %v12235 = vpop.permute.xlu0 %12234
        %12236 = vrot.lane.b32.xlu0 %v12184, 120
        %v12237 = vpop.permute.xlu0 %12236
        %12238 = vrot.lane.b32.xlu0 %v12186, 120
        %v12239 = vpop.permute.xlu0 %12238
        %12240 = vrot.lane.b32.xlu0 %v12189, 120
        %v12241 = vpop.permute.xlu0 %12240
        %12242 = vrot.lane.b32.xlu0 %v12191, 120
        %v12243 = vpop.permute.xlu0 %12242
        %12244 = vrot.lane.b32.xlu0 %v12194, 120
        %v12245 = vpop.permute.xlu0 %12244
        %12246 = vrot.lane.b32.xlu0 %v12196, 120
        %v12247 = vpop.permute.xlu0 %12246
        %12248 = vrot.lane.b32.xlu0 %v12199, 120
        %v12249 = vpop.permute.xlu0 %12248
        %12250 = vrot.lane.b32.xlu0 %v12201, 120
        %v12251 = vpop.permute.xlu0 %12250
        %12252 = vrot.lane.b32.xlu0 %v12204, 120
        %v12253 = vpop.permute.xlu0 %12252
        %12254 = vrot.lane.b32.xlu0 %v12206, 120
        %v12255 = vpop.permute.xlu0 %12254
        %vm12272 = vcmask 64512
        %v12273 = vsel %vm12272, %v12225, 0.0
        %12274 = vadd.xlane.f32.xlu0 %v12273
        %v12275 = vpop.xlane.xlu0 %12274
        %v12276 = vsel %vm12272, %v12227, 0.0
        %12277 = vadd.xlane.f32.xlu0 %v12276
        %v12278 = vpop.xlane.xlu0 %12277
        %v12279 = vsel %vm12272, %v12229, 0.0
        %12280 = vadd.xlane.f32.xlu0 %v12279
        %v12281 = vpop.xlane.xlu0 %12280
        %v12282 = vsel %vm12272, %v12231, 0.0
        %12283 = vadd.xlane.f32.xlu0 %v12282
        %v12284 = vpop.xlane.xlu0 %12283
        %v12285 = vsel %vm12272, %v12233, 0.0
        %12286 = vadd.xlane.f32.xlu0 %v12285
        %v12287 = vpop.xlane.xlu0 %12286
        %v12288 = vsel %vm12272, %v12235, 0.0
        %12289 = vadd.xlane.f32.xlu0 %v12288
        %v12290 = vpop.xlane.xlu0 %12289
        %v12291 = vsel %vm12272, %v12237, 0.0
        %12292 = vadd.xlane.f32.xlu0 %v12291
        %v12293 = vpop.xlane.xlu0 %12292
        %v12294 = vsel %vm12272, %v12239, 0.0
        %12295 = vadd.xlane.f32.xlu0 %v12294
        %v12296 = vpop.xlane.xlu0 %12295
        %v12297 = vsel %vm12272, %v12241, 0.0
        %12298 = vadd.xlane.f32.xlu0 %v12297
        %v12299 = vpop.xlane.xlu0 %12298
        %v12300 = vsel %vm12272, %v12243, 0.0
        %12301 = vadd.xlane.f32.xlu0 %v12300
        %v12302 = vpop.xlane.xlu0 %12301
        %v12303 = vsel %vm12272, %v12245, 0.0
        %12304 = vadd.xlane.f32.xlu0 %v12303
        %v12305 = vpop.xlane.xlu0 %12304
        %v12306 = vsel %vm12272, %v12247, 0.0
        %12307 = vadd.xlane.f32.xlu0 %v12306
        %v12308 = vpop.xlane.xlu0 %12307
        %v12309 = vsel %vm12272, %v12249, 0.0
        %12310 = vadd.xlane.f32.xlu0 %v12309
        %v12311 = vpop.xlane.xlu0 %12310
        %v12312 = vsel %vm12272, %v12251, 0.0
        %12313 = vadd.xlane.f32.xlu0 %v12312
        %v12314 = vpop.xlane.xlu0 %12313
        %v12315 = vsel %vm12272, %v12253, 0.0
        %12316 = vadd.xlane.f32.xlu0 %v12315
        %v12317 = vpop.xlane.xlu0 %12316
        %v12318 = vsel %vm12272, %v12255, 0.0
        %12319 = vadd.xlane.f32.xlu0 %v12318
        %v12320 = vpop.xlane.xlu0 %12319
        %v12321 = vmul.f32 %v12275, 0.125
        %v12322 = vmul.f32 %v12278, 0.125
        %v12323 = vmul.f32 %v12281, 0.125
        %v12324 = vmul.f32 %v12284, 0.125
        %v12325 = vmul.f32 %v12287, 0.125
        %v12326 = vmul.f32 %v12290, 0.125
        %v12327 = vmul.f32 %v12293, 0.125
        %v12328 = vmul.f32 %v12296, 0.125
        %v12329 = vmul.f32 %v12299, 0.125
        %v12330 = vmul.f32 %v12302, 0.125
        %v12331 = vmul.f32 %v12305, 0.125
        %v12332 = vmul.f32 %v12308, 0.125
        %v12333 = vmul.f32 %v12311, 0.125
        %v12334 = vmul.f32 %v12314, 0.125
        %v12335 = vmul.f32 %v12317, 0.125
        %v12336 = vmul.f32 %v12320, 0.125
        %v12337 = vadd.f32 %v12169, %v12225
        %v12338 = vadd.f32 %v12171, %v12227
        %v12339 = vadd.f32 %v12174, %v12229
        %v12340 = vadd.f32 %v12176, %v12231
        %v12341 = vadd.f32 %v12179, %v12233
        %v12342 = vadd.f32 %v12181, %v12235
        %v12343 = vadd.f32 %v12184, %v12237
        %v12344 = vadd.f32 %v12186, %v12239
        %v12345 = vadd.f32 %v12189, %v12241
        %v12346 = vadd.f32 %v12191, %v12243
        %v12347 = vadd.f32 %v12194, %v12245
        %v12348 = vadd.f32 %v12196, %v12247
        %v12349 = vadd.f32 %v12199, %v12249
        %v12350 = vadd.f32 %v12201, %v12251
        %v12351 = vadd.f32 %v12204, %v12253
        %v12352 = vadd.f32 %v12206, %v12255
        %v12353 = vsub.f32 %v12337, %v12321
        %v12354 = vsub.f32 %v12338, %v12322
        %v12355 = vsub.f32 %v12339, %v12323
        %v12356 = vsub.f32 %v12340, %v12324
        %v12357 = vsub.f32 %v12341, %v12325
        %v12358 = vsub.f32 %v12342, %v12326
        %v12359 = vsub.f32 %v12343, %v12327
        %v12360 = vsub.f32 %v12344, %v12328
        %v12361 = vsub.f32 %v12345, %v12329
        %v12362 = vsub.f32 %v12346, %v12330
        %v12363 = vsub.f32 %v12347, %v12331
        %v12364 = vsub.f32 %v12348, %v12332
        %v12365 = vsub.f32 %v12349, %v12333
        %v12366 = vsub.f32 %v12350, %v12334
        %v12367 = vsub.f32 %v12351, %v12335
        %v12368 = vsub.f32 %v12352, %v12336
        %12369 = vst.msk [vmem:[%s650] sm:$0xff] %vm12272, %v12353
        %12370 = vst.msk [vmem:[%s650 + $0x8] sm:$0xff] %vm12272, %v12354
        %12371 = vst.msk [vmem:[%s650 + $0x10] sm:$0xff] %vm12272, %v12355
        %12372 = vst.msk [vmem:[%s650 + $0x18] sm:$0xff] %vm12272, %v12356
        %12373 = vst.msk [vmem:[%s650 + $0x20] sm:$0xff] %vm12272, %v12357
        %12374 = vst.msk [vmem:[%s650 + $0x28] sm:$0xff] %vm12272, %v12358
        %12375 = vst.msk [vmem:[%s650 + $0x30] sm:$0xff] %vm12272, %v12359
        %12376 = vst.msk [vmem:[%s650 + $0x38] sm:$0xff] %vm12272, %v12360
        %12377 = vst.msk [vmem:[%s650 + $0x40] sm:$0xff] %vm12272, %v12361
        %12378 = vst.msk [vmem:[%s650 + $0x48] sm:$0xff] %vm12272, %v12362
        %12379 = vst.msk [vmem:[%s650 + $0x50] sm:$0xff] %vm12272, %v12363
        %12380 = vst.msk [vmem:[%s650 + $0x58] sm:$0xff] %vm12272, %v12364
        %12381 = vst.msk [vmem:[%s650 + $0x60] sm:$0xff] %vm12272, %v12365
        %12382 = vst.msk [vmem:[%s650 + $0x68] sm:$0xff] %vm12272, %v12366
        %12383 = vst.msk [vmem:[%s650 + $0x70] sm:$0xff] %vm12272, %v12367
        %12384 = vst.msk [vmem:[%s650 + $0x78] sm:$0xff] %vm12272, %v12368
        %s12385 = smul.u32 16, %s32
        %p12386 = scmp.lt.s32.totalorder %s12385, 31
        %s12387 = scalar_select %p12386, %s12385, 31
        %s12388 = smul.addr %s12387, 8
        %s12389 = scalar_lea.vmem %s17, %s12388
        // Predicated region
        $region113: #{tpu_custom_call.1} parent=87 // pred_check
          %p12390 = pneg %p412
        $region114: #{tpu_custom_call.1} parent=87 // pred_check_branch
          %12392 = sbr.rel (%p12390) target = $region116
        $region115: #{tpu_custom_call.1} parent=87 // pred_region
          %s12393 = smul.u32 16, %s32
        $region116: #{tpu_custom_call.1} parent=87 // pred_fallthru
          _
      $region88: #{tpu_custom_call.1} parent=5 // pred_fallthru
        _
      %p12394 = scmp.le.s32.totalorder 2, %s27
      // Predicated region
      $region117: #{tpu_custom_call.1} parent=5 // pred_check
        %p12395 = pneg %p12394
      $region118: #{tpu_custom_call.1} parent=5 // pred_check_branch
        %12397 = sbr.rel (%p12395) target = $region120
      $region119: #{tpu_custom_call.1} parent=5 // pred_region
        %s12398 = ssub.s32 %s27, 2
        // Predicated region
        $region121: #{tpu_custom_call.1} parent=119 // pred_check
          %p12399 = pneg %p418
        $region122: #{tpu_custom_call.1} parent=119 // pred_check_branch
          %12401 = sbr.rel (%p12399) target = $region124
        $region123: #{tpu_custom_call.1} parent=119 // pred_region
          %s12402 = smul.u32 16, %s33
          %p12403 = scmp.lt.s32.totalorder %s12402, 31
          %s12404 = scalar_select %p12403, %s12402, 31
          %s12405 = smul.addr %s12404, 8
          %s12406 = scalar_lea.vmem %s17, %s12405
        $region124: #{tpu_custom_call.1} parent=119 // pred_fallthru
          _
      $region120: #{tpu_custom_call.1} parent=5 // pred_fallthru
        _
    $region6: #{tpu_custom_call.1} parent=1 // loop_footer
      %s31 = sadd.s32 1, %s27
    $region7: #{tpu_custom_call.1} parent=1 // loop_footer_branch
      %26 = sbr.rel target = $region3
    $region8: #{tpu_custom_call.1} parent=1 // loop_exit
      _
    %12407 = vsyncpa [#allocation3], 1
    %s12408 = scalar_lea.sflag [#allocation3], 1
    %12409 = vsyncpa %s12408, 1
    %12410 = vsyncpa [#allocation5], 1
    %12411 = vsyncpa [#allocation8], 1
    %12412 = vsyncpa [#allocation11], 1

</llo_original>
